<compile_context>
chip_gen: v7x
topology: tpu7x:2x2x1
jax: 0.10.0
libtpu: 0.0.40
codegen_flags: <defaults>
</compile_context>

<pallas_src>
import functools
import math

import jax
import jax.numpy as jnp
from jax import lax
from jax.experimental import pallas as pl
from jax.experimental.pallas import tpu as pltpu

_MASK_MIN = float(jnp.finfo(jnp.float32).min)   # mirrors torch.finfo(f32).min
_GELU_C = 0.7978845608028654                    # sqrt(2/pi)


# --------------------------------------------------------------------------- #
# Helpers
# --------------------------------------------------------------------------- #
@functools.lru_cache(maxsize=None)
def _vmem_limit_bytes():
    """Derive a scoped-VMEM budget from the actual chip (v7x has 64 MiB)."""
    try:
        info = pltpu.get_tpu_info()
        cap = int(getattr(info, "vmem_capacity_bytes", 128 * 1024 * 1024))
    except Exception:
        cap = 128 * 1024 * 1024
    return int(max(16 * 1024 * 1024, min(cap // 2, 64 * 1024 * 1024)))


def _pick_seq_tile(s, target=256):
    """Largest row tile <= target that divides s (multiple of 8 unless == s)."""
    if s <= target:
        return s
    best = None
    for t in range(8, target + 1, 8):
        if s % t == 0:
            best = t
    return best if best is not None else s


# --------------------------------------------------------------------------- #
# Fused multi-head attention + residual + LayerNorm kernel
# --------------------------------------------------------------------------- #
def _attn_ln_kernel(*refs, num_heads, causal, self_attn, seq_tile, eps,
                    compute_dtype):
    if self_attn:
        (x_ref, pad_ref,
         wq_ref, wk_ref, wv_ref, wo_ref,
         bq_ref, bk_ref, bv_ref, bo_ref,
         g_ref, be_ref, out_ref, attw_ref) = refs
        xkv = x_ref[0]                                   # (Sk, D) bf16, full seq
        if seq_tile == x_ref.shape[1]:
            xq = xkv                                     # single q tile == full x
        else:
            q0 = pl.multiple_of(pl.program_id(1) * seq_tile, seq_tile)
            xq = x_ref[0, pl.ds(q0, seq_tile), :]        # (tq, D)
    else:
        (xq_ref, kv_ref, pad_ref,
         wq_ref, wk_ref, wv_ref, wo_ref,
         bq_ref, bk_ref, bv_ref, bo_ref,
         g_ref, be_ref, out_ref, attw_ref) = refs
        xq = xq_ref[0]                                   # (tq, D)
        xkv = kv_ref[0]                                  # (Sk, D)

    cd = compute_dtype

    # Full-width projections for ALL heads at once: (S, D) @ (D, D) on the MXU,
    # f32 accumulation, f32 bias add.  Weights are grid-resident (constant maps).
    q_all = jnp.dot(xq, wq_ref[...],
                    preferred_element_type=jnp.float32) + bq_ref[...]
    k_all = jnp.dot(xkv, wk_ref[...],
                    preferred_element_type=jnp.float32) + bk_ref[...]
    v_all = jnp.dot(xkv, wv_ref[...],
                    preferred_element_type=jnp.float32) + bv_ref[...]

    d_model = q_all.shape[-1]
    tq = q_all.shape[0]
    sk = k_all.shape[0]
    d_k = d_model // num_heads
    scale = 1.0 / math.sqrt(d_k)

    # Additive bias: tiny (1, Sk) padding bias DMA'd from HBM; causal mask is
    # built in-kernel (zero HBM traffic for the look-ahead mask).
    bias = pad_ref[0]                                    # (1, Sk) f32
    if causal:
        q0_idx = pl.program_id(1) * seq_tile
        rows = q0_idx + lax.broadcasted_iota(jnp.int32, (tq, sk), 0)
        cols = lax.broadcasted_iota(jnp.int32, (tq, sk), 1)
        bias = bias + jnp.where(cols <= rows, 0.0, _MASK_MIN).astype(jnp.float32)
    # TODO(synk): a fully-masked key row would give exp(-inf - (-inf)) = NaN;
    #             the model's masks never produce one, matching torch behavior.

    # TODO(synk): per-head loop underfills the 256-deep MXU for small d_k;
    #             head-batched dot_general / head packing left for future work.
    ctxs = []
    for h in range(num_heads):                           # static unroll
        sl = slice(h * d_k, (h + 1) * d_k)
        qh = q_all[:, sl].astype(cd)
        kh = k_all[:, sl].astype(cd)
        vh = v_all[:, sl].astype(cd)

        s = jnp.einsum('qc,kc->qk', qh, kh,
                       preferred_element_type=jnp.float32) * scale + bias
        m = jnp.max(s, axis=-1, keepdims=True)
        p = jnp.exp(s - m)
        inv = pl.reciprocal(jnp.sum(p, axis=-1, keepdims=True), approx=True)
        w = p * inv                                      # (tq, Sk) f32
        # nn.Dropout on attention weights is identity in eval mode.
        attw_ref[0, h] = w.astype(attw_ref.dtype)
        ctxs.append(jnp.dot(w.astype(cd), vh,
                            preferred_element_type=jnp.float32))

    # Per-head contexts stay as values; ONE merged output projection.
    merged = jnp.concatenate(ctxs, axis=-1).astype(cd)   # (tq, D)
    attn = jnp.dot(merged, wo_ref[...],
                   preferred_element_type=jnp.float32) + bo_ref[...]

    # Fused residual add + LayerNorm epilogue (f32 math, bf16 store).
    y = attn + xq.astype(jnp.float32)
    mean = jnp.mean(y, axis=-1, keepdims=True)
    c = y - mean
    var = jnp.mean(c * c, axis=-1, keepdims=True)
    out_ref[0] = (c * lax.rsqrt(var + eps) * g_ref[...]
                  + be_ref[...]).astype(out_ref.dtype)


def attn_ln_forward(xq, xkv, pad_bias, p, gamma, beta, *, num_heads, eps,
                    causal, compute_dtype=jnp.bfloat16, attw_dtype=jnp.float32):
    """Fused MHA + residual + LayerNorm.

    xq: (B, Sq, D) bf16 query source (also the residual).
    xkv: (B, Sk, D) bf16 key/value source, or None for self-attention
         (then xq is DMA'd once and reused for Q/K/V).
    pad_bias: (B, 1, Sk) f32 additive padding bias (0 or finfo.min).
    """
    self_attn = xkv is None
    B, Sq, D = xq.shape
    Sk = Sq if self_attn else xkv.shape[1]
    cd = compute_dtype
    tq = _pick_seq_tile(Sq)
    n_q = Sq // tq

    # Layout plumbing outside the kernel: pre-transpose + pre-cast weights once.
    wq_t = p['wq'].T.astype(cd)
    wk_t = p['wk'].T.astype(cd)
    wv_t = p['wv'].T.astype(cd)
    wo_t = p['wo'].T.astype(cd)
    bq = p['bq'].reshape(1, D).astype(jnp.float32)
    bk = p['bk'].reshape(1, D).astype(jnp.float32)
    bv = p['bv'].reshape(1, D).astype(jnp.float32)
    bo = p['bo'].reshape(1, D).astype(jnp.float32)
    g = gamma.reshape(1, D).astype(jnp.float32)
    bt = beta.reshape(1, D).astype(jnp.float32)

    w_spec = pl.BlockSpec((D, D), lambda b, qi: (0, 0))       # grid-resident
    vec_spec = pl.BlockSpec((1, D), lambda b, qi: (0, 0))
    pad_spec = pl.BlockSpec((1, 1, Sk), lambda b, qi: (b, 0, 0))
    out_spec = pl.BlockSpec((1, tq, D), lambda b, qi: (b, qi, 0))
    attw_spec = pl.BlockSpec((1, num_heads, tq, Sk), lambda b, qi: (b, 0, qi, 0))

    if self_attn:
        act_specs = [pl.BlockSpec((1, Sq, D), lambda b, qi: (b, 0, 0))]
        act_args = [xq]
    else:
        act_specs = [pl.BlockSpec((1, tq, D), lambda b, qi: (b, qi, 0)),
                     pl.BlockSpec((1, Sk, D), lambda b, qi: (b, 0, 0))]
        act_args = [xq, xkv]

    kernel = functools.partial(_attn_ln_kernel, num_heads=num_heads,
                               causal=causal, self_attn=self_attn,
                               seq_tile=tq, eps=eps, compute_dtype=cd)
    fn = pl.pallas_call(
        kernel,
        out_shape=(jax.ShapeDtypeStruct((B, Sq, D), cd),
                   jax.ShapeDtypeStruct((B, num_heads, Sq, Sk), attw_dtype)),
        grid_spec=pltpu.PrefetchScalarGridSpec(
            num_scalar_prefetch=0,
            grid=(B, n_q),
            in_specs=act_specs + [pad_spec,
                                  w_spec, w_spec, w_spec, w_spec,
                                  vec_spec, vec_spec, vec_spec, vec_spec,
                                  vec_spec, vec_spec],
            out_specs=[out_spec, attw_spec]),
        compiler_params=pltpu.CompilerParams(
            dimension_semantics=("parallel", "parallel"),
            vmem_limit_bytes=_vmem_limit_bytes()),
    )
    return fn(*act_args, pad_bias, wq_t, wk_t, wv_t, wo_t,
              bq, bk, bv, bo, g, bt)


# --------------------------------------------------------------------------- #
# Fused feed-forward (fc1 -> GELU -> fc2) + residual + LayerNorm kernel
# --------------------------------------------------------------------------- #
def _ffn_ln_kernel(x_ref, w1_ref, b1_ref, w2_ref, b2_ref, g_ref, be_ref, o_ref,
                   *, eps, compute_dtype):
    cd = compute_dtype
    x = x_ref[0]                                         # (ts, D) bf16
    h = jnp.dot(x, w1_ref[...], preferred_element_type=jnp.float32) + b1_ref[...]
    # TODO(synk): tanh-approximate GELU; PyTorch nn.GELU() default is exact erf.
    h = 0.5 * h * (1.0 + jnp.tanh(_GELU_C * (h + 0.044715 * h * h * h)))
    o = jnp.dot(h.astype(cd), w2_ref[...],
                preferred_element_type=jnp.float32) + b2_ref[...]
    # Fused residual add + LayerNorm epilogue.
    y = o + x.astype(jnp.float32)
    mean = jnp.mean(y, axis=-1, keepdims=True)
    c = y - mean
    var = jnp.mean(c * c, axis=-1, keepdims=True)
    o_ref[0] = (c * lax.rsqrt(var + eps) * g_ref[...]
                + be_ref[...]).astype(o_ref.dtype)


def ffn_ln_forward(x, p, gamma, beta, *, eps, compute_dtype=jnp.bfloat16):
    B, S, D = x.shape
    d_ff = p['w1'].shape[0]
    cd = compute_dtype
    ts = _pick_seq_tile(S)

    w1_t = p['w1'].T.astype(cd)                          # (D, F)
    w2_t = p['w2'].T.astype(cd)                          # (F, D)
    b1 = p['b1'].reshape(1, d_ff).astype(jnp.float32)
    b2 = p['b2'].reshape(1, D).astype(jnp.float32)
    g = gamma.reshape(1, D).astype(jnp.float32)
    bt = beta.reshape(1, D).astype(jnp.float32)

    act = pl.BlockSpec((1, ts, D), lambda b, si: (b, si, 0))
    # TODO(synk): on v7x, single-buffer the grid-resident weight specs
    #             (pipeline_mode=pl.Buffered(1)) / tile d_ff if D*d_ff grows.
    fn = pl.pallas_call(
        functools.partial(_ffn_ln_kernel, eps=eps, compute_dtype=cd),
        out_shape=jax.ShapeDtypeStruct((B, S, D), cd),
        grid_spec=pltpu.PrefetchScalarGridSpec(
            num_scalar_prefetch=0,
            grid=(B, S // ts),
            in_specs=[act,
                      pl.BlockSpec((D, d_ff), lambda b, si: (0, 0)),
                      pl.BlockSpec((1, d_ff), lambda b, si: (0, 0)),
                      pl.BlockSpec((d_ff, D), lambda b, si: (0, 0)),
                      pl.BlockSpec((1, D), lambda b, si: (0, 0)),
                      pl.BlockSpec((1, D), lambda b, si: (0, 0)),
                      pl.BlockSpec((1, D), lambda b, si: (0, 0))],
            out_specs=act),
        compiler_params=pltpu.CompilerParams(
            dimension_semantics=("parallel", "parallel"),
            vmem_limit_bytes=_vmem_limit_bytes()),
    )
    return fn(x, w1_t, b1, w2_t, b2, g, bt)


# --------------------------------------------------------------------------- #
# Model composition (eval mode: dropout = identity)
# --------------------------------------------------------------------------- #
def transformer_forward(params, enc_input, dec_input, enc_pad_mask, *,
                        num_heads, compute_dtype=jnp.bfloat16,
                        attw_dtype=jnp.float32):
    cd = compute_dtype
    B, S_enc, _ = enc_input.shape
    S_dec = dec_input.shape[1]

    # Tiny (B,1,Sk) additive padding bias (0 or finfo.min); no (B,Sq,Sk) blow-up.
    pad_bias = jnp.where(enc_pad_mask > 0, 0.0,
                         _MASK_MIN).astype(jnp.float32)[:, None, :]
    zero_bias_dec = jnp.zeros((B, 1, S_dec), jnp.float32)

    # bf16 activations between kernels (f32 math inside each kernel).
    x = enc_input.astype(cd)
    enc_attws = []
    for lp in params['encoder']:
        # encoder: both LayerNorms use PyTorch default eps=1e-5
        x, w = attn_ln_forward(x, None, pad_bias, lp['self_attn'],
                               lp['ln1_g'], lp['ln1_b'],
                               num_heads=num_heads, eps=1e-5, causal=False,
                               compute_dtype=cd, attw_dtype=attw_dtype)
        x = ffn_ln_forward(x, lp['ffn'], lp['ln2_g'], lp['ln2_b'],
                           eps=1e-5, compute_dtype=cd)
        enc_attws.append(w)
    enc_out = x

    y = dec_input.astype(cd)
    dec_self_attws, dec_cross_attws = [], []
    for lp in params['decoder']:
        # decoder (matches spec): self_attn LN eps=1e-5 (default),
        # encoder_attn LN and final LN eps=1e-12 (TransformerDecoderLayer arg).
        y, sw = attn_ln_forward(y, None, zero_bias_dec, lp['self_attn'],
                                lp['ln1_g'], lp['ln1_b'],
                                num_heads=num_heads, eps=1e-5, causal=True,
                                compute_dtype=cd, attw_dtype=attw_dtype)
        y, cw = attn_ln_forward(y, enc_out, pad_bias, lp['cross_attn'],
                                lp['ln2_g'], lp['ln2_b'],
                                num_heads=num_heads, eps=1e-12, causal=False,
                                compute_dtype=cd, attw_dtype=attw_dtype)
        y = ffn_ln_forward(y, lp['ffn'], lp['ln3_g'], lp['ln3_b'],
                           eps=1e-12, compute_dtype=cd)
        dec_self_attws.append(sw)
        dec_cross_attws.append(cw)
    return enc_out, y, enc_attws, dec_self_attws, dec_cross_attws


# --------------------------------------------------------------------------- #
# Parameter init (mirrors torch nn.Linear / nn.LayerNorm shapes)
# --------------------------------------------------------------------------- #
def _init_linear(key, out_dim, in_dim):
    kw, kb = jax.random.split(key)
    bound = 1.0 / math.sqrt(in_dim)
    w = jax.random.uniform(kw, (out_dim, in_dim), jnp.float32, -bound, bound)
    b = jax.random.uniform(kb, (out_dim,), jnp.float32, -bound, bound)
    return w, b


def _init_attention(key, d_model):
    p = {}
    for name, k in zip(('q', 'k', 'v', 'o'), jax.random.split(key, 4)):
        w, b = _init_linear(k, d_model, d_model)
        p['w' + name], p['b' + name] = w, b
    return p


def _init_ln(key, d):
    kg, kb = jax.random.split(key)
    return (1.0 + 0.1 * jax.random.normal(kg, (d,), jnp.float32),
            0.1 * jax.random.normal(kb, (d,), jnp.float32))


def _init_encoder_layer(key, d_model, d_ff):
    k = jax.random.split(key, 5)
    w1, b1 = _init_linear(k[1], d_ff, d_model)
    w2, b2 = _init_linear(k[2], d_model, d_ff)
    g1, be1 = _init_ln(k[3], d_model)
    g2, be2 = _init_ln(k[4], d_model)
    return {'self_attn': _init_attention(k[0], d_model),
            'ffn': {'w1': w1, 'b1': b1, 'w2': w2, 'b2': b2},
            'ln1_g': g1, 'ln1_b': be1, 'ln2_g': g2, 'ln2_b': be2}


def _init_decoder_layer(key, d_model, d_ff):
    k = jax.random.split(key, 7)
    w1, b1 = _init_linear(k[2], d_ff, d_model)
    w2, b2 = _init_linear(k[3], d_model, d_ff)
    g1, be1 = _init_ln(k[4], d_model)
    g2, be2 = _init_ln(k[5], d_model)
    g3, be3 = _init_ln(k[6], d_model)
    return {'self_attn': _init_attention(k[0], d_model),
            'cross_attn': _init_attention(k[1], d_model),
            'ffn': {'w1': w1, 'b1': b1, 'w2': w2, 'b2': b2},
            'ln1_g': g1, 'ln1_b': be1, 'ln2_g': g2, 'ln2_b': be2,
            'ln3_g': g3, 'ln3_b': be3}


def init_transformer(key, num_layers, d_model, d_ff):
    ke, kd = jax.random.split(key)
    return {'encoder': [_init_encoder_layer(k, d_model, d_ff)
                        for k in jax.random.split(ke, num_layers)],
            'decoder': [_init_decoder_layer(k, d_model, d_ff)
                        for k in jax.random.split(kd, num_layers)]}


# --------------------------------------------------------------------------- #
# Pure-JAX reference with the SAME mixed-precision policy (bf16 matmul operands
# and bf16 inter-sublayer activations, f32 accumulation / softmax / LayerNorm),
# mirroring the PyTorch forward math.
# --------------------------------------------------------------------------- #
def _ref_attn_ln(xq, xkv, pad_bias_row, p, gamma, beta, num_heads, eps, causal, cd):
    B, Sq, D = xq.shape
    Sk = xkv.shape[1]
    dk = D // num_heads
    q = jnp.dot(xq, p['wq'].T.astype(cd),
                preferred_element_type=jnp.float32) + p['bq']
    k = jnp.dot(xkv, p['wk'].T.astype(cd),
                preferred_element_type=jnp.float32) + p['bk']
    v = jnp.dot(xkv, p['wv'].T.astype(cd),
                preferred_element_type=jnp.float32) + p['bv']

    def split(t, S):
        return t.reshape(B, S, num_heads, dk).transpose(0, 2, 1, 3)

    qh, kh, vh = split(q, Sq), split(k, Sk), split(v, Sk)
    s = jnp.einsum('bhqd,bhkd->bhqk', qh.astype(cd), kh.astype(cd),
                   preferred_element_type=jnp.float32) * (1.0 / math.sqrt(dk))
    bias = pad_bias_row[:, None, :, :]                   # (B,1,1,Sk)
    if causal:
        rows = jnp.arange(Sq)[:, None]
        cols = jnp.arange(Sk)[None, :]
        bias = bias + jnp.where(cols <= rows, 0.0,
                                _MASK_MIN)[None, None].astype(jnp.float32)
    s = s + bias
    m = jnp.max(s, axis=-1, keepdims=True)
    e = jnp.exp(s - m)
    w = e / jnp.sum(e, axis=-1, keepdims=True)
    ctx = jnp.einsum('bhqk,bhkd->bhqd', w.astype(cd), vh.astype(cd),
                     preferred_element_type=jnp.float32)
    merged = ctx.transpose(0, 2, 1, 3).reshape(B, Sq, D)
    out = jnp.dot(merged.astype(cd), p['wo'].T.astype(cd),
                  preferred_element_type=jnp.float32) + p['bo']
    y = out + xq.astype(jnp.float32)
    mean = jnp.mean(y, axis=-1, keepdims=True)
    c = y - mean
    var = jnp.mean(c * c, axis=-1, keepdims=True)
    y = c * lax.rsqrt(var + eps) * gamma + beta
    return y.astype(cd), w.astype(jnp.float32)


def _ref_ffn_ln(x, p, gamma, beta, eps, cd):
    h = jnp.dot(x, p['w1'].T.astype(cd),
                preferred_element_type=jnp.float32) + p['b1']
    h = 0.5 * h * (1.0 + jnp.tanh(_GELU_C * (h + 0.044715 * h * h * h)))
    o = jnp.dot(h.astype(cd), p['w2'].T.astype(cd),
                preferred_element_type=jnp.float32) + p['b2']
    y = o + x.astype(jnp.float32)
    mean = jnp.mean(y, axis=-1, keepdims=True)
    c = y - mean
    var = jnp.mean(c * c, axis=-1, keepdims=True)
    return (c * lax.rsqrt(var + eps) * gamma + beta).astype(cd)


def ref_transformer(params, enc_input, dec_input, enc_pad_mask, num_heads, cd):
    B, S_enc, _ = enc_input.shape
    S_dec = dec_input.shape[1]
    pad_bias = jnp.where(enc_pad_mask > 0, 0.0,
                         _MASK_MIN).astype(jnp.float32)[:, None, :]
    zero_bias_dec = jnp.zeros((B, 1, S_dec), jnp.float32)

    x = enc_input.astype(cd)
    enc_attws = []
    for lp in params['encoder']:
        x, w = _ref_attn_ln(x, x, pad_bias, lp['self_attn'],
                            lp['ln1_g'], lp['ln1_b'], num_heads, 1e-5, False, cd)
        x = _ref_ffn_ln(x, lp['ffn'], lp['ln2_g'], lp['ln2_b'], 1e-5, cd)
        enc_attws.append(w)
    enc_out = x

    y = dec_input.astype(cd)
    dsw, dcw = [], []
    for lp in params['decoder']:
        y, sw = _ref_attn_ln(y, y, zero_bias_dec, lp['self_attn'],
                             lp['ln1_g'], lp['ln1_b'], num_heads, 1e-5, True, cd)
        y, cw = _ref_attn_ln(y, enc_out, pad_bias, lp['cross_attn'],
                             lp['ln2_g'], lp['ln2_b'], num_heads, 1e-12, False, cd)
        y = _ref_ffn_ln(y, lp['ffn'], lp['ln3_g'], lp['ln3_b'], 1e-12, cd)
        dsw.append(sw)
        dcw.append(cw)
    return enc_out, y, enc_attws, dsw, dcw


# --------------------------------------------------------------------------- #
if __name__ == "__main__":
    B, S_enc, S_dec = 2, 8, 8
    d_model, num_heads, num_layers = 32, 4, 2
    d_ff = 4 * d_model
    compute_dtype = jnp.bfloat16   # bf16 matmul operands / activations, f32 accum

    root = jax.random.PRNGKey(0)
    kp, ke, kd = jax.random.split(root, 3)
    params = init_transformer(kp, num_layers, d_model, d_ff)

    enc_input = jax.random.normal(ke, (B, S_enc, d_model), jnp.float32)
    dec_input = jax.random.normal(kd, (B, S_dec, d_model), jnp.float32)
    # 1 = real token, 0 = padded (last two positions of batch element 1 padded)
    enc_pad_mask = jnp.array([[1] * S_enc,
                              [1] * (S_enc - 2) + [0, 0]], dtype=jnp.int32)

    fwd = jax.jit(functools.partial(transformer_forward,
                                    num_heads=num_heads,
                                    compute_dtype=compute_dtype))
    enc_out, dec_out, enc_w, dec_sw, dec_cw = jax.block_until_ready(
        fwd(params, enc_input, dec_input, enc_pad_mask))

    r_enc, r_dec, r_ew, r_sw, r_cw = ref_transformer(
        params, enc_input, dec_input, enc_pad_mask, num_heads, compute_dtype)

    assert enc_out.shape == (B, S_enc, d_model)
    assert dec_out.shape == (B, S_dec, d_model)
    assert len(enc_w) == num_layers
    assert enc_w[0].shape == (B, num_heads, S_enc, S_enc)
    assert dec_sw[0].shape == (B, num_heads, S_dec, S_dec)
    assert dec_cw[0].shape == (B, num_heads, S_dec, S_enc)

    def _close(a, b, atol=2e-2, rtol=2e-2):
        a = jnp.asarray(a, jnp.float32)
        b = jnp.asarray(b, jnp.float32)
        return bool(jnp.allclose(a, b, atol=atol, rtol=rtol)), \
            float(jnp.max(jnp.abs(a - b)))

    ok, err = _close(enc_out, r_enc)
    assert ok, f"encoder output mismatch, max |err| = {err}"
    ok, err = _close(dec_out, r_dec)
    assert ok, f"decoder output mismatch, max |err| = {err}"
    for got, want in zip(enc_w + dec_sw + dec_cw, r_ew + r_sw + r_cw):
        ok, err = _close(got, want)
        assert ok, f"attention weights mismatch, max |err| = {err}"

    print("KERNEL_OK")
</pallas_src>

<mosaic_0001>
module attributes {stable_mosaic.version = 11 : i64} {
  func.func @_attn_ln_kernel(%arg0: i32, %arg1: i32, %arg2: memref<1x8x32xbf16, #tpu.memory_space<vmem>>, %arg3: memref<1x1x8xf32, #tpu.memory_space<vmem>>, %arg4: memref<32x32xbf16, #tpu.memory_space<vmem>>, %arg5: memref<32x32xbf16, #tpu.memory_space<vmem>>, %arg6: memref<32x32xbf16, #tpu.memory_space<vmem>>, %arg7: memref<32x32xbf16, #tpu.memory_space<vmem>>, %arg8: memref<1x32xf32, #tpu.memory_space<vmem>>, %arg9: memref<1x32xf32, #tpu.memory_space<vmem>>, %arg10: memref<1x32xf32, #tpu.memory_space<vmem>>, %arg11: memref<1x32xf32, #tpu.memory_space<vmem>>, %arg12: memref<1x32xf32, #tpu.memory_space<vmem>>, %arg13: memref<1x32xf32, #tpu.memory_space<vmem>>, %arg14: memref<1x8x32xbf16, #tpu.memory_space<vmem>>, %arg15: memref<1x4x8x8xf32, #tpu.memory_space<vmem>>) attributes {dimension_semantics = [#tpu.dimension_semantics<parallel>, #tpu.dimension_semantics<parallel>], iteration_bounds = array<i64: 2, 1>, scalar_prefetch = 0 : i64, scratch_operands = 0 : i64, tpu.core_type = #tpu.core_type<tc>, window_params = [{transform_indices = @transform_0, window_bounds = array<i64: 1, 8, 32>}, {transform_indices = @transform_1, window_bounds = array<i64: 1, 1, 8>}, {pipeline_mode = #tpu.pipeline_mode<synchronous>, transform_indices = @transform_2, window_bounds = array<i64: 32, 32>}, {pipeline_mode = #tpu.pipeline_mode<synchronous>, transform_indices = @transform_3, window_bounds = array<i64: 32, 32>}, {pipeline_mode = #tpu.pipeline_mode<synchronous>, transform_indices = @transform_4, window_bounds = array<i64: 32, 32>}, {pipeline_mode = #tpu.pipeline_mode<synchronous>, transform_indices = @transform_5, window_bounds = array<i64: 32, 32>}, {pipeline_mode = #tpu.pipeline_mode<synchronous>, transform_indices = @transform_6, window_bounds = array<i64: 1, 32>}, {pipeline_mode = #tpu.pipeline_mode<synchronous>, transform_indices = @transform_7, window_bounds = array<i64: 1, 32>}, {pipeline_mode = #tpu.pipeline_mode<synchronous>, transform_indices = @transform_8, window_bounds = array<i64: 1, 32>}, {pipeline_mode = #tpu.pipeline_mode<synchronous>, transform_indices = @transform_9, window_bounds = array<i64: 1, 32>}, {pipeline_mode = #tpu.pipeline_mode<synchronous>, transform_indices = @transform_10, window_bounds = array<i64: 1, 32>}, {pipeline_mode = #tpu.pipeline_mode<synchronous>, transform_indices = @transform_11, window_bounds = array<i64: 1, 32>}, {transform_indices = @transform_12, window_bounds = array<i64: 1, 8, 32>}, {transform_indices = @transform_13, window_bounds = array<i64: 1, 4, 8, 8>}]} {
    %c0 = arith.constant 0 : index
    %c0_0 = arith.constant 0 : index
    %c0_1 = arith.constant 0 : index
    %0 = vector.load %arg2[%c0, %c0_0, %c0_1] : memref<1x8x32xbf16, #tpu.memory_space<vmem>>, vector<1x8x32xbf16>
    %1 = vector.shape_cast %0 : vector<1x8x32xbf16> to vector<8x32xbf16>
    %c0_2 = arith.constant 0 : index
    %c0_3 = arith.constant 0 : index
    %2 = vector.load %arg4[%c0_2, %c0_3] : memref<32x32xbf16, #tpu.memory_space<vmem>>, vector<32x32xbf16>
    %cst = arith.constant dense<0.000000e+00> : vector<8x32xf32>
    %3 = tpu.matmul %1, %2, %cst {dimension_numbers = #tpu.dot_dimension_numbers<[1], [0], [0], [1], [0, 0, 1, 1], [], []>} : vector<8x32xbf16>, vector<32x32xbf16>, vector<8x32xf32> -> vector<8x32xf32>
    %c0_4 = arith.constant 0 : index
    %c0_5 = arith.constant 0 : index
    %4 = vector.load %arg8[%c0_4, %c0_5] : memref<1x32xf32, #tpu.memory_space<vmem>>, vector<1x32xf32>
    %5 = vector.broadcast %4 : vector<1x32xf32> to vector<8x32xf32>
    %6 = arith.addf %3, %5 : vector<8x32xf32>
    %c0_6 = arith.constant 0 : index
    %c0_7 = arith.constant 0 : index
    %7 = vector.load %arg5[%c0_6, %c0_7] : memref<32x32xbf16, #tpu.memory_space<vmem>>, vector<32x32xbf16>
    %cst_8 = arith.constant dense<0.000000e+00> : vector<8x32xf32>
    %8 = tpu.matmul %1, %7, %cst_8 {dimension_numbers = #tpu.dot_dimension_numbers<[1], [0], [0], [1], [0, 0, 1, 1], [], []>} : vector<8x32xbf16>, vector<32x32xbf16>, vector<8x32xf32> -> vector<8x32xf32>
    %c0_9 = arith.constant 0 : index
    %c0_10 = arith.constant 0 : index
    %9 = vector.load %arg9[%c0_9, %c0_10] : memref<1x32xf32, #tpu.memory_space<vmem>>, vector<1x32xf32>
    %10 = vector.broadcast %9 : vector<1x32xf32> to vector<8x32xf32>
    %11 = arith.addf %8, %10 : vector<8x32xf32>
    %c0_11 = arith.constant 0 : index
    %c0_12 = arith.constant 0 : index
    %12 = vector.load %arg6[%c0_11, %c0_12] : memref<32x32xbf16, #tpu.memory_space<vmem>>, vector<32x32xbf16>
    %cst_13 = arith.constant dense<0.000000e+00> : vector<8x32xf32>
    %13 = tpu.matmul %1, %12, %cst_13 {dimension_numbers = #tpu.dot_dimension_numbers<[1], [0], [0], [1], [0, 0, 1, 1], [], []>} : vector<8x32xbf16>, vector<32x32xbf16>, vector<8x32xf32> -> vector<8x32xf32>
    %c0_14 = arith.constant 0 : index
    %c0_15 = arith.constant 0 : index
    %14 = vector.load %arg10[%c0_14, %c0_15] : memref<1x32xf32, #tpu.memory_space<vmem>>, vector<1x32xf32>
    %15 = vector.broadcast %14 : vector<1x32xf32> to vector<8x32xf32>
    %16 = arith.addf %13, %15 : vector<8x32xf32>
    %c0_16 = arith.constant 0 : index
    %c0_17 = arith.constant 0 : index
    %c0_18 = arith.constant 0 : index
    %17 = vector.load %arg3[%c0_16, %c0_17, %c0_18] : memref<1x1x8xf32, #tpu.memory_space<vmem>>, vector<1x1x8xf32>
    %18 = vector.shape_cast %17 : vector<1x1x8xf32> to vector<1x8xf32>
    %19 = vector.extract_strided_slice %6 {offsets = [0, 0], sizes = [8, 8], strides = [1, 1]} : vector<8x32xf32> to vector<8x8xf32>
    %20 = arith.truncf %19 : vector<8x8xf32> to vector<8x8xbf16>
    %21 = vector.extract_strided_slice %11 {offsets = [0, 0], sizes = [8, 8], strides = [1, 1]} : vector<8x32xf32> to vector<8x8xf32>
    %22 = arith.truncf %21 : vector<8x8xf32> to vector<8x8xbf16>
    %23 = vector.extract_strided_slice %16 {offsets = [0, 0], sizes = [8, 8], strides = [1, 1]} : vector<8x32xf32> to vector<8x8xf32>
    %24 = arith.truncf %23 : vector<8x8xf32> to vector<8x8xbf16>
    "tpu.trace_start"() <{level = 10 : i32, message = "qc,kc->qk"}> : () -> ()
    %cst_19 = arith.constant dense<0.000000e+00> : vector<8x8xf32>
    %25 = tpu.matmul %20, %22, %cst_19 {dimension_numbers = #tpu.dot_dimension_numbers<[1], [1], [0], [0], [0, 0, 1, 0], [], []>} : vector<8x8xbf16>, vector<8x8xbf16>, vector<8x8xf32> -> vector<8x8xf32>
    "tpu.trace_stop"() : () -> ()
    %cst_20 = arith.constant 0.353553385 : f32
    %26 = vector.broadcast %cst_20 : f32 to vector<8x8xf32>
    %27 = arith.mulf %25, %26 : vector<8x8xf32>
    %28 = vector.broadcast %18 : vector<1x8xf32> to vector<8x8xf32>
    %29 = arith.addf %27, %28 : vector<8x8xf32>
    %cst_21 = arith.constant dense<0xFF800000> : vector<8xf32>
    %30 = vector.multi_reduction <maximumf>, %29, %cst_21 [1] : vector<8x8xf32> to vector<8xf32>
    %31 = vector.shape_cast %30 : vector<8xf32> to vector<8x1xf32>
    %32 = vector.broadcast %31 : vector<8x1xf32> to vector<8x8xf32>
    %33 = arith.subf %29, %32 : vector<8x8xf32>
    %34 = math.exp %33 : vector<8x8xf32>
    %cst_22 = arith.constant dense<0.000000e+00> : vector<8xf32>
    %35 = vector.multi_reduction <add>, %34, %cst_22 [1] : vector<8x8xf32> to vector<8xf32>
    %36 = vector.shape_cast %35 : vector<8xf32> to vector<8x1xf32>
    %37 = tpu.reciprocal %36 {approx = true} : vector<8x1xf32> -> vector<8x1xf32>
    %38 = vector.broadcast %37 : vector<8x1xf32> to vector<8x8xf32>
    %39 = arith.mulf %34, %38 : vector<8x8xf32>
    %c0_23 = arith.constant 0 : index
    %c0_24 = arith.constant 0 : index
    %c0_25 = arith.constant 0 : index
    %c0_26 = arith.constant 0 : index
    %40 = vector.load %arg15[%c0_23, %c0_24, %c0_25, %c0_26] : memref<1x4x8x8xf32, #tpu.memory_space<vmem>>, vector<1x1x8x8xf32>
    %41 = vector.shape_cast %40 : vector<1x1x8x8xf32> to vector<8x8xf32>
    %42 = vector.shape_cast %39 : vector<8x8xf32> to vector<1x1x8x8xf32>
    tpu.vector_store %arg15[%c0_23, %c0_24, %c0_25, %c0_26], %42 {strides = array<i32>} : memref<1x4x8x8xf32, #tpu.memory_space<vmem>>, vector<1x1x8x8xf32>,
    %43 = arith.truncf %39 : vector<8x8xf32> to vector<8x8xbf16>
    %cst_27 = arith.constant dense<0.000000e+00> : vector<8x8xf32>
    %44 = tpu.matmul %43, %24, %cst_27 {dimension_numbers = #tpu.dot_dimension_numbers<[1], [0], [0], [1], [0, 0, 1, 1], [], []>} : vector<8x8xbf16>, vector<8x8xbf16>, vector<8x8xf32> -> vector<8x8xf32>
    %45 = vector.extract_strided_slice %6 {offsets = [0, 8], sizes = [8, 8], strides = [1, 1]} : vector<8x32xf32> to vector<8x8xf32>
    %46 = arith.truncf %45 : vector<8x8xf32> to vector<8x8xbf16>
    %47 = vector.extract_strided_slice %11 {offsets = [0, 8], sizes = [8, 8], strides = [1, 1]} : vector<8x32xf32> to vector<8x8xf32>
    %48 = arith.truncf %47 : vector<8x8xf32> to vector<8x8xbf16>
    %49 = vector.extract_strided_slice %16 {offsets = [0, 8], sizes = [8, 8], strides = [1, 1]} : vector<8x32xf32> to vector<8x8xf32>
    %50 = arith.truncf %49 : vector<8x8xf32> to vector<8x8xbf16>
    "tpu.trace_start"() <{level = 10 : i32, message = "qc,kc->qk"}> : () -> ()
    %cst_28 = arith.constant dense<0.000000e+00> : vector<8x8xf32>
    %51 = tpu.matmul %46, %48, %cst_28 {dimension_numbers = #tpu.dot_dimension_numbers<[1], [1], [0], [0], [0, 0, 1, 0], [], []>} : vector<8x8xbf16>, vector<8x8xbf16>, vector<8x8xf32> -> vector<8x8xf32>
    "tpu.trace_stop"() : () -> ()
    %cst_29 = arith.constant 0.353553385 : f32
    %52 = vector.broadcast %cst_29 : f32 to vector<8x8xf32>
    %53 = arith.mulf %51, %52 : vector<8x8xf32>
    %54 = vector.broadcast %18 : vector<1x8xf32> to vector<8x8xf32>
    %55 = arith.addf %53, %54 : vector<8x8xf32>
    %cst_30 = arith.constant dense<0xFF800000> : vector<8xf32>
    %56 = vector.multi_reduction <maximumf>, %55, %cst_30 [1] : vector<8x8xf32> to vector<8xf32>
    %57 = vector.shape_cast %56 : vector<8xf32> to vector<8x1xf32>
    %58 = vector.broadcast %57 : vector<8x1xf32> to vector<8x8xf32>
    %59 = arith.subf %55, %58 : vector<8x8xf32>
    %60 = math.exp %59 : vector<8x8xf32>
    %cst_31 = arith.constant dense<0.000000e+00> : vector<8xf32>
    %61 = vector.multi_reduction <add>, %60, %cst_31 [1] : vector<8x8xf32> to vector<8xf32>
    %62 = vector.shape_cast %61 : vector<8xf32> to vector<8x1xf32>
    %63 = tpu.reciprocal %62 {approx = true} : vector<8x1xf32> -> vector<8x1xf32>
    %64 = vector.broadcast %63 : vector<8x1xf32> to vector<8x8xf32>
    %65 = arith.mulf %60, %64 : vector<8x8xf32>
    %c0_32 = arith.constant 0 : index
    %c1 = arith.constant 1 : index
    %c0_33 = arith.constant 0 : index
    %c0_34 = arith.constant 0 : index
    %66 = vector.load %arg15[%c0_32, %c1, %c0_33, %c0_34] : memref<1x4x8x8xf32, #tpu.memory_space<vmem>>, vector<1x1x8x8xf32>
    %67 = vector.shape_cast %66 : vector<1x1x8x8xf32> to vector<8x8xf32>
    %68 = vector.shape_cast %65 : vector<8x8xf32> to vector<1x1x8x8xf32>
    tpu.vector_store %arg15[%c0_32, %c1, %c0_33, %c0_34], %68 {strides = array<i32>} : memref<1x4x8x8xf32, #tpu.memory_space<vmem>>, vector<1x1x8x8xf32>,
    %69 = arith.truncf %65 : vector<8x8xf32> to vector<8x8xbf16>
    %cst_35 = arith.constant dense<0.000000e+00> : vector<8x8xf32>
    %70 = tpu.matmul %69, %50, %cst_35 {dimension_numbers = #tpu.dot_dimension_numbers<[1], [0], [0], [1], [0, 0, 1, 1], [], []>} : vector<8x8xbf16>, vector<8x8xbf16>, vector<8x8xf32> -> vector<8x8xf32>
    %71 = vector.extract_strided_slice %6 {offsets = [0, 16], sizes = [8, 8], strides = [1, 1]} : vector<8x32xf32> to vector<8x8xf32>
    %72 = arith.truncf %71 : vector<8x8xf32> to vector<8x8xbf16>
    %73 = vector.extract_strided_slice %11 {offsets = [0, 16], sizes = [8, 8], strides = [1, 1]} : vector<8x32xf32> to vector<8x8xf32>
    %74 = arith.truncf %73 : vector<8x8xf32> to vector<8x8xbf16>
    %75 = vector.extract_strided_slice %16 {offsets = [0, 16], sizes = [8, 8], strides = [1, 1]} : vector<8x32xf32> to vector<8x8xf32>
    %76 = arith.truncf %75 : vector<8x8xf32> to vector<8x8xbf16>
    "tpu.trace_start"() <{level = 10 : i32, message = "qc,kc->qk"}> : () -> ()
    %cst_36 = arith.constant dense<0.000000e+00> : vector<8x8xf32>
    %77 = tpu.matmul %72, %74, %cst_36 {dimension_numbers = #tpu.dot_dimension_numbers<[1], [1], [0], [0], [0, 0, 1, 0], [], []>} : vector<8x8xbf16>, vector<8x8xbf16>, vector<8x8xf32> -> vector<8x8xf32>
    "tpu.trace_stop"() : () -> ()
    %cst_37 = arith.constant 0.353553385 : f32
    %78 = vector.broadcast %cst_37 : f32 to vector<8x8xf32>
    %79 = arith.mulf %77, %78 : vector<8x8xf32>
    %80 = vector.broadcast %18 : vector<1x8xf32> to vector<8x8xf32>
    %81 = arith.addf %79, %80 : vector<8x8xf32>
    %cst_38 = arith.constant dense<0xFF800000> : vector<8xf32>
    %82 = vector.multi_reduction <maximumf>, %81, %cst_38 [1] : vector<8x8xf32> to vector<8xf32>
    %83 = vector.shape_cast %82 : vector<8xf32> to vector<8x1xf32>
    %84 = vector.broadcast %83 : vector<8x1xf32> to vector<8x8xf32>
    %85 = arith.subf %81, %84 : vector<8x8xf32>
    %86 = math.exp %85 : vector<8x8xf32>
    %cst_39 = arith.constant dense<0.000000e+00> : vector<8xf32>
    %87 = vector.multi_reduction <add>, %86, %cst_39 [1] : vector<8x8xf32> to vector<8xf32>
    %88 = vector.shape_cast %87 : vector<8xf32> to vector<8x1xf32>
    %89 = tpu.reciprocal %88 {approx = true} : vector<8x1xf32> -> vector<8x1xf32>
    %90 = vector.broadcast %89 : vector<8x1xf32> to vector<8x8xf32>
    %91 = arith.mulf %86, %90 : vector<8x8xf32>
    %c0_40 = arith.constant 0 : index
    %c2 = arith.constant 2 : index
    %c0_41 = arith.constant 0 : index
    %c0_42 = arith.constant 0 : index
    %92 = vector.load %arg15[%c0_40, %c2, %c0_41, %c0_42] : memref<1x4x8x8xf32, #tpu.memory_space<vmem>>, vector<1x1x8x8xf32>
    %93 = vector.shape_cast %92 : vector<1x1x8x8xf32> to vector<8x8xf32>
    %94 = vector.shape_cast %91 : vector<8x8xf32> to vector<1x1x8x8xf32>
    tpu.vector_store %arg15[%c0_40, %c2, %c0_41, %c0_42], %94 {strides = array<i32>} : memref<1x4x8x8xf32, #tpu.memory_space<vmem>>, vector<1x1x8x8xf32>,
    %95 = arith.truncf %91 : vector<8x8xf32> to vector<8x8xbf16>
    %cst_43 = arith.constant dense<0.000000e+00> : vector<8x8xf32>
    %96 = tpu.matmul %95, %76, %cst_43 {dimension_numbers = #tpu.dot_dimension_numbers<[1], [0], [0], [1], [0, 0, 1, 1], [], []>} : vector<8x8xbf16>, vector<8x8xbf16>, vector<8x8xf32> -> vector<8x8xf32>
    %97 = vector.extract_strided_slice %6 {offsets = [0, 24], sizes = [8, 8], strides = [1, 1]} : vector<8x32xf32> to vector<8x8xf32>
    %98 = arith.truncf %97 : vector<8x8xf32> to vector<8x8xbf16>
    %99 = vector.extract_strided_slice %11 {offsets = [0, 24], sizes = [8, 8], strides = [1, 1]} : vector<8x32xf32> to vector<8x8xf32>
    %100 = arith.truncf %99 : vector<8x8xf32> to vector<8x8xbf16>
    %101 = vector.extract_strided_slice %16 {offsets = [0, 24], sizes = [8, 8], strides = [1, 1]} : vector<8x32xf32> to vector<8x8xf32>
    %102 = arith.truncf %101 : vector<8x8xf32> to vector<8x8xbf16>
    "tpu.trace_start"() <{level = 10 : i32, message = "qc,kc->qk"}> : () -> ()
    %cst_44 = arith.constant dense<0.000000e+00> : vector<8x8xf32>
    %103 = tpu.matmul %98, %100, %cst_44 {dimension_numbers = #tpu.dot_dimension_numbers<[1], [1], [0], [0], [0, 0, 1, 0], [], []>} : vector<8x8xbf16>, vector<8x8xbf16>, vector<8x8xf32> -> vector<8x8xf32>
    "tpu.trace_stop"() : () -> ()
    %cst_45 = arith.constant 0.353553385 : f32
    %104 = vector.broadcast %cst_45 : f32 to vector<8x8xf32>
    %105 = arith.mulf %103, %104 : vector<8x8xf32>
    %106 = vector.broadcast %18 : vector<1x8xf32> to vector<8x8xf32>
    %107 = arith.addf %105, %106 : vector<8x8xf32>
    %cst_46 = arith.constant dense<0xFF800000> : vector<8xf32>
    %108 = vector.multi_reduction <maximumf>, %107, %cst_46 [1] : vector<8x8xf32> to vector<8xf32>
    %109 = vector.shape_cast %108 : vector<8xf32> to vector<8x1xf32>
    %110 = vector.broadcast %109 : vector<8x1xf32> to vector<8x8xf32>
    %111 = arith.subf %107, %110 : vector<8x8xf32>
    %112 = math.exp %111 : vector<8x8xf32>
    %cst_47 = arith.constant dense<0.000000e+00> : vector<8xf32>
    %113 = vector.multi_reduction <add>, %112, %cst_47 [1] : vector<8x8xf32> to vector<8xf32>
    %114 = vector.shape_cast %113 : vector<8xf32> to vector<8x1xf32>
    %115 = tpu.reciprocal %114 {approx = true} : vector<8x1xf32> -> vector<8x1xf32>
    %116 = vector.broadcast %115 : vector<8x1xf32> to vector<8x8xf32>
    %117 = arith.mulf %112, %116 : vector<8x8xf32>
    %c0_48 = arith.constant 0 : index
    %c3 = arith.constant 3 : index
    %c0_49 = arith.constant 0 : index
    %c0_50 = arith.constant 0 : index
    %118 = vector.load %arg15[%c0_48, %c3, %c0_49, %c0_50] : memref<1x4x8x8xf32, #tpu.memory_space<vmem>>, vector<1x1x8x8xf32>
    %119 = vector.shape_cast %118 : vector<1x1x8x8xf32> to vector<8x8xf32>
    %120 = vector.shape_cast %117 : vector<8x8xf32> to vector<1x1x8x8xf32>
    tpu.vector_store %arg15[%c0_48, %c3, %c0_49, %c0_50], %120 {strides = array<i32>} : memref<1x4x8x8xf32, #tpu.memory_space<vmem>>, vector<1x1x8x8xf32>,
    %121 = arith.truncf %117 : vector<8x8xf32> to vector<8x8xbf16>
    %cst_51 = arith.constant dense<0.000000e+00> : vector<8x8xf32>
    %122 = tpu.matmul %121, %102, %cst_51 {dimension_numbers = #tpu.dot_dimension_numbers<[1], [0], [0], [1], [0, 0, 1, 1], [], []>} : vector<8x8xbf16>, vector<8x8xbf16>, vector<8x8xf32> -> vector<8x8xf32>
    %123 = tpu.concatenate %44, %70, %96, %122 in 1 : vector<8x8xf32>, vector<8x8xf32>, vector<8x8xf32>, vector<8x8xf32> -> vector<8x32xf32>
    %124 = arith.truncf %123 : vector<8x32xf32> to vector<8x32xbf16>
    %c0_52 = arith.constant 0 : index
    %c0_53 = arith.constant 0 : index
    %125 = vector.load %arg7[%c0_52, %c0_53] : memref<32x32xbf16, #tpu.memory_space<vmem>>, vector<32x32xbf16>
    %cst_54 = arith.constant dense<0.000000e+00> : vector<8x32xf32>
    %126 = tpu.matmul %124, %125, %cst_54 {dimension_numbers = #tpu.dot_dimension_numbers<[1], [0], [0], [1], [0, 0, 1, 1], [], []>} : vector<8x32xbf16>, vector<32x32xbf16>, vector<8x32xf32> -> vector<8x32xf32>
    %c0_55 = arith.constant 0 : index
    %c0_56 = arith.constant 0 : index
    %127 = vector.load %arg11[%c0_55, %c0_56] : memref<1x32xf32, #tpu.memory_space<vmem>>, vector<1x32xf32>
    %128 = vector.broadcast %127 : vector<1x32xf32> to vector<8x32xf32>
    %129 = arith.addf %126, %128 : vector<8x32xf32>
    %130 = arith.extf %1 : vector<8x32xbf16> to vector<8x32xf32>
    %131 = arith.addf %129, %130 : vector<8x32xf32>
    %cst_57 = arith.constant dense<0.000000e+00> : vector<8xf32>
    %132 = vector.multi_reduction <add>, %131, %cst_57 [1] : vector<8x32xf32> to vector<8xf32>
    %133 = vector.shape_cast %132 : vector<8xf32> to vector<8x1xf32>
    %cst_58 = arith.constant 3.200000e+01 : f32
    %134 = vector.broadcast %cst_58 : f32 to vector<8x1xf32>
    %135 = arith.divf %133, %134 : vector<8x1xf32>
    %136 = vector.broadcast %135 : vector<8x1xf32> to vector<8x32xf32>
    %137 = arith.subf %131, %136 : vector<8x32xf32>
    %138 = arith.mulf %137, %137 : vector<8x32xf32>
    %cst_59 = arith.constant dense<0.000000e+00> : vector<8xf32>
    %139 = vector.multi_reduction <add>, %138, %cst_59 [1] : vector<8x32xf32> to vector<8xf32>
    %140 = vector.shape_cast %139 : vector<8xf32> to vector<8x1xf32>
    %cst_60 = arith.constant 3.200000e+01 : f32
    %141 = vector.broadcast %cst_60 : f32 to vector<8x1xf32>
    %142 = arith.divf %140, %141 : vector<8x1xf32>
    %cst_61 = arith.constant 9.99999974E-6 : f32
    %143 = vector.broadcast %cst_61 : f32 to vector<8x1xf32>
    %144 = arith.addf %142, %143 : vector<8x1xf32>
    %145 = math.rsqrt %144 : vector<8x1xf32>
    %146 = vector.broadcast %145 : vector<8x1xf32> to vector<8x32xf32>
    %147 = arith.mulf %137, %146 : vector<8x32xf32>
    %c0_62 = arith.constant 0 : index
    %c0_63 = arith.constant 0 : index
    %148 = vector.load %arg12[%c0_62, %c0_63] : memref<1x32xf32, #tpu.memory_space<vmem>>, vector<1x32xf32>
    %149 = vector.broadcast %148 : vector<1x32xf32> to vector<8x32xf32>
    %150 = arith.mulf %147, %149 : vector<8x32xf32>
    %c0_64 = arith.constant 0 : index
    %c0_65 = arith.constant 0 : index
    %151 = vector.load %arg13[%c0_64, %c0_65] : memref<1x32xf32, #tpu.memory_space<vmem>>, vector<1x32xf32>
    %152 = vector.broadcast %151 : vector<1x32xf32> to vector<8x32xf32>
    %153 = arith.addf %150, %152 : vector<8x32xf32>
    %154 = arith.truncf %153 : vector<8x32xf32> to vector<8x32xbf16>
    %c0_66 = arith.constant 0 : index
    %c0_67 = arith.constant 0 : index
    %c0_68 = arith.constant 0 : index
    %155 = vector.load %arg14[%c0_66, %c0_67, %c0_68] : memref<1x8x32xbf16, #tpu.memory_space<vmem>>, vector<1x8x32xbf16>
    %156 = vector.shape_cast %155 : vector<1x8x32xbf16> to vector<8x32xbf16>
    %157 = vector.shape_cast %154 : vector<8x32xbf16> to vector<1x8x32xbf16>
    tpu.vector_store %arg14[%c0_66, %c0_67, %c0_68], %157 {strides = array<i32>} : memref<1x8x32xbf16, #tpu.memory_space<vmem>>, vector<1x8x32xbf16>,
    return
  }
  func.func @transform_0(%arg0: i32, %arg1: i32) -> (i32, i32, i32) {
    %c0_i32 = arith.constant 0 : i32
    %c0_i32_0 = arith.constant 0 : i32
    %c0_i32_1 = arith.constant 0 : i32
    return %arg0, %c0_i32, %c0_i32_0 : i32, i32, i32
  }
  func.func @transform_1(%arg0: i32, %arg1: i32) -> (i32, i32, i32) {
    %c0_i32 = arith.constant 0 : i32
    %c0_i32_0 = arith.constant 0 : i32
    %c0_i32_1 = arith.constant 0 : i32
    return %arg0, %c0_i32, %c0_i32_0 : i32, i32, i32
  }
  func.func @transform_2(%arg0: i32, %arg1: i32) -> (i32, i32) {
    %c0_i32 = arith.constant 0 : i32
    %c0_i32_0 = arith.constant 0 : i32
    %c0_i32_1 = arith.constant 0 : i32
    return %c0_i32, %c0_i32_0 : i32, i32
  }
  func.func @transform_3(%arg0: i32, %arg1: i32) -> (i32, i32) {
    %c0_i32 = arith.constant 0 : i32
    %c0_i32_0 = arith.constant 0 : i32
    %c0_i32_1 = arith.constant 0 : i32
    return %c0_i32, %c0_i32_0 : i32, i32
  }
  func.func @transform_4(%arg0: i32, %arg1: i32) -> (i32, i32) {
    %c0_i32 = arith.constant 0 : i32
    %c0_i32_0 = arith.constant 0 : i32
    %c0_i32_1 = arith.constant 0 : i32
    return %c0_i32, %c0_i32_0 : i32, i32
  }
  func.func @transform_5(%arg0: i32, %arg1: i32) -> (i32, i32) {
    %c0_i32 = arith.constant 0 : i32
    %c0_i32_0 = arith.constant 0 : i32
    %c0_i32_1 = arith.constant 0 : i32
    return %c0_i32, %c0_i32_0 : i32, i32
  }
  func.func @transform_6(%arg0: i32, %arg1: i32) -> (i32, i32) {
    %c0_i32 = arith.constant 0 : i32
    %c0_i32_0 = arith.constant 0 : i32
    %c0_i32_1 = arith.constant 0 : i32
    return %c0_i32, %c0_i32_0 : i32, i32
  }
  func.func @transform_7(%arg0: i32, %arg1: i32) -> (i32, i32) {
    %c0_i32 = arith.constant 0 : i32
    %c0_i32_0 = arith.constant 0 : i32
    %c0_i32_1 = arith.constant 0 : i32
    return %c0_i32, %c0_i32_0 : i32, i32
  }
  func.func @transform_8(%arg0: i32, %arg1: i32) -> (i32, i32) {
    %c0_i32 = arith.constant 0 : i32
    %c0_i32_0 = arith.constant 0 : i32
    %c0_i32_1 = arith.constant 0 : i32
    return %c0_i32, %c0_i32_0 : i32, i32
  }
  func.func @transform_9(%arg0: i32, %arg1: i32) -> (i32, i32) {
    %c0_i32 = arith.constant 0 : i32
    %c0_i32_0 = arith.constant 0 : i32
    %c0_i32_1 = arith.constant 0 : i32
    return %c0_i32, %c0_i32_0 : i32, i32
  }
  func.func @transform_10(%arg0: i32, %arg1: i32) -> (i32, i32) {
    %c0_i32 = arith.constant 0 : i32
    %c0_i32_0 = arith.constant 0 : i32
    %c0_i32_1 = arith.constant 0 : i32
    return %c0_i32, %c0_i32_0 : i32, i32
  }
  func.func @transform_11(%arg0: i32, %arg1: i32) -> (i32, i32) {
    %c0_i32 = arith.constant 0 : i32
    %c0_i32_0 = arith.constant 0 : i32
    %c0_i32_1 = arith.constant 0 : i32
    return %c0_i32, %c0_i32_0 : i32, i32
  }
  func.func @transform_12(%arg0: i32, %arg1: i32) -> (i32, i32, i32) {
    %c0_i32 = arith.constant 0 : i32
    %c0_i32_0 = arith.constant 0 : i32
    return %arg0, %arg1, %c0_i32 : i32, i32, i32
  }
  func.func @transform_13(%arg0: i32, %arg1: i32) -> (i32, i32, i32, i32) {
    %c0_i32 = arith.constant 0 : i32
    %c0_i32_0 = arith.constant 0 : i32
    %c0_i32_1 = arith.constant 0 : i32
    return %arg0, %c0_i32, %arg1, %c0_i32_0 : i32, i32, i32, i32
  }
}

module attributes {stable_mosaic.version = 11 : i64} {
  func.func @_ffn_ln_kernel(%arg0: i32, %arg1: i32, %arg2: memref<1x8x32xbf16, #tpu.memory_space<vmem>>, %arg3: memref<32x128xbf16, #tpu.memory_space<vmem>>, %arg4: memref<1x128xf32, #tpu.memory_space<vmem>>, %arg5: memref<128x32xbf16, #tpu.memory_space<vmem>>, %arg6: memref<1x32xf32, #tpu.memory_space<vmem>>, %arg7: memref<1x32xf32, #tpu.memory_space<vmem>>, %arg8: memref<1x32xf32, #tpu.memory_space<vmem>>, %arg9: memref<1x8x32xbf16, #tpu.memory_space<vmem>>) attributes {dimension_semantics = [#tpu.dimension_semantics<parallel>, #tpu.dimension_semantics<parallel>], iteration_bounds = array<i64: 2, 1>, scalar_prefetch = 0 : i64, scratch_operands = 0 : i64, tpu.core_type = #tpu.core_type<tc>, window_params = [{transform_indices = @transform_0, window_bounds = array<i64: 1, 8, 32>}, {pipeline_mode = #tpu.pipeline_mode<synchronous>, transform_indices = @transform_1, window_bounds = array<i64: 32, 128>}, {pipeline_mode = #tpu.pipeline_mode<synchronous>, transform_indices = @transform_2, window_bounds = array<i64: 1, 128>}, {pipeline_mode = #tpu.pipeline_mode<synchronous>, transform_indices = @transform_3, window_bounds = array<i64: 128, 32>}, {pipeline_mode = #tpu.pipeline_mode<synchronous>, transform_indices = @transform_4, window_bounds = array<i64: 1, 32>}, {pipeline_mode = #tpu.pipeline_mode<synchronous>, transform_indices = @transform_5, window_bounds = array<i64: 1, 32>}, {pipeline_mode = #tpu.pipeline_mode<synchronous>, transform_indices = @transform_6, window_bounds = array<i64: 1, 32>}, {transform_indices = @transform_7, window_bounds = array<i64: 1, 8, 32>}]} {
    %c0 = arith.constant 0 : index
    %c0_0 = arith.constant 0 : index
    %c0_1 = arith.constant 0 : index
    %0 = vector.load %arg2[%c0, %c0_0, %c0_1] : memref<1x8x32xbf16, #tpu.memory_space<vmem>>, vector<1x8x32xbf16>
    %1 = vector.shape_cast %0 : vector<1x8x32xbf16> to vector<8x32xbf16>
    %c0_2 = arith.constant 0 : index
    %c0_3 = arith.constant 0 : index
    %2 = vector.load %arg3[%c0_2, %c0_3] : memref<32x128xbf16, #tpu.memory_space<vmem>>, vector<32x128xbf16>
    %cst = arith.constant dense<0.000000e+00> : vector<8x128xf32>
    %3 = tpu.matmul %1, %2, %cst {dimension_numbers = #tpu.dot_dimension_numbers<[1], [0], [0], [1], [0, 0, 1, 1], [], []>} : vector<8x32xbf16>, vector<32x128xbf16>, vector<8x128xf32> -> vector<8x128xf32>
    %c0_4 = arith.constant 0 : index
    %c0_5 = arith.constant 0 : index
    %4 = vector.load %arg4[%c0_4, %c0_5] : memref<1x128xf32, #tpu.memory_space<vmem>>, vector<1x128xf32>
    %5 = vector.broadcast %4 : vector<1x128xf32> to vector<8x128xf32>
    %6 = arith.addf %3, %5 : vector<8x128xf32>
    %cst_6 = arith.constant 5.000000e-01 : f32
    %7 = vector.broadcast %cst_6 : f32 to vector<8x128xf32>
    %8 = arith.mulf %7, %6 : vector<8x128xf32>
    %cst_7 = arith.constant 4.471500e-02 : f32
    %9 = vector.broadcast %cst_7 : f32 to vector<8x128xf32>
    %10 = arith.mulf %9, %6 : vector<8x128xf32>
    %11 = arith.mulf %10, %6 : vector<8x128xf32>
    %12 = arith.mulf %11, %6 : vector<8x128xf32>
    %13 = arith.addf %6, %12 : vector<8x128xf32>
    %cst_8 = arith.constant 0.797884583 : f32
    %14 = vector.broadcast %cst_8 : f32 to vector<8x128xf32>
    %15 = arith.mulf %14, %13 : vector<8x128xf32>
    %16 = math.tanh %15 : vector<8x128xf32>
    %cst_9 = arith.constant 1.000000e+00 : f32
    %17 = vector.broadcast %cst_9 : f32 to vector<8x128xf32>
    %18 = arith.addf %17, %16 : vector<8x128xf32>
    %19 = arith.mulf %8, %18 : vector<8x128xf32>
    %20 = arith.truncf %19 : vector<8x128xf32> to vector<8x128xbf16>
    %c0_10 = arith.constant 0 : index
    %c0_11 = arith.constant 0 : index
    %21 = vector.load %arg5[%c0_10, %c0_11] : memref<128x32xbf16, #tpu.memory_space<vmem>>, vector<128x32xbf16>
    %cst_12 = arith.constant dense<0.000000e+00> : vector<8x32xf32>
    %22 = tpu.matmul %20, %21, %cst_12 {dimension_numbers = #tpu.dot_dimension_numbers<[1], [0], [0], [1], [0, 0, 1, 1], [], []>} : vector<8x128xbf16>, vector<128x32xbf16>, vector<8x32xf32> -> vector<8x32xf32>
    %c0_13 = arith.constant 0 : index
    %c0_14 = arith.constant 0 : index
    %23 = vector.load %arg6[%c0_13, %c0_14] : memref<1x32xf32, #tpu.memory_space<vmem>>, vector<1x32xf32>
    %24 = vector.broadcast %23 : vector<1x32xf32> to vector<8x32xf32>
    %25 = arith.addf %22, %24 : vector<8x32xf32>
    %26 = arith.extf %1 : vector<8x32xbf16> to vector<8x32xf32>
    %27 = arith.addf %25, %26 : vector<8x32xf32>
    %cst_15 = arith.constant dense<0.000000e+00> : vector<8xf32>
    %28 = vector.multi_reduction <add>, %27, %cst_15 [1] : vector<8x32xf32> to vector<8xf32>
    %29 = vector.shape_cast %28 : vector<8xf32> to vector<8x1xf32>
    %cst_16 = arith.constant 3.200000e+01 : f32
    %30 = vector.broadcast %cst_16 : f32 to vector<8x1xf32>
    %31 = arith.divf %29, %30 : vector<8x1xf32>
    %32 = vector.broadcast %31 : vector<8x1xf32> to vector<8x32xf32>
    %33 = arith.subf %27, %32 : vector<8x32xf32>
    %34 = arith.mulf %33, %33 : vector<8x32xf32>
    %cst_17 = arith.constant dense<0.000000e+00> : vector<8xf32>
    %35 = vector.multi_reduction <add>, %34, %cst_17 [1] : vector<8x32xf32> to vector<8xf32>
    %36 = vector.shape_cast %35 : vector<8xf32> to vector<8x1xf32>
    %cst_18 = arith.constant 3.200000e+01 : f32
    %37 = vector.broadcast %cst_18 : f32 to vector<8x1xf32>
    %38 = arith.divf %36, %37 : vector<8x1xf32>
    %cst_19 = arith.constant 9.99999974E-6 : f32
    %39 = vector.broadcast %cst_19 : f32 to vector<8x1xf32>
    %40 = arith.addf %38, %39 : vector<8x1xf32>
    %41 = math.rsqrt %40 : vector<8x1xf32>
    %42 = vector.broadcast %41 : vector<8x1xf32> to vector<8x32xf32>
    %43 = arith.mulf %33, %42 : vector<8x32xf32>
    %c0_20 = arith.constant 0 : index
    %c0_21 = arith.constant 0 : index
    %44 = vector.load %arg7[%c0_20, %c0_21] : memref<1x32xf32, #tpu.memory_space<vmem>>, vector<1x32xf32>
    %45 = vector.broadcast %44 : vector<1x32xf32> to vector<8x32xf32>
    %46 = arith.mulf %43, %45 : vector<8x32xf32>
    %c0_22 = arith.constant 0 : index
    %c0_23 = arith.constant 0 : index
    %47 = vector.load %arg8[%c0_22, %c0_23] : memref<1x32xf32, #tpu.memory_space<vmem>>, vector<1x32xf32>
    %48 = vector.broadcast %47 : vector<1x32xf32> to vector<8x32xf32>
    %49 = arith.addf %46, %48 : vector<8x32xf32>
    %50 = arith.truncf %49 : vector<8x32xf32> to vector<8x32xbf16>
    %c0_24 = arith.constant 0 : index
    %c0_25 = arith.constant 0 : index
    %c0_26 = arith.constant 0 : index
    %51 = vector.load %arg9[%c0_24, %c0_25, %c0_26] : memref<1x8x32xbf16, #tpu.memory_space<vmem>>, vector<1x8x32xbf16>
    %52 = vector.shape_cast %51 : vector<1x8x32xbf16> to vector<8x32xbf16>
    %53 = vector.shape_cast %50 : vector<8x32xbf16> to vector<1x8x32xbf16>
    tpu.vector_store %arg9[%c0_24, %c0_25, %c0_26], %53 {strides = array<i32>} : memref<1x8x32xbf16, #tpu.memory_space<vmem>>, vector<1x8x32xbf16>,
    return
  }
  func.func @transform_0(%arg0: i32, %arg1: i32) -> (i32, i32, i32) {
    %c0_i32 = arith.constant 0 : i32
    %c0_i32_0 = arith.constant 0 : i32
    return %arg0, %arg1, %c0_i32 : i32, i32, i32
  }
  func.func @transform_1(%arg0: i32, %arg1: i32) -> (i32, i32) {
    %c0_i32 = arith.constant 0 : i32
    %c0_i32_0 = arith.constant 0 : i32
    %c0_i32_1 = arith.constant 0 : i32
    return %c0_i32, %c0_i32_0 : i32, i32
  }
  func.func @transform_2(%arg0: i32, %arg1: i32) -> (i32, i32) {
    %c0_i32 = arith.constant 0 : i32
    %c0_i32_0 = arith.constant 0 : i32
    %c0_i32_1 = arith.constant 0 : i32
    return %c0_i32, %c0_i32_0 : i32, i32
  }
  func.func @transform_3(%arg0: i32, %arg1: i32) -> (i32, i32) {
    %c0_i32 = arith.constant 0 : i32
    %c0_i32_0 = arith.constant 0 : i32
    %c0_i32_1 = arith.constant 0 : i32
    return %c0_i32, %c0_i32_0 : i32, i32
  }
  func.func @transform_4(%arg0: i32, %arg1: i32) -> (i32, i32) {
    %c0_i32 = arith.constant 0 : i32
    %c0_i32_0 = arith.constant 0 : i32
    %c0_i32_1 = arith.constant 0 : i32
    return %c0_i32, %c0_i32_0 : i32, i32
  }
  func.func @transform_5(%arg0: i32, %arg1: i32) -> (i32, i32) {
    %c0_i32 = arith.constant 0 : i32
    %c0_i32_0 = arith.constant 0 : i32
    %c0_i32_1 = arith.constant 0 : i32
    return %c0_i32, %c0_i32_0 : i32, i32
  }
  func.func @transform_6(%arg0: i32, %arg1: i32) -> (i32, i32) {
    %c0_i32 = arith.constant 0 : i32
    %c0_i32_0 = arith.constant 0 : i32
    %c0_i32_1 = arith.constant 0 : i32
    return %c0_i32, %c0_i32_0 : i32, i32
  }
  func.func @transform_7(%arg0: i32, %arg1: i32) -> (i32, i32, i32) {
    %c0_i32 = arith.constant 0 : i32
    %c0_i32_0 = arith.constant 0 : i32
    return %arg0, %arg1, %c0_i32 : i32, i32, i32
  }
}

module attributes {stable_mosaic.version = 11 : i64} {
  func.func @_attn_ln_kernel(%arg0: i32, %arg1: i32, %arg2: memref<1x8x32xbf16, #tpu.memory_space<vmem>>, %arg3: memref<1x8x32xbf16, #tpu.memory_space<vmem>>, %arg4: memref<1x1x8xf32, #tpu.memory_space<vmem>>, %arg5: memref<32x32xbf16, #tpu.memory_space<vmem>>, %arg6: memref<32x32xbf16, #tpu.memory_space<vmem>>, %arg7: memref<32x32xbf16, #tpu.memory_space<vmem>>, %arg8: memref<32x32xbf16, #tpu.memory_space<vmem>>, %arg9: memref<1x32xf32, #tpu.memory_space<vmem>>, %arg10: memref<1x32xf32, #tpu.memory_space<vmem>>, %arg11: memref<1x32xf32, #tpu.memory_space<vmem>>, %arg12: memref<1x32xf32, #tpu.memory_space<vmem>>, %arg13: memref<1x32xf32, #tpu.memory_space<vmem>>, %arg14: memref<1x32xf32, #tpu.memory_space<vmem>>, %arg15: memref<1x8x32xbf16, #tpu.memory_space<vmem>>, %arg16: memref<1x4x8x8xf32, #tpu.memory_space<vmem>>) attributes {dimension_semantics = [#tpu.dimension_semantics<parallel>, #tpu.dimension_semantics<parallel>], iteration_bounds = array<i64: 2, 1>, scalar_prefetch = 0 : i64, scratch_operands = 0 : i64, tpu.core_type = #tpu.core_type<tc>, window_params = [{transform_indices = @transform_0, window_bounds = array<i64: 1, 8, 32>}, {transform_indices = @transform_1, window_bounds = array<i64: 1, 8, 32>}, {transform_indices = @transform_2, window_bounds = array<i64: 1, 1, 8>}, {pipeline_mode = #tpu.pipeline_mode<synchronous>, transform_indices = @transform_3, window_bounds = array<i64: 32, 32>}, {pipeline_mode = #tpu.pipeline_mode<synchronous>, transform_indices = @transform_4, window_bounds = array<i64: 32, 32>}, {pipeline_mode = #tpu.pipeline_mode<synchronous>, transform_indices = @transform_5, window_bounds = array<i64: 32, 32>}, {pipeline_mode = #tpu.pipeline_mode<synchronous>, transform_indices = @transform_6, window_bounds = array<i64: 32, 32>}, {pipeline_mode = #tpu.pipeline_mode<synchronous>, transform_indices = @transform_7, window_bounds = array<i64: 1, 32>}, {pipeline_mode = #tpu.pipeline_mode<synchronous>, transform_indices = @transform_8, window_bounds = array<i64: 1, 32>}, {pipeline_mode = #tpu.pipeline_mode<synchronous>, transform_indices = @transform_9, window_bounds = array<i64: 1, 32>}, {pipeline_mode = #tpu.pipeline_mode<synchronous>, transform_indices = @transform_10, window_bounds = array<i64: 1, 32>}, {pipeline_mode = #tpu.pipeline_mode<synchronous>, transform_indices = @transform_11, window_bounds = array<i64: 1, 32>}, {pipeline_mode = #tpu.pipeline_mode<synchronous>, transform_indices = @transform_12, window_bounds = array<i64: 1, 32>}, {transform_indices = @transform_13, window_bounds = array<i64: 1, 8, 32>}, {transform_indices = @transform_14, window_bounds = array<i64: 1, 4, 8, 8>}]} {
    %c0 = arith.constant 0 : index
    %c0_0 = arith.constant 0 : index
    %c0_1 = arith.constant 0 : index
    %0 = vector.load %arg2[%c0, %c0_0, %c0_1] : memref<1x8x32xbf16, #tpu.memory_space<vmem>>, vector<1x8x32xbf16>
    %1 = vector.shape_cast %0 : vector<1x8x32xbf16> to vector<8x32xbf16>
    %c0_2 = arith.constant 0 : index
    %c0_3 = arith.constant 0 : index
    %c0_4 = arith.constant 0 : index
    %2 = vector.load %arg3[%c0_2, %c0_3, %c0_4] : memref<1x8x32xbf16, #tpu.memory_space<vmem>>, vector<1x8x32xbf16>
    %3 = vector.shape_cast %2 : vector<1x8x32xbf16> to vector<8x32xbf16>
    %c0_5 = arith.constant 0 : index
    %c0_6 = arith.constant 0 : index
    %4 = vector.load %arg5[%c0_5, %c0_6] : memref<32x32xbf16, #tpu.memory_space<vmem>>, vector<32x32xbf16>
    %cst = arith.constant dense<0.000000e+00> : vector<8x32xf32>
    %5 = tpu.matmul %1, %4, %cst {dimension_numbers = #tpu.dot_dimension_numbers<[1], [0], [0], [1], [0, 0, 1, 1], [], []>} : vector<8x32xbf16>, vector<32x32xbf16>, vector<8x32xf32> -> vector<8x32xf32>
    %c0_7 = arith.constant 0 : index
    %c0_8 = arith.constant 0 : index
    %6 = vector.load %arg9[%c0_7, %c0_8] : memref<1x32xf32, #tpu.memory_space<vmem>>, vector<1x32xf32>
    %7 = vector.broadcast %6 : vector<1x32xf32> to vector<8x32xf32>
    %8 = arith.addf %5, %7 : vector<8x32xf32>
    %c0_9 = arith.constant 0 : index
    %c0_10 = arith.constant 0 : index
    %9 = vector.load %arg6[%c0_9, %c0_10] : memref<32x32xbf16, #tpu.memory_space<vmem>>, vector<32x32xbf16>
    %cst_11 = arith.constant dense<0.000000e+00> : vector<8x32xf32>
    %10 = tpu.matmul %3, %9, %cst_11 {dimension_numbers = #tpu.dot_dimension_numbers<[1], [0], [0], [1], [0, 0, 1, 1], [], []>} : vector<8x32xbf16>, vector<32x32xbf16>, vector<8x32xf32> -> vector<8x32xf32>
    %c0_12 = arith.constant 0 : index
    %c0_13 = arith.constant 0 : index
    %11 = vector.load %arg10[%c0_12, %c0_13] : memref<1x32xf32, #tpu.memory_space<vmem>>, vector<1x32xf32>
    %12 = vector.broadcast %11 : vector<1x32xf32> to vector<8x32xf32>
    %13 = arith.addf %10, %12 : vector<8x32xf32>
    %c0_14 = arith.constant 0 : index
    %c0_15 = arith.constant 0 : index
    %14 = vector.load %arg7[%c0_14, %c0_15] : memref<32x32xbf16, #tpu.memory_space<vmem>>, vector<32x32xbf16>
    %cst_16 = arith.constant dense<0.000000e+00> : vector<8x32xf32>
    %15 = tpu.matmul %3, %14, %cst_16 {dimension_numbers = #tpu.dot_dimension_numbers<[1], [0], [0], [1], [0, 0, 1, 1], [], []>} : vector<8x32xbf16>, vector<32x32xbf16>, vector<8x32xf32> -> vector<8x32xf32>
    %c0_17 = arith.constant 0 : index
    %c0_18 = arith.constant 0 : index
    %16 = vector.load %arg11[%c0_17, %c0_18] : memref<1x32xf32, #tpu.memory_space<vmem>>, vector<1x32xf32>
    %17 = vector.broadcast %16 : vector<1x32xf32> to vector<8x32xf32>
    %18 = arith.addf %15, %17 : vector<8x32xf32>
    %c0_19 = arith.constant 0 : index
    %c0_20 = arith.constant 0 : index
    %c0_21 = arith.constant 0 : index
    %19 = vector.load %arg4[%c0_19, %c0_20, %c0_21] : memref<1x1x8xf32, #tpu.memory_space<vmem>>, vector<1x1x8xf32>
    %20 = vector.shape_cast %19 : vector<1x1x8xf32> to vector<1x8xf32>
    %21 = vector.extract_strided_slice %8 {offsets = [0, 0], sizes = [8, 8], strides = [1, 1]} : vector<8x32xf32> to vector<8x8xf32>
    %22 = arith.truncf %21 : vector<8x8xf32> to vector<8x8xbf16>
    %23 = vector.extract_strided_slice %13 {offsets = [0, 0], sizes = [8, 8], strides = [1, 1]} : vector<8x32xf32> to vector<8x8xf32>
    %24 = arith.truncf %23 : vector<8x8xf32> to vector<8x8xbf16>
    %25 = vector.extract_strided_slice %18 {offsets = [0, 0], sizes = [8, 8], strides = [1, 1]} : vector<8x32xf32> to vector<8x8xf32>
    %26 = arith.truncf %25 : vector<8x8xf32> to vector<8x8xbf16>
    "tpu.trace_start"() <{level = 10 : i32, message = "qc,kc->qk"}> : () -> ()
    %cst_22 = arith.constant dense<0.000000e+00> : vector<8x8xf32>
    %27 = tpu.matmul %22, %24, %cst_22 {dimension_numbers = #tpu.dot_dimension_numbers<[1], [1], [0], [0], [0, 0, 1, 0], [], []>} : vector<8x8xbf16>, vector<8x8xbf16>, vector<8x8xf32> -> vector<8x8xf32>
    "tpu.trace_stop"() : () -> ()
    %cst_23 = arith.constant 0.353553385 : f32
    %28 = vector.broadcast %cst_23 : f32 to vector<8x8xf32>
    %29 = arith.mulf %27, %28 : vector<8x8xf32>
    %30 = vector.broadcast %20 : vector<1x8xf32> to vector<8x8xf32>
    %31 = arith.addf %29, %30 : vector<8x8xf32>
    %cst_24 = arith.constant dense<0xFF800000> : vector<8xf32>
    %32 = vector.multi_reduction <maximumf>, %31, %cst_24 [1] : vector<8x8xf32> to vector<8xf32>
    %33 = vector.shape_cast %32 : vector<8xf32> to vector<8x1xf32>
    %34 = vector.broadcast %33 : vector<8x1xf32> to vector<8x8xf32>
    %35 = arith.subf %31, %34 : vector<8x8xf32>
    %36 = math.exp %35 : vector<8x8xf32>
    %cst_25 = arith.constant dense<0.000000e+00> : vector<8xf32>
    %37 = vector.multi_reduction <add>, %36, %cst_25 [1] : vector<8x8xf32> to vector<8xf32>
    %38 = vector.shape_cast %37 : vector<8xf32> to vector<8x1xf32>
    %39 = tpu.reciprocal %38 {approx = true} : vector<8x1xf32> -> vector<8x1xf32>
    %40 = vector.broadcast %39 : vector<8x1xf32> to vector<8x8xf32>
    %41 = arith.mulf %36, %40 : vector<8x8xf32>
    %c0_26 = arith.constant 0 : index
    %c0_27 = arith.constant 0 : index
    %c0_28 = arith.constant 0 : index
    %c0_29 = arith.constant 0 : index
    %42 = vector.load %arg16[%c0_26, %c0_27, %c0_28, %c0_29] : memref<1x4x8x8xf32, #tpu.memory_space<vmem>>, vector<1x1x8x8xf32>
    %43 = vector.shape_cast %42 : vector<1x1x8x8xf32> to vector<8x8xf32>
    %44 = vector.shape_cast %41 : vector<8x8xf32> to vector<1x1x8x8xf32>
    tpu.vector_store %arg16[%c0_26, %c0_27, %c0_28, %c0_29], %44 {strides = array<i32>} : memref<1x4x8x8xf32, #tpu.memory_space<vmem>>, vector<1x1x8x8xf32>,
    %45 = arith.truncf %41 : vector<8x8xf32> to vector<8x8xbf16>
    %cst_30 = arith.constant dense<0.000000e+00> : vector<8x8xf32>
    %46 = tpu.matmul %45, %26, %cst_30 {dimension_numbers = #tpu.dot_dimension_numbers<[1], [0], [0], [1], [0, 0, 1, 1], [], []>} : vector<8x8xbf16>, vector<8x8xbf16>, vector<8x8xf32> -> vector<8x8xf32>
    %47 = vector.extract_strided_slice %8 {offsets = [0, 8], sizes = [8, 8], strides = [1, 1]} : vector<8x32xf32> to vector<8x8xf32>
    %48 = arith.truncf %47 : vector<8x8xf32> to vector<8x8xbf16>
    %49 = vector.extract_strided_slice %13 {offsets = [0, 8], sizes = [8, 8], strides = [1, 1]} : vector<8x32xf32> to vector<8x8xf32>
    %50 = arith.truncf %49 : vector<8x8xf32> to vector<8x8xbf16>
    %51 = vector.extract_strided_slice %18 {offsets = [0, 8], sizes = [8, 8], strides = [1, 1]} : vector<8x32xf32> to vector<8x8xf32>
    %52 = arith.truncf %51 : vector<8x8xf32> to vector<8x8xbf16>
    "tpu.trace_start"() <{level = 10 : i32, message = "qc,kc->qk"}> : () -> ()
    %cst_31 = arith.constant dense<0.000000e+00> : vector<8x8xf32>
    %53 = tpu.matmul %48, %50, %cst_31 {dimension_numbers = #tpu.dot_dimension_numbers<[1], [1], [0], [0], [0, 0, 1, 0], [], []>} : vector<8x8xbf16>, vector<8x8xbf16>, vector<8x8xf32> -> vector<8x8xf32>
    "tpu.trace_stop"() : () -> ()
    %cst_32 = arith.constant 0.353553385 : f32
    %54 = vector.broadcast %cst_32 : f32 to vector<8x8xf32>
    %55 = arith.mulf %53, %54 : vector<8x8xf32>
    %56 = vector.broadcast %20 : vector<1x8xf32> to vector<8x8xf32>
    %57 = arith.addf %55, %56 : vector<8x8xf32>
    %cst_33 = arith.constant dense<0xFF800000> : vector<8xf32>
    %58 = vector.multi_reduction <maximumf>, %57, %cst_33 [1] : vector<8x8xf32> to vector<8xf32>
    %59 = vector.shape_cast %58 : vector<8xf32> to vector<8x1xf32>
    %60 = vector.broadcast %59 : vector<8x1xf32> to vector<8x8xf32>
    %61 = arith.subf %57, %60 : vector<8x8xf32>
    %62 = math.exp %61 : vector<8x8xf32>
    %cst_34 = arith.constant dense<0.000000e+00> : vector<8xf32>
    %63 = vector.multi_reduction <add>, %62, %cst_34 [1] : vector<8x8xf32> to vector<8xf32>
    %64 = vector.shape_cast %63 : vector<8xf32> to vector<8x1xf32>
    %65 = tpu.reciprocal %64 {approx = true} : vector<8x1xf32> -> vector<8x1xf32>
    %66 = vector.broadcast %65 : vector<8x1xf32> to vector<8x8xf32>
    %67 = arith.mulf %62, %66 : vector<8x8xf32>
    %c0_35 = arith.constant 0 : index
    %c1 = arith.constant 1 : index
    %c0_36 = arith.constant 0 : index
    %c0_37 = arith.constant 0 : index
    %68 = vector.load %arg16[%c0_35, %c1, %c0_36, %c0_37] : memref<1x4x8x8xf32, #tpu.memory_space<vmem>>, vector<1x1x8x8xf32>
    %69 = vector.shape_cast %68 : vector<1x1x8x8xf32> to vector<8x8xf32>
    %70 = vector.shape_cast %67 : vector<8x8xf32> to vector<1x1x8x8xf32>
    tpu.vector_store %arg16[%c0_35, %c1, %c0_36, %c0_37], %70 {strides = array<i32>} : memref<1x4x8x8xf32, #tpu.memory_space<vmem>>, vector<1x1x8x8xf32>,
    %71 = arith.truncf %67 : vector<8x8xf32> to vector<8x8xbf16>
    %cst_38 = arith.constant dense<0.000000e+00> : vector<8x8xf32>
    %72 = tpu.matmul %71, %52, %cst_38 {dimension_numbers = #tpu.dot_dimension_numbers<[1], [0], [0], [1], [0, 0, 1, 1], [], []>} : vector<8x8xbf16>, vector<8x8xbf16>, vector<8x8xf32> -> vector<8x8xf32>
    %73 = vector.extract_strided_slice %8 {offsets = [0, 16], sizes = [8, 8], strides = [1, 1]} : vector<8x32xf32> to vector<8x8xf32>
    %74 = arith.truncf %73 : vector<8x8xf32> to vector<8x8xbf16>
    %75 = vector.extract_strided_slice %13 {offsets = [0, 16], sizes = [8, 8], strides = [1, 1]} : vector<8x32xf32> to vector<8x8xf32>
    %76 = arith.truncf %75 : vector<8x8xf32> to vector<8x8xbf16>
    %77 = vector.extract_strided_slice %18 {offsets = [0, 16], sizes = [8, 8], strides = [1, 1]} : vector<8x32xf32> to vector<8x8xf32>
    %78 = arith.truncf %77 : vector<8x8xf32> to vector<8x8xbf16>
    "tpu.trace_start"() <{level = 10 : i32, message = "qc,kc->qk"}> : () -> ()
    %cst_39 = arith.constant dense<0.000000e+00> : vector<8x8xf32>
    %79 = tpu.matmul %74, %76, %cst_39 {dimension_numbers = #tpu.dot_dimension_numbers<[1], [1], [0], [0], [0, 0, 1, 0], [], []>} : vector<8x8xbf16>, vector<8x8xbf16>, vector<8x8xf32> -> vector<8x8xf32>
    "tpu.trace_stop"() : () -> ()
    %cst_40 = arith.constant 0.353553385 : f32
    %80 = vector.broadcast %cst_40 : f32 to vector<8x8xf32>
    %81 = arith.mulf %79, %80 : vector<8x8xf32>
    %82 = vector.broadcast %20 : vector<1x8xf32> to vector<8x8xf32>
    %83 = arith.addf %81, %82 : vector<8x8xf32>
    %cst_41 = arith.constant dense<0xFF800000> : vector<8xf32>
    %84 = vector.multi_reduction <maximumf>, %83, %cst_41 [1] : vector<8x8xf32> to vector<8xf32>
    %85 = vector.shape_cast %84 : vector<8xf32> to vector<8x1xf32>
    %86 = vector.broadcast %85 : vector<8x1xf32> to vector<8x8xf32>
    %87 = arith.subf %83, %86 : vector<8x8xf32>
    %88 = math.exp %87 : vector<8x8xf32>
    %cst_42 = arith.constant dense<0.000000e+00> : vector<8xf32>
    %89 = vector.multi_reduction <add>, %88, %cst_42 [1] : vector<8x8xf32> to vector<8xf32>
    %90 = vector.shape_cast %89 : vector<8xf32> to vector<8x1xf32>
    %91 = tpu.reciprocal %90 {approx = true} : vector<8x1xf32> -> vector<8x1xf32>
    %92 = vector.broadcast %91 : vector<8x1xf32> to vector<8x8xf32>
    %93 = arith.mulf %88, %92 : vector<8x8xf32>
    %c0_43 = arith.constant 0 : index
    %c2 = arith.constant 2 : index
    %c0_44 = arith.constant 0 : index
    %c0_45 = arith.constant 0 : index
    %94 = vector.load %arg16[%c0_43, %c2, %c0_44, %c0_45] : memref<1x4x8x8xf32, #tpu.memory_space<vmem>>, vector<1x1x8x8xf32>
    %95 = vector.shape_cast %94 : vector<1x1x8x8xf32> to vector<8x8xf32>
    %96 = vector.shape_cast %93 : vector<8x8xf32> to vector<1x1x8x8xf32>
    tpu.vector_store %arg16[%c0_43, %c2, %c0_44, %c0_45], %96 {strides = array<i32>} : memref<1x4x8x8xf32, #tpu.memory_space<vmem>>, vector<1x1x8x8xf32>,
    %97 = arith.truncf %93 : vector<8x8xf32> to vector<8x8xbf16>
    %cst_46 = arith.constant dense<0.000000e+00> : vector<8x8xf32>
    %98 = tpu.matmul %97, %78, %cst_46 {dimension_numbers = #tpu.dot_dimension_numbers<[1], [0], [0], [1], [0, 0, 1, 1], [], []>} : vector<8x8xbf16>, vector<8x8xbf16>, vector<8x8xf32> -> vector<8x8xf32>
    %99 = vector.extract_strided_slice %8 {offsets = [0, 24], sizes = [8, 8], strides = [1, 1]} : vector<8x32xf32> to vector<8x8xf32>
    %100 = arith.truncf %99 : vector<8x8xf32> to vector<8x8xbf16>
    %101 = vector.extract_strided_slice %13 {offsets = [0, 24], sizes = [8, 8], strides = [1, 1]} : vector<8x32xf32> to vector<8x8xf32>
    %102 = arith.truncf %101 : vector<8x8xf32> to vector<8x8xbf16>
    %103 = vector.extract_strided_slice %18 {offsets = [0, 24], sizes = [8, 8], strides = [1, 1]} : vector<8x32xf32> to vector<8x8xf32>
    %104 = arith.truncf %103 : vector<8x8xf32> to vector<8x8xbf16>
    "tpu.trace_start"() <{level = 10 : i32, message = "qc,kc->qk"}> : () -> ()
    %cst_47 = arith.constant dense<0.000000e+00> : vector<8x8xf32>
    %105 = tpu.matmul %100, %102, %cst_47 {dimension_numbers = #tpu.dot_dimension_numbers<[1], [1], [0], [0], [0, 0, 1, 0], [], []>} : vector<8x8xbf16>, vector<8x8xbf16>, vector<8x8xf32> -> vector<8x8xf32>
    "tpu.trace_stop"() : () -> ()
    %cst_48 = arith.constant 0.353553385 : f32
    %106 = vector.broadcast %cst_48 : f32 to vector<8x8xf32>
    %107 = arith.mulf %105, %106 : vector<8x8xf32>
    %108 = vector.broadcast %20 : vector<1x8xf32> to vector<8x8xf32>
    %109 = arith.addf %107, %108 : vector<8x8xf32>
    %cst_49 = arith.constant dense<0xFF800000> : vector<8xf32>
    %110 = vector.multi_reduction <maximumf>, %109, %cst_49 [1] : vector<8x8xf32> to vector<8xf32>
    %111 = vector.shape_cast %110 : vector<8xf32> to vector<8x1xf32>
    %112 = vector.broadcast %111 : vector<8x1xf32> to vector<8x8xf32>
    %113 = arith.subf %109, %112 : vector<8x8xf32>
    %114 = math.exp %113 : vector<8x8xf32>
    %cst_50 = arith.constant dense<0.000000e+00> : vector<8xf32>
    %115 = vector.multi_reduction <add>, %114, %cst_50 [1] : vector<8x8xf32> to vector<8xf32>
    %116 = vector.shape_cast %115 : vector<8xf32> to vector<8x1xf32>
    %117 = tpu.reciprocal %116 {approx = true} : vector<8x1xf32> -> vector<8x1xf32>
    %118 = vector.broadcast %117 : vector<8x1xf32> to vector<8x8xf32>
    %119 = arith.mulf %114, %118 : vector<8x8xf32>
    %c0_51 = arith.constant 0 : index
    %c3 = arith.constant 3 : index
    %c0_52 = arith.constant 0 : index
    %c0_53 = arith.constant 0 : index
    %120 = vector.load %arg16[%c0_51, %c3, %c0_52, %c0_53] : memref<1x4x8x8xf32, #tpu.memory_space<vmem>>, vector<1x1x8x8xf32>
    %121 = vector.shape_cast %120 : vector<1x1x8x8xf32> to vector<8x8xf32>
    %122 = vector.shape_cast %119 : vector<8x8xf32> to vector<1x1x8x8xf32>
    tpu.vector_store %arg16[%c0_51, %c3, %c0_52, %c0_53], %122 {strides = array<i32>} : memref<1x4x8x8xf32, #tpu.memory_space<vmem>>, vector<1x1x8x8xf32>,
    %123 = arith.truncf %119 : vector<8x8xf32> to vector<8x8xbf16>
    %cst_54 = arith.constant dense<0.000000e+00> : vector<8x8xf32>
    %124 = tpu.matmul %123, %104, %cst_54 {dimension_numbers = #tpu.dot_dimension_numbers<[1], [0], [0], [1], [0, 0, 1, 1], [], []>} : vector<8x8xbf16>, vector<8x8xbf16>, vector<8x8xf32> -> vector<8x8xf32>
    %125 = tpu.concatenate %46, %72, %98, %124 in 1 : vector<8x8xf32>, vector<8x8xf32>, vector<8x8xf32>, vector<8x8xf32> -> vector<8x32xf32>
    %126 = arith.truncf %125 : vector<8x32xf32> to vector<8x32xbf16>
    %c0_55 = arith.constant 0 : index
    %c0_56 = arith.constant 0 : index
    %127 = vector.load %arg8[%c0_55, %c0_56] : memref<32x32xbf16, #tpu.memory_space<vmem>>, vector<32x32xbf16>
    %cst_57 = arith.constant dense<0.000000e+00> : vector<8x32xf32>
    %128 = tpu.matmul %126, %127, %cst_57 {dimension_numbers = #tpu.dot_dimension_numbers<[1], [0], [0], [1], [0, 0, 1, 1], [], []>} : vector<8x32xbf16>, vector<32x32xbf16>, vector<8x32xf32> -> vector<8x32xf32>
    %c0_58 = arith.constant 0 : index
    %c0_59 = arith.constant 0 : index
    %129 = vector.load %arg12[%c0_58, %c0_59] : memref<1x32xf32, #tpu.memory_space<vmem>>, vector<1x32xf32>
    %130 = vector.broadcast %129 : vector<1x32xf32> to vector<8x32xf32>
    %131 = arith.addf %128, %130 : vector<8x32xf32>
    %132 = arith.extf %1 : vector<8x32xbf16> to vector<8x32xf32>
    %133 = arith.addf %131, %132 : vector<8x32xf32>
    %cst_60 = arith.constant dense<0.000000e+00> : vector<8xf32>
    %134 = vector.multi_reduction <add>, %133, %cst_60 [1] : vector<8x32xf32> to vector<8xf32>
    %135 = vector.shape_cast %134 : vector<8xf32> to vector<8x1xf32>
    %cst_61 = arith.constant 3.200000e+01 : f32
    %136 = vector.broadcast %cst_61 : f32 to vector<8x1xf32>
    %137 = arith.divf %135, %136 : vector<8x1xf32>
    %138 = vector.broadcast %137 : vector<8x1xf32> to vector<8x32xf32>
    %139 = arith.subf %133, %138 : vector<8x32xf32>
    %140 = arith.mulf %139, %139 : vector<8x32xf32>
    %cst_62 = arith.constant dense<0.000000e+00> : vector<8xf32>
    %141 = vector.multi_reduction <add>, %140, %cst_62 [1] : vector<8x32xf32> to vector<8xf32>
    %142 = vector.shape_cast %141 : vector<8xf32> to vector<8x1xf32>
    %cst_63 = arith.constant 3.200000e+01 : f32
    %143 = vector.broadcast %cst_63 : f32 to vector<8x1xf32>
    %144 = arith.divf %142, %143 : vector<8x1xf32>
    %cst_64 = arith.constant 9.99999996E-13 : f32
    %145 = vector.broadcast %cst_64 : f32 to vector<8x1xf32>
    %146 = arith.addf %144, %145 : vector<8x1xf32>
    %147 = math.rsqrt %146 : vector<8x1xf32>
    %148 = vector.broadcast %147 : vector<8x1xf32> to vector<8x32xf32>
    %149 = arith.mulf %139, %148 : vector<8x32xf32>
    %c0_65 = arith.constant 0 : index
    %c0_66 = arith.constant 0 : index
    %150 = vector.load %arg13[%c0_65, %c0_66] : memref<1x32xf32, #tpu.memory_space<vmem>>, vector<1x32xf32>
    %151 = vector.broadcast %150 : vector<1x32xf32> to vector<8x32xf32>
    %152 = arith.mulf %149, %151 : vector<8x32xf32>
    %c0_67 = arith.constant 0 : index
    %c0_68 = arith.constant 0 : index
    %153 = vector.load %arg14[%c0_67, %c0_68] : memref<1x32xf32, #tpu.memory_space<vmem>>, vector<1x32xf32>
    %154 = vector.broadcast %153 : vector<1x32xf32> to vector<8x32xf32>
    %155 = arith.addf %152, %154 : vector<8x32xf32>
    %156 = arith.truncf %155 : vector<8x32xf32> to vector<8x32xbf16>
    %c0_69 = arith.constant 0 : index
    %c0_70 = arith.constant 0 : index
    %c0_71 = arith.constant 0 : index
    %157 = vector.load %arg15[%c0_69, %c0_70, %c0_71] : memref<1x8x32xbf16, #tpu.memory_space<vmem>>, vector<1x8x32xbf16>
    %158 = vector.shape_cast %157 : vector<1x8x32xbf16> to vector<8x32xbf16>
    %159 = vector.shape_cast %156 : vector<8x32xbf16> to vector<1x8x32xbf16>
    tpu.vector_store %arg15[%c0_69, %c0_70, %c0_71], %159 {strides = array<i32>} : memref<1x8x32xbf16, #tpu.memory_space<vmem>>, vector<1x8x32xbf16>,
    return
  }
  func.func @transform_0(%arg0: i32, %arg1: i32) -> (i32, i32, i32) {
    %c0_i32 = arith.constant 0 : i32
    %c0_i32_0 = arith.constant 0 : i32
    return %arg0, %arg1, %c0_i32 : i32, i32, i32
  }
  func.func @transform_1(%arg0: i32, %arg1: i32) -> (i32, i32, i32) {
    %c0_i32 = arith.constant 0 : i32
    %c0_i32_0 = arith.constant 0 : i32
    %c0_i32_1 = arith.constant 0 : i32
    return %arg0, %c0_i32, %c0_i32_0 : i32, i32, i32
  }
  func.func @transform_2(%arg0: i32, %arg1: i32) -> (i32, i32, i32) {
    %c0_i32 = arith.constant 0 : i32
    %c0_i32_0 = arith.constant 0 : i32
    %c0_i32_1 = arith.constant 0 : i32
    return %arg0, %c0_i32, %c0_i32_0 : i32, i32, i32
  }
  func.func @transform_3(%arg0: i32, %arg1: i32) -> (i32, i32) {
    %c0_i32 = arith.constant 0 : i32
    %c0_i32_0 = arith.constant 0 : i32
    %c0_i32_1 = arith.constant 0 : i32
    return %c0_i32, %c0_i32_0 : i32, i32
  }
  func.func @transform_4(%arg0: i32, %arg1: i32) -> (i32, i32) {
    %c0_i32 = arith.constant 0 : i32
    %c0_i32_0 = arith.constant 0 : i32
    %c0_i32_1 = arith.constant 0 : i32
    return %c0_i32, %c0_i32_0 : i32, i32
  }
  func.func @transform_5(%arg0: i32, %arg1: i32) -> (i32, i32) {
    %c0_i32 = arith.constant 0 : i32
    %c0_i32_0 = arith.constant 0 : i32
    %c0_i32_1 = arith.constant 0 : i32
    return %c0_i32, %c0_i32_0 : i32, i32
  }
  func.func @transform_6(%arg0: i32, %arg1: i32) -> (i32, i32) {
    %c0_i32 = arith.constant 0 : i32
    %c0_i32_0 = arith.constant 0 : i32
    %c0_i32_1 = arith.constant 0 : i32
    return %c0_i32, %c0_i32_0 : i32, i32
  }
  func.func @transform_7(%arg0: i32, %arg1: i32) -> (i32, i32) {
    %c0_i32 = arith.constant 0 : i32
    %c0_i32_0 = arith.constant 0 : i32
    %c0_i32_1 = arith.constant 0 : i32
    return %c0_i32, %c0_i32_0 : i32, i32
  }
  func.func @transform_8(%arg0: i32, %arg1: i32) -> (i32, i32) {
    %c0_i32 = arith.constant 0 : i32
    %c0_i32_0 = arith.constant 0 : i32
    %c0_i32_1 = arith.constant 0 : i32
    return %c0_i32, %c0_i32_0 : i32, i32
  }
  func.func @transform_9(%arg0: i32, %arg1: i32) -> (i32, i32) {
    %c0_i32 = arith.constant 0 : i32
    %c0_i32_0 = arith.constant 0 : i32
    %c0_i32_1 = arith.constant 0 : i32
    return %c0_i32, %c0_i32_0 : i32, i32
  }
  func.func @transform_10(%arg0: i32, %arg1: i32) -> (i32, i32) {
    %c0_i32 = arith.constant 0 : i32
    %c0_i32_0 = arith.constant 0 : i32
    %c0_i32_1 = arith.constant 0 : i32
    return %c0_i32, %c0_i32_0 : i32, i32
  }
  func.func @transform_11(%arg0: i32, %arg1: i32) -> (i32, i32) {
    %c0_i32 = arith.constant 0 : i32
    %c0_i32_0 = arith.constant 0 : i32
    %c0_i32_1 = arith.constant 0 : i32
    return %c0_i32, %c0_i32_0 : i32, i32
  }
  func.func @transform_12(%arg0: i32, %arg1: i32) -> (i32, i32) {
    %c0_i32 = arith.constant 0 : i32
    %c0_i32_0 = arith.constant 0 : i32
    %c0_i32_1 = arith.constant 0 : i32
    return %c0_i32, %c0_i32_0 : i32, i32
  }
  func.func @transform_13(%arg0: i32, %arg1: i32) -> (i32, i32, i32) {
    %c0_i32 = arith.constant 0 : i32
    %c0_i32_0 = arith.constant 0 : i32
    return %arg0, %arg1, %c0_i32 : i32, i32, i32
  }
  func.func @transform_14(%arg0: i32, %arg1: i32) -> (i32, i32, i32, i32) {
    %c0_i32 = arith.constant 0 : i32
    %c0_i32_0 = arith.constant 0 : i32
    %c0_i32_1 = arith.constant 0 : i32
    return %arg0, %c0_i32, %arg1, %c0_i32_0 : i32, i32, i32, i32
  }
}

module attributes {stable_mosaic.version = 11 : i64} {
  func.func @_attn_ln_kernel(%arg0: i32, %arg1: i32, %arg2: memref<1x8x32xbf16, #tpu.memory_space<vmem>>, %arg3: memref<1x1x8xf32, #tpu.memory_space<vmem>>, %arg4: memref<32x32xbf16, #tpu.memory_space<vmem>>, %arg5: memref<32x32xbf16, #tpu.memory_space<vmem>>, %arg6: memref<32x32xbf16, #tpu.memory_space<vmem>>, %arg7: memref<32x32xbf16, #tpu.memory_space<vmem>>, %arg8: memref<1x32xf32, #tpu.memory_space<vmem>>, %arg9: memref<1x32xf32, #tpu.memory_space<vmem>>, %arg10: memref<1x32xf32, #tpu.memory_space<vmem>>, %arg11: memref<1x32xf32, #tpu.memory_space<vmem>>, %arg12: memref<1x32xf32, #tpu.memory_space<vmem>>, %arg13: memref<1x32xf32, #tpu.memory_space<vmem>>, %arg14: memref<1x8x32xbf16, #tpu.memory_space<vmem>>, %arg15: memref<1x4x8x8xf32, #tpu.memory_space<vmem>>) attributes {dimension_semantics = [#tpu.dimension_semantics<parallel>, #tpu.dimension_semantics<parallel>], iteration_bounds = array<i64: 2, 1>, scalar_prefetch = 0 : i64, scratch_operands = 0 : i64, tpu.core_type = #tpu.core_type<tc>, window_params = [{transform_indices = @transform_0, window_bounds = array<i64: 1, 8, 32>}, {transform_indices = @transform_1, window_bounds = array<i64: 1, 1, 8>}, {pipeline_mode = #tpu.pipeline_mode<synchronous>, transform_indices = @transform_2, window_bounds = array<i64: 32, 32>}, {pipeline_mode = #tpu.pipeline_mode<synchronous>, transform_indices = @transform_3, window_bounds = array<i64: 32, 32>}, {pipeline_mode = #tpu.pipeline_mode<synchronous>, transform_indices = @transform_4, window_bounds = array<i64: 32, 32>}, {pipeline_mode = #tpu.pipeline_mode<synchronous>, transform_indices = @transform_5, window_bounds = array<i64: 32, 32>}, {pipeline_mode = #tpu.pipeline_mode<synchronous>, transform_indices = @transform_6, window_bounds = array<i64: 1, 32>}, {pipeline_mode = #tpu.pipeline_mode<synchronous>, transform_indices = @transform_7, window_bounds = array<i64: 1, 32>}, {pipeline_mode = #tpu.pipeline_mode<synchronous>, transform_indices = @transform_8, window_bounds = array<i64: 1, 32>}, {pipeline_mode = #tpu.pipeline_mode<synchronous>, transform_indices = @transform_9, window_bounds = array<i64: 1, 32>}, {pipeline_mode = #tpu.pipeline_mode<synchronous>, transform_indices = @transform_10, window_bounds = array<i64: 1, 32>}, {pipeline_mode = #tpu.pipeline_mode<synchronous>, transform_indices = @transform_11, window_bounds = array<i64: 1, 32>}, {transform_indices = @transform_12, window_bounds = array<i64: 1, 8, 32>}, {transform_indices = @transform_13, window_bounds = array<i64: 1, 4, 8, 8>}]} {
    %c0 = arith.constant 0 : index
    %c0_0 = arith.constant 0 : index
    %c0_1 = arith.constant 0 : index
    %0 = vector.load %arg2[%c0, %c0_0, %c0_1] : memref<1x8x32xbf16, #tpu.memory_space<vmem>>, vector<1x8x32xbf16>
    %1 = vector.shape_cast %0 : vector<1x8x32xbf16> to vector<8x32xbf16>
    %c0_2 = arith.constant 0 : index
    %c0_3 = arith.constant 0 : index
    %2 = vector.load %arg4[%c0_2, %c0_3] : memref<32x32xbf16, #tpu.memory_space<vmem>>, vector<32x32xbf16>
    %cst = arith.constant dense<0.000000e+00> : vector<8x32xf32>
    %3 = tpu.matmul %1, %2, %cst {dimension_numbers = #tpu.dot_dimension_numbers<[1], [0], [0], [1], [0, 0, 1, 1], [], []>} : vector<8x32xbf16>, vector<32x32xbf16>, vector<8x32xf32> -> vector<8x32xf32>
    %c0_4 = arith.constant 0 : index
    %c0_5 = arith.constant 0 : index
    %4 = vector.load %arg8[%c0_4, %c0_5] : memref<1x32xf32, #tpu.memory_space<vmem>>, vector<1x32xf32>
    %5 = vector.broadcast %4 : vector<1x32xf32> to vector<8x32xf32>
    %6 = arith.addf %3, %5 : vector<8x32xf32>
    %c0_6 = arith.constant 0 : index
    %c0_7 = arith.constant 0 : index
    %7 = vector.load %arg5[%c0_6, %c0_7] : memref<32x32xbf16, #tpu.memory_space<vmem>>, vector<32x32xbf16>
    %cst_8 = arith.constant dense<0.000000e+00> : vector<8x32xf32>
    %8 = tpu.matmul %1, %7, %cst_8 {dimension_numbers = #tpu.dot_dimension_numbers<[1], [0], [0], [1], [0, 0, 1, 1], [], []>} : vector<8x32xbf16>, vector<32x32xbf16>, vector<8x32xf32> -> vector<8x32xf32>
    %c0_9 = arith.constant 0 : index
    %c0_10 = arith.constant 0 : index
    %9 = vector.load %arg9[%c0_9, %c0_10] : memref<1x32xf32, #tpu.memory_space<vmem>>, vector<1x32xf32>
    %10 = vector.broadcast %9 : vector<1x32xf32> to vector<8x32xf32>
    %11 = arith.addf %8, %10 : vector<8x32xf32>
    %c0_11 = arith.constant 0 : index
    %c0_12 = arith.constant 0 : index
    %12 = vector.load %arg6[%c0_11, %c0_12] : memref<32x32xbf16, #tpu.memory_space<vmem>>, vector<32x32xbf16>
    %cst_13 = arith.constant dense<0.000000e+00> : vector<8x32xf32>
    %13 = tpu.matmul %1, %12, %cst_13 {dimension_numbers = #tpu.dot_dimension_numbers<[1], [0], [0], [1], [0, 0, 1, 1], [], []>} : vector<8x32xbf16>, vector<32x32xbf16>, vector<8x32xf32> -> vector<8x32xf32>
    %c0_14 = arith.constant 0 : index
    %c0_15 = arith.constant 0 : index
    %14 = vector.load %arg10[%c0_14, %c0_15] : memref<1x32xf32, #tpu.memory_space<vmem>>, vector<1x32xf32>
    %15 = vector.broadcast %14 : vector<1x32xf32> to vector<8x32xf32>
    %16 = arith.addf %13, %15 : vector<8x32xf32>
    %c0_16 = arith.constant 0 : index
    %c0_17 = arith.constant 0 : index
    %c0_18 = arith.constant 0 : index
    %17 = vector.load %arg3[%c0_16, %c0_17, %c0_18] : memref<1x1x8xf32, #tpu.memory_space<vmem>>, vector<1x1x8xf32>
    %18 = vector.shape_cast %17 : vector<1x1x8xf32> to vector<1x8xf32>
    %c8_i32 = arith.constant 8 : i32
    %19 = arith.muli %arg1, %c8_i32 : i32
    %20 = tpu.iota {dimensions = array<i32: 0>} : vector<8x8xi32>
    %21 = vector.broadcast %19 : i32 to vector<8x8xi32>
    %22 = arith.addi %21, %20 : vector<8x8xi32>
    %23 = tpu.iota {dimensions = array<i32: 1>} : vector<8x8xi32>
    %24 = arith.cmpi sle, %23, %22 : vector<8x8xi32>
    %cst_19 = arith.constant 0.000000e+00 : f32
    %cst_20 = arith.constant -3.40282347E+38 : f32
    %25 = vector.broadcast %cst_19 : f32 to vector<8x8xf32>
    %26 = vector.broadcast %cst_20 : f32 to vector<8x8xf32>
    %27 = arith.select %24, %25, %26 : vector<8x8xi1>, vector<8x8xf32>
    %28 = vector.broadcast %18 : vector<1x8xf32> to vector<8x8xf32>
    %29 = arith.addf %28, %27 : vector<8x8xf32>
    %30 = vector.extract_strided_slice %6 {offsets = [0, 0], sizes = [8, 8], strides = [1, 1]} : vector<8x32xf32> to vector<8x8xf32>
    %31 = arith.truncf %30 : vector<8x8xf32> to vector<8x8xbf16>
    %32 = vector.extract_strided_slice %11 {offsets = [0, 0], sizes = [8, 8], strides = [1, 1]} : vector<8x32xf32> to vector<8x8xf32>
    %33 = arith.truncf %32 : vector<8x8xf32> to vector<8x8xbf16>
    %34 = vector.extract_strided_slice %16 {offsets = [0, 0], sizes = [8, 8], strides = [1, 1]} : vector<8x32xf32> to vector<8x8xf32>
    %35 = arith.truncf %34 : vector<8x8xf32> to vector<8x8xbf16>
    "tpu.trace_start"() <{level = 10 : i32, message = "qc,kc->qk"}> : () -> ()
    %cst_21 = arith.constant dense<0.000000e+00> : vector<8x8xf32>
    %36 = tpu.matmul %31, %33, %cst_21 {dimension_numbers = #tpu.dot_dimension_numbers<[1], [1], [0], [0], [0, 0, 1, 0], [], []>} : vector<8x8xbf16>, vector<8x8xbf16>, vector<8x8xf32> -> vector<8x8xf32>
    "tpu.trace_stop"() : () -> ()
    %cst_22 = arith.constant 0.353553385 : f32
    %37 = vector.broadcast %cst_22 : f32 to vector<8x8xf32>
    %38 = arith.mulf %36, %37 : vector<8x8xf32>
    %39 = arith.addf %38, %29 : vector<8x8xf32>
    %cst_23 = arith.constant dense<0xFF800000> : vector<8xf32>
    %40 = vector.multi_reduction <maximumf>, %39, %cst_23 [1] : vector<8x8xf32> to vector<8xf32>
    %41 = vector.shape_cast %40 : vector<8xf32> to vector<8x1xf32>
    %42 = vector.broadcast %41 : vector<8x1xf32> to vector<8x8xf32>
    %43 = arith.subf %39, %42 : vector<8x8xf32>
    %44 = math.exp %43 : vector<8x8xf32>
    %cst_24 = arith.constant dense<0.000000e+00> : vector<8xf32>
    %45 = vector.multi_reduction <add>, %44, %cst_24 [1] : vector<8x8xf32> to vector<8xf32>
    %46 = vector.shape_cast %45 : vector<8xf32> to vector<8x1xf32>
    %47 = tpu.reciprocal %46 {approx = true} : vector<8x1xf32> -> vector<8x1xf32>
    %48 = vector.broadcast %47 : vector<8x1xf32> to vector<8x8xf32>
    %49 = arith.mulf %44, %48 : vector<8x8xf32>
    %c0_25 = arith.constant 0 : index
    %c0_26 = arith.constant 0 : index
    %c0_27 = arith.constant 0 : index
    %c0_28 = arith.constant 0 : index
    %50 = vector.load %arg15[%c0_25, %c0_26, %c0_27, %c0_28] : memref<1x4x8x8xf32, #tpu.memory_space<vmem>>, vector<1x1x8x8xf32>
    %51 = vector.shape_cast %50 : vector<1x1x8x8xf32> to vector<8x8xf32>
    %52 = vector.shape_cast %49 : vector<8x8xf32> to vector<1x1x8x8xf32>
    tpu.vector_store %arg15[%c0_25, %c0_26, %c0_27, %c0_28], %52 {strides = array<i32>} : memref<1x4x8x8xf32, #tpu.memory_space<vmem>>, vector<1x1x8x8xf32>,
    %53 = arith.truncf %49 : vector<8x8xf32> to vector<8x8xbf16>
    %cst_29 = arith.constant dense<0.000000e+00> : vector<8x8xf32>
    %54 = tpu.matmul %53, %35, %cst_29 {dimension_numbers = #tpu.dot_dimension_numbers<[1], [0], [0], [1], [0, 0, 1, 1], [], []>} : vector<8x8xbf16>, vector<8x8xbf16>, vector<8x8xf32> -> vector<8x8xf32>
    %55 = vector.extract_strided_slice %6 {offsets = [0, 8], sizes = [8, 8], strides = [1, 1]} : vector<8x32xf32> to vector<8x8xf32>
    %56 = arith.truncf %55 : vector<8x8xf32> to vector<8x8xbf16>
    %57 = vector.extract_strided_slice %11 {offsets = [0, 8], sizes = [8, 8], strides = [1, 1]} : vector<8x32xf32> to vector<8x8xf32>
    %58 = arith.truncf %57 : vector<8x8xf32> to vector<8x8xbf16>
    %59 = vector.extract_strided_slice %16 {offsets = [0, 8], sizes = [8, 8], strides = [1, 1]} : vector<8x32xf32> to vector<8x8xf32>
    %60 = arith.truncf %59 : vector<8x8xf32> to vector<8x8xbf16>
    "tpu.trace_start"() <{level = 10 : i32, message = "qc,kc->qk"}> : () -> ()
    %cst_30 = arith.constant dense<0.000000e+00> : vector<8x8xf32>
    %61 = tpu.matmul %56, %58, %cst_30 {dimension_numbers = #tpu.dot_dimension_numbers<[1], [1], [0], [0], [0, 0, 1, 0], [], []>} : vector<8x8xbf16>, vector<8x8xbf16>, vector<8x8xf32> -> vector<8x8xf32>
    "tpu.trace_stop"() : () -> ()
    %cst_31 = arith.constant 0.353553385 : f32
    %62 = vector.broadcast %cst_31 : f32 to vector<8x8xf32>
    %63 = arith.mulf %61, %62 : vector<8x8xf32>
    %64 = arith.addf %63, %29 : vector<8x8xf32>
    %cst_32 = arith.constant dense<0xFF800000> : vector<8xf32>
    %65 = vector.multi_reduction <maximumf>, %64, %cst_32 [1] : vector<8x8xf32> to vector<8xf32>
    %66 = vector.shape_cast %65 : vector<8xf32> to vector<8x1xf32>
    %67 = vector.broadcast %66 : vector<8x1xf32> to vector<8x8xf32>
    %68 = arith.subf %64, %67 : vector<8x8xf32>
    %69 = math.exp %68 : vector<8x8xf32>
    %cst_33 = arith.constant dense<0.000000e+00> : vector<8xf32>
    %70 = vector.multi_reduction <add>, %69, %cst_33 [1] : vector<8x8xf32> to vector<8xf32>
    %71 = vector.shape_cast %70 : vector<8xf32> to vector<8x1xf32>
    %72 = tpu.reciprocal %71 {approx = true} : vector<8x1xf32> -> vector<8x1xf32>
    %73 = vector.broadcast %72 : vector<8x1xf32> to vector<8x8xf32>
    %74 = arith.mulf %69, %73 : vector<8x8xf32>
    %c0_34 = arith.constant 0 : index
    %c1 = arith.constant 1 : index
    %c0_35 = arith.constant 0 : index
    %c0_36 = arith.constant 0 : index
    %75 = vector.load %arg15[%c0_34, %c1, %c0_35, %c0_36] : memref<1x4x8x8xf32, #tpu.memory_space<vmem>>, vector<1x1x8x8xf32>
    %76 = vector.shape_cast %75 : vector<1x1x8x8xf32> to vector<8x8xf32>
    %77 = vector.shape_cast %74 : vector<8x8xf32> to vector<1x1x8x8xf32>
    tpu.vector_store %arg15[%c0_34, %c1, %c0_35, %c0_36], %77 {strides = array<i32>} : memref<1x4x8x8xf32, #tpu.memory_space<vmem>>, vector<1x1x8x8xf32>,
    %78 = arith.truncf %74 : vector<8x8xf32> to vector<8x8xbf16>
    %cst_37 = arith.constant dense<0.000000e+00> : vector<8x8xf32>
    %79 = tpu.matmul %78, %60, %cst_37 {dimension_numbers = #tpu.dot_dimension_numbers<[1], [0], [0], [1], [0, 0, 1, 1], [], []>} : vector<8x8xbf16>, vector<8x8xbf16>, vector<8x8xf32> -> vector<8x8xf32>
    %80 = vector.extract_strided_slice %6 {offsets = [0, 16], sizes = [8, 8], strides = [1, 1]} : vector<8x32xf32> to vector<8x8xf32>
    %81 = arith.truncf %80 : vector<8x8xf32> to vector<8x8xbf16>
    %82 = vector.extract_strided_slice %11 {offsets = [0, 16], sizes = [8, 8], strides = [1, 1]} : vector<8x32xf32> to vector<8x8xf32>
    %83 = arith.truncf %82 : vector<8x8xf32> to vector<8x8xbf16>
    %84 = vector.extract_strided_slice %16 {offsets = [0, 16], sizes = [8, 8], strides = [1, 1]} : vector<8x32xf32> to vector<8x8xf32>
    %85 = arith.truncf %84 : vector<8x8xf32> to vector<8x8xbf16>
    "tpu.trace_start"() <{level = 10 : i32, message = "qc,kc->qk"}> : () -> ()
    %cst_38 = arith.constant dense<0.000000e+00> : vector<8x8xf32>
    %86 = tpu.matmul %81, %83, %cst_38 {dimension_numbers = #tpu.dot_dimension_numbers<[1], [1], [0], [0], [0, 0, 1, 0], [], []>} : vector<8x8xbf16>, vector<8x8xbf16>, vector<8x8xf32> -> vector<8x8xf32>
    "tpu.trace_stop"() : () -> ()
    %cst_39 = arith.constant 0.353553385 : f32
    %87 = vector.broadcast %cst_39 : f32 to vector<8x8xf32>
    %88 = arith.mulf %86, %87 : vector<8x8xf32>
    %89 = arith.addf %88, %29 : vector<8x8xf32>
    %cst_40 = arith.constant dense<0xFF800000> : vector<8xf32>
    %90 = vector.multi_reduction <maximumf>, %89, %cst_40 [1] : vector<8x8xf32> to vector<8xf32>
    %91 = vector.shape_cast %90 : vector<8xf32> to vector<8x1xf32>
    %92 = vector.broadcast %91 : vector<8x1xf32> to vector<8x8xf32>
    %93 = arith.subf %89, %92 : vector<8x8xf32>
    %94 = math.exp %93 : vector<8x8xf32>
    %cst_41 = arith.constant dense<0.000000e+00> : vector<8xf32>
    %95 = vector.multi_reduction <add>, %94, %cst_41 [1] : vector<8x8xf32> to vector<8xf32>
    %96 = vector.shape_cast %95 : vector<8xf32> to vector<8x1xf32>
    %97 = tpu.reciprocal %96 {approx = true} : vector<8x1xf32> -> vector<8x1xf32>
    %98 = vector.broadcast %97 : vector<8x1xf32> to vector<8x8xf32>
    %99 = arith.mulf %94, %98 : vector<8x8xf32>
    %c0_42 = arith.constant 0 : index
    %c2 = arith.constant 2 : index
    %c0_43 = arith.constant 0 : index
    %c0_44 = arith.constant 0 : index
    %100 = vector.load %arg15[%c0_42, %c2, %c0_43, %c0_44] : memref<1x4x8x8xf32, #tpu.memory_space<vmem>>, vector<1x1x8x8xf32>
    %101 = vector.shape_cast %100 : vector<1x1x8x8xf32> to vector<8x8xf32>
    %102 = vector.shape_cast %99 : vector<8x8xf32> to vector<1x1x8x8xf32>
    tpu.vector_store %arg15[%c0_42, %c2, %c0_43, %c0_44], %102 {strides = array<i32>} : memref<1x4x8x8xf32, #tpu.memory_space<vmem>>, vector<1x1x8x8xf32>,
    %103 = arith.truncf %99 : vector<8x8xf32> to vector<8x8xbf16>
    %cst_45 = arith.constant dense<0.000000e+00> : vector<8x8xf32>
    %104 = tpu.matmul %103, %85, %cst_45 {dimension_numbers = #tpu.dot_dimension_numbers<[1], [0], [0], [1], [0, 0, 1, 1], [], []>} : vector<8x8xbf16>, vector<8x8xbf16>, vector<8x8xf32> -> vector<8x8xf32>
    %105 = vector.extract_strided_slice %6 {offsets = [0, 24], sizes = [8, 8], strides = [1, 1]} : vector<8x32xf32> to vector<8x8xf32>
    %106 = arith.truncf %105 : vector<8x8xf32> to vector<8x8xbf16>
    %107 = vector.extract_strided_slice %11 {offsets = [0, 24], sizes = [8, 8], strides = [1, 1]} : vector<8x32xf32> to vector<8x8xf32>
    %108 = arith.truncf %107 : vector<8x8xf32> to vector<8x8xbf16>
    %109 = vector.extract_strided_slice %16 {offsets = [0, 24], sizes = [8, 8], strides = [1, 1]} : vector<8x32xf32> to vector<8x8xf32>
    %110 = arith.truncf %109 : vector<8x8xf32> to vector<8x8xbf16>
    "tpu.trace_start"() <{level = 10 : i32, message = "qc,kc->qk"}> : () -> ()
    %cst_46 = arith.constant dense<0.000000e+00> : vector<8x8xf32>
    %111 = tpu.matmul %106, %108, %cst_46 {dimension_numbers = #tpu.dot_dimension_numbers<[1], [1], [0], [0], [0, 0, 1, 0], [], []>} : vector<8x8xbf16>, vector<8x8xbf16>, vector<8x8xf32> -> vector<8x8xf32>
    "tpu.trace_stop"() : () -> ()
    %cst_47 = arith.constant 0.353553385 : f32
    %112 = vector.broadcast %cst_47 : f32 to vector<8x8xf32>
    %113 = arith.mulf %111, %112 : vector<8x8xf32>
    %114 = arith.addf %113, %29 : vector<8x8xf32>
    %cst_48 = arith.constant dense<0xFF800000> : vector<8xf32>
    %115 = vector.multi_reduction <maximumf>, %114, %cst_48 [1] : vector<8x8xf32> to vector<8xf32>
    %116 = vector.shape_cast %115 : vector<8xf32> to vector<8x1xf32>
    %117 = vector.broadcast %116 : vector<8x1xf32> to vector<8x8xf32>
    %118 = arith.subf %114, %117 : vector<8x8xf32>
    %119 = math.exp %118 : vector<8x8xf32>
    %cst_49 = arith.constant dense<0.000000e+00> : vector<8xf32>
    %120 = vector.multi_reduction <add>, %119, %cst_49 [1] : vector<8x8xf32> to vector<8xf32>
    %121 = vector.shape_cast %120 : vector<8xf32> to vector<8x1xf32>
    %122 = tpu.reciprocal %121 {approx = true} : vector<8x1xf32> -> vector<8x1xf32>
    %123 = vector.broadcast %122 : vector<8x1xf32> to vector<8x8xf32>
    %124 = arith.mulf %119, %123 : vector<8x8xf32>
    %c0_50 = arith.constant 0 : index
    %c3 = arith.constant 3 : index
    %c0_51 = arith.constant 0 : index
    %c0_52 = arith.constant 0 : index
    %125 = vector.load %arg15[%c0_50, %c3, %c0_51, %c0_52] : memref<1x4x8x8xf32, #tpu.memory_space<vmem>>, vector<1x1x8x8xf32>
    %126 = vector.shape_cast %125 : vector<1x1x8x8xf32> to vector<8x8xf32>
    %127 = vector.shape_cast %124 : vector<8x8xf32> to vector<1x1x8x8xf32>
    tpu.vector_store %arg15[%c0_50, %c3, %c0_51, %c0_52], %127 {strides = array<i32>} : memref<1x4x8x8xf32, #tpu.memory_space<vmem>>, vector<1x1x8x8xf32>,
    %128 = arith.truncf %124 : vector<8x8xf32> to vector<8x8xbf16>
    %cst_53 = arith.constant dense<0.000000e+00> : vector<8x8xf32>
    %129 = tpu.matmul %128, %110, %cst_53 {dimension_numbers = #tpu.dot_dimension_numbers<[1], [0], [0], [1], [0, 0, 1, 1], [], []>} : vector<8x8xbf16>, vector<8x8xbf16>, vector<8x8xf32> -> vector<8x8xf32>
    %130 = tpu.concatenate %54, %79, %104, %129 in 1 : vector<8x8xf32>, vector<8x8xf32>, vector<8x8xf32>, vector<8x8xf32> -> vector<8x32xf32>
    %131 = arith.truncf %130 : vector<8x32xf32> to vector<8x32xbf16>
    %c0_54 = arith.constant 0 : index
    %c0_55 = arith.constant 0 : index
    %132 = vector.load %arg7[%c0_54, %c0_55] : memref<32x32xbf16, #tpu.memory_space<vmem>>, vector<32x32xbf16>
    %cst_56 = arith.constant dense<0.000000e+00> : vector<8x32xf32>
    %133 = tpu.matmul %131, %132, %cst_56 {dimension_numbers = #tpu.dot_dimension_numbers<[1], [0], [0], [1], [0, 0, 1, 1], [], []>} : vector<8x32xbf16>, vector<32x32xbf16>, vector<8x32xf32> -> vector<8x32xf32>
    %c0_57 = arith.constant 0 : index
    %c0_58 = arith.constant 0 : index
    %134 = vector.load %arg11[%c0_57, %c0_58] : memref<1x32xf32, #tpu.memory_space<vmem>>, vector<1x32xf32>
    %135 = vector.broadcast %134 : vector<1x32xf32> to vector<8x32xf32>
    %136 = arith.addf %133, %135 : vector<8x32xf32>
    %137 = arith.extf %1 : vector<8x32xbf16> to vector<8x32xf32>
    %138 = arith.addf %136, %137 : vector<8x32xf32>
    %cst_59 = arith.constant dense<0.000000e+00> : vector<8xf32>
    %139 = vector.multi_reduction <add>, %138, %cst_59 [1] : vector<8x32xf32> to vector<8xf32>
    %140 = vector.shape_cast %139 : vector<8xf32> to vector<8x1xf32>
    %cst_60 = arith.constant 3.200000e+01 : f32
    %141 = vector.broadcast %cst_60 : f32 to vector<8x1xf32>
    %142 = arith.divf %140, %141 : vector<8x1xf32>
    %143 = vector.broadcast %142 : vector<8x1xf32> to vector<8x32xf32>
    %144 = arith.subf %138, %143 : vector<8x32xf32>
    %145 = arith.mulf %144, %144 : vector<8x32xf32>
    %cst_61 = arith.constant dense<0.000000e+00> : vector<8xf32>
    %146 = vector.multi_reduction <add>, %145, %cst_61 [1] : vector<8x32xf32> to vector<8xf32>
    %147 = vector.shape_cast %146 : vector<8xf32> to vector<8x1xf32>
    %cst_62 = arith.constant 3.200000e+01 : f32
    %148 = vector.broadcast %cst_62 : f32 to vector<8x1xf32>
    %149 = arith.divf %147, %148 : vector<8x1xf32>
    %cst_63 = arith.constant 9.99999974E-6 : f32
    %150 = vector.broadcast %cst_63 : f32 to vector<8x1xf32>
    %151 = arith.addf %149, %150 : vector<8x1xf32>
    %152 = math.rsqrt %151 : vector<8x1xf32>
    %153 = vector.broadcast %152 : vector<8x1xf32> to vector<8x32xf32>
    %154 = arith.mulf %144, %153 : vector<8x32xf32>
    %c0_64 = arith.constant 0 : index
    %c0_65 = arith.constant 0 : index
    %155 = vector.load %arg12[%c0_64, %c0_65] : memref<1x32xf32, #tpu.memory_space<vmem>>, vector<1x32xf32>
    %156 = vector.broadcast %155 : vector<1x32xf32> to vector<8x32xf32>
    %157 = arith.mulf %154, %156 : vector<8x32xf32>
    %c0_66 = arith.constant 0 : index
    %c0_67 = arith.constant 0 : index
    %158 = vector.load %arg13[%c0_66, %c0_67] : memref<1x32xf32, #tpu.memory_space<vmem>>, vector<1x32xf32>
    %159 = vector.broadcast %158 : vector<1x32xf32> to vector<8x32xf32>
    %160 = arith.addf %157, %159 : vector<8x32xf32>
    %161 = arith.truncf %160 : vector<8x32xf32> to vector<8x32xbf16>
    %c0_68 = arith.constant 0 : index
    %c0_69 = arith.constant 0 : index
    %c0_70 = arith.constant 0 : index
    %162 = vector.load %arg14[%c0_68, %c0_69, %c0_70] : memref<1x8x32xbf16, #tpu.memory_space<vmem>>, vector<1x8x32xbf16>
    %163 = vector.shape_cast %162 : vector<1x8x32xbf16> to vector<8x32xbf16>
    %164 = vector.shape_cast %161 : vector<8x32xbf16> to vector<1x8x32xbf16>
    tpu.vector_store %arg14[%c0_68, %c0_69, %c0_70], %164 {strides = array<i32>} : memref<1x8x32xbf16, #tpu.memory_space<vmem>>, vector<1x8x32xbf16>,
    return
  }
  func.func @transform_0(%arg0: i32, %arg1: i32) -> (i32, i32, i32) {
    %c0_i32 = arith.constant 0 : i32
    %c0_i32_0 = arith.constant 0 : i32
    %c0_i32_1 = arith.constant 0 : i32
    return %arg0, %c0_i32, %c0_i32_0 : i32, i32, i32
  }
  func.func @transform_1(%arg0: i32, %arg1: i32) -> (i32, i32, i32) {
    %c0_i32 = arith.constant 0 : i32
    %c0_i32_0 = arith.constant 0 : i32
    %c0_i32_1 = arith.constant 0 : i32
    return %arg0, %c0_i32, %c0_i32_0 : i32, i32, i32
  }
  func.func @transform_2(%arg0: i32, %arg1: i32) -> (i32, i32) {
    %c0_i32 = arith.constant 0 : i32
    %c0_i32_0 = arith.constant 0 : i32
    %c0_i32_1 = arith.constant 0 : i32
    return %c0_i32, %c0_i32_0 : i32, i32
  }
  func.func @transform_3(%arg0: i32, %arg1: i32) -> (i32, i32) {
    %c0_i32 = arith.constant 0 : i32
    %c0_i32_0 = arith.constant 0 : i32
    %c0_i32_1 = arith.constant 0 : i32
    return %c0_i32, %c0_i32_0 : i32, i32
  }
  func.func @transform_4(%arg0: i32, %arg1: i32) -> (i32, i32) {
    %c0_i32 = arith.constant 0 : i32
    %c0_i32_0 = arith.constant 0 : i32
    %c0_i32_1 = arith.constant 0 : i32
    return %c0_i32, %c0_i32_0 : i32, i32
  }
  func.func @transform_5(%arg0: i32, %arg1: i32) -> (i32, i32) {
    %c0_i32 = arith.constant 0 : i32
    %c0_i32_0 = arith.constant 0 : i32
    %c0_i32_1 = arith.constant 0 : i32
    return %c0_i32, %c0_i32_0 : i32, i32
  }
  func.func @transform_6(%arg0: i32, %arg1: i32) -> (i32, i32) {
    %c0_i32 = arith.constant 0 : i32
    %c0_i32_0 = arith.constant 0 : i32
    %c0_i32_1 = arith.constant 0 : i32
    return %c0_i32, %c0_i32_0 : i32, i32
  }
  func.func @transform_7(%arg0: i32, %arg1: i32) -> (i32, i32) {
    %c0_i32 = arith.constant 0 : i32
    %c0_i32_0 = arith.constant 0 : i32
    %c0_i32_1 = arith.constant 0 : i32
    return %c0_i32, %c0_i32_0 : i32, i32
  }
  func.func @transform_8(%arg0: i32, %arg1: i32) -> (i32, i32) {
    %c0_i32 = arith.constant 0 : i32
    %c0_i32_0 = arith.constant 0 : i32
    %c0_i32_1 = arith.constant 0 : i32
    return %c0_i32, %c0_i32_0 : i32, i32
  }
  func.func @transform_9(%arg0: i32, %arg1: i32) -> (i32, i32) {
    %c0_i32 = arith.constant 0 : i32
    %c0_i32_0 = arith.constant 0 : i32
    %c0_i32_1 = arith.constant 0 : i32
    return %c0_i32, %c0_i32_0 : i32, i32
  }
  func.func @transform_10(%arg0: i32, %arg1: i32) -> (i32, i32) {
    %c0_i32 = arith.constant 0 : i32
    %c0_i32_0 = arith.constant 0 : i32
    %c0_i32_1 = arith.constant 0 : i32
    return %c0_i32, %c0_i32_0 : i32, i32
  }
  func.func @transform_11(%arg0: i32, %arg1: i32) -> (i32, i32) {
    %c0_i32 = arith.constant 0 : i32
    %c0_i32_0 = arith.constant 0 : i32
    %c0_i32_1 = arith.constant 0 : i32
    return %c0_i32, %c0_i32_0 : i32, i32
  }
  func.func @transform_12(%arg0: i32, %arg1: i32) -> (i32, i32, i32) {
    %c0_i32 = arith.constant 0 : i32
    %c0_i32_0 = arith.constant 0 : i32
    return %arg0, %arg1, %c0_i32 : i32, i32, i32
  }
  func.func @transform_13(%arg0: i32, %arg1: i32) -> (i32, i32, i32, i32) {
    %c0_i32 = arith.constant 0 : i32
    %c0_i32_0 = arith.constant 0 : i32
    %c0_i32_1 = arith.constant 0 : i32
    return %arg0, %c0_i32, %arg1, %c0_i32_0 : i32, i32, i32, i32
  }
}

module attributes {stable_mosaic.version = 11 : i64} {
  func.func @_ffn_ln_kernel(%arg0: i32, %arg1: i32, %arg2: memref<1x8x32xbf16, #tpu.memory_space<vmem>>, %arg3: memref<32x128xbf16, #tpu.memory_space<vmem>>, %arg4: memref<1x128xf32, #tpu.memory_space<vmem>>, %arg5: memref<128x32xbf16, #tpu.memory_space<vmem>>, %arg6: memref<1x32xf32, #tpu.memory_space<vmem>>, %arg7: memref<1x32xf32, #tpu.memory_space<vmem>>, %arg8: memref<1x32xf32, #tpu.memory_space<vmem>>, %arg9: memref<1x8x32xbf16, #tpu.memory_space<vmem>>) attributes {dimension_semantics = [#tpu.dimension_semantics<parallel>, #tpu.dimension_semantics<parallel>], iteration_bounds = array<i64: 2, 1>, scalar_prefetch = 0 : i64, scratch_operands = 0 : i64, tpu.core_type = #tpu.core_type<tc>, window_params = [{transform_indices = @transform_0, window_bounds = array<i64: 1, 8, 32>}, {pipeline_mode = #tpu.pipeline_mode<synchronous>, transform_indices = @transform_1, window_bounds = array<i64: 32, 128>}, {pipeline_mode = #tpu.pipeline_mode<synchronous>, transform_indices = @transform_2, window_bounds = array<i64: 1, 128>}, {pipeline_mode = #tpu.pipeline_mode<synchronous>, transform_indices = @transform_3, window_bounds = array<i64: 128, 32>}, {pipeline_mode = #tpu.pipeline_mode<synchronous>, transform_indices = @transform_4, window_bounds = array<i64: 1, 32>}, {pipeline_mode = #tpu.pipeline_mode<synchronous>, transform_indices = @transform_5, window_bounds = array<i64: 1, 32>}, {pipeline_mode = #tpu.pipeline_mode<synchronous>, transform_indices = @transform_6, window_bounds = array<i64: 1, 32>}, {transform_indices = @transform_7, window_bounds = array<i64: 1, 8, 32>}]} {
    %c0 = arith.constant 0 : index
    %c0_0 = arith.constant 0 : index
    %c0_1 = arith.constant 0 : index
    %0 = vector.load %arg2[%c0, %c0_0, %c0_1] : memref<1x8x32xbf16, #tpu.memory_space<vmem>>, vector<1x8x32xbf16>
    %1 = vector.shape_cast %0 : vector<1x8x32xbf16> to vector<8x32xbf16>
    %c0_2 = arith.constant 0 : index
    %c0_3 = arith.constant 0 : index
    %2 = vector.load %arg3[%c0_2, %c0_3] : memref<32x128xbf16, #tpu.memory_space<vmem>>, vector<32x128xbf16>
    %cst = arith.constant dense<0.000000e+00> : vector<8x128xf32>
    %3 = tpu.matmul %1, %2, %cst {dimension_numbers = #tpu.dot_dimension_numbers<[1], [0], [0], [1], [0, 0, 1, 1], [], []>} : vector<8x32xbf16>, vector<32x128xbf16>, vector<8x128xf32> -> vector<8x128xf32>
    %c0_4 = arith.constant 0 : index
    %c0_5 = arith.constant 0 : index
    %4 = vector.load %arg4[%c0_4, %c0_5] : memref<1x128xf32, #tpu.memory_space<vmem>>, vector<1x128xf32>
    %5 = vector.broadcast %4 : vector<1x128xf32> to vector<8x128xf32>
    %6 = arith.addf %3, %5 : vector<8x128xf32>
    %cst_6 = arith.constant 5.000000e-01 : f32
    %7 = vector.broadcast %cst_6 : f32 to vector<8x128xf32>
    %8 = arith.mulf %7, %6 : vector<8x128xf32>
    %cst_7 = arith.constant 4.471500e-02 : f32
    %9 = vector.broadcast %cst_7 : f32 to vector<8x128xf32>
    %10 = arith.mulf %9, %6 : vector<8x128xf32>
    %11 = arith.mulf %10, %6 : vector<8x128xf32>
    %12 = arith.mulf %11, %6 : vector<8x128xf32>
    %13 = arith.addf %6, %12 : vector<8x128xf32>
    %cst_8 = arith.constant 0.797884583 : f32
    %14 = vector.broadcast %cst_8 : f32 to vector<8x128xf32>
    %15 = arith.mulf %14, %13 : vector<8x128xf32>
    %16 = math.tanh %15 : vector<8x128xf32>
    %cst_9 = arith.constant 1.000000e+00 : f32
    %17 = vector.broadcast %cst_9 : f32 to vector<8x128xf32>
    %18 = arith.addf %17, %16 : vector<8x128xf32>
    %19 = arith.mulf %8, %18 : vector<8x128xf32>
    %20 = arith.truncf %19 : vector<8x128xf32> to vector<8x128xbf16>
    %c0_10 = arith.constant 0 : index
    %c0_11 = arith.constant 0 : index
    %21 = vector.load %arg5[%c0_10, %c0_11] : memref<128x32xbf16, #tpu.memory_space<vmem>>, vector<128x32xbf16>
    %cst_12 = arith.constant dense<0.000000e+00> : vector<8x32xf32>
    %22 = tpu.matmul %20, %21, %cst_12 {dimension_numbers = #tpu.dot_dimension_numbers<[1], [0], [0], [1], [0, 0, 1, 1], [], []>} : vector<8x128xbf16>, vector<128x32xbf16>, vector<8x32xf32> -> vector<8x32xf32>
    %c0_13 = arith.constant 0 : index
    %c0_14 = arith.constant 0 : index
    %23 = vector.load %arg6[%c0_13, %c0_14] : memref<1x32xf32, #tpu.memory_space<vmem>>, vector<1x32xf32>
    %24 = vector.broadcast %23 : vector<1x32xf32> to vector<8x32xf32>
    %25 = arith.addf %22, %24 : vector<8x32xf32>
    %26 = arith.extf %1 : vector<8x32xbf16> to vector<8x32xf32>
    %27 = arith.addf %25, %26 : vector<8x32xf32>
    %cst_15 = arith.constant dense<0.000000e+00> : vector<8xf32>
    %28 = vector.multi_reduction <add>, %27, %cst_15 [1] : vector<8x32xf32> to vector<8xf32>
    %29 = vector.shape_cast %28 : vector<8xf32> to vector<8x1xf32>
    %cst_16 = arith.constant 3.200000e+01 : f32
    %30 = vector.broadcast %cst_16 : f32 to vector<8x1xf32>
    %31 = arith.divf %29, %30 : vector<8x1xf32>
    %32 = vector.broadcast %31 : vector<8x1xf32> to vector<8x32xf32>
    %33 = arith.subf %27, %32 : vector<8x32xf32>
    %34 = arith.mulf %33, %33 : vector<8x32xf32>
    %cst_17 = arith.constant dense<0.000000e+00> : vector<8xf32>
    %35 = vector.multi_reduction <add>, %34, %cst_17 [1] : vector<8x32xf32> to vector<8xf32>
    %36 = vector.shape_cast %35 : vector<8xf32> to vector<8x1xf32>
    %cst_18 = arith.constant 3.200000e+01 : f32
    %37 = vector.broadcast %cst_18 : f32 to vector<8x1xf32>
    %38 = arith.divf %36, %37 : vector<8x1xf32>
    %cst_19 = arith.constant 9.99999996E-13 : f32
    %39 = vector.broadcast %cst_19 : f32 to vector<8x1xf32>
    %40 = arith.addf %38, %39 : vector<8x1xf32>
    %41 = math.rsqrt %40 : vector<8x1xf32>
    %42 = vector.broadcast %41 : vector<8x1xf32> to vector<8x32xf32>
    %43 = arith.mulf %33, %42 : vector<8x32xf32>
    %c0_20 = arith.constant 0 : index
    %c0_21 = arith.constant 0 : index
    %44 = vector.load %arg7[%c0_20, %c0_21] : memref<1x32xf32, #tpu.memory_space<vmem>>, vector<1x32xf32>
    %45 = vector.broadcast %44 : vector<1x32xf32> to vector<8x32xf32>
    %46 = arith.mulf %43, %45 : vector<8x32xf32>
    %c0_22 = arith.constant 0 : index
    %c0_23 = arith.constant 0 : index
    %47 = vector.load %arg8[%c0_22, %c0_23] : memref<1x32xf32, #tpu.memory_space<vmem>>, vector<1x32xf32>
    %48 = vector.broadcast %47 : vector<1x32xf32> to vector<8x32xf32>
    %49 = arith.addf %46, %48 : vector<8x32xf32>
    %50 = arith.truncf %49 : vector<8x32xf32> to vector<8x32xbf16>
    %c0_24 = arith.constant 0 : index
    %c0_25 = arith.constant 0 : index
    %c0_26 = arith.constant 0 : index
    %51 = vector.load %arg9[%c0_24, %c0_25, %c0_26] : memref<1x8x32xbf16, #tpu.memory_space<vmem>>, vector<1x8x32xbf16>
    %52 = vector.shape_cast %51 : vector<1x8x32xbf16> to vector<8x32xbf16>
    %53 = vector.shape_cast %50 : vector<8x32xbf16> to vector<1x8x32xbf16>
    tpu.vector_store %arg9[%c0_24, %c0_25, %c0_26], %53 {strides = array<i32>} : memref<1x8x32xbf16, #tpu.memory_space<vmem>>, vector<1x8x32xbf16>,
    return
  }
  func.func @transform_0(%arg0: i32, %arg1: i32) -> (i32, i32, i32) {
    %c0_i32 = arith.constant 0 : i32
    %c0_i32_0 = arith.constant 0 : i32
    return %arg0, %arg1, %c0_i32 : i32, i32, i32
  }
  func.func @transform_1(%arg0: i32, %arg1: i32) -> (i32, i32) {
    %c0_i32 = arith.constant 0 : i32
    %c0_i32_0 = arith.constant 0 : i32
    %c0_i32_1 = arith.constant 0 : i32
    return %c0_i32, %c0_i32_0 : i32, i32
  }
  func.func @transform_2(%arg0: i32, %arg1: i32) -> (i32, i32) {
    %c0_i32 = arith.constant 0 : i32
    %c0_i32_0 = arith.constant 0 : i32
    %c0_i32_1 = arith.constant 0 : i32
    return %c0_i32, %c0_i32_0 : i32, i32
  }
  func.func @transform_3(%arg0: i32, %arg1: i32) -> (i32, i32) {
    %c0_i32 = arith.constant 0 : i32
    %c0_i32_0 = arith.constant 0 : i32
    %c0_i32_1 = arith.constant 0 : i32
    return %c0_i32, %c0_i32_0 : i32, i32
  }
  func.func @transform_4(%arg0: i32, %arg1: i32) -> (i32, i32) {
    %c0_i32 = arith.constant 0 : i32
    %c0_i32_0 = arith.constant 0 : i32
    %c0_i32_1 = arith.constant 0 : i32
    return %c0_i32, %c0_i32_0 : i32, i32
  }
  func.func @transform_5(%arg0: i32, %arg1: i32) -> (i32, i32) {
    %c0_i32 = arith.constant 0 : i32
    %c0_i32_0 = arith.constant 0 : i32
    %c0_i32_1 = arith.constant 0 : i32
    return %c0_i32, %c0_i32_0 : i32, i32
  }
  func.func @transform_6(%arg0: i32, %arg1: i32) -> (i32, i32) {
    %c0_i32 = arith.constant 0 : i32
    %c0_i32_0 = arith.constant 0 : i32
    %c0_i32_1 = arith.constant 0 : i32
    return %c0_i32, %c0_i32_0 : i32, i32
  }
  func.func @transform_7(%arg0: i32, %arg1: i32) -> (i32, i32, i32) {
    %c0_i32 = arith.constant 0 : i32
    %c0_i32_0 = arith.constant 0 : i32
    return %arg0, %arg1, %c0_i32 : i32, i32, i32
  }
}

</mosaic_0001>

<llo_original>
// kernel: transformer_forward.11
$region0: #{transformer_forward.11}
  #allocation0 [shape = 'u32[]', space=smem, size = 0x4, offset = 0x4, fixed_abs, tag = 'smem constant byte address 0x4 - core index']
  #allocation1 [shape = 'u32[144,128]{1,0:T(1,128)}', space=vmem, size = 0x12000, scoped, tag = 'internal scratch']
  %s0 = inlined_call_operand.hbm [shape: bf16[2,8,32], index: 0, kind: input, shape index: {}]
  %s1 = inlined_call_operand.hbm [shape: bf16[32,128], index: 1, kind: input, shape index: {}]
  %s2 = inlined_call_operand.hbm [shape: f32[1,128], index: 2, kind: input, shape index: {}]
  %s3 = inlined_call_operand.hbm [shape: bf16[128,32], index: 3, kind: input, shape index: {}]
  %s4 = inlined_call_operand.hbm [shape: f32[1,32], index: 4, kind: input, shape index: {}]
  %s5 = inlined_call_operand.hbm [shape: f32[1,32], index: 5, kind: input, shape index: {}]
  %s6 = inlined_call_operand.hbm [shape: f32[1,32], index: 6, kind: input, shape index: {}]
  %s7 = inlined_call_operand.hbm [shape: bf16[2,8,32], index: 7, kind: output, shape index: {}]
  %s8 = sld [smem:[#allocation0]]
  $region89: #{transformer_forward.11} parent=0
    _
  %s10 = ssub.s32 1, %s8
  %s11 = scalar_select 0, %s10, %s8
  $region1: #{transformer_forward.11} parent=0
    #allocation2 [shape = 'u8[4096]{0}', space=vmem, size = 0x1000, scoped, tag = 'input window, operand 0']
    #allocation3 [shape = 's32[2]{0}', space=sflag, size = 0x8, scoped, tag = 'scoped memory for transformer_forward.11']
    #allocation4 [shape = 's32[2]{0}', space=sflag, size = 0x8, scoped, tag = 'scoped memory for transformer_forward.11']
    #allocation5 [shape = 'u8[8192]{0}', space=vmem, size = 0x2000, scoped, tag = 'input window, operand 1, single buffered']
    #allocation6 [shape = 's32[1]{0}', space=sflag, size = 0x4, scoped, tag = 'scoped memory for transformer_forward.11']
    #allocation7 [shape = 'u8[512]{0}', space=vmem, size = 0x400, scoped, tag = 'input window, operand 2, single buffered']
    #allocation8 [shape = 'u8[32768]{0}', space=vmem, size = 0x8000, scoped, tag = 'input window, operand 3, single buffered']
    #allocation9 [shape = 's32[1]{0}', space=sflag, size = 0x4, scoped, tag = 'scoped memory for transformer_forward.11']
    #allocation10 [shape = 'u8[512]{0}', space=vmem, size = 0x400, scoped, tag = 'input window, operand 4, single buffered']
    #allocation11 [shape = 'u8[512]{0}', space=vmem, size = 0x400, scoped, tag = 'input window, operand 5, single buffered']
    #allocation12 [shape = 's32[1]{0}', space=sflag, size = 0x4, scoped, tag = 'scoped memory for transformer_forward.11']
    #allocation13 [shape = 'u8[512]{0}', space=vmem, size = 0x400, scoped, tag = 'input window, operand 6, single buffered']
    #allocation14 [shape = 'u8[4096]{0}', space=vmem, size = 0x1000, scoped, tag = 'output window, operand 0']
    %12 = vsyncpa [#allocation3], 0
    %s13 = scalar_lea.sflag [#allocation3], 1
    %14 = vsyncpa %s13, 0
    %15 = vsyncpa [#allocation6], 0
    %16 = vsyncpa [#allocation9], 0
    %17 = vsyncpa [#allocation12], 0
    %18 = vsyncpa [#allocation4], 0
    %s19 = scalar_lea.sflag [#allocation4], 1
    %20 = vsyncpa %s19, 0
    loop: start=0, step=1, limit=4
    $region2: #{transformer_forward.11} parent=1 // loop_pre_header
      _
    $region3: #{transformer_forward.11} parent=1 // loop_header
      %s22 = sphi 0, %s26
      %p23 = scmp.ge.s32.totalorder %s22, 4
      %s29 = sphi 0, %s41
      %s30 = sphi 0, %s37
      %s31 = sphi 0, %s29
      %s32 = sphi 0, %s30
      %s33 = sphi 0, %s31
      %s34 = sphi 0, %s32
      %s46 = sphi 0, %s48
      %s49 = sphi 0, %s46
      %s50 = sphi 0, %s49
      %s66 = sphi 0, %s50
      %s70 = sphi 0, %s70
      %s72 = sphi 0, %s70
      %s73 = sphi 0, %s72
      %s87 = sphi 0, %s73
      %s91 = sphi 0, %s91
      %s93 = sphi 0, %s91
      %s94 = sphi 0, %s93
      %s108 = sphi 0, %s94
      %s112 = sphi 0, %s112
      %s114 = sphi 0, %s112
      %s115 = sphi 0, %s114
      %s129 = sphi 0, %s115
      %s133 = sphi 0, %s133
      %s135 = sphi 0, %s133
      %s136 = sphi 0, %s135
      %s150 = sphi 0, %s136
      %s154 = sphi 0, %s154
      %s156 = sphi 0, %s154
      %s157 = sphi 0, %s156
      %s171 = sphi 0, %s157
      %s175 = sphi 0, %s175
      %s177 = sphi 0, %s175
      %s178 = sphi 0, %s177
      %s192 = sphi 0, %s178
      %s200 = sphi 0, %s202
      %s203 = sphi 0, %s200
      %s204 = sphi 0, %s203
      %s220 = sphi 0, %s204
    $region4: #{transformer_forward.11} parent=1 // loop_header_branch
      %25 = sbr.rel (%p23) target = $region8
    $region5: #{transformer_forward.11} parent=1 // loop_body
      %s27 = ssub.s32 %s22, 1
      %s28 = ssub.s32 %s22, 2
      %s35 = sadd.s32 1, %s30
      %p36 = scmp.ge.s32.totalorder %s35, 1
      %s37 = scalar_select %p36, 0, %s35
      %s38 = sadd.s32 1, %s29
      %s39 = scalar_select %p36, %s38, %s29
      %p40 = scmp.ge.s32.totalorder %s39, 2
      %s41 = scalar_select %p40, 0, %s39
      %s42 = ssub.s32 %s29, %s41
      %s43 = ssub.s32 %s30, %s37
      %s44 = sor.u32 %s42, %s43
      %p45 = scmp.eq.s32.totalorder %s44, 0
      %s47 = sadd.s32 %s46, 1
      %s48 = scalar_select %p45, %s46, %s47
      %p51 = pneg %p45
      %p52 = scmp.eq.s32.totalorder %s22, 1
      %p53 = por %p51, %p52
      %p54 = scmp.ne.s32.totalorder %s46, %s49
      %p55 = scmp.eq.s32.totalorder %s22, 0
      %p56 = por %p54, %p55
      %p57 = scmp.ne.s32.totalorder %s46, %s49
      %p58 = scmp.eq.s32.totalorder %s27, 1
      %p59 = por %p57, %p58
      %p60 = scmp.ne.s32.totalorder %s49, %s50
      %p61 = scmp.eq.s32.totalorder %s27, 0
      %p62 = por %p60, %p61
      %p63 = scmp.ne.s32.totalorder %s49, %s50
      %p64 = scmp.eq.s32.totalorder %s28, 1
      %p65 = por %p63, %p64
      %p67 = scmp.ne.s32.totalorder %s50, %s66
      %p68 = scmp.eq.s32.totalorder %s28, 0
      %p69 = por %p67, %p68
      %s71 = sadd.s32 %s70, 1
      %p74 = scmp.eq.s32.totalorder %s22, 1
      %p75 = scmp.ne.s32.totalorder %s70, %s72
      %p76 = scmp.eq.s32.totalorder %s22, 0
      %p77 = por %p75, %p76
      %p78 = scmp.ne.s32.totalorder %s70, %s72
      %p79 = scmp.eq.s32.totalorder %s27, 1
      %p80 = por %p78, %p79
      %p81 = scmp.ne.s32.totalorder %s72, %s73
      %p82 = scmp.eq.s32.totalorder %s27, 0
      %p83 = por %p81, %p82
      %p84 = scmp.ne.s32.totalorder %s72, %s73
      %p85 = scmp.eq.s32.totalorder %s28, 1
      %p86 = por %p84, %p85
      %p88 = scmp.ne.s32.totalorder %s73, %s87
      %p89 = scmp.eq.s32.totalorder %s28, 0
      %p90 = por %p88, %p89
      %s92 = sadd.s32 %s91, 1
      %p95 = scmp.eq.s32.totalorder %s22, 1
      %p96 = scmp.ne.s32.totalorder %s91, %s93
      %p97 = scmp.eq.s32.totalorder %s22, 0
      %p98 = por %p96, %p97
      %p99 = scmp.ne.s32.totalorder %s91, %s93
      %p100 = scmp.eq.s32.totalorder %s27, 1
      %p101 = por %p99, %p100
      %p102 = scmp.ne.s32.totalorder %s93, %s94
      %p103 = scmp.eq.s32.totalorder %s27, 0
      %p104 = por %p102, %p103
      %p105 = scmp.ne.s32.totalorder %s93, %s94
      %p106 = scmp.eq.s32.totalorder %s28, 1
      %p107 = por %p105, %p106
      %p109 = scmp.ne.s32.totalorder %s94, %s108
      %p110 = scmp.eq.s32.totalorder %s28, 0
      %p111 = por %p109, %p110
      %s113 = sadd.s32 %s112, 1
      %p116 = scmp.eq.s32.totalorder %s22, 1
      %p117 = scmp.ne.s32.totalorder %s112, %s114
      %p118 = scmp.eq.s32.totalorder %s22, 0
      %p119 = por %p117, %p118
      %p120 = scmp.ne.s32.totalorder %s112, %s114
      %p121 = scmp.eq.s32.totalorder %s27, 1
      %p122 = por %p120, %p121
      %p123 = scmp.ne.s32.totalorder %s114, %s115
      %p124 = scmp.eq.s32.totalorder %s27, 0
      %p125 = por %p123, %p124
      %p126 = scmp.ne.s32.totalorder %s114, %s115
      %p127 = scmp.eq.s32.totalorder %s28, 1
      %p128 = por %p126, %p127
      %p130 = scmp.ne.s32.totalorder %s115, %s129
      %p131 = scmp.eq.s32.totalorder %s28, 0
      %p132 = por %p130, %p131
      %s134 = sadd.s32 %s133, 1
      %p137 = scmp.eq.s32.totalorder %s22, 1
      %p138 = scmp.ne.s32.totalorder %s133, %s135
      %p139 = scmp.eq.s32.totalorder %s22, 0
      %p140 = por %p138, %p139
      %p141 = scmp.ne.s32.totalorder %s133, %s135
      %p142 = scmp.eq.s32.totalorder %s27, 1
      %p143 = por %p141, %p142
      %p144 = scmp.ne.s32.totalorder %s135, %s136
      %p145 = scmp.eq.s32.totalorder %s27, 0
      %p146 = por %p144, %p145
      %p147 = scmp.ne.s32.totalorder %s135, %s136
      %p148 = scmp.eq.s32.totalorder %s28, 1
      %p149 = por %p147, %p148
      %p151 = scmp.ne.s32.totalorder %s136, %s150
      %p152 = scmp.eq.s32.totalorder %s28, 0
      %p153 = por %p151, %p152
      %s155 = sadd.s32 %s154, 1
      %p158 = scmp.eq.s32.totalorder %s22, 1
      %p159 = scmp.ne.s32.totalorder %s154, %s156
      %p160 = scmp.eq.s32.totalorder %s22, 0
      %p161 = por %p159, %p160
      %p162 = scmp.ne.s32.totalorder %s154, %s156
      %p163 = scmp.eq.s32.totalorder %s27, 1
      %p164 = por %p162, %p163
      %p165 = scmp.ne.s32.totalorder %s156, %s157
      %p166 = scmp.eq.s32.totalorder %s27, 0
      %p167 = por %p165, %p166
      %p168 = scmp.ne.s32.totalorder %s156, %s157
      %p169 = scmp.eq.s32.totalorder %s28, 1
      %p170 = por %p168, %p169
      %p172 = scmp.ne.s32.totalorder %s157, %s171
      %p173 = scmp.eq.s32.totalorder %s28, 0
      %p174 = por %p172, %p173
      %s176 = sadd.s32 %s175, 1
      %p179 = scmp.eq.s32.totalorder %s22, 1
      %p180 = scmp.ne.s32.totalorder %s175, %s177
      %p181 = scmp.eq.s32.totalorder %s22, 0
      %p182 = por %p180, %p181
      %p183 = scmp.ne.s32.totalorder %s175, %s177
      %p184 = scmp.eq.s32.totalorder %s27, 1
      %p185 = por %p183, %p184
      %p186 = scmp.ne.s32.totalorder %s177, %s178
      %p187 = scmp.eq.s32.totalorder %s27, 0
      %p188 = por %p186, %p187
      %p189 = scmp.ne.s32.totalorder %s177, %s178
      %p190 = scmp.eq.s32.totalorder %s28, 1
      %p191 = por %p189, %p190
      %p193 = scmp.ne.s32.totalorder %s178, %s192
      %p194 = scmp.eq.s32.totalorder %s28, 0
      %p195 = por %p193, %p194
      %s196 = ssub.s32 %s29, %s41
      %s197 = ssub.s32 %s30, %s37
      %s198 = sor.u32 %s196, %s197
      %p199 = scmp.eq.s32.totalorder %s198, 0
      %s201 = sadd.s32 %s200, 1
      %s202 = scalar_select %p199, %s200, %s201
      %p205 = pneg %p199
      %p206 = scmp.eq.s32.totalorder %s22, 1
      %p207 = por %p205, %p206
      %p208 = scmp.ne.s32.totalorder %s200, %s203
      %p209 = scmp.eq.s32.totalorder %s22, 0
      %p210 = por %p208, %p209
      %p211 = scmp.ne.s32.totalorder %s200, %s203
      %p212 = scmp.eq.s32.totalorder %s27, 1
      %p213 = por %p211, %p212
      %p214 = scmp.ne.s32.totalorder %s203, %s204
      %p215 = scmp.eq.s32.totalorder %s27, 0
      %p216 = por %p214, %p215
      %p217 = scmp.ne.s32.totalorder %s203, %s204
      %p218 = scmp.eq.s32.totalorder %s28, 1
      %p219 = por %p217, %p218
      %p221 = scmp.ne.s32.totalorder %s204, %s220
      %p222 = scmp.eq.s32.totalorder %s28, 0
      %p223 = por %p221, %p222
      %p224 = scmp.le.s32.totalorder 1, %s22
      %p225 = scmp.lt.s32.totalorder %s22, 3
      %p226 = pnand %p224, %p225
      %p227 = pneg %p226
      // Predicated region
      $region9: #{transformer_forward.11} parent=5 // pred_check
        _
      $region10: #{transformer_forward.11} parent=5 // pred_check_branch
        %229 = sbr.rel (%p226) target = $region12
      $region11: #{transformer_forward.11} parent=5 // pred_region
        %s230 = ssub.s32 %s22, 1
        // Predicated region
        $region13: #{transformer_forward.11} parent=11 // pred_check
          %p231 = pneg %p83
        $region14: #{transformer_forward.11} parent=11 // pred_check_branch
          %233 = sbr.rel (%p231) target = $region16
        $region15: #{transformer_forward.11} parent=11 // pred_region
          %s235 = ssub.s32 256, 256
          %236 = vsyncadd [#allocation6], %s235
          %s237 = sshll.u32 [#allocation5], 4
          %s238 = int_to_ptr.vmem [resolvable:$true] %s237
          %243 = dma.hbm_to_vmem [thread:$0]  %s1, 256, %s238, [#allocation6], 64, 64, 4
        $region16: #{transformer_forward.11} parent=11 // pred_fallthru
          _
        // Predicated region
        $region17: #{transformer_forward.11} parent=11 // pred_check
          %p244 = pneg %p104
        $region18: #{transformer_forward.11} parent=11 // pred_check_branch
          %246 = sbr.rel (%p244) target = $region20
        $region19: #{transformer_forward.11} parent=11 // pred_region
          %s248 = ssub.s32 16, 16
          %249 = vsyncadd [#allocation6], %s248
          %s251 = sshll.u32 [#allocation7], 4
          %s252 = int_to_ptr.vmem [resolvable:$true] %s251
          %254 = dma.hbm_to_vmem [thread:$0]  %s2, 16, %s252, [#allocation6]
        $region20: #{transformer_forward.11} parent=11 // pred_fallthru
          _
        // Predicated region
        $region21: #{transformer_forward.11} parent=11 // pred_check
          %p255 = pneg %p125
        $region22: #{transformer_forward.11} parent=11 // pred_check_branch
          %257 = sbr.rel (%p255) target = $region24
        $region23: #{transformer_forward.11} parent=11 // pred_region
          %s259 = ssub.s32 1024, 1024
          %260 = vsyncadd [#allocation9], %s259
          %s261 = sshll.u32 [#allocation8], 4
          %s262 = int_to_ptr.vmem [resolvable:$true] %s261
          %267 = dma.hbm_to_vmem [thread:$0]  %s3, 1024, %s262, [#allocation9], 64, 64, 4
        $region24: #{transformer_forward.11} parent=11 // pred_fallthru
          _
        // Predicated region
        $region25: #{transformer_forward.11} parent=11 // pred_check
          %p268 = pneg %p146
        $region26: #{transformer_forward.11} parent=11 // pred_check_branch
          %270 = sbr.rel (%p268) target = $region28
        $region27: #{transformer_forward.11} parent=11 // pred_region
          %s272 = ssub.s32 16, 16
          %273 = vsyncadd [#allocation9], %s272
          %s275 = sshll.u32 [#allocation10], 4
          %s276 = int_to_ptr.vmem [resolvable:$true] %s275
          %278 = dma.hbm_to_vmem [thread:$0]  %s4, 16, %s276, [#allocation9]
        $region28: #{transformer_forward.11} parent=11 // pred_fallthru
          _
        // Predicated region
        $region29: #{transformer_forward.11} parent=11 // pred_check
          %p279 = pneg %p167
        $region30: #{transformer_forward.11} parent=11 // pred_check_branch
          %281 = sbr.rel (%p279) target = $region32
        $region31: #{transformer_forward.11} parent=11 // pred_region
          %s283 = ssub.s32 16, 16
          %284 = vsyncadd [#allocation12], %s283
          %s286 = sshll.u32 [#allocation11], 4
          %s287 = int_to_ptr.vmem [resolvable:$true] %s286
          %289 = dma.hbm_to_vmem [thread:$0]  %s5, 16, %s287, [#allocation12]
        $region32: #{transformer_forward.11} parent=11 // pred_fallthru
          _
        // Predicated region
        $region33: #{transformer_forward.11} parent=11 // pred_check
          %p290 = pneg %p188
        $region34: #{transformer_forward.11} parent=11 // pred_check_branch
          %292 = sbr.rel (%p290) target = $region36
        $region35: #{transformer_forward.11} parent=11 // pred_region
          %s294 = ssub.s32 16, 16
          %295 = vsyncadd [#allocation12], %s294
          %s297 = sshll.u32 [#allocation13], 4
          %s298 = int_to_ptr.vmem [resolvable:$true] %s297
          %300 = dma.hbm_to_vmem [thread:$0]  %s6, 16, %s298, [#allocation12]
        $region36: #{transformer_forward.11} parent=11 // pred_fallthru
          _
      $region12: #{transformer_forward.11} parent=5 // pred_fallthru
        _
      %p301 = scmp.lt.s32.totalorder %s22, 2
      // Predicated region
      $region37: #{transformer_forward.11} parent=5 // pred_check
        %p302 = pneg %p301
      $region38: #{transformer_forward.11} parent=5 // pred_check_branch
        %304 = sbr.rel (%p302) target = $region40
      $region39: #{transformer_forward.11} parent=5 // pred_region
        // Predicated region
        $region41: #{transformer_forward.11} parent=39 // pred_check
          %p305 = pneg %p56
        $region42: #{transformer_forward.11} parent=39 // pred_check_branch
          %307 = sbr.rel (%p305) target = $region44
        $region43: #{transformer_forward.11} parent=39 // pred_region
          %s308 = sand.u32 %s46, 1
          %s309 = scalar_lea.sflag [#allocation3], %s308
          %s310 = sand.u32 %s46, 1
          %s311 = smul.addr %s310, 4
          %s312 = scalar_lea.vmem [#allocation2], %s311
          %s314 = ssub.s32 64, 64
          %315 = vsyncadd %s309, %s314
          %s316 = sadd.s32 %s30, %s29
          %s317 = smul.addr %s316, 64
          %s318 = scalar_lea.hbm %s0, %s317
          %s320 = sshll.u32 %s312, 4
          %s321 = int_to_ptr.vmem [resolvable:$true] %s320
          %323 = dma.hbm_to_vmem [thread:$0]  %s318, 64, %s321, %s309
        $region44: #{transformer_forward.11} parent=39 // pred_fallthru
          _
      $region40: #{transformer_forward.11} parent=5 // pred_fallthru
        _
      %p324 = scmp.le.s32.totalorder 1, %s22
      %p325 = scmp.lt.s32.totalorder %s22, 3
      %p326 = pnand %p324, %p325
      %p327 = pneg %p326
      // Predicated region
      $region45: #{transformer_forward.11} parent=5 // pred_check
        _
      $region46: #{transformer_forward.11} parent=5 // pred_check_branch
        %329 = sbr.rel (%p326) target = $region48
      $region47: #{transformer_forward.11} parent=5 // pred_region
        %s330 = ssub.s32 %s22, 1
        %s331 = sand.u32 %s49, 1
        %s332 = scalar_lea.sflag [#allocation3], %s331
        %s333 = sand.u32 %s49, 1
        %s334 = smul.addr %s333, 4
        %s335 = scalar_lea.vmem [#allocation2], %s334
        // Predicated region
        $region49: #{transformer_forward.11} parent=47 // pred_check
          %p336 = pneg %p62
        $region50: #{transformer_forward.11} parent=47 // pred_check_branch
          %338 = sbr.rel (%p336) target = $region52
        $region51: #{transformer_forward.11} parent=47 // pred_region
          %339 = dma.done %s332, 64
        $region52: #{transformer_forward.11} parent=47 // pred_fallthru
          _
        // Predicated region
        $region53: #{transformer_forward.11} parent=47 // pred_check
          %p340 = pneg %p83
        $region54: #{transformer_forward.11} parent=47 // pred_check_branch
          %342 = sbr.rel (%p340) target = $region56
        $region55: #{transformer_forward.11} parent=47 // pred_region
          %343 = dma.done [#allocation6], 256
        $region56: #{transformer_forward.11} parent=47 // pred_fallthru
          _
        // Predicated region
        $region57: #{transformer_forward.11} parent=47 // pred_check
          %p344 = pneg %p104
        $region58: #{transformer_forward.11} parent=47 // pred_check_branch
          %346 = sbr.rel (%p344) target = $region60
        $region59: #{transformer_forward.11} parent=47 // pred_region
          %347 = dma.done [#allocation6], 16
        $region60: #{transformer_forward.11} parent=47 // pred_fallthru
          _
        // Predicated region
        $region61: #{transformer_forward.11} parent=47 // pred_check
          %p348 = pneg %p125
        $region62: #{transformer_forward.11} parent=47 // pred_check_branch
          %350 = sbr.rel (%p348) target = $region64
        $region63: #{transformer_forward.11} parent=47 // pred_region
          %351 = dma.done [#allocation9], 1024
        $region64: #{transformer_forward.11} parent=47 // pred_fallthru
          _
        // Predicated region
        $region65: #{transformer_forward.11} parent=47 // pred_check
          %p352 = pneg %p146
        $region66: #{transformer_forward.11} parent=47 // pred_check_branch
          %354 = sbr.rel (%p352) target = $region68
        $region67: #{transformer_forward.11} parent=47 // pred_region
          %355 = dma.done [#allocation9], 16
        $region68: #{transformer_forward.11} parent=47 // pred_fallthru
          _
        // Predicated region
        $region69: #{transformer_forward.11} parent=47 // pred_check
          %p356 = pneg %p167
        $region70: #{transformer_forward.11} parent=47 // pred_check_branch
          %358 = sbr.rel (%p356) target = $region72
        $region71: #{transformer_forward.11} parent=47 // pred_region
          %359 = dma.done [#allocation12], 16
        $region72: #{transformer_forward.11} parent=47 // pred_fallthru
          _
        // Predicated region
        $region73: #{transformer_forward.11} parent=47 // pred_check
          %p360 = pneg %p188
        $region74: #{transformer_forward.11} parent=47 // pred_check_branch
          %362 = sbr.rel (%p360) target = $region76
        $region75: #{transformer_forward.11} parent=47 // pred_region
          %363 = dma.done [#allocation12], 16
        $region76: #{transformer_forward.11} parent=47 // pred_fallthru
          _
        %s364 = sand.u32 %s49, 1
        %s365 = scalar_lea.sflag [#allocation3], %s364
        %s366 = sand.u32 %s49, 1
        %s367 = smul.addr %s366, 4
        %s368 = scalar_lea.vmem [#allocation2], %s367
        %p369 = pneg %p62
        %p370 = pneg %p59
        %p371 = pneg %p83
        %p372 = pneg %p80
        %p373 = pneg %p104
        %p374 = pneg %p101
        %p375 = pneg %p125
        %p376 = pneg %p122
        %p377 = pneg %p146
        %p378 = pneg %p143
        %p379 = pneg %p167
        %p380 = pneg %p164
        %p381 = pneg %p188
        %p382 = pneg %p185
        %p383 = pneg %p216
        %p384 = pneg %p213
        %s385 = sand.u32 %s203, 1
        %s386 = scalar_lea.sflag [#allocation4], %s385
        %s387 = sand.u32 %s203, 1
        %s388 = smul.addr %s387, 4
        %s389 = scalar_lea.vmem [#allocation14], %s388
        %v391 = vld [vmem:[%s335] sm:$0xf]
        %v392 = vld [vmem:[#allocation5] sm:$0xf]
        %v393 = vld [vmem:[#allocation5 + $0x4] sm:$0xf]
        %v394 = vld [vmem:[#allocation5 + $0x8] sm:$0xf]
        %v395 = vld [vmem:[#allocation5 + $0xc] sm:$0xf]
        %v396 = vld [vmem:[#allocation7] sm:$0x1]
        %v398 = vlaneseq
        %v399 = vshrl.u32 %v398, 7
        %v400 = vsub.s32 0, %v399
        %v401 = vrot.slane %v396, %v400
        %v407 = vunpack.c.l.b16 %v392
        %v408 = vunpack.c.l.b16 %v393
        %v409 = vunpack.c.l.b16 %v394
        %v410 = vunpack.c.l.b16 %v395
        %v411 = vpack.c.b16 %v408, %v407
        %v412 = vpack.c.b16 %v410, %v409
        %vm415 = vcmask 261120
        %v417 = vsel %vm415, %v391, 0
        %419 = vmatprep.subr.bf16.mxu0 0
        %420 = vmatpush1.bf16.msra.mxu0 %v411
        %421 = vmatprep.subr.bf16.mxu0 0
        %422 = vmatpush1.bf16.msra.mxu0 %v412
        %423 = vmatprep.subr.bf16.mxu0 0
        %424 = vmatpush1.bf16.msra.mxu0 0
        %425 = vmatprep.subr.bf16.mxu0 0
        %426 = vmatpush1.bf16.msra.mxu0 0
        %427 = vmatprep.subr.bf16.mxu0 0
        %428 = vmatpush1.bf16.msra.mxu0 0
        %429 = vmatprep.subr.bf16.mxu0 0
        %430 = vmatpush1.bf16.msra.mxu0 0
        %431 = vmatprep.subr.bf16.mxu0 0
        %432 = vmatpush1.bf16.msra.mxu0 0
        %433 = vmatprep.subr.bf16.mxu0 0
        %434 = vmatpush1.bf16.msra.mxu0 0
        %435 = vmatprep.subr.bf16.mxu0 0
        %436 = vmatpush1.bf16.msra.mxu0 0
        %437 = vmatprep.subr.bf16.mxu0 0
        %438 = vmatpush1.bf16.msra.mxu0 0
        %439 = vmatprep.subr.bf16.mxu0 0
        %440 = vmatpush1.bf16.msra.mxu0 0
        %441 = vmatprep.subr.bf16.mxu0 0
        %442 = vmatpush1.bf16.msra.mxu0 0
        %443 = vmatprep.subr.bf16.mxu0 0
        %444 = vmatpush1.bf16.msra.mxu0 0
        %445 = vmatprep.subr.bf16.mxu0 0
        %446 = vmatpush1.bf16.msra.mxu0 0
        %447 = vmatprep.subr.bf16.mxu0 0
        %448 = vmatpush1.bf16.msra.mxu0 0
        %449 = vmatprep.subr.bf16.mxu0 0
        %450 = vmatpush1.bf16.msra.mxu0 0
        %451 = vmatprep.mubr.bf16.mxu0 0
        %452 = vmatmul.mubr.bf16.gmra.mrb[0].mxu0 %v417
        %v453 = vpop.f32.mrb[0].mxu0
        %v454 = vadd.f32 %v401, %v453
        %v455 = vpop.f32.mrb[0].mxu0
        %v456 = vpop.f32.mrb[0].mxu0
        %v457 = vpop.f32.mrb[0].mxu0
        %458 = vdwg.mxu0
        %v459 = vmul.f32 %v454, 0.5
        %v460 = vmul.f32 %v454, 0.044715
        %v461 = vmul.f32 %v460, %v454
        %v462 = vmul.f32 %v461, %v454
        %v463 = vadd.f32 %v454, %v462
        %v464 = vmul.f32 %v463, 0.7978846
        %v465 = vtanh.pop %v464
        %v466 = vadd.f32 %v465, 1.0
        %v467 = vmul.f32 %v459, %v466
        %v468 = vpack.c.bf16 %v467, %v467
        %v469 = vld [vmem:[#allocation8] sm:$0xf]
        %v470 = vld [vmem:[#allocation8 + $0x4] sm:$0xf]
        %v471 = vld [vmem:[#allocation8 + $0x8] sm:$0xf]
        %v472 = vld [vmem:[#allocation8 + $0xc] sm:$0xf]
        %v473 = vld [vmem:[#allocation8 + $0x10] sm:$0xf]
        %v474 = vld [vmem:[#allocation8 + $0x14] sm:$0xf]
        %v475 = vld [vmem:[#allocation8 + $0x18] sm:$0xf]
        %v476 = vld [vmem:[#allocation8 + $0x1c] sm:$0xf]
        %v477 = vld [vmem:[#allocation8 + $0x20] sm:$0xf]
        %v478 = vld [vmem:[#allocation8 + $0x24] sm:$0xf]
        %v479 = vld [vmem:[#allocation8 + $0x28] sm:$0xf]
        %v480 = vld [vmem:[#allocation8 + $0x2c] sm:$0xf]
        %v481 = vld [vmem:[#allocation8 + $0x30] sm:$0xf]
        %v482 = vld [vmem:[#allocation8 + $0x34] sm:$0xf]
        %v483 = vld [vmem:[#allocation8 + $0x38] sm:$0xf]
        %v484 = vld [vmem:[#allocation8 + $0x3c] sm:$0xf]
        %v485 = vld [vmem:[#allocation10] sm:$0x1]
        %v487 = vlaneseq
        %v488 = vshrl.u32 %v487, 7
        %v489 = vsub.s32 0, %v488
        %v490 = vrot.slane %v485, %v489
        %v508 = vunpack.c.l.b16 %v469
        %v509 = vunpack.c.l.b16 %v470
        %v510 = vunpack.c.l.b16 %v471
        %v511 = vunpack.c.l.b16 %v472
        %v512 = vunpack.c.l.b16 %v473
        %v513 = vunpack.c.l.b16 %v474
        %v514 = vunpack.c.l.b16 %v475
        %v515 = vunpack.c.l.b16 %v476
        %v516 = vunpack.c.l.b16 %v477
        %v517 = vunpack.c.l.b16 %v478
        %v518 = vunpack.c.l.b16 %v479
        %v519 = vunpack.c.l.b16 %v480
        %v520 = vunpack.c.l.b16 %v481
        %v521 = vunpack.c.l.b16 %v482
        %v522 = vunpack.c.l.b16 %v483
        %v523 = vunpack.c.l.b16 %v484
        %v524 = vpack.c.b16 %v509, %v508
        %v525 = vpack.c.b16 %v511, %v510
        %v526 = vpack.c.b16 %v513, %v512
        %v527 = vpack.c.b16 %v515, %v514
        %v528 = vpack.c.b16 %v517, %v516
        %v529 = vpack.c.b16 %v519, %v518
        %v530 = vpack.c.b16 %v521, %v520
        %v531 = vpack.c.b16 %v523, %v522
        %540 = vmatprep.subr.bf16.mxu0 0
        %541 = vmatpush1.bf16.msra.mxu0 %v524
        %542 = vmatprep.subr.bf16.mxu0 0
        %543 = vmatpush1.bf16.msra.mxu0 %v525
        %544 = vmatprep.subr.bf16.mxu0 0
        %545 = vmatpush1.bf16.msra.mxu0 %v526
        %546 = vmatprep.subr.bf16.mxu0 0
        %547 = vmatpush1.bf16.msra.mxu0 %v527
        %548 = vmatprep.subr.bf16.mxu0 0
        %549 = vmatpush1.bf16.msra.mxu0 %v528
        %550 = vmatprep.subr.bf16.mxu0 0
        %551 = vmatpush1.bf16.msra.mxu0 %v529
        %552 = vmatprep.subr.bf16.mxu0 0
        %553 = vmatpush1.bf16.msra.mxu0 %v530
        %554 = vmatprep.subr.bf16.mxu0 0
        %555 = vmatpush1.bf16.msra.mxu0 %v531
        %556 = vmatprep.subr.bf16.mxu0 0
        %557 = vmatpush1.bf16.msra.mxu0 0
        %558 = vmatprep.subr.bf16.mxu0 0
        %559 = vmatpush1.bf16.msra.mxu0 0
        %560 = vmatprep.subr.bf16.mxu0 0
        %561 = vmatpush1.bf16.msra.mxu0 0
        %562 = vmatprep.subr.bf16.mxu0 0
        %563 = vmatpush1.bf16.msra.mxu0 0
        %564 = vmatprep.subr.bf16.mxu0 0
        %565 = vmatpush1.bf16.msra.mxu0 0
        %566 = vmatprep.subr.bf16.mxu0 0
        %567 = vmatpush1.bf16.msra.mxu0 0
        %568 = vmatprep.subr.bf16.mxu0 0
        %569 = vmatpush1.bf16.msra.mxu0 0
        %570 = vmatprep.subr.bf16.mxu0 0
        %571 = vmatpush1.bf16.msra.mxu0 0
        %572 = vmatprep.mubr.bf16.mxu0 0
        %573 = vmatmul.mubr.bf16.gmra.mrb[0].mxu0 %v468
        %v574 = vpop.f32.mrb[0].mxu0
        %v575 = vadd.f32 %v490, %v574
        %v576 = vpop.f32.mrb[0].mxu0
        %v577 = vpop.f32.mrb[0].mxu0
        %v578 = vpop.f32.mrb[0].mxu0
        %579 = vdwg.mxu0
        %v580 = vunpack.c.l.bf16 %v391
        %v581 = vadd.f32 %v575, %v580
        %v582 = vsel %vm415, %v581, 0.0
        %583 = vadd.xlane.f32.xlu0 %v582
        %v584 = vpop.xlane.xlu0 %583
        %v585 = vrcp.pop 32.0
        %v586 = vmul.f32 %v584, %v585
        %v587 = vsub.f32 %v581, %v586
        %v588 = vmul.f32 %v587, %v587
        %v589 = vsel %vm415, %v588, 0.0
        %590 = vadd.xlane.f32.xlu0 %v589
        %v591 = vpop.xlane.xlu0 %590
        %v592 = vmul.f32 %v591, %v585
        %v593 = vadd.f32 %v592, 1e-05
        %v594 = vrsqrt.pop %v593
        %v595 = vmul.f32 %v587, %v594
        %v596 = vld [vmem:[#allocation11] sm:$0x1]
        %v598 = vlaneseq
        %v599 = vshrl.u32 %v598, 7
        %v600 = vsub.s32 0, %v599
        %v601 = vrot.slane %v596, %v600
        %v603 = vmul.f32 %v595, %v601
        %v604 = vld [vmem:[#allocation13] sm:$0x1]
        %v606 = vlaneseq
        %v607 = vshrl.u32 %v606, 7
        %v608 = vsub.s32 0, %v607
        %v609 = vrot.slane %v604, %v608
        %v611 = vadd.f32 %v603, %v609
        %v612 = vpack.c.bf16 %v611, %v611
        %vm613 = vcmask 257024
        %614 = vst.msk [vmem:[%s389] sm:$0xf] %vm613, %v612
        %s615 = sand.u32 %s203, 1
        %s616 = scalar_lea.sflag [#allocation4], %s615
        %s617 = sand.u32 %s203, 1
        %s618 = smul.addr %s617, 4
        %s619 = scalar_lea.vmem [#allocation14], %s618
        // Predicated region
        $region77: #{transformer_forward.11} parent=47 // pred_check
          %p620 = pneg %p213
        $region78: #{transformer_forward.11} parent=47 // pred_check_branch
          %622 = sbr.rel (%p620) target = $region80
        $region79: #{transformer_forward.11} parent=47 // pred_region
          %s624 = ssub.s32 64, 64
          %625 = vsyncadd %s616, %s624
          %s626 = sadd.s32 %s32, %s31
          %s627 = smul.addr %s626, 64
          %s628 = scalar_lea.hbm %s7, %s627
          %s630 = sshll.u32 %s619, 4
          %s631 = int_to_ptr.vmem [resolvable:$true] %s630
          %633 = dma.vmem_to_hbm [thread:$0]  %s631, 64, %s628, %s616
        $region80: #{transformer_forward.11} parent=47 // pred_fallthru
          _
      $region48: #{transformer_forward.11} parent=5 // pred_fallthru
        _
      %p634 = scmp.le.s32.totalorder 2, %s22
      // Predicated region
      $region81: #{transformer_forward.11} parent=5 // pred_check
        %p635 = pneg %p634
      $region82: #{transformer_forward.11} parent=5 // pred_check_branch
        %637 = sbr.rel (%p635) target = $region84
      $region83: #{transformer_forward.11} parent=5 // pred_region
        %s638 = ssub.s32 %s22, 2
        // Predicated region
        $region85: #{transformer_forward.11} parent=83 // pred_check
          %p639 = pneg %p219
        $region86: #{transformer_forward.11} parent=83 // pred_check_branch
          %641 = sbr.rel (%p639) target = $region88
        $region87: #{transformer_forward.11} parent=83 // pred_region
          %s642 = sand.u32 %s204, 1
          %s643 = scalar_lea.sflag [#allocation4], %s642
          %s644 = sand.u32 %s204, 1
          %s645 = smul.addr %s644, 4
          %s646 = scalar_lea.vmem [#allocation14], %s645
          %647 = dma.done %s643, 64
        $region88: #{transformer_forward.11} parent=83 // pred_fallthru
          _
      $region84: #{transformer_forward.11} parent=5 // pred_fallthru
        _
    $region6: #{transformer_forward.11} parent=1 // loop_footer
      %s26 = sadd.s32 1, %s22
    $region7: #{transformer_forward.11} parent=1 // loop_footer_branch
      %21 = sbr.rel target = $region3
    $region8: #{transformer_forward.11} parent=1 // loop_exit
      _
    %648 = vsyncpa [#allocation3], 1
    %s649 = scalar_lea.sflag [#allocation3], 1
    %650 = vsyncpa %s649, 1
    %651 = vsyncpa [#allocation6], 1
    %652 = vsyncpa [#allocation9], 1
    %653 = vsyncpa [#allocation12], 1
    %654 = vsyncpa [#allocation4], 1
    %s655 = scalar_lea.sflag [#allocation4], 1
    %656 = vsyncpa %s655, 1

// kernel: transformer_forward.10
$region0: #{transformer_forward.10}
  #allocation0 [shape = 'u32[]', space=smem, size = 0x4, offset = 0x4, fixed_abs, tag = 'smem constant byte address 0x4 - core index']
  #allocation1 [shape = 'u32[144,128]{1,0:T(1,128)}', space=vmem, size = 0x12000, scoped, tag = 'internal scratch']
  %s0 = inlined_call_operand.hbm [shape: bf16[2,8,32], index: 0, kind: input, shape index: {}]
  %s1 = inlined_call_operand.hbm [shape: f32[2,1,8], index: 1, kind: input, shape index: {}]
  %s2 = inlined_call_operand.hbm [shape: bf16[32,32], index: 2, kind: input, shape index: {}]
  %s3 = inlined_call_operand.hbm [shape: bf16[32,32], index: 3, kind: input, shape index: {}]
  %s4 = inlined_call_operand.hbm [shape: bf16[32,32], index: 4, kind: input, shape index: {}]
  %s5 = inlined_call_operand.hbm [shape: bf16[32,32], index: 5, kind: input, shape index: {}]
  %s6 = inlined_call_operand.hbm [shape: f32[1,32], index: 6, kind: input, shape index: {}]
  %s7 = inlined_call_operand.hbm [shape: f32[1,32], index: 7, kind: input, shape index: {}]
  %s8 = inlined_call_operand.hbm [shape: f32[1,32], index: 8, kind: input, shape index: {}]
  %s9 = inlined_call_operand.hbm [shape: f32[1,32], index: 9, kind: input, shape index: {}]
  %s10 = inlined_call_operand.hbm [shape: f32[1,32], index: 10, kind: input, shape index: {}]
  %s11 = inlined_call_operand.hbm [shape: f32[1,32], index: 11, kind: input, shape index: {}]
  %s12 = inlined_call_operand.hbm [shape: bf16[2,8,32], index: 12, kind: output, shape index: {0}]
  %s13 = inlined_call_operand.hbm [shape: f32[2,4,8,8], index: 13, kind: output, shape index: {1}]
  %14 = xla_tuple %s12, %s13
  %s15 = sld [smem:[#allocation0]]
  $region137: #{transformer_forward.10} parent=0
    _
  %s17 = ssub.s32 1, %s15
  %s18 = scalar_select 0, %s17, %s15
  $region1: #{transformer_forward.10} parent=0
    #allocation2 [shape = 'u8[4096]{0}', space=vmem, size = 0x1000, scoped, tag = 'input window, operand 0']
    #allocation3 [shape = 's32[2]{0}', space=sflag, size = 0x8, scoped, tag = 'scoped memory for transformer_forward.10']
    #allocation4 [shape = 's32[2]{0}', space=sflag, size = 0x8, scoped, tag = 'scoped memory for transformer_forward.10']
    #allocation5 [shape = 'u8[1024]{0}', space=vmem, size = 0x400, scoped, tag = 'input window, operand 1']
    #allocation6 [shape = 's32[2]{0}', space=sflag, size = 0x8, scoped, tag = 'scoped memory for transformer_forward.10']
    #allocation7 [shape = 'u8[8192]{0}', space=vmem, size = 0x2000, scoped, tag = 'input window, operand 2, single buffered']
    #allocation8 [shape = 'u8[8192]{0}', space=vmem, size = 0x2000, scoped, tag = 'input window, operand 3, single buffered']
    #allocation9 [shape = 's32[1]{0}', space=sflag, size = 0x4, scoped, tag = 'scoped memory for transformer_forward.10']
    #allocation10 [shape = 'u8[8192]{0}', space=vmem, size = 0x2000, scoped, tag = 'input window, operand 4, single buffered']
    #allocation11 [shape = 'u8[8192]{0}', space=vmem, size = 0x2000, scoped, tag = 'input window, operand 5, single buffered']
    #allocation12 [shape = 's32[1]{0}', space=sflag, size = 0x4, scoped, tag = 'scoped memory for transformer_forward.10']
    #allocation13 [shape = 'u8[512]{0}', space=vmem, size = 0x400, scoped, tag = 'input window, operand 6, single buffered']
    #allocation14 [shape = 'u8[512]{0}', space=vmem, size = 0x400, scoped, tag = 'input window, operand 7, single buffered']
    #allocation15 [shape = 's32[1]{0}', space=sflag, size = 0x4, scoped, tag = 'scoped memory for transformer_forward.10']
    #allocation16 [shape = 'u8[512]{0}', space=vmem, size = 0x400, scoped, tag = 'input window, operand 8, single buffered']
    #allocation17 [shape = 'u8[512]{0}', space=vmem, size = 0x400, scoped, tag = 'input window, operand 9, single buffered']
    #allocation18 [shape = 's32[1]{0}', space=sflag, size = 0x4, scoped, tag = 'scoped memory for transformer_forward.10']
    #allocation19 [shape = 'u8[512]{0}', space=vmem, size = 0x400, scoped, tag = 'input window, operand 10, single buffered']
    #allocation20 [shape = 'u8[512]{0}', space=vmem, size = 0x400, scoped, tag = 'input window, operand 11, single buffered']
    #allocation21 [shape = 's32[1]{0}', space=sflag, size = 0x4, scoped, tag = 'scoped memory for transformer_forward.10']
    #allocation22 [shape = 'u8[4096]{0}', space=vmem, size = 0x1000, scoped, tag = 'output window, operand 0']
    #allocation23 [shape = 'u8[32768]{0}', space=vmem, size = 0x8000, scoped, tag = 'output window, operand 1']
    #allocation24 [shape = 's32[2]{0}', space=sflag, size = 0x8, scoped, tag = 'scoped memory for transformer_forward.10']
    %19 = vsyncpa [#allocation3], 0
    %s20 = scalar_lea.sflag [#allocation3], 1
    %21 = vsyncpa %s20, 0
    %22 = vsyncpa [#allocation6], 0
    %s23 = scalar_lea.sflag [#allocation6], 1
    %24 = vsyncpa %s23, 0
    %25 = vsyncpa [#allocation9], 0
    %26 = vsyncpa [#allocation12], 0
    %27 = vsyncpa [#allocation15], 0
    %28 = vsyncpa [#allocation18], 0
    %29 = vsyncpa [#allocation21], 0
    %30 = vsyncpa [#allocation4], 0
    %s31 = scalar_lea.sflag [#allocation4], 1
    %32 = vsyncpa %s31, 0
    %33 = vsyncpa [#allocation24], 0
    %s34 = scalar_lea.sflag [#allocation24], 1
    %35 = vsyncpa %s34, 0
    loop: start=0, step=1, limit=4
    $region2: #{transformer_forward.10} parent=1 // loop_pre_header
      _
    $region3: #{transformer_forward.10} parent=1 // loop_header
      %s37 = sphi 0, %s41
      %p38 = scmp.ge.s32.totalorder %s37, 4
      %s44 = sphi 0, %s56
      %s45 = sphi 0, %s52
      %s46 = sphi 0, %s44
      %s47 = sphi 0, %s45
      %s48 = sphi 0, %s46
      %s49 = sphi 0, %s47
      %s59 = sphi 0, %s61
      %s62 = sphi 0, %s59
      %s63 = sphi 0, %s62
      %s79 = sphi 0, %s63
      %s85 = sphi 0, %s87
      %s88 = sphi 0, %s85
      %s89 = sphi 0, %s88
      %s105 = sphi 0, %s89
      %s109 = sphi 0, %s109
      %s111 = sphi 0, %s109
      %s112 = sphi 0, %s111
      %s126 = sphi 0, %s112
      %s130 = sphi 0, %s130
      %s132 = sphi 0, %s130
      %s133 = sphi 0, %s132
      %s147 = sphi 0, %s133
      %s151 = sphi 0, %s151
      %s153 = sphi 0, %s151
      %s154 = sphi 0, %s153
      %s168 = sphi 0, %s154
      %s172 = sphi 0, %s172
      %s174 = sphi 0, %s172
      %s175 = sphi 0, %s174
      %s189 = sphi 0, %s175
      %s193 = sphi 0, %s193
      %s195 = sphi 0, %s193
      %s196 = sphi 0, %s195
      %s210 = sphi 0, %s196
      %s214 = sphi 0, %s214
      %s216 = sphi 0, %s214
      %s217 = sphi 0, %s216
      %s231 = sphi 0, %s217
      %s235 = sphi 0, %s235
      %s237 = sphi 0, %s235
      %s238 = sphi 0, %s237
      %s252 = sphi 0, %s238
      %s256 = sphi 0, %s256
      %s258 = sphi 0, %s256
      %s259 = sphi 0, %s258
      %s273 = sphi 0, %s259
      %s277 = sphi 0, %s277
      %s279 = sphi 0, %s277
      %s280 = sphi 0, %s279
      %s294 = sphi 0, %s280
      %s298 = sphi 0, %s298
      %s300 = sphi 0, %s298
      %s301 = sphi 0, %s300
      %s315 = sphi 0, %s301
      %s323 = sphi 0, %s325
      %s326 = sphi 0, %s323
      %s327 = sphi 0, %s326
      %s343 = sphi 0, %s327
      %s351 = sphi 0, %s353
      %s354 = sphi 0, %s351
      %s355 = sphi 0, %s354
      %s371 = sphi 0, %s355
    $region4: #{transformer_forward.10} parent=1 // loop_header_branch
      %40 = sbr.rel (%p38) target = $region8
    $region5: #{transformer_forward.10} parent=1 // loop_body
      %s42 = ssub.s32 %s37, 1
      %s43 = ssub.s32 %s37, 2
      %s50 = sadd.s32 1, %s45
      %p51 = scmp.ge.s32.totalorder %s50, 1
      %s52 = scalar_select %p51, 0, %s50
      %s53 = sadd.s32 1, %s44
      %s54 = scalar_select %p51, %s53, %s44
      %p55 = scmp.ge.s32.totalorder %s54, 2
      %s56 = scalar_select %p55, 0, %s54
      %s57 = ssub.s32 %s44, %s56
      %p58 = scmp.eq.s32.totalorder %s57, 0
      %s60 = sadd.s32 %s59, 1
      %s61 = scalar_select %p58, %s59, %s60
      %p64 = pneg %p58
      %p65 = scmp.eq.s32.totalorder %s37, 1
      %p66 = por %p64, %p65
      %p67 = scmp.ne.s32.totalorder %s59, %s62
      %p68 = scmp.eq.s32.totalorder %s37, 0
      %p69 = por %p67, %p68
      %p70 = scmp.ne.s32.totalorder %s59, %s62
      %p71 = scmp.eq.s32.totalorder %s42, 1
      %p72 = por %p70, %p71
      %p73 = scmp.ne.s32.totalorder %s62, %s63
      %p74 = scmp.eq.s32.totalorder %s42, 0
      %p75 = por %p73, %p74
      %p76 = scmp.ne.s32.totalorder %s62, %s63
      %p77 = scmp.eq.s32.totalorder %s43, 1
      %p78 = por %p76, %p77
      %p80 = scmp.ne.s32.totalorder %s63, %s79
      %p81 = scmp.eq.s32.totalorder %s43, 0
      %p82 = por %p80, %p81
      %s83 = ssub.s32 %s44, %s56
      %p84 = scmp.eq.s32.totalorder %s83, 0
      %s86 = sadd.s32 %s85, 1
      %s87 = scalar_select %p84, %s85, %s86
      %p90 = pneg %p84
      %p91 = scmp.eq.s32.totalorder %s37, 1
      %p92 = por %p90, %p91
      %p93 = scmp.ne.s32.totalorder %s85, %s88
      %p94 = scmp.eq.s32.totalorder %s37, 0
      %p95 = por %p93, %p94
      %p96 = scmp.ne.s32.totalorder %s85, %s88
      %p97 = scmp.eq.s32.totalorder %s42, 1
      %p98 = por %p96, %p97
      %p99 = scmp.ne.s32.totalorder %s88, %s89
      %p100 = scmp.eq.s32.totalorder %s42, 0
      %p101 = por %p99, %p100
      %p102 = scmp.ne.s32.totalorder %s88, %s89
      %p103 = scmp.eq.s32.totalorder %s43, 1
      %p104 = por %p102, %p103
      %p106 = scmp.ne.s32.totalorder %s89, %s105
      %p107 = scmp.eq.s32.totalorder %s43, 0
      %p108 = por %p106, %p107
      %s110 = sadd.s32 %s109, 1
      %p113 = scmp.eq.s32.totalorder %s37, 1
      %p114 = scmp.ne.s32.totalorder %s109, %s111
      %p115 = scmp.eq.s32.totalorder %s37, 0
      %p116 = por %p114, %p115
      %p117 = scmp.ne.s32.totalorder %s109, %s111
      %p118 = scmp.eq.s32.totalorder %s42, 1
      %p119 = por %p117, %p118
      %p120 = scmp.ne.s32.totalorder %s111, %s112
      %p121 = scmp.eq.s32.totalorder %s42, 0
      %p122 = por %p120, %p121
      %p123 = scmp.ne.s32.totalorder %s111, %s112
      %p124 = scmp.eq.s32.totalorder %s43, 1
      %p125 = por %p123, %p124
      %p127 = scmp.ne.s32.totalorder %s112, %s126
      %p128 = scmp.eq.s32.totalorder %s43, 0
      %p129 = por %p127, %p128
      %s131 = sadd.s32 %s130, 1
      %p134 = scmp.eq.s32.totalorder %s37, 1
      %p135 = scmp.ne.s32.totalorder %s130, %s132
      %p136 = scmp.eq.s32.totalorder %s37, 0
      %p137 = por %p135, %p136
      %p138 = scmp.ne.s32.totalorder %s130, %s132
      %p139 = scmp.eq.s32.totalorder %s42, 1
      %p140 = por %p138, %p139
      %p141 = scmp.ne.s32.totalorder %s132, %s133
      %p142 = scmp.eq.s32.totalorder %s42, 0
      %p143 = por %p141, %p142
      %p144 = scmp.ne.s32.totalorder %s132, %s133
      %p145 = scmp.eq.s32.totalorder %s43, 1
      %p146 = por %p144, %p145
      %p148 = scmp.ne.s32.totalorder %s133, %s147
      %p149 = scmp.eq.s32.totalorder %s43, 0
      %p150 = por %p148, %p149
      %s152 = sadd.s32 %s151, 1
      %p155 = scmp.eq.s32.totalorder %s37, 1
      %p156 = scmp.ne.s32.totalorder %s151, %s153
      %p157 = scmp.eq.s32.totalorder %s37, 0
      %p158 = por %p156, %p157
      %p159 = scmp.ne.s32.totalorder %s151, %s153
      %p160 = scmp.eq.s32.totalorder %s42, 1
      %p161 = por %p159, %p160
      %p162 = scmp.ne.s32.totalorder %s153, %s154
      %p163 = scmp.eq.s32.totalorder %s42, 0
      %p164 = por %p162, %p163
      %p165 = scmp.ne.s32.totalorder %s153, %s154
      %p166 = scmp.eq.s32.totalorder %s43, 1
      %p167 = por %p165, %p166
      %p169 = scmp.ne.s32.totalorder %s154, %s168
      %p170 = scmp.eq.s32.totalorder %s43, 0
      %p171 = por %p169, %p170
      %s173 = sadd.s32 %s172, 1
      %p176 = scmp.eq.s32.totalorder %s37, 1
      %p177 = scmp.ne.s32.totalorder %s172, %s174
      %p178 = scmp.eq.s32.totalorder %s37, 0
      %p179 = por %p177, %p178
      %p180 = scmp.ne.s32.totalorder %s172, %s174
      %p181 = scmp.eq.s32.totalorder %s42, 1
      %p182 = por %p180, %p181
      %p183 = scmp.ne.s32.totalorder %s174, %s175
      %p184 = scmp.eq.s32.totalorder %s42, 0
      %p185 = por %p183, %p184
      %p186 = scmp.ne.s32.totalorder %s174, %s175
      %p187 = scmp.eq.s32.totalorder %s43, 1
      %p188 = por %p186, %p187
      %p190 = scmp.ne.s32.totalorder %s175, %s189
      %p191 = scmp.eq.s32.totalorder %s43, 0
      %p192 = por %p190, %p191
      %s194 = sadd.s32 %s193, 1
      %p197 = scmp.eq.s32.totalorder %s37, 1
      %p198 = scmp.ne.s32.totalorder %s193, %s195
      %p199 = scmp.eq.s32.totalorder %s37, 0
      %p200 = por %p198, %p199
      %p201 = scmp.ne.s32.totalorder %s193, %s195
      %p202 = scmp.eq.s32.totalorder %s42, 1
      %p203 = por %p201, %p202
      %p204 = scmp.ne.s32.totalorder %s195, %s196
      %p205 = scmp.eq.s32.totalorder %s42, 0
      %p206 = por %p204, %p205
      %p207 = scmp.ne.s32.totalorder %s195, %s196
      %p208 = scmp.eq.s32.totalorder %s43, 1
      %p209 = por %p207, %p208
      %p211 = scmp.ne.s32.totalorder %s196, %s210
      %p212 = scmp.eq.s32.totalorder %s43, 0
      %p213 = por %p211, %p212
      %s215 = sadd.s32 %s214, 1
      %p218 = scmp.eq.s32.totalorder %s37, 1
      %p219 = scmp.ne.s32.totalorder %s214, %s216
      %p220 = scmp.eq.s32.totalorder %s37, 0
      %p221 = por %p219, %p220
      %p222 = scmp.ne.s32.totalorder %s214, %s216
      %p223 = scmp.eq.s32.totalorder %s42, 1
      %p224 = por %p222, %p223
      %p225 = scmp.ne.s32.totalorder %s216, %s217
      %p226 = scmp.eq.s32.totalorder %s42, 0
      %p227 = por %p225, %p226
      %p228 = scmp.ne.s32.totalorder %s216, %s217
      %p229 = scmp.eq.s32.totalorder %s43, 1
      %p230 = por %p228, %p229
      %p232 = scmp.ne.s32.totalorder %s217, %s231
      %p233 = scmp.eq.s32.totalorder %s43, 0
      %p234 = por %p232, %p233
      %s236 = sadd.s32 %s235, 1
      %p239 = scmp.eq.s32.totalorder %s37, 1
      %p240 = scmp.ne.s32.totalorder %s235, %s237
      %p241 = scmp.eq.s32.totalorder %s37, 0
      %p242 = por %p240, %p241
      %p243 = scmp.ne.s32.totalorder %s235, %s237
      %p244 = scmp.eq.s32.totalorder %s42, 1
      %p245 = por %p243, %p244
      %p246 = scmp.ne.s32.totalorder %s237, %s238
      %p247 = scmp.eq.s32.totalorder %s42, 0
      %p248 = por %p246, %p247
      %p249 = scmp.ne.s32.totalorder %s237, %s238
      %p250 = scmp.eq.s32.totalorder %s43, 1
      %p251 = por %p249, %p250
      %p253 = scmp.ne.s32.totalorder %s238, %s252
      %p254 = scmp.eq.s32.totalorder %s43, 0
      %p255 = por %p253, %p254
      %s257 = sadd.s32 %s256, 1
      %p260 = scmp.eq.s32.totalorder %s37, 1
      %p261 = scmp.ne.s32.totalorder %s256, %s258
      %p262 = scmp.eq.s32.totalorder %s37, 0
      %p263 = por %p261, %p262
      %p264 = scmp.ne.s32.totalorder %s256, %s258
      %p265 = scmp.eq.s32.totalorder %s42, 1
      %p266 = por %p264, %p265
      %p267 = scmp.ne.s32.totalorder %s258, %s259
      %p268 = scmp.eq.s32.totalorder %s42, 0
      %p269 = por %p267, %p268
      %p270 = scmp.ne.s32.totalorder %s258, %s259
      %p271 = scmp.eq.s32.totalorder %s43, 1
      %p272 = por %p270, %p271
      %p274 = scmp.ne.s32.totalorder %s259, %s273
      %p275 = scmp.eq.s32.totalorder %s43, 0
      %p276 = por %p274, %p275
      %s278 = sadd.s32 %s277, 1
      %p281 = scmp.eq.s32.totalorder %s37, 1
      %p282 = scmp.ne.s32.totalorder %s277, %s279
      %p283 = scmp.eq.s32.totalorder %s37, 0
      %p284 = por %p282, %p283
      %p285 = scmp.ne.s32.totalorder %s277, %s279
      %p286 = scmp.eq.s32.totalorder %s42, 1
      %p287 = por %p285, %p286
      %p288 = scmp.ne.s32.totalorder %s279, %s280
      %p289 = scmp.eq.s32.totalorder %s42, 0
      %p290 = por %p288, %p289
      %p291 = scmp.ne.s32.totalorder %s279, %s280
      %p292 = scmp.eq.s32.totalorder %s43, 1
      %p293 = por %p291, %p292
      %p295 = scmp.ne.s32.totalorder %s280, %s294
      %p296 = scmp.eq.s32.totalorder %s43, 0
      %p297 = por %p295, %p296
      %s299 = sadd.s32 %s298, 1
      %p302 = scmp.eq.s32.totalorder %s37, 1
      %p303 = scmp.ne.s32.totalorder %s298, %s300
      %p304 = scmp.eq.s32.totalorder %s37, 0
      %p305 = por %p303, %p304
      %p306 = scmp.ne.s32.totalorder %s298, %s300
      %p307 = scmp.eq.s32.totalorder %s42, 1
      %p308 = por %p306, %p307
      %p309 = scmp.ne.s32.totalorder %s300, %s301
      %p310 = scmp.eq.s32.totalorder %s42, 0
      %p311 = por %p309, %p310
      %p312 = scmp.ne.s32.totalorder %s300, %s301
      %p313 = scmp.eq.s32.totalorder %s43, 1
      %p314 = por %p312, %p313
      %p316 = scmp.ne.s32.totalorder %s301, %s315
      %p317 = scmp.eq.s32.totalorder %s43, 0
      %p318 = por %p316, %p317
      %s319 = ssub.s32 %s44, %s56
      %s320 = ssub.s32 %s45, %s52
      %s321 = sor.u32 %s319, %s320
      %p322 = scmp.eq.s32.totalorder %s321, 0
      %s324 = sadd.s32 %s323, 1
      %s325 = scalar_select %p322, %s323, %s324
      %p328 = pneg %p322
      %p329 = scmp.eq.s32.totalorder %s37, 1
      %p330 = por %p328, %p329
      %p331 = scmp.ne.s32.totalorder %s323, %s326
      %p332 = scmp.eq.s32.totalorder %s37, 0
      %p333 = por %p331, %p332
      %p334 = scmp.ne.s32.totalorder %s323, %s326
      %p335 = scmp.eq.s32.totalorder %s42, 1
      %p336 = por %p334, %p335
      %p337 = scmp.ne.s32.totalorder %s326, %s327
      %p338 = scmp.eq.s32.totalorder %s42, 0
      %p339 = por %p337, %p338
      %p340 = scmp.ne.s32.totalorder %s326, %s327
      %p341 = scmp.eq.s32.totalorder %s43, 1
      %p342 = por %p340, %p341
      %p344 = scmp.ne.s32.totalorder %s327, %s343
      %p345 = scmp.eq.s32.totalorder %s43, 0
      %p346 = por %p344, %p345
      %s347 = ssub.s32 %s44, %s56
      %s348 = ssub.s32 %s45, %s52
      %s349 = sor.u32 %s347, %s348
      %p350 = scmp.eq.s32.totalorder %s349, 0
      %s352 = sadd.s32 %s351, 1
      %s353 = scalar_select %p350, %s351, %s352
      %p356 = pneg %p350
      %p357 = scmp.eq.s32.totalorder %s37, 1
      %p358 = por %p356, %p357
      %p359 = scmp.ne.s32.totalorder %s351, %s354
      %p360 = scmp.eq.s32.totalorder %s37, 0
      %p361 = por %p359, %p360
      %p362 = scmp.ne.s32.totalorder %s351, %s354
      %p363 = scmp.eq.s32.totalorder %s42, 1
      %p364 = por %p362, %p363
      %p365 = scmp.ne.s32.totalorder %s354, %s355
      %p366 = scmp.eq.s32.totalorder %s42, 0
      %p367 = por %p365, %p366
      %p368 = scmp.ne.s32.totalorder %s354, %s355
      %p369 = scmp.eq.s32.totalorder %s43, 1
      %p370 = por %p368, %p369
      %p372 = scmp.ne.s32.totalorder %s355, %s371
      %p373 = scmp.eq.s32.totalorder %s43, 0
      %p374 = por %p372, %p373
      %p375 = scmp.le.s32.totalorder 1, %s37
      %p376 = scmp.lt.s32.totalorder %s37, 3
      %p377 = pnand %p375, %p376
      %p378 = pneg %p377
      // Predicated region
      $region9: #{transformer_forward.10} parent=5 // pred_check
        _
      $region10: #{transformer_forward.10} parent=5 // pred_check_branch
        %380 = sbr.rel (%p377) target = $region12
      $region11: #{transformer_forward.10} parent=5 // pred_region
        %s381 = ssub.s32 %s37, 1
        // Predicated region
        $region13: #{transformer_forward.10} parent=11 // pred_check
          %p382 = pneg %p122
        $region14: #{transformer_forward.10} parent=11 // pred_check_branch
          %384 = sbr.rel (%p382) target = $region16
        $region15: #{transformer_forward.10} parent=11 // pred_region
          %s386 = ssub.s32 256, 256
          %387 = vsyncadd [#allocation6], %s386
          %s388 = sshll.u32 [#allocation7], 4
          %s389 = int_to_ptr.vmem [resolvable:$true] %s388
          %394 = dma.hbm_to_vmem [thread:$0]  %s2, 256, %s389, [#allocation6], 64, 64, 4
        $region16: #{transformer_forward.10} parent=11 // pred_fallthru
          _
        // Predicated region
        $region17: #{transformer_forward.10} parent=11 // pred_check
          %p395 = pneg %p143
        $region18: #{transformer_forward.10} parent=11 // pred_check_branch
          %397 = sbr.rel (%p395) target = $region20
        $region19: #{transformer_forward.10} parent=11 // pred_region
          %s399 = ssub.s32 256, 256
          %400 = vsyncadd [#allocation9], %s399
          %s401 = sshll.u32 [#allocation8], 4
          %s402 = int_to_ptr.vmem [resolvable:$true] %s401
          %407 = dma.hbm_to_vmem [thread:$0]  %s3, 256, %s402, [#allocation9], 64, 64, 4
        $region20: #{transformer_forward.10} parent=11 // pred_fallthru
          _
        // Predicated region
        $region21: #{transformer_forward.10} parent=11 // pred_check
          %p408 = pneg %p164
        $region22: #{transformer_forward.10} parent=11 // pred_check_branch
          %410 = sbr.rel (%p408) target = $region24
        $region23: #{transformer_forward.10} parent=11 // pred_region
          %s412 = ssub.s32 256, 256
          %413 = vsyncadd [#allocation9], %s412
          %s414 = sshll.u32 [#allocation10], 4
          %s415 = int_to_ptr.vmem [resolvable:$true] %s414
          %420 = dma.hbm_to_vmem [thread:$0]  %s4, 256, %s415, [#allocation9], 64, 64, 4
        $region24: #{transformer_forward.10} parent=11 // pred_fallthru
          _
        // Predicated region
        $region25: #{transformer_forward.10} parent=11 // pred_check
          %p421 = pneg %p185
        $region26: #{transformer_forward.10} parent=11 // pred_check_branch
          %423 = sbr.rel (%p421) target = $region28
        $region27: #{transformer_forward.10} parent=11 // pred_region
          %s425 = ssub.s32 256, 256
          %426 = vsyncadd [#allocation12], %s425
          %s427 = sshll.u32 [#allocation11], 4
          %s428 = int_to_ptr.vmem [resolvable:$true] %s427
          %433 = dma.hbm_to_vmem [thread:$0]  %s5, 256, %s428, [#allocation12], 64, 64, 4
        $region28: #{transformer_forward.10} parent=11 // pred_fallthru
          _
        // Predicated region
        $region29: #{transformer_forward.10} parent=11 // pred_check
          %p434 = pneg %p206
        $region30: #{transformer_forward.10} parent=11 // pred_check_branch
          %436 = sbr.rel (%p434) target = $region32
        $region31: #{transformer_forward.10} parent=11 // pred_region
          %s438 = ssub.s32 16, 16
          %439 = vsyncadd [#allocation12], %s438
          %s441 = sshll.u32 [#allocation13], 4
          %s442 = int_to_ptr.vmem [resolvable:$true] %s441
          %444 = dma.hbm_to_vmem [thread:$0]  %s6, 16, %s442, [#allocation12]
        $region32: #{transformer_forward.10} parent=11 // pred_fallthru
          _
        // Predicated region
        $region33: #{transformer_forward.10} parent=11 // pred_check
          %p445 = pneg %p227
        $region34: #{transformer_forward.10} parent=11 // pred_check_branch
          %447 = sbr.rel (%p445) target = $region36
        $region35: #{transformer_forward.10} parent=11 // pred_region
          %s449 = ssub.s32 16, 16
          %450 = vsyncadd [#allocation15], %s449
          %s452 = sshll.u32 [#allocation14], 4
          %s453 = int_to_ptr.vmem [resolvable:$true] %s452
          %455 = dma.hbm_to_vmem [thread:$0]  %s7, 16, %s453, [#allocation15]
        $region36: #{transformer_forward.10} parent=11 // pred_fallthru
          _
        // Predicated region
        $region37: #{transformer_forward.10} parent=11 // pred_check
          %p456 = pneg %p248
        $region38: #{transformer_forward.10} parent=11 // pred_check_branch
          %458 = sbr.rel (%p456) target = $region40
        $region39: #{transformer_forward.10} parent=11 // pred_region
          %s460 = ssub.s32 16, 16
          %461 = vsyncadd [#allocation15], %s460
          %s463 = sshll.u32 [#allocation16], 4
          %s464 = int_to_ptr.vmem [resolvable:$true] %s463
          %466 = dma.hbm_to_vmem [thread:$0]  %s8, 16, %s464, [#allocation15]
        $region40: #{transformer_forward.10} parent=11 // pred_fallthru
          _
        // Predicated region
        $region41: #{transformer_forward.10} parent=11 // pred_check
          %p467 = pneg %p269
        $region42: #{transformer_forward.10} parent=11 // pred_check_branch
          %469 = sbr.rel (%p467) target = $region44
        $region43: #{transformer_forward.10} parent=11 // pred_region
          %s471 = ssub.s32 16, 16
          %472 = vsyncadd [#allocation18], %s471
          %s474 = sshll.u32 [#allocation17], 4
          %s475 = int_to_ptr.vmem [resolvable:$true] %s474
          %477 = dma.hbm_to_vmem [thread:$0]  %s9, 16, %s475, [#allocation18]
        $region44: #{transformer_forward.10} parent=11 // pred_fallthru
          _
        // Predicated region
        $region45: #{transformer_forward.10} parent=11 // pred_check
          %p478 = pneg %p290
        $region46: #{transformer_forward.10} parent=11 // pred_check_branch
          %480 = sbr.rel (%p478) target = $region48
        $region47: #{transformer_forward.10} parent=11 // pred_region
          %s482 = ssub.s32 16, 16
          %483 = vsyncadd [#allocation18], %s482
          %s485 = sshll.u32 [#allocation19], 4
          %s486 = int_to_ptr.vmem [resolvable:$true] %s485
          %488 = dma.hbm_to_vmem [thread:$0]  %s10, 16, %s486, [#allocation18]
        $region48: #{transformer_forward.10} parent=11 // pred_fallthru
          _
        // Predicated region
        $region49: #{transformer_forward.10} parent=11 // pred_check
          %p489 = pneg %p311
        $region50: #{transformer_forward.10} parent=11 // pred_check_branch
          %491 = sbr.rel (%p489) target = $region52
        $region51: #{transformer_forward.10} parent=11 // pred_region
          %s493 = ssub.s32 16, 16
          %494 = vsyncadd [#allocation21], %s493
          %s496 = sshll.u32 [#allocation20], 4
          %s497 = int_to_ptr.vmem [resolvable:$true] %s496
          %499 = dma.hbm_to_vmem [thread:$0]  %s11, 16, %s497, [#allocation21]
        $region52: #{transformer_forward.10} parent=11 // pred_fallthru
          _
      $region12: #{transformer_forward.10} parent=5 // pred_fallthru
        _
      %p500 = scmp.lt.s32.totalorder %s37, 2
      // Predicated region
      $region53: #{transformer_forward.10} parent=5 // pred_check
        %p501 = pneg %p500
      $region54: #{transformer_forward.10} parent=5 // pred_check_branch
        %503 = sbr.rel (%p501) target = $region56
      $region55: #{transformer_forward.10} parent=5 // pred_region
        // Predicated region
        $region57: #{transformer_forward.10} parent=55 // pred_check
          %p504 = pneg %p69
        $region58: #{transformer_forward.10} parent=55 // pred_check_branch
          %506 = sbr.rel (%p504) target = $region60
        $region59: #{transformer_forward.10} parent=55 // pred_region
          %s507 = sand.u32 %s59, 1
          %s508 = scalar_lea.sflag [#allocation3], %s507
          %s509 = sand.u32 %s59, 1
          %s510 = smul.addr %s509, 4
          %s511 = scalar_lea.vmem [#allocation2], %s510
          %s513 = ssub.s32 64, 64
          %514 = vsyncadd %s508, %s513
          %s515 = smul.addr %s44, 64
          %s516 = scalar_lea.hbm %s0, %s515
          %s518 = sshll.u32 %s511, 4
          %s519 = int_to_ptr.vmem [resolvable:$true] %s518
          %521 = dma.hbm_to_vmem [thread:$0]  %s516, 64, %s519, %s508
        $region60: #{transformer_forward.10} parent=55 // pred_fallthru
          _
        // Predicated region
        $region61: #{transformer_forward.10} parent=55 // pred_check
          %p522 = pneg %p95
        $region62: #{transformer_forward.10} parent=55 // pred_check_branch
          %524 = sbr.rel (%p522) target = $region64
        $region63: #{transformer_forward.10} parent=55 // pred_region
          %s525 = sand.u32 %s37, 1
          %s526 = scalar_lea.sflag [#allocation6], %s525
          %s527 = sand.u32 %s85, 1
          %s528 = scalar_lea.vmem [#allocation5], %s527
          %s530 = ssub.s32 16, 16
          %531 = vsyncadd %s526, %s530
          %s532 = smul.addr %s44, 16
          %s533 = scalar_lea.hbm %s1, %s532
          %s535 = sshll.u32 %s528, 4
          %s536 = int_to_ptr.vmem [resolvable:$true] %s535
          %538 = dma.hbm_to_vmem [thread:$0]  %s533, 16, %s536, %s526
        $region64: #{transformer_forward.10} parent=55 // pred_fallthru
          _
      $region56: #{transformer_forward.10} parent=5 // pred_fallthru
        _
      %p539 = scmp.le.s32.totalorder 1, %s37
      %p540 = scmp.lt.s32.totalorder %s37, 3
      %p541 = pnand %p539, %p540
      %p542 = pneg %p541
      // Predicated region
      $region65: #{transformer_forward.10} parent=5 // pred_check
        _
      $region66: #{transformer_forward.10} parent=5 // pred_check_branch
        %544 = sbr.rel (%p541) target = $region68
      $region67: #{transformer_forward.10} parent=5 // pred_region
        %s545 = ssub.s32 %s37, 1
        %s546 = sand.u32 %s62, 1
        %s547 = scalar_lea.sflag [#allocation3], %s546
        %s548 = sand.u32 %s62, 1
        %s549 = smul.addr %s548, 4
        %s550 = scalar_lea.vmem [#allocation2], %s549
        // Predicated region
        $region69: #{transformer_forward.10} parent=67 // pred_check
          %p551 = pneg %p75
        $region70: #{transformer_forward.10} parent=67 // pred_check_branch
          %553 = sbr.rel (%p551) target = $region72
        $region71: #{transformer_forward.10} parent=67 // pred_region
          %554 = dma.done %s547, 64
        $region72: #{transformer_forward.10} parent=67 // pred_fallthru
          _
        %s555 = sand.u32 %s42, 1
        %s556 = scalar_lea.sflag [#allocation6], %s555
        %s557 = sand.u32 %s88, 1
        %s558 = scalar_lea.vmem [#allocation5], %s557
        // Predicated region
        $region73: #{transformer_forward.10} parent=67 // pred_check
          %p559 = pneg %p101
        $region74: #{transformer_forward.10} parent=67 // pred_check_branch
          %561 = sbr.rel (%p559) target = $region76
        $region75: #{transformer_forward.10} parent=67 // pred_region
          %562 = dma.done %s556, 16
        $region76: #{transformer_forward.10} parent=67 // pred_fallthru
          _
        // Predicated region
        $region77: #{transformer_forward.10} parent=67 // pred_check
          %p563 = pneg %p122
        $region78: #{transformer_forward.10} parent=67 // pred_check_branch
          %565 = sbr.rel (%p563) target = $region80
        $region79: #{transformer_forward.10} parent=67 // pred_region
          %566 = dma.done [#allocation6], 256
        $region80: #{transformer_forward.10} parent=67 // pred_fallthru
          _
        // Predicated region
        $region81: #{transformer_forward.10} parent=67 // pred_check
          %p567 = pneg %p143
        $region82: #{transformer_forward.10} parent=67 // pred_check_branch
          %569 = sbr.rel (%p567) target = $region84
        $region83: #{transformer_forward.10} parent=67 // pred_region
          %570 = dma.done [#allocation9], 256
        $region84: #{transformer_forward.10} parent=67 // pred_fallthru
          _
        // Predicated region
        $region85: #{transformer_forward.10} parent=67 // pred_check
          %p571 = pneg %p164
        $region86: #{transformer_forward.10} parent=67 // pred_check_branch
          %573 = sbr.rel (%p571) target = $region88
        $region87: #{transformer_forward.10} parent=67 // pred_region
          %574 = dma.done [#allocation9], 256
        $region88: #{transformer_forward.10} parent=67 // pred_fallthru
          _
        // Predicated region
        $region89: #{transformer_forward.10} parent=67 // pred_check
          %p575 = pneg %p185
        $region90: #{transformer_forward.10} parent=67 // pred_check_branch
          %577 = sbr.rel (%p575) target = $region92
        $region91: #{transformer_forward.10} parent=67 // pred_region
          %578 = dma.done [#allocation12], 256
        $region92: #{transformer_forward.10} parent=67 // pred_fallthru
          _
        // Predicated region
        $region93: #{transformer_forward.10} parent=67 // pred_check
          %p579 = pneg %p206
        $region94: #{transformer_forward.10} parent=67 // pred_check_branch
          %581 = sbr.rel (%p579) target = $region96
        $region95: #{transformer_forward.10} parent=67 // pred_region
          %582 = dma.done [#allocation12], 16
        $region96: #{transformer_forward.10} parent=67 // pred_fallthru
          _
        // Predicated region
        $region97: #{transformer_forward.10} parent=67 // pred_check
          %p583 = pneg %p227
        $region98: #{transformer_forward.10} parent=67 // pred_check_branch
          %585 = sbr.rel (%p583) target = $region100
        $region99: #{transformer_forward.10} parent=67 // pred_region
          %586 = dma.done [#allocation15], 16
        $region100: #{transformer_forward.10} parent=67 // pred_fallthru
          _
        // Predicated region
        $region101: #{transformer_forward.10} parent=67 // pred_check
          %p587 = pneg %p248
        $region102: #{transformer_forward.10} parent=67 // pred_check_branch
          %589 = sbr.rel (%p587) target = $region104
        $region103: #{transformer_forward.10} parent=67 // pred_region
          %590 = dma.done [#allocation15], 16
        $region104: #{transformer_forward.10} parent=67 // pred_fallthru
          _
        // Predicated region
        $region105: #{transformer_forward.10} parent=67 // pred_check
          %p591 = pneg %p269
        $region106: #{transformer_forward.10} parent=67 // pred_check_branch
          %593 = sbr.rel (%p591) target = $region108
        $region107: #{transformer_forward.10} parent=67 // pred_region
          %594 = dma.done [#allocation18], 16
        $region108: #{transformer_forward.10} parent=67 // pred_fallthru
          _
        // Predicated region
        $region109: #{transformer_forward.10} parent=67 // pred_check
          %p595 = pneg %p290
        $region110: #{transformer_forward.10} parent=67 // pred_check_branch
          %597 = sbr.rel (%p595) target = $region112
        $region111: #{transformer_forward.10} parent=67 // pred_region
          %598 = dma.done [#allocation18], 16
        $region112: #{transformer_forward.10} parent=67 // pred_fallthru
          _
        // Predicated region
        $region113: #{transformer_forward.10} parent=67 // pred_check
          %p599 = pneg %p311
        $region114: #{transformer_forward.10} parent=67 // pred_check_branch
          %601 = sbr.rel (%p599) target = $region116
        $region115: #{transformer_forward.10} parent=67 // pred_region
          %602 = dma.done [#allocation21], 16
        $region116: #{transformer_forward.10} parent=67 // pred_fallthru
          _
        %s603 = sand.u32 %s62, 1
        %s604 = scalar_lea.sflag [#allocation3], %s603
        %s605 = sand.u32 %s62, 1
        %s606 = smul.addr %s605, 4
        %s607 = scalar_lea.vmem [#allocation2], %s606
        %p608 = pneg %p75
        %p609 = pneg %p72
        %s610 = sand.u32 %s42, 1
        %s611 = scalar_lea.sflag [#allocation6], %s610
        %s612 = sand.u32 %s88, 1
        %s613 = scalar_lea.vmem [#allocation5], %s612
        %p614 = pneg %p101
        %p615 = pneg %p98
        %p616 = pneg %p122
        %p617 = pneg %p119
        %p618 = pneg %p143
        %p619 = pneg %p140
        %p620 = pneg %p164
        %p621 = pneg %p161
        %p622 = pneg %p185
        %p623 = pneg %p182
        %p624 = pneg %p206
        %p625 = pneg %p203
        %p626 = pneg %p227
        %p627 = pneg %p224
        %p628 = pneg %p248
        %p629 = pneg %p245
        %p630 = pneg %p269
        %p631 = pneg %p266
        %p632 = pneg %p290
        %p633 = pneg %p287
        %p634 = pneg %p311
        %p635 = pneg %p308
        %p636 = pneg %p339
        %p637 = pneg %p336
        %s638 = sand.u32 %s326, 1
        %s639 = scalar_lea.sflag [#allocation4], %s638
        %s640 = sand.u32 %s326, 1
        %s641 = smul.addr %s640, 4
        %s642 = scalar_lea.vmem [#allocation22], %s641
        %p643 = pneg %p367
        %p644 = pneg %p364
        %s645 = sand.u32 %s354, 1
        %s646 = scalar_lea.sflag [#allocation24], %s645
        %s647 = sand.u32 %s354, 1
        %s648 = smul.addr %s647, 32
        %s649 = scalar_lea.vmem [#allocation23], %s648
        %v651 = vld [vmem:[%s550] sm:$0xf]
        %v652 = vld [vmem:[#allocation7] sm:$0xf]
        %v653 = vld [vmem:[#allocation7 + $0x4] sm:$0xf]
        %v654 = vld [vmem:[#allocation7 + $0x8] sm:$0xf]
        %v655 = vld [vmem:[#allocation7 + $0xc] sm:$0xf]
        %v656 = vld [vmem:[#allocation13] sm:$0x1]
        %v658 = vlaneseq
        %v659 = vshrl.u32 %v658, 7
        %v660 = vsub.s32 0, %v659
        %v661 = vrot.slane %v656, %v660
        %v667 = vunpack.c.l.b16 %v652
        %v668 = vunpack.c.l.b16 %v653
        %v669 = vunpack.c.l.b16 %v654
        %v670 = vunpack.c.l.b16 %v655
        %v671 = vpack.c.b16 %v668, %v667
        %v672 = vpack.c.b16 %v670, %v669
        %vm675 = vcmask 261120
        %v677 = vsel %vm675, %v651, 0
        %679 = vmatprep.subr.bf16.mxu0 0
        %680 = vmatpush1.bf16.msra.mxu0 %v671
        %681 = vmatprep.subr.bf16.mxu0 0
        %682 = vmatpush1.bf16.msra.mxu0 %v672
        %683 = vmatprep.subr.bf16.mxu0 0
        %684 = vmatpush1.bf16.msra.mxu0 0
        %685 = vmatprep.subr.bf16.mxu0 0
        %686 = vmatpush1.bf16.msra.mxu0 0
        %687 = vmatprep.subr.bf16.mxu0 0
        %688 = vmatpush1.bf16.msra.mxu0 0
        %689 = vmatprep.subr.bf16.mxu0 0
        %690 = vmatpush1.bf16.msra.mxu0 0
        %691 = vmatprep.subr.bf16.mxu0 0
        %692 = vmatpush1.bf16.msra.mxu0 0
        %693 = vmatprep.subr.bf16.mxu0 0
        %694 = vmatpush1.bf16.msra.mxu0 0
        %695 = vmatprep.subr.bf16.mxu0 0
        %696 = vmatpush1.bf16.msra.mxu0 0
        %697 = vmatprep.subr.bf16.mxu0 0
        %698 = vmatpush1.bf16.msra.mxu0 0
        %699 = vmatprep.subr.bf16.mxu0 0
        %700 = vmatpush1.bf16.msra.mxu0 0
        %701 = vmatprep.subr.bf16.mxu0 0
        %702 = vmatpush1.bf16.msra.mxu0 0
        %703 = vmatprep.subr.bf16.mxu0 0
        %704 = vmatpush1.bf16.msra.mxu0 0
        %705 = vmatprep.subr.bf16.mxu0 0
        %706 = vmatpush1.bf16.msra.mxu0 0
        %707 = vmatprep.subr.bf16.mxu0 0
        %708 = vmatpush1.bf16.msra.mxu0 0
        %709 = vmatprep.subr.bf16.mxu0 0
        %710 = vmatpush1.bf16.msra.mxu0 0
        %711 = vmatprep.mubr.bf16.mxu0 0
        %712 = vmatmul.mubr.bf16.gmra.mrb[0].mxu0 %v677
        %v713 = vpop.f32.mrb[0].mxu0
        %v714 = vadd.f32 %v661, %v713
        %v715 = vpop.f32.mrb[0].mxu0
        %v716 = vpop.f32.mrb[0].mxu0
        %v717 = vpop.f32.mrb[0].mxu0
        %718 = vdwg.mxu0
        %v719 = vld [vmem:[#allocation8] sm:$0xf]
        %v720 = vld [vmem:[#allocation8 + $0x4] sm:$0xf]
        %v721 = vld [vmem:[#allocation8 + $0x8] sm:$0xf]
        %v722 = vld [vmem:[#allocation8 + $0xc] sm:$0xf]
        %v723 = vld [vmem:[#allocation14] sm:$0x1]
        %v725 = vlaneseq
        %v726 = vshrl.u32 %v725, 7
        %v727 = vsub.s32 0, %v726
        %v728 = vrot.slane %v723, %v727
        %v734 = vunpack.c.l.b16 %v719
        %v735 = vunpack.c.l.b16 %v720
        %v736 = vunpack.c.l.b16 %v721
        %v737 = vunpack.c.l.b16 %v722
        %v738 = vpack.c.b16 %v735, %v734
        %v739 = vpack.c.b16 %v737, %v736
        %742 = vmatprep.subr.bf16.mxu0 0
        %743 = vmatpush1.bf16.msra.mxu0 %v738
        %744 = vmatprep.subr.bf16.mxu0 0
        %745 = vmatpush1.bf16.msra.mxu0 %v739
        %746 = vmatprep.subr.bf16.mxu0 0
        %747 = vmatpush1.bf16.msra.mxu0 0
        %748 = vmatprep.subr.bf16.mxu0 0
        %749 = vmatpush1.bf16.msra.mxu0 0
        %750 = vmatprep.subr.bf16.mxu0 0
        %751 = vmatpush1.bf16.msra.mxu0 0
        %752 = vmatprep.subr.bf16.mxu0 0
        %753 = vmatpush1.bf16.msra.mxu0 0
        %754 = vmatprep.subr.bf16.mxu0 0
        %755 = vmatpush1.bf16.msra.mxu0 0
        %756 = vmatprep.subr.bf16.mxu0 0
        %757 = vmatpush1.bf16.msra.mxu0 0
        %758 = vmatprep.subr.bf16.mxu0 0
        %759 = vmatpush1.bf16.msra.mxu0 0
        %760 = vmatprep.subr.bf16.mxu0 0
        %761 = vmatpush1.bf16.msra.mxu0 0
        %762 = vmatprep.subr.bf16.mxu0 0
        %763 = vmatpush1.bf16.msra.mxu0 0
        %764 = vmatprep.subr.bf16.mxu0 0
        %765 = vmatpush1.bf16.msra.mxu0 0
        %766 = vmatprep.subr.bf16.mxu0 0
        %767 = vmatpush1.bf16.msra.mxu0 0
        %768 = vmatprep.subr.bf16.mxu0 0
        %769 = vmatpush1.bf16.msra.mxu0 0
        %770 = vmatprep.subr.bf16.mxu0 0
        %771 = vmatpush1.bf16.msra.mxu0 0
        %772 = vmatprep.subr.bf16.mxu0 0
        %773 = vmatpush1.bf16.msra.mxu0 0
        %774 = vmatprep.mubr.bf16.mxu0 0
        %775 = vmatmul.mubr.bf16.gmra.mrb[0].mxu0 %v677
        %v776 = vpop.f32.mrb[0].mxu0
        %v777 = vadd.f32 %v728, %v776
        %v778 = vpop.f32.mrb[0].mxu0
        %v779 = vpop.f32.mrb[0].mxu0
        %v780 = vpop.f32.mrb[0].mxu0
        %781 = vdwg.mxu0
        %v782 = vld [vmem:[#allocation10] sm:$0xf]
        %v783 = vld [vmem:[#allocation10 + $0x4] sm:$0xf]
        %v784 = vld [vmem:[#allocation10 + $0x8] sm:$0xf]
        %v785 = vld [vmem:[#allocation10 + $0xc] sm:$0xf]
        %v786 = vld [vmem:[#allocation16] sm:$0x1]
        %v788 = vlaneseq
        %v789 = vshrl.u32 %v788, 7
        %v790 = vsub.s32 0, %v789
        %v791 = vrot.slane %v786, %v790
        %v797 = vunpack.c.l.b16 %v782
        %v798 = vunpack.c.l.b16 %v783
        %v799 = vunpack.c.l.b16 %v784
        %v800 = vunpack.c.l.b16 %v785
        %v801 = vpack.c.b16 %v798, %v797
        %v802 = vpack.c.b16 %v800, %v799
        %805 = vmatprep.subr.bf16.mxu0 0
        %806 = vmatpush1.bf16.msra.mxu0 %v801
        %807 = vmatprep.subr.bf16.mxu0 0
        %808 = vmatpush1.bf16.msra.mxu0 %v802
        %809 = vmatprep.subr.bf16.mxu0 0
        %810 = vmatpush1.bf16.msra.mxu0 0
        %811 = vmatprep.subr.bf16.mxu0 0
        %812 = vmatpush1.bf16.msra.mxu0 0
        %813 = vmatprep.subr.bf16.mxu0 0
        %814 = vmatpush1.bf16.msra.mxu0 0
        %815 = vmatprep.subr.bf16.mxu0 0
        %816 = vmatpush1.bf16.msra.mxu0 0
        %817 = vmatprep.subr.bf16.mxu0 0
        %818 = vmatpush1.bf16.msra.mxu0 0
        %819 = vmatprep.subr.bf16.mxu0 0
        %820 = vmatpush1.bf16.msra.mxu0 0
        %821 = vmatprep.subr.bf16.mxu0 0
        %822 = vmatpush1.bf16.msra.mxu0 0
        %823 = vmatprep.subr.bf16.mxu0 0
        %824 = vmatpush1.bf16.msra.mxu0 0
        %825 = vmatprep.subr.bf16.mxu0 0
        %826 = vmatpush1.bf16.msra.mxu0 0
        %827 = vmatprep.subr.bf16.mxu0 0
        %828 = vmatpush1.bf16.msra.mxu0 0
        %829 = vmatprep.subr.bf16.mxu0 0
        %830 = vmatpush1.bf16.msra.mxu0 0
        %831 = vmatprep.subr.bf16.mxu0 0
        %832 = vmatpush1.bf16.msra.mxu0 0
        %833 = vmatprep.subr.bf16.mxu0 0
        %834 = vmatpush1.bf16.msra.mxu0 0
        %835 = vmatprep.subr.bf16.mxu0 0
        %836 = vmatpush1.bf16.msra.mxu0 0
        %837 = vmatprep.mubr.bf16.mxu0 0
        %838 = vmatmul.mubr.bf16.gmra.mrb[0].mxu0 %v677
        %v839 = vpop.f32.mrb[0].mxu0
        %v840 = vadd.f32 %v791, %v839
        %v841 = vpop.f32.mrb[0].mxu0
        %v842 = vpop.f32.mrb[0].mxu0
        %v843 = vpop.f32.mrb[0].mxu0
        %844 = vdwg.mxu0
        %v845 = vld [vmem:[%s558] sm:$0x1]
        %v846 = vpack.c.bf16 %v714, %v714
        %v847 = vpack.c.bf16 %v777, %v777
        %v848 = vpack.c.bf16 %v840, %v840
        %vm849 = vcmask 64512
        %v851 = vsel %vm849, %v846, 0
        %v854 = vsel %vm849, %v847, 0
        %856 = vmatprep.subr.bf16.mxu0 0
        %857 = vmatpush1.bf16.xpose.msra.mxu0 %v854
        %858 = vmatprep.subr.bf16.mxu0 0
        %859 = vmatpush1.bf16.xpose.msra.mxu0 0
        %860 = vmatprep.subr.bf16.mxu0 0
        %861 = vmatpush1.bf16.xpose.msra.mxu0 0
        %862 = vmatprep.subr.bf16.mxu0 0
        %863 = vmatpush1.bf16.xpose.msra.mxu0 0
        %864 = vmatprep.subr.bf16.mxu0 0
        %865 = vmatpush1.bf16.xpose.msra.mxu0 0
        %866 = vmatprep.subr.bf16.mxu0 0
        %867 = vmatpush1.bf16.xpose.msra.mxu0 0
        %868 = vmatprep.subr.bf16.mxu0 0
        %869 = vmatpush1.bf16.xpose.msra.mxu0 0
        %870 = vmatprep.subr.bf16.mxu0 0
        %871 = vmatpush1.bf16.xpose.msra.mxu0 0
        %872 = vmatprep.subr.bf16.mxu0 0
        %873 = vmatpush1.bf16.xpose.msra.mxu0 0
        %874 = vmatprep.subr.bf16.mxu0 0
        %875 = vmatpush1.bf16.xpose.msra.mxu0 0
        %876 = vmatprep.subr.bf16.mxu0 0
        %877 = vmatpush1.bf16.xpose.msra.mxu0 0
        %878 = vmatprep.subr.bf16.mxu0 0
        %879 = vmatpush1.bf16.xpose.msra.mxu0 0
        %880 = vmatprep.subr.bf16.mxu0 0
        %881 = vmatpush1.bf16.xpose.msra.mxu0 0
        %882 = vmatprep.subr.bf16.mxu0 0
        %883 = vmatpush1.bf16.xpose.msra.mxu0 0
        %884 = vmatprep.subr.bf16.mxu0 0
        %885 = vmatpush1.bf16.xpose.msra.mxu0 0
        %886 = vmatprep.subr.bf16.mxu0 0
        %887 = vmatpush1.bf16.xpose.msra.mxu0 0
        %888 = vmatprep.mubr.bf16.mxu0 0
        %889 = vmatmul.mubr.bf16.gmra.mrb[0].mxu0 %v851
        %v890 = vpop.f32.mrb[0].mxu0
        %v891 = vadd.f32 0.0, %v890
        %v892 = vpop.f32.mrb[0].mxu0
        %v893 = vpop.f32.mrb[0].mxu0
        %v894 = vpop.f32.mrb[0].mxu0
        %895 = vdwg.mxu0
        %v896 = vmul.f32 %v891, 0.35355338
        %v898 = vlaneseq
        %v899 = vshrl.u32 %v898, 7
        %v900 = vsub.s32 0, %v899
        %v901 = vrot.slane %v845, %v900
        %v903 = vadd.f32 %v896, %v901
        %v904 = vsel %vm849, %v903, -inf
        %905 = vmax.xlane.f32.xlu0 %v904
        %v906 = vpop.xlane.xlu0 %905
        %v907 = vsub.f32 %v903, %v906
        %v908 = vmul.f32 %v907, 1.442695
        %v909 = vpow.pop %v908
        %v910 = vsel %vm849, %v909, 0.0
        %911 = vadd.xlane.f32.xlu0 %v910
        %v912 = vpop.xlane.xlu0 %911
        %v913 = vrcp.pop %v912
        %v914 = vmul.f32 %v909, %v913
        %915 = vst.msk [vmem:[%s649] sm:$0xff] %vm849, %v914
        %v916 = vpack.c.bf16 %v914, %v914
        %v918 = vsel %vm849, %v916, 0
        %vm920 = vcmask 1043456
        %v922 = vsel %vm920, %v848, 0
        %924 = vmatprep.subr.bf16.mxu0 0
        %925 = vmatpush1.bf16.msra.mxu0 %v922
        %926 = vmatprep.subr.bf16.mxu0 0
        %927 = vmatpush1.bf16.msra.mxu0 0
        %928 = vmatprep.subr.bf16.mxu0 0
        %929 = vmatpush1.bf16.msra.mxu0 0
        %930 = vmatprep.subr.bf16.mxu0 0
        %931 = vmatpush1.bf16.msra.mxu0 0
        %932 = vmatprep.subr.bf16.mxu0 0
        %933 = vmatpush1.bf16.msra.mxu0 0
        %934 = vmatprep.subr.bf16.mxu0 0
        %935 = vmatpush1.bf16.msra.mxu0 0
        %936 = vmatprep.subr.bf16.mxu0 0
        %937 = vmatpush1.bf16.msra.mxu0 0
        %938 = vmatprep.subr.bf16.mxu0 0
        %939 = vmatpush1.bf16.msra.mxu0 0
        %940 = vmatprep.subr.bf16.mxu0 0
        %941 = vmatpush1.bf16.msra.mxu0 0
        %942 = vmatprep.subr.bf16.mxu0 0
        %943 = vmatpush1.bf16.msra.mxu0 0
        %944 = vmatprep.subr.bf16.mxu0 0
        %945 = vmatpush1.bf16.msra.mxu0 0
        %946 = vmatprep.subr.bf16.mxu0 0
        %947 = vmatpush1.bf16.msra.mxu0 0
        %948 = vmatprep.subr.bf16.mxu0 0
        %949 = vmatpush1.bf16.msra.mxu0 0
        %950 = vmatprep.subr.bf16.mxu0 0
        %951 = vmatpush1.bf16.msra.mxu0 0
        %952 = vmatprep.subr.bf16.mxu0 0
        %953 = vmatpush1.bf16.msra.mxu0 0
        %954 = vmatprep.subr.bf16.mxu0 0
        %955 = vmatpush1.bf16.msra.mxu0 0
        %956 = vmatprep.mubr.bf16.mxu0 0
        %957 = vmatmul.mubr.bf16.gmra.mrb[0].mxu0 %v918
        %v958 = vpop.f32.mrb[0].mxu0
        %v959 = vadd.f32 0.0, %v958
        %v960 = vpop.f32.mrb[0].mxu0
        %v961 = vpop.f32.mrb[0].mxu0
        %v962 = vpop.f32.mrb[0].mxu0
        %963 = vdwg.mxu0
        %965 = vrot.lane.b32.xlu0 %v846, 120
        %v966 = vpop.permute.xlu0 %965
        %968 = vrot.lane.b32.xlu0 %v847, 120
        %v969 = vpop.permute.xlu0 %968
        %v971 = vsel %vm849, %v966, 0
        %v974 = vsel %vm849, %v969, 0
        %976 = vmatprep.subr.bf16.mxu0 0
        %977 = vmatpush1.bf16.xpose.msra.mxu0 %v974
        %978 = vmatprep.subr.bf16.mxu0 0
        %979 = vmatpush1.bf16.xpose.msra.mxu0 0
        %980 = vmatprep.subr.bf16.mxu0 0
        %981 = vmatpush1.bf16.xpose.msra.mxu0 0
        %982 = vmatprep.subr.bf16.mxu0 0
        %983 = vmatpush1.bf16.xpose.msra.mxu0 0
        %984 = vmatprep.subr.bf16.mxu0 0
        %985 = vmatpush1.bf16.xpose.msra.mxu0 0
        %986 = vmatprep.subr.bf16.mxu0 0
        %987 = vmatpush1.bf16.xpose.msra.mxu0 0
        %988 = vmatprep.subr.bf16.mxu0 0
        %989 = vmatpush1.bf16.xpose.msra.mxu0 0
        %990 = vmatprep.subr.bf16.mxu0 0
        %991 = vmatpush1.bf16.xpose.msra.mxu0 0
        %992 = vmatprep.subr.bf16.mxu0 0
        %993 = vmatpush1.bf16.xpose.msra.mxu0 0
        %994 = vmatprep.subr.bf16.mxu0 0
        %995 = vmatpush1.bf16.xpose.msra.mxu0 0
        %996 = vmatprep.subr.bf16.mxu0 0
        %997 = vmatpush1.bf16.xpose.msra.mxu0 0
        %998 = vmatprep.subr.bf16.mxu0 0
        %999 = vmatpush1.bf16.xpose.msra.mxu0 0
        %1000 = vmatprep.subr.bf16.mxu0 0
        %1001 = vmatpush1.bf16.xpose.msra.mxu0 0
        %1002 = vmatprep.subr.bf16.mxu0 0
        %1003 = vmatpush1.bf16.xpose.msra.mxu0 0
        %1004 = vmatprep.subr.bf16.mxu0 0
        %1005 = vmatpush1.bf16.xpose.msra.mxu0 0
        %1006 = vmatprep.subr.bf16.mxu0 0
        %1007 = vmatpush1.bf16.xpose.msra.mxu0 0
        %1008 = vmatprep.mubr.bf16.mxu0 0
        %1009 = vmatmul.mubr.bf16.gmra.mrb[0].mxu0 %v971
        %v1010 = vpop.f32.mrb[0].mxu0
        %v1011 = vadd.f32 0.0, %v1010
        %v1012 = vpop.f32.mrb[0].mxu0
        %v1013 = vpop.f32.mrb[0].mxu0
        %v1014 = vpop.f32.mrb[0].mxu0
        %1015 = vdwg.mxu0
        %v1016 = vmul.f32 %v1011, 0.35355338
        %v1017 = vadd.f32 %v1016, %v901
        %v1018 = vsel %vm849, %v1017, -inf
        %1019 = vmax.xlane.f32.xlu0 %v1018
        %v1020 = vpop.xlane.xlu0 %1019
        %v1021 = vsub.f32 %v1017, %v1020
        %v1022 = vmul.f32 %v1021, 1.442695
        %v1023 = vpow.pop %v1022
        %v1024 = vsel %vm849, %v1023, 0.0
        %1025 = vadd.xlane.f32.xlu0 %v1024
        %v1026 = vpop.xlane.xlu0 %1025
        %v1027 = vrcp.pop %v1026
        %v1028 = vmul.f32 %v1023, %v1027
        %s1029 = scalar_lea.vmem %s649, 8 [#allocation23]
        %1030 = vst.msk [vmem:[%s1029] sm:$0xff] %vm849, %v1028
        %v1031 = vpack.c.bf16 %v1028, %v1028
        %1033 = vrot.lane.b32.xlu0 %v848, 120
        %v1034 = vpop.permute.xlu0 %1033
        %v1036 = vsel %vm849, %v1031, 0
        %v1039 = vsel %vm920, %v1034, 0
        %1041 = vmatprep.subr.bf16.mxu0 0
        %1042 = vmatpush1.bf16.msra.mxu0 %v1039
        %1043 = vmatprep.subr.bf16.mxu0 0
        %1044 = vmatpush1.bf16.msra.mxu0 0
        %1045 = vmatprep.subr.bf16.mxu0 0
        %1046 = vmatpush1.bf16.msra.mxu0 0
        %1047 = vmatprep.subr.bf16.mxu0 0
        %1048 = vmatpush1.bf16.msra.mxu0 0
        %1049 = vmatprep.subr.bf16.mxu0 0
        %1050 = vmatpush1.bf16.msra.mxu0 0
        %1051 = vmatprep.subr.bf16.mxu0 0
        %1052 = vmatpush1.bf16.msra.mxu0 0
        %1053 = vmatprep.subr.bf16.mxu0 0
        %1054 = vmatpush1.bf16.msra.mxu0 0
        %1055 = vmatprep.subr.bf16.mxu0 0
        %1056 = vmatpush1.bf16.msra.mxu0 0
        %1057 = vmatprep.subr.bf16.mxu0 0
        %1058 = vmatpush1.bf16.msra.mxu0 0
        %1059 = vmatprep.subr.bf16.mxu0 0
        %1060 = vmatpush1.bf16.msra.mxu0 0
        %1061 = vmatprep.subr.bf16.mxu0 0
        %1062 = vmatpush1.bf16.msra.mxu0 0
        %1063 = vmatprep.subr.bf16.mxu0 0
        %1064 = vmatpush1.bf16.msra.mxu0 0
        %1065 = vmatprep.subr.bf16.mxu0 0
        %1066 = vmatpush1.bf16.msra.mxu0 0
        %1067 = vmatprep.subr.bf16.mxu0 0
        %1068 = vmatpush1.bf16.msra.mxu0 0
        %1069 = vmatprep.subr.bf16.mxu0 0
        %1070 = vmatpush1.bf16.msra.mxu0 0
        %1071 = vmatprep.subr.bf16.mxu0 0
        %1072 = vmatpush1.bf16.msra.mxu0 0
        %1073 = vmatprep.mubr.bf16.mxu0 0
        %1074 = vmatmul.mubr.bf16.gmra.mrb[0].mxu0 %v1036
        %v1075 = vpop.f32.mrb[0].mxu0
        %v1076 = vadd.f32 0.0, %v1075
        %v1077 = vpop.f32.mrb[0].mxu0
        %v1078 = vpop.f32.mrb[0].mxu0
        %v1079 = vpop.f32.mrb[0].mxu0
        %1080 = vdwg.mxu0
        %1081 = vrot.lane.b32.xlu0 %v846, 112
        %v1082 = vpop.permute.xlu0 %1081
        %1083 = vrot.lane.b32.xlu0 %v847, 112
        %v1084 = vpop.permute.xlu0 %1083
        %v1086 = vsel %vm849, %v1082, 0
        %v1089 = vsel %vm849, %v1084, 0
        %1091 = vmatprep.subr.bf16.mxu0 0
        %1092 = vmatpush1.bf16.xpose.msra.mxu0 %v1089
        %1093 = vmatprep.subr.bf16.mxu0 0
        %1094 = vmatpush1.bf16.xpose.msra.mxu0 0
        %1095 = vmatprep.subr.bf16.mxu0 0
        %1096 = vmatpush1.bf16.xpose.msra.mxu0 0
        %1097 = vmatprep.subr.bf16.mxu0 0
        %1098 = vmatpush1.bf16.xpose.msra.mxu0 0
        %1099 = vmatprep.subr.bf16.mxu0 0
        %1100 = vmatpush1.bf16.xpose.msra.mxu0 0
        %1101 = vmatprep.subr.bf16.mxu0 0
        %1102 = vmatpush1.bf16.xpose.msra.mxu0 0
        %1103 = vmatprep.subr.bf16.mxu0 0
        %1104 = vmatpush1.bf16.xpose.msra.mxu0 0
        %1105 = vmatprep.subr.bf16.mxu0 0
        %1106 = vmatpush1.bf16.xpose.msra.mxu0 0
        %1107 = vmatprep.subr.bf16.mxu0 0
        %1108 = vmatpush1.bf16.xpose.msra.mxu0 0
        %1109 = vmatprep.subr.bf16.mxu0 0
        %1110 = vmatpush1.bf16.xpose.msra.mxu0 0
        %1111 = vmatprep.subr.bf16.mxu0 0
        %1112 = vmatpush1.bf16.xpose.msra.mxu0 0
        %1113 = vmatprep.subr.bf16.mxu0 0
        %1114 = vmatpush1.bf16.xpose.msra.mxu0 0
        %1115 = vmatprep.subr.bf16.mxu0 0
        %1116 = vmatpush1.bf16.xpose.msra.mxu0 0
        %1117 = vmatprep.subr.bf16.mxu0 0
        %1118 = vmatpush1.bf16.xpose.msra.mxu0 0
        %1119 = vmatprep.subr.bf16.mxu0 0
        %1120 = vmatpush1.bf16.xpose.msra.mxu0 0
        %1121 = vmatprep.subr.bf16.mxu0 0
        %1122 = vmatpush1.bf16.xpose.msra.mxu0 0
        %1123 = vmatprep.mubr.bf16.mxu0 0
        %1124 = vmatmul.mubr.bf16.gmra.mrb[0].mxu0 %v1086
        %v1125 = vpop.f32.mrb[0].mxu0
        %v1126 = vadd.f32 0.0, %v1125
        %v1127 = vpop.f32.mrb[0].mxu0
        %v1128 = vpop.f32.mrb[0].mxu0
        %v1129 = vpop.f32.mrb[0].mxu0
        %1130 = vdwg.mxu0
        %v1131 = vmul.f32 %v1126, 0.35355338
        %v1132 = vadd.f32 %v1131, %v901
        %v1133 = vsel %vm849, %v1132, -inf
        %1134 = vmax.xlane.f32.xlu0 %v1133
        %v1135 = vpop.xlane.xlu0 %1134
        %v1136 = vsub.f32 %v1132, %v1135
        %v1137 = vmul.f32 %v1136, 1.442695
        %v1138 = vpow.pop %v1137
        %v1139 = vsel %vm849, %v1138, 0.0
        %1140 = vadd.xlane.f32.xlu0 %v1139
        %v1141 = vpop.xlane.xlu0 %1140
        %v1142 = vrcp.pop %v1141
        %v1143 = vmul.f32 %v1138, %v1142
        %s1144 = scalar_lea.vmem %s649, 16 [#allocation23]
        %1145 = vst.msk [vmem:[%s1144] sm:$0xff] %vm849, %v1143
        %v1146 = vpack.c.bf16 %v1143, %v1143
        %1147 = vrot.lane.b32.xlu0 %v848, 112
        %v1148 = vpop.permute.xlu0 %1147
        %v1150 = vsel %vm849, %v1146, 0
        %v1153 = vsel %vm920, %v1148, 0
        %1155 = vmatprep.subr.bf16.mxu0 0
        %1156 = vmatpush1.bf16.msra.mxu0 %v1153
        %1157 = vmatprep.subr.bf16.mxu0 0
        %1158 = vmatpush1.bf16.msra.mxu0 0
        %1159 = vmatprep.subr.bf16.mxu0 0
        %1160 = vmatpush1.bf16.msra.mxu0 0
        %1161 = vmatprep.subr.bf16.mxu0 0
        %1162 = vmatpush1.bf16.msra.mxu0 0
        %1163 = vmatprep.subr.bf16.mxu0 0
        %1164 = vmatpush1.bf16.msra.mxu0 0
        %1165 = vmatprep.subr.bf16.mxu0 0
        %1166 = vmatpush1.bf16.msra.mxu0 0
        %1167 = vmatprep.subr.bf16.mxu0 0
        %1168 = vmatpush1.bf16.msra.mxu0 0
        %1169 = vmatprep.subr.bf16.mxu0 0
        %1170 = vmatpush1.bf16.msra.mxu0 0
        %1171 = vmatprep.subr.bf16.mxu0 0
        %1172 = vmatpush1.bf16.msra.mxu0 0
        %1173 = vmatprep.subr.bf16.mxu0 0
        %1174 = vmatpush1.bf16.msra.mxu0 0
        %1175 = vmatprep.subr.bf16.mxu0 0
        %1176 = vmatpush1.bf16.msra.mxu0 0
        %1177 = vmatprep.subr.bf16.mxu0 0
        %1178 = vmatpush1.bf16.msra.mxu0 0
        %1179 = vmatprep.subr.bf16.mxu0 0
        %1180 = vmatpush1.bf16.msra.mxu0 0
        %1181 = vmatprep.subr.bf16.mxu0 0
        %1182 = vmatpush1.bf16.msra.mxu0 0
        %1183 = vmatprep.subr.bf16.mxu0 0
        %1184 = vmatpush1.bf16.msra.mxu0 0
        %1185 = vmatprep.subr.bf16.mxu0 0
        %1186 = vmatpush1.bf16.msra.mxu0 0
        %1187 = vmatprep.mubr.bf16.mxu0 0
        %1188 = vmatmul.mubr.bf16.gmra.mrb[0].mxu0 %v1150
        %v1189 = vpop.f32.mrb[0].mxu0
        %v1190 = vadd.f32 0.0, %v1189
        %v1191 = vpop.f32.mrb[0].mxu0
        %v1192 = vpop.f32.mrb[0].mxu0
        %v1193 = vpop.f32.mrb[0].mxu0
        %1194 = vdwg.mxu0
        %1195 = vrot.lane.b32.xlu0 %v846, 104
        %v1196 = vpop.permute.xlu0 %1195
        %1197 = vrot.lane.b32.xlu0 %v847, 104
        %v1198 = vpop.permute.xlu0 %1197
        %v1200 = vsel %vm849, %v1196, 0
        %v1203 = vsel %vm849, %v1198, 0
        %1205 = vmatprep.subr.bf16.mxu0 0
        %1206 = vmatpush1.bf16.xpose.msra.mxu0 %v1203
        %1207 = vmatprep.subr.bf16.mxu0 0
        %1208 = vmatpush1.bf16.xpose.msra.mxu0 0
        %1209 = vmatprep.subr.bf16.mxu0 0
        %1210 = vmatpush1.bf16.xpose.msra.mxu0 0
        %1211 = vmatprep.subr.bf16.mxu0 0
        %1212 = vmatpush1.bf16.xpose.msra.mxu0 0
        %1213 = vmatprep.subr.bf16.mxu0 0
        %1214 = vmatpush1.bf16.xpose.msra.mxu0 0
        %1215 = vmatprep.subr.bf16.mxu0 0
        %1216 = vmatpush1.bf16.xpose.msra.mxu0 0
        %1217 = vmatprep.subr.bf16.mxu0 0
        %1218 = vmatpush1.bf16.xpose.msra.mxu0 0
        %1219 = vmatprep.subr.bf16.mxu0 0
        %1220 = vmatpush1.bf16.xpose.msra.mxu0 0
        %1221 = vmatprep.subr.bf16.mxu0 0
        %1222 = vmatpush1.bf16.xpose.msra.mxu0 0
        %1223 = vmatprep.subr.bf16.mxu0 0
        %1224 = vmatpush1.bf16.xpose.msra.mxu0 0
        %1225 = vmatprep.subr.bf16.mxu0 0
        %1226 = vmatpush1.bf16.xpose.msra.mxu0 0
        %1227 = vmatprep.subr.bf16.mxu0 0
        %1228 = vmatpush1.bf16.xpose.msra.mxu0 0
        %1229 = vmatprep.subr.bf16.mxu0 0
        %1230 = vmatpush1.bf16.xpose.msra.mxu0 0
        %1231 = vmatprep.subr.bf16.mxu0 0
        %1232 = vmatpush1.bf16.xpose.msra.mxu0 0
        %1233 = vmatprep.subr.bf16.mxu0 0
        %1234 = vmatpush1.bf16.xpose.msra.mxu0 0
        %1235 = vmatprep.subr.bf16.mxu0 0
        %1236 = vmatpush1.bf16.xpose.msra.mxu0 0
        %1237 = vmatprep.mubr.bf16.mxu0 0
        %1238 = vmatmul.mubr.bf16.gmra.mrb[0].mxu0 %v1200
        %v1239 = vpop.f32.mrb[0].mxu0
        %v1240 = vadd.f32 0.0, %v1239
        %v1241 = vpop.f32.mrb[0].mxu0
        %v1242 = vpop.f32.mrb[0].mxu0
        %v1243 = vpop.f32.mrb[0].mxu0
        %1244 = vdwg.mxu0
        %v1245 = vmul.f32 %v1240, 0.35355338
        %v1246 = vadd.f32 %v1245, %v901
        %v1247 = vsel %vm849, %v1246, -inf
        %1248 = vmax.xlane.f32.xlu0 %v1247
        %v1249 = vpop.xlane.xlu0 %1248
        %v1250 = vsub.f32 %v1246, %v1249
        %v1251 = vmul.f32 %v1250, 1.442695
        %v1252 = vpow.pop %v1251
        %v1253 = vsel %vm849, %v1252, 0.0
        %1254 = vadd.xlane.f32.xlu0 %v1253
        %v1255 = vpop.xlane.xlu0 %1254
        %v1256 = vrcp.pop %v1255
        %v1257 = vmul.f32 %v1252, %v1256
        %s1258 = scalar_lea.vmem %s649, 24 [#allocation23]
        %1259 = vst.msk [vmem:[%s1258] sm:$0xff] %vm849, %v1257
        %v1260 = vpack.c.bf16 %v1257, %v1257
        %1261 = vrot.lane.b32.xlu0 %v848, 104
        %v1262 = vpop.permute.xlu0 %1261
        %v1264 = vsel %vm849, %v1260, 0
        %v1267 = vsel %vm920, %v1262, 0
        %1269 = vmatprep.subr.bf16.mxu0 0
        %1270 = vmatpush1.bf16.msra.mxu0 %v1267
        %1271 = vmatprep.subr.bf16.mxu0 0
        %1272 = vmatpush1.bf16.msra.mxu0 0
        %1273 = vmatprep.subr.bf16.mxu0 0
        %1274 = vmatpush1.bf16.msra.mxu0 0
        %1275 = vmatprep.subr.bf16.mxu0 0
        %1276 = vmatpush1.bf16.msra.mxu0 0
        %1277 = vmatprep.subr.bf16.mxu0 0
        %1278 = vmatpush1.bf16.msra.mxu0 0
        %1279 = vmatprep.subr.bf16.mxu0 0
        %1280 = vmatpush1.bf16.msra.mxu0 0
        %1281 = vmatprep.subr.bf16.mxu0 0
        %1282 = vmatpush1.bf16.msra.mxu0 0
        %1283 = vmatprep.subr.bf16.mxu0 0
        %1284 = vmatpush1.bf16.msra.mxu0 0
        %1285 = vmatprep.subr.bf16.mxu0 0
        %1286 = vmatpush1.bf16.msra.mxu0 0
        %1287 = vmatprep.subr.bf16.mxu0 0
        %1288 = vmatpush1.bf16.msra.mxu0 0
        %1289 = vmatprep.subr.bf16.mxu0 0
        %1290 = vmatpush1.bf16.msra.mxu0 0
        %1291 = vmatprep.subr.bf16.mxu0 0
        %1292 = vmatpush1.bf16.msra.mxu0 0
        %1293 = vmatprep.subr.bf16.mxu0 0
        %1294 = vmatpush1.bf16.msra.mxu0 0
        %1295 = vmatprep.subr.bf16.mxu0 0
        %1296 = vmatpush1.bf16.msra.mxu0 0
        %1297 = vmatprep.subr.bf16.mxu0 0
        %1298 = vmatpush1.bf16.msra.mxu0 0
        %1299 = vmatprep.subr.bf16.mxu0 0
        %1300 = vmatpush1.bf16.msra.mxu0 0
        %1301 = vmatprep.mubr.bf16.mxu0 0
        %1302 = vmatmul.mubr.bf16.gmra.mrb[0].mxu0 %v1264
        %v1303 = vpop.f32.mrb[0].mxu0
        %v1304 = vadd.f32 0.0, %v1303
        %v1305 = vpop.f32.mrb[0].mxu0
        %v1306 = vpop.f32.mrb[0].mxu0
        %v1307 = vpop.f32.mrb[0].mxu0
        %1308 = vdwg.mxu0
        %1310 = vrot.lane.b32.xlu0 %v1076, 8
        %v1311 = vpop.permute.xlu0 %1310
        %1314 = vrot.lane.b32.xlu0 %v1190, 16
        %v1315 = vpop.permute.xlu0 %1314
        %1318 = vrot.lane.b32.xlu0 %v1304, 24
        %v1319 = vpop.permute.xlu0 %1318
        %v1321 = vsel %vm849, %v959, %v1311
        %vm1322 = vcmask 130048
        %v1323 = vsel %vm1322, %v1321, %v1315
        %vm1324 = vcmask 195584
        %v1325 = vsel %vm1324, %v1323, %v1319
        %v1326 = vpack.c.bf16 %v1325, %v1325
        %v1327 = vld [vmem:[#allocation11] sm:$0xf]
        %v1328 = vld [vmem:[#allocation11 + $0x4] sm:$0xf]
        %v1329 = vld [vmem:[#allocation11 + $0x8] sm:$0xf]
        %v1330 = vld [vmem:[#allocation11 + $0xc] sm:$0xf]
        %v1331 = vld [vmem:[#allocation17] sm:$0x1]
        %v1333 = vlaneseq
        %v1334 = vshrl.u32 %v1333, 7
        %v1335 = vsub.s32 0, %v1334
        %v1336 = vrot.slane %v1331, %v1335
        %v1342 = vunpack.c.l.b16 %v1327
        %v1343 = vunpack.c.l.b16 %v1328
        %v1344 = vunpack.c.l.b16 %v1329
        %v1345 = vunpack.c.l.b16 %v1330
        %v1346 = vpack.c.b16 %v1343, %v1342
        %v1347 = vpack.c.b16 %v1345, %v1344
        %v1351 = vsel %vm675, %v1326, 0
        %1353 = vmatprep.subr.bf16.mxu0 0
        %1354 = vmatpush1.bf16.msra.mxu0 %v1346
        %1355 = vmatprep.subr.bf16.mxu0 0
        %1356 = vmatpush1.bf16.msra.mxu0 %v1347
        %1357 = vmatprep.subr.bf16.mxu0 0
        %1358 = vmatpush1.bf16.msra.mxu0 0
        %1359 = vmatprep.subr.bf16.mxu0 0
        %1360 = vmatpush1.bf16.msra.mxu0 0
        %1361 = vmatprep.subr.bf16.mxu0 0
        %1362 = vmatpush1.bf16.msra.mxu0 0
        %1363 = vmatprep.subr.bf16.mxu0 0
        %1364 = vmatpush1.bf16.msra.mxu0 0
        %1365 = vmatprep.subr.bf16.mxu0 0
        %1366 = vmatpush1.bf16.msra.mxu0 0
        %1367 = vmatprep.subr.bf16.mxu0 0
        %1368 = vmatpush1.bf16.msra.mxu0 0
        %1369 = vmatprep.subr.bf16.mxu0 0
        %1370 = vmatpush1.bf16.msra.mxu0 0
        %1371 = vmatprep.subr.bf16.mxu0 0
        %1372 = vmatpush1.bf16.msra.mxu0 0
        %1373 = vmatprep.subr.bf16.mxu0 0
        %1374 = vmatpush1.bf16.msra.mxu0 0
        %1375 = vmatprep.subr.bf16.mxu0 0
        %1376 = vmatpush1.bf16.msra.mxu0 0
        %1377 = vmatprep.subr.bf16.mxu0 0
        %1378 = vmatpush1.bf16.msra.mxu0 0
        %1379 = vmatprep.subr.bf16.mxu0 0
        %1380 = vmatpush1.bf16.msra.mxu0 0
        %1381 = vmatprep.subr.bf16.mxu0 0
        %1382 = vmatpush1.bf16.msra.mxu0 0
        %1383 = vmatprep.subr.bf16.mxu0 0
        %1384 = vmatpush1.bf16.msra.mxu0 0
        %1385 = vmatprep.mubr.bf16.mxu0 0
        %1386 = vmatmul.mubr.bf16.gmra.mrb[0].mxu0 %v1351
        %v1387 = vpop.f32.mrb[0].mxu0
        %v1388 = vadd.f32 %v1336, %v1387
        %v1389 = vpop.f32.mrb[0].mxu0
        %v1390 = vpop.f32.mrb[0].mxu0
        %v1391 = vpop.f32.mrb[0].mxu0
        %1392 = vdwg.mxu0
        %v1393 = vunpack.c.l.bf16 %v651
        %v1394 = vadd.f32 %v1388, %v1393
        %v1395 = vsel %vm675, %v1394, 0.0
        %1396 = vadd.xlane.f32.xlu0 %v1395
        %v1397 = vpop.xlane.xlu0 %1396
        %v1398 = vrcp.pop 32.0
        %v1399 = vmul.f32 %v1397, %v1398
        %v1400 = vsub.f32 %v1394, %v1399
        %v1401 = vmul.f32 %v1400, %v1400
        %v1402 = vsel %vm675, %v1401, 0.0
        %1403 = vadd.xlane.f32.xlu0 %v1402
        %v1404 = vpop.xlane.xlu0 %1403
        %v1405 = vmul.f32 %v1404, %v1398
        %v1406 = vadd.f32 %v1405, 1e-05
        %v1407 = vrsqrt.pop %v1406
        %v1408 = vmul.f32 %v1400, %v1407
        %v1409 = vld [vmem:[#allocation19] sm:$0x1]
        %v1411 = vlaneseq
        %v1412 = vshrl.u32 %v1411, 7
        %v1413 = vsub.s32 0, %v1412
        %v1414 = vrot.slane %v1409, %v1413
        %v1416 = vmul.f32 %v1408, %v1414
        %v1417 = vld [vmem:[#allocation20] sm:$0x1]
        %v1419 = vlaneseq
        %v1420 = vshrl.u32 %v1419, 7
        %v1421 = vsub.s32 0, %v1420
        %v1422 = vrot.slane %v1417, %v1421
        %v1424 = vadd.f32 %v1416, %v1422
        %v1425 = vpack.c.bf16 %v1424, %v1424
        %vm1426 = vcmask 257024
        %1427 = vst.msk [vmem:[%s642] sm:$0xf] %vm1426, %v1425
        %s1428 = sand.u32 %s326, 1
        %s1429 = scalar_lea.sflag [#allocation4], %s1428
        %s1430 = sand.u32 %s326, 1
        %s1431 = smul.addr %s1430, 4
        %s1432 = scalar_lea.vmem [#allocation22], %s1431
        %s1433 = sand.u32 %s354, 1
        %s1434 = scalar_lea.sflag [#allocation24], %s1433
        %s1435 = sand.u32 %s354, 1
        %s1436 = smul.addr %s1435, 32
        %s1437 = scalar_lea.vmem [#allocation23], %s1436
        // Predicated region
        $region117: #{transformer_forward.10} parent=67 // pred_check
          %p1438 = pneg %p336
        $region118: #{transformer_forward.10} parent=67 // pred_check_branch
          %1440 = sbr.rel (%p1438) target = $region120
        $region119: #{transformer_forward.10} parent=67 // pred_region
          %s1442 = ssub.s32 64, 64
          %1443 = vsyncadd %s1429, %s1442
          %s1444 = sadd.s32 %s47, %s46
          %s1445 = smul.addr %s1444, 64
          %s1446 = scalar_lea.hbm %s12, %s1445
          %s1448 = sshll.u32 %s1432, 4
          %s1449 = int_to_ptr.vmem [resolvable:$true] %s1448
          %1451 = dma.vmem_to_hbm [thread:$0]  %s1449, 64, %s1446, %s1429
        $region120: #{transformer_forward.10} parent=67 // pred_fallthru
          _
        // Predicated region
        $region121: #{transformer_forward.10} parent=67 // pred_check
          %p1452 = pneg %p364
        $region122: #{transformer_forward.10} parent=67 // pred_check_branch
          %1454 = sbr.rel (%p1452) target = $region124
        $region123: #{transformer_forward.10} parent=67 // pred_region
          %s1456 = ssub.s32 512, 512
          %1457 = vsyncadd %s1434, %s1456
          %s1458 = smul.addr %s46, 4
          %s1459 = sadd.s32 %s47, %s1458
          %s1460 = smul.addr %s1459, 128
          %s1461 = scalar_lea.hbm %s13, %s1460
          %s1462 = sshll.u32 %s1437, 4
          %s1463 = int_to_ptr.vmem [resolvable:$true] %s1462
          %1468 = dma.vmem_to_hbm [thread:$0]  %s1463, 512, %s1461, %s1434, 128, 128, 8
        $region124: #{transformer_forward.10} parent=67 // pred_fallthru
          _
      $region68: #{transformer_forward.10} parent=5 // pred_fallthru
        _
      %p1469 = scmp.le.s32.totalorder 2, %s37
      // Predicated region
      $region125: #{transformer_forward.10} parent=5 // pred_check
        %p1470 = pneg %p1469
      $region126: #{transformer_forward.10} parent=5 // pred_check_branch
        %1472 = sbr.rel (%p1470) target = $region128
      $region127: #{transformer_forward.10} parent=5 // pred_region
        %s1473 = ssub.s32 %s37, 2
        // Predicated region
        $region129: #{transformer_forward.10} parent=127 // pred_check
          %p1474 = pneg %p342
        $region130: #{transformer_forward.10} parent=127 // pred_check_branch
          %1476 = sbr.rel (%p1474) target = $region132
        $region131: #{transformer_forward.10} parent=127 // pred_region
          %s1477 = sand.u32 %s327, 1
          %s1478 = scalar_lea.sflag [#allocation4], %s1477
          %s1479 = sand.u32 %s327, 1
          %s1480 = smul.addr %s1479, 4
          %s1481 = scalar_lea.vmem [#allocation22], %s1480
          %1482 = dma.done %s1478, 64
        $region132: #{transformer_forward.10} parent=127 // pred_fallthru
          _
        // Predicated region
        $region133: #{transformer_forward.10} parent=127 // pred_check
          %p1483 = pneg %p370
        $region134: #{transformer_forward.10} parent=127 // pred_check_branch
          %1485 = sbr.rel (%p1483) target = $region136
        $region135: #{transformer_forward.10} parent=127 // pred_region
          %s1486 = sand.u32 %s355, 1
          %s1487 = scalar_lea.sflag [#allocation24], %s1486
          %s1488 = sand.u32 %s355, 1
          %s1489 = smul.addr %s1488, 32
          %s1490 = scalar_lea.vmem [#allocation23], %s1489
          %1491 = dma.done %s1487, 512
        $region136: #{transformer_forward.10} parent=127 // pred_fallthru
          _
      $region128: #{transformer_forward.10} parent=5 // pred_fallthru
        _
    $region6: #{transformer_forward.10} parent=1 // loop_footer
      %s41 = sadd.s32 1, %s37
    $region7: #{transformer_forward.10} parent=1 // loop_footer_branch
      %36 = sbr.rel target = $region3
    $region8: #{transformer_forward.10} parent=1 // loop_exit
      _
    %1492 = vsyncpa [#allocation3], 1
    %s1493 = scalar_lea.sflag [#allocation3], 1
    %1494 = vsyncpa %s1493, 1
    %1495 = vsyncpa [#allocation6], 1
    %s1496 = scalar_lea.sflag [#allocation6], 1
    %1497 = vsyncpa %s1496, 1
    %1498 = vsyncpa [#allocation9], 1
    %1499 = vsyncpa [#allocation12], 1
    %1500 = vsyncpa [#allocation15], 1
    %1501 = vsyncpa [#allocation18], 1
    %1502 = vsyncpa [#allocation21], 1
    %1503 = vsyncpa [#allocation4], 1
    %s1504 = scalar_lea.sflag [#allocation4], 1
    %1505 = vsyncpa %s1504, 1
    %1506 = vsyncpa [#allocation24], 1
    %s1507 = scalar_lea.sflag [#allocation24], 1
    %1508 = vsyncpa %s1507, 1

// kernel: transformer_forward.15
$region0: #{transformer_forward.15}
  #allocation0 [shape = 'u32[]', space=smem, size = 0x4, offset = 0x4, fixed_abs, tag = 'smem constant byte address 0x4 - core index']
  #allocation1 [shape = 'u32[144,128]{1,0:T(1,128)}', space=vmem, size = 0x12000, scoped, tag = 'internal scratch']
  %s0 = inlined_call_operand.hbm [shape: bf16[2,8,32], index: 0, kind: input, shape index: {}]
  %s1 = inlined_call_operand.hbm [shape: bf16[2,8,32], index: 1, kind: input, shape index: {}]
  %s2 = inlined_call_operand.hbm [shape: f32[2,1,8], index: 2, kind: input, shape index: {}]
  %s3 = inlined_call_operand.hbm [shape: bf16[32,32], index: 3, kind: input, shape index: {}]
  %s4 = inlined_call_operand.hbm [shape: bf16[32,32], index: 4, kind: input, shape index: {}]
  %s5 = inlined_call_operand.hbm [shape: bf16[32,32], index: 5, kind: input, shape index: {}]
  %s6 = inlined_call_operand.hbm [shape: bf16[32,32], index: 6, kind: input, shape index: {}]
  %s7 = inlined_call_operand.hbm [shape: f32[1,32], index: 7, kind: input, shape index: {}]
  %s8 = inlined_call_operand.hbm [shape: f32[1,32], index: 8, kind: input, shape index: {}]
  %s9 = inlined_call_operand.hbm [shape: f32[1,32], index: 9, kind: input, shape index: {}]
  %s10 = inlined_call_operand.hbm [shape: f32[1,32], index: 10, kind: input, shape index: {}]
  %s11 = inlined_call_operand.hbm [shape: f32[1,32], index: 11, kind: input, shape index: {}]
  %s12 = inlined_call_operand.hbm [shape: f32[1,32], index: 12, kind: input, shape index: {}]
  %s13 = inlined_call_operand.hbm [shape: bf16[2,8,32], index: 13, kind: output, shape index: {0}]
  %s14 = inlined_call_operand.hbm [shape: f32[2,4,8,8], index: 14, kind: output, shape index: {1}]
  %15 = xla_tuple %s13, %s14
  %s16 = sld [smem:[#allocation0]]
  $region145: #{transformer_forward.15} parent=0
    _
  %s18 = ssub.s32 1, %s16
  %s19 = scalar_select 0, %s18, %s16
  $region1: #{transformer_forward.15} parent=0
    #allocation2 [shape = 'u8[4096]{0}', space=vmem, size = 0x1000, scoped, tag = 'input window, operand 0']
    #allocation3 [shape = 's32[2]{0}', space=sflag, size = 0x8, scoped, tag = 'scoped memory for transformer_forward.15']
    #allocation4 [shape = 's32[2]{0}', space=sflag, size = 0x8, scoped, tag = 'scoped memory for transformer_forward.15']
    #allocation5 [shape = 'u8[4096]{0}', space=vmem, size = 0x1000, scoped, tag = 'input window, operand 1']
    #allocation6 [shape = 's32[2]{0}', space=sflag, size = 0x8, scoped, tag = 'scoped memory for transformer_forward.15']
    #allocation7 [shape = 'u8[1024]{0}', space=vmem, size = 0x400, scoped, tag = 'input window, operand 2']
    #allocation8 [shape = 'u8[8192]{0}', space=vmem, size = 0x2000, scoped, tag = 'input window, operand 3, single buffered']
    #allocation9 [shape = 's32[1]{0}', space=sflag, size = 0x4, scoped, tag = 'scoped memory for transformer_forward.15']
    #allocation10 [shape = 'u8[8192]{0}', space=vmem, size = 0x2000, scoped, tag = 'input window, operand 4, single buffered']
    #allocation11 [shape = 'u8[8192]{0}', space=vmem, size = 0x2000, scoped, tag = 'input window, operand 5, single buffered']
    #allocation12 [shape = 's32[1]{0}', space=sflag, size = 0x4, scoped, tag = 'scoped memory for transformer_forward.15']
    #allocation13 [shape = 'u8[8192]{0}', space=vmem, size = 0x2000, scoped, tag = 'input window, operand 6, single buffered']
    #allocation14 [shape = 'u8[512]{0}', space=vmem, size = 0x400, scoped, tag = 'input window, operand 7, single buffered']
    #allocation15 [shape = 's32[1]{0}', space=sflag, size = 0x4, scoped, tag = 'scoped memory for transformer_forward.15']
    #allocation16 [shape = 'u8[512]{0}', space=vmem, size = 0x400, scoped, tag = 'input window, operand 8, single buffered']
    #allocation17 [shape = 'u8[512]{0}', space=vmem, size = 0x400, scoped, tag = 'input window, operand 9, single buffered']
    #allocation18 [shape = 's32[1]{0}', space=sflag, size = 0x4, scoped, tag = 'scoped memory for transformer_forward.15']
    #allocation19 [shape = 'u8[512]{0}', space=vmem, size = 0x400, scoped, tag = 'input window, operand 10, single buffered']
    #allocation20 [shape = 'u8[512]{0}', space=vmem, size = 0x400, scoped, tag = 'input window, operand 11, single buffered']
    #allocation21 [shape = 's32[1]{0}', space=sflag, size = 0x4, scoped, tag = 'scoped memory for transformer_forward.15']
    #allocation22 [shape = 'u8[512]{0}', space=vmem, size = 0x400, scoped, tag = 'input window, operand 12, single buffered']
    #allocation23 [shape = 'u8[4096]{0}', space=vmem, size = 0x1000, scoped, tag = 'output window, operand 0']
    #allocation24 [shape = 'u8[32768]{0}', space=vmem, size = 0x8000, scoped, tag = 'output window, operand 1']
    #allocation25 [shape = 's32[2]{0}', space=sflag, size = 0x8, scoped, tag = 'scoped memory for transformer_forward.15']
    %20 = vsyncpa [#allocation3], 0
    %s21 = scalar_lea.sflag [#allocation3], 1
    %22 = vsyncpa %s21, 0
    %23 = vsyncpa [#allocation6], 0
    %s24 = scalar_lea.sflag [#allocation6], 1
    %25 = vsyncpa %s24, 0
    %26 = vsyncpa [#allocation9], 0
    %27 = vsyncpa [#allocation12], 0
    %28 = vsyncpa [#allocation15], 0
    %29 = vsyncpa [#allocation18], 0
    %30 = vsyncpa [#allocation21], 0
    %31 = vsyncpa [#allocation4], 0
    %s32 = scalar_lea.sflag [#allocation4], 1
    %33 = vsyncpa %s32, 0
    %34 = vsyncpa [#allocation25], 0
    %s35 = scalar_lea.sflag [#allocation25], 1
    %36 = vsyncpa %s35, 0
    loop: start=0, step=1, limit=4
    $region2: #{transformer_forward.15} parent=1 // loop_pre_header
      _
    $region3: #{transformer_forward.15} parent=1 // loop_header
      %s38 = sphi 0, %s42
      %p39 = scmp.ge.s32.totalorder %s38, 4
      %s45 = sphi 0, %s57
      %s46 = sphi 0, %s53
      %s47 = sphi 0, %s45
      %s48 = sphi 0, %s46
      %s49 = sphi 0, %s47
      %s50 = sphi 0, %s48
      %s62 = sphi 0, %s64
      %s65 = sphi 0, %s62
      %s66 = sphi 0, %s65
      %s82 = sphi 0, %s66
      %s88 = sphi 0, %s90
      %s91 = sphi 0, %s88
      %s92 = sphi 0, %s91
      %s108 = sphi 0, %s92
      %s114 = sphi 0, %s116
      %s117 = sphi 0, %s114
      %s118 = sphi 0, %s117
      %s134 = sphi 0, %s118
      %s138 = sphi 0, %s138
      %s140 = sphi 0, %s138
      %s141 = sphi 0, %s140
      %s155 = sphi 0, %s141
      %s159 = sphi 0, %s159
      %s161 = sphi 0, %s159
      %s162 = sphi 0, %s161
      %s176 = sphi 0, %s162
      %s180 = sphi 0, %s180
      %s182 = sphi 0, %s180
      %s183 = sphi 0, %s182
      %s197 = sphi 0, %s183
      %s201 = sphi 0, %s201
      %s203 = sphi 0, %s201
      %s204 = sphi 0, %s203
      %s218 = sphi 0, %s204
      %s222 = sphi 0, %s222
      %s224 = sphi 0, %s222
      %s225 = sphi 0, %s224
      %s239 = sphi 0, %s225
      %s243 = sphi 0, %s243
      %s245 = sphi 0, %s243
      %s246 = sphi 0, %s245
      %s260 = sphi 0, %s246
      %s264 = sphi 0, %s264
      %s266 = sphi 0, %s264
      %s267 = sphi 0, %s266
      %s281 = sphi 0, %s267
      %s285 = sphi 0, %s285
      %s287 = sphi 0, %s285
      %s288 = sphi 0, %s287
      %s302 = sphi 0, %s288
      %s306 = sphi 0, %s306
      %s308 = sphi 0, %s306
      %s309 = sphi 0, %s308
      %s323 = sphi 0, %s309
      %s327 = sphi 0, %s327
      %s329 = sphi 0, %s327
      %s330 = sphi 0, %s329
      %s344 = sphi 0, %s330
      %s352 = sphi 0, %s354
      %s355 = sphi 0, %s352
      %s356 = sphi 0, %s355
      %s372 = sphi 0, %s356
      %s380 = sphi 0, %s382
      %s383 = sphi 0, %s380
      %s384 = sphi 0, %s383
      %s400 = sphi 0, %s384
    $region4: #{transformer_forward.15} parent=1 // loop_header_branch
      %41 = sbr.rel (%p39) target = $region8
    $region5: #{transformer_forward.15} parent=1 // loop_body
      %s43 = ssub.s32 %s38, 1
      %s44 = ssub.s32 %s38, 2
      %s51 = sadd.s32 1, %s46
      %p52 = scmp.ge.s32.totalorder %s51, 1
      %s53 = scalar_select %p52, 0, %s51
      %s54 = sadd.s32 1, %s45
      %s55 = scalar_select %p52, %s54, %s45
      %p56 = scmp.ge.s32.totalorder %s55, 2
      %s57 = scalar_select %p56, 0, %s55
      %s58 = ssub.s32 %s45, %s57
      %s59 = ssub.s32 %s46, %s53
      %s60 = sor.u32 %s58, %s59
      %p61 = scmp.eq.s32.totalorder %s60, 0
      %s63 = sadd.s32 %s62, 1
      %s64 = scalar_select %p61, %s62, %s63
      %p67 = pneg %p61
      %p68 = scmp.eq.s32.totalorder %s38, 1
      %p69 = por %p67, %p68
      %p70 = scmp.ne.s32.totalorder %s62, %s65
      %p71 = scmp.eq.s32.totalorder %s38, 0
      %p72 = por %p70, %p71
      %p73 = scmp.ne.s32.totalorder %s62, %s65
      %p74 = scmp.eq.s32.totalorder %s43, 1
      %p75 = por %p73, %p74
      %p76 = scmp.ne.s32.totalorder %s65, %s66
      %p77 = scmp.eq.s32.totalorder %s43, 0
      %p78 = por %p76, %p77
      %p79 = scmp.ne.s32.totalorder %s65, %s66
      %p80 = scmp.eq.s32.totalorder %s44, 1
      %p81 = por %p79, %p80
      %p83 = scmp.ne.s32.totalorder %s66, %s82
      %p84 = scmp.eq.s32.totalorder %s44, 0
      %p85 = por %p83, %p84
      %s86 = ssub.s32 %s45, %s57
      %p87 = scmp.eq.s32.totalorder %s86, 0
      %s89 = sadd.s32 %s88, 1
      %s90 = scalar_select %p87, %s88, %s89
      %p93 = pneg %p87
      %p94 = scmp.eq.s32.totalorder %s38, 1
      %p95 = por %p93, %p94
      %p96 = scmp.ne.s32.totalorder %s88, %s91
      %p97 = scmp.eq.s32.totalorder %s38, 0
      %p98 = por %p96, %p97
      %p99 = scmp.ne.s32.totalorder %s88, %s91
      %p100 = scmp.eq.s32.totalorder %s43, 1
      %p101 = por %p99, %p100
      %p102 = scmp.ne.s32.totalorder %s91, %s92
      %p103 = scmp.eq.s32.totalorder %s43, 0
      %p104 = por %p102, %p103
      %p105 = scmp.ne.s32.totalorder %s91, %s92
      %p106 = scmp.eq.s32.totalorder %s44, 1
      %p107 = por %p105, %p106
      %p109 = scmp.ne.s32.totalorder %s92, %s108
      %p110 = scmp.eq.s32.totalorder %s44, 0
      %p111 = por %p109, %p110
      %s112 = ssub.s32 %s45, %s57
      %p113 = scmp.eq.s32.totalorder %s112, 0
      %s115 = sadd.s32 %s114, 1
      %s116 = scalar_select %p113, %s114, %s115
      %p119 = pneg %p113
      %p120 = scmp.eq.s32.totalorder %s38, 1
      %p121 = por %p119, %p120
      %p122 = scmp.ne.s32.totalorder %s114, %s117
      %p123 = scmp.eq.s32.totalorder %s38, 0
      %p124 = por %p122, %p123
      %p125 = scmp.ne.s32.totalorder %s114, %s117
      %p126 = scmp.eq.s32.totalorder %s43, 1
      %p127 = por %p125, %p126
      %p128 = scmp.ne.s32.totalorder %s117, %s118
      %p129 = scmp.eq.s32.totalorder %s43, 0
      %p130 = por %p128, %p129
      %p131 = scmp.ne.s32.totalorder %s117, %s118
      %p132 = scmp.eq.s32.totalorder %s44, 1
      %p133 = por %p131, %p132
      %p135 = scmp.ne.s32.totalorder %s118, %s134
      %p136 = scmp.eq.s32.totalorder %s44, 0
      %p137 = por %p135, %p136
      %s139 = sadd.s32 %s138, 1
      %p142 = scmp.eq.s32.totalorder %s38, 1
      %p143 = scmp.ne.s32.totalorder %s138, %s140
      %p144 = scmp.eq.s32.totalorder %s38, 0
      %p145 = por %p143, %p144
      %p146 = scmp.ne.s32.totalorder %s138, %s140
      %p147 = scmp.eq.s32.totalorder %s43, 1
      %p148 = por %p146, %p147
      %p149 = scmp.ne.s32.totalorder %s140, %s141
      %p150 = scmp.eq.s32.totalorder %s43, 0
      %p151 = por %p149, %p150
      %p152 = scmp.ne.s32.totalorder %s140, %s141
      %p153 = scmp.eq.s32.totalorder %s44, 1
      %p154 = por %p152, %p153
      %p156 = scmp.ne.s32.totalorder %s141, %s155
      %p157 = scmp.eq.s32.totalorder %s44, 0
      %p158 = por %p156, %p157
      %s160 = sadd.s32 %s159, 1
      %p163 = scmp.eq.s32.totalorder %s38, 1
      %p164 = scmp.ne.s32.totalorder %s159, %s161
      %p165 = scmp.eq.s32.totalorder %s38, 0
      %p166 = por %p164, %p165
      %p167 = scmp.ne.s32.totalorder %s159, %s161
      %p168 = scmp.eq.s32.totalorder %s43, 1
      %p169 = por %p167, %p168
      %p170 = scmp.ne.s32.totalorder %s161, %s162
      %p171 = scmp.eq.s32.totalorder %s43, 0
      %p172 = por %p170, %p171
      %p173 = scmp.ne.s32.totalorder %s161, %s162
      %p174 = scmp.eq.s32.totalorder %s44, 1
      %p175 = por %p173, %p174
      %p177 = scmp.ne.s32.totalorder %s162, %s176
      %p178 = scmp.eq.s32.totalorder %s44, 0
      %p179 = por %p177, %p178
      %s181 = sadd.s32 %s180, 1
      %p184 = scmp.eq.s32.totalorder %s38, 1
      %p185 = scmp.ne.s32.totalorder %s180, %s182
      %p186 = scmp.eq.s32.totalorder %s38, 0
      %p187 = por %p185, %p186
      %p188 = scmp.ne.s32.totalorder %s180, %s182
      %p189 = scmp.eq.s32.totalorder %s43, 1
      %p190 = por %p188, %p189
      %p191 = scmp.ne.s32.totalorder %s182, %s183
      %p192 = scmp.eq.s32.totalorder %s43, 0
      %p193 = por %p191, %p192
      %p194 = scmp.ne.s32.totalorder %s182, %s183
      %p195 = scmp.eq.s32.totalorder %s44, 1
      %p196 = por %p194, %p195
      %p198 = scmp.ne.s32.totalorder %s183, %s197
      %p199 = scmp.eq.s32.totalorder %s44, 0
      %p200 = por %p198, %p199
      %s202 = sadd.s32 %s201, 1
      %p205 = scmp.eq.s32.totalorder %s38, 1
      %p206 = scmp.ne.s32.totalorder %s201, %s203
      %p207 = scmp.eq.s32.totalorder %s38, 0
      %p208 = por %p206, %p207
      %p209 = scmp.ne.s32.totalorder %s201, %s203
      %p210 = scmp.eq.s32.totalorder %s43, 1
      %p211 = por %p209, %p210
      %p212 = scmp.ne.s32.totalorder %s203, %s204
      %p213 = scmp.eq.s32.totalorder %s43, 0
      %p214 = por %p212, %p213
      %p215 = scmp.ne.s32.totalorder %s203, %s204
      %p216 = scmp.eq.s32.totalorder %s44, 1
      %p217 = por %p215, %p216
      %p219 = scmp.ne.s32.totalorder %s204, %s218
      %p220 = scmp.eq.s32.totalorder %s44, 0
      %p221 = por %p219, %p220
      %s223 = sadd.s32 %s222, 1
      %p226 = scmp.eq.s32.totalorder %s38, 1
      %p227 = scmp.ne.s32.totalorder %s222, %s224
      %p228 = scmp.eq.s32.totalorder %s38, 0
      %p229 = por %p227, %p228
      %p230 = scmp.ne.s32.totalorder %s222, %s224
      %p231 = scmp.eq.s32.totalorder %s43, 1
      %p232 = por %p230, %p231
      %p233 = scmp.ne.s32.totalorder %s224, %s225
      %p234 = scmp.eq.s32.totalorder %s43, 0
      %p235 = por %p233, %p234
      %p236 = scmp.ne.s32.totalorder %s224, %s225
      %p237 = scmp.eq.s32.totalorder %s44, 1
      %p238 = por %p236, %p237
      %p240 = scmp.ne.s32.totalorder %s225, %s239
      %p241 = scmp.eq.s32.totalorder %s44, 0
      %p242 = por %p240, %p241
      %s244 = sadd.s32 %s243, 1
      %p247 = scmp.eq.s32.totalorder %s38, 1
      %p248 = scmp.ne.s32.totalorder %s243, %s245
      %p249 = scmp.eq.s32.totalorder %s38, 0
      %p250 = por %p248, %p249
      %p251 = scmp.ne.s32.totalorder %s243, %s245
      %p252 = scmp.eq.s32.totalorder %s43, 1
      %p253 = por %p251, %p252
      %p254 = scmp.ne.s32.totalorder %s245, %s246
      %p255 = scmp.eq.s32.totalorder %s43, 0
      %p256 = por %p254, %p255
      %p257 = scmp.ne.s32.totalorder %s245, %s246
      %p258 = scmp.eq.s32.totalorder %s44, 1
      %p259 = por %p257, %p258
      %p261 = scmp.ne.s32.totalorder %s246, %s260
      %p262 = scmp.eq.s32.totalorder %s44, 0
      %p263 = por %p261, %p262
      %s265 = sadd.s32 %s264, 1
      %p268 = scmp.eq.s32.totalorder %s38, 1
      %p269 = scmp.ne.s32.totalorder %s264, %s266
      %p270 = scmp.eq.s32.totalorder %s38, 0
      %p271 = por %p269, %p270
      %p272 = scmp.ne.s32.totalorder %s264, %s266
      %p273 = scmp.eq.s32.totalorder %s43, 1
      %p274 = por %p272, %p273
      %p275 = scmp.ne.s32.totalorder %s266, %s267
      %p276 = scmp.eq.s32.totalorder %s43, 0
      %p277 = por %p275, %p276
      %p278 = scmp.ne.s32.totalorder %s266, %s267
      %p279 = scmp.eq.s32.totalorder %s44, 1
      %p280 = por %p278, %p279
      %p282 = scmp.ne.s32.totalorder %s267, %s281
      %p283 = scmp.eq.s32.totalorder %s44, 0
      %p284 = por %p282, %p283
      %s286 = sadd.s32 %s285, 1
      %p289 = scmp.eq.s32.totalorder %s38, 1
      %p290 = scmp.ne.s32.totalorder %s285, %s287
      %p291 = scmp.eq.s32.totalorder %s38, 0
      %p292 = por %p290, %p291
      %p293 = scmp.ne.s32.totalorder %s285, %s287
      %p294 = scmp.eq.s32.totalorder %s43, 1
      %p295 = por %p293, %p294
      %p296 = scmp.ne.s32.totalorder %s287, %s288
      %p297 = scmp.eq.s32.totalorder %s43, 0
      %p298 = por %p296, %p297
      %p299 = scmp.ne.s32.totalorder %s287, %s288
      %p300 = scmp.eq.s32.totalorder %s44, 1
      %p301 = por %p299, %p300
      %p303 = scmp.ne.s32.totalorder %s288, %s302
      %p304 = scmp.eq.s32.totalorder %s44, 0
      %p305 = por %p303, %p304
      %s307 = sadd.s32 %s306, 1
      %p310 = scmp.eq.s32.totalorder %s38, 1
      %p311 = scmp.ne.s32.totalorder %s306, %s308
      %p312 = scmp.eq.s32.totalorder %s38, 0
      %p313 = por %p311, %p312
      %p314 = scmp.ne.s32.totalorder %s306, %s308
      %p315 = scmp.eq.s32.totalorder %s43, 1
      %p316 = por %p314, %p315
      %p317 = scmp.ne.s32.totalorder %s308, %s309
      %p318 = scmp.eq.s32.totalorder %s43, 0
      %p319 = por %p317, %p318
      %p320 = scmp.ne.s32.totalorder %s308, %s309
      %p321 = scmp.eq.s32.totalorder %s44, 1
      %p322 = por %p320, %p321
      %p324 = scmp.ne.s32.totalorder %s309, %s323
      %p325 = scmp.eq.s32.totalorder %s44, 0
      %p326 = por %p324, %p325
      %s328 = sadd.s32 %s327, 1
      %p331 = scmp.eq.s32.totalorder %s38, 1
      %p332 = scmp.ne.s32.totalorder %s327, %s329
      %p333 = scmp.eq.s32.totalorder %s38, 0
      %p334 = por %p332, %p333
      %p335 = scmp.ne.s32.totalorder %s327, %s329
      %p336 = scmp.eq.s32.totalorder %s43, 1
      %p337 = por %p335, %p336
      %p338 = scmp.ne.s32.totalorder %s329, %s330
      %p339 = scmp.eq.s32.totalorder %s43, 0
      %p340 = por %p338, %p339
      %p341 = scmp.ne.s32.totalorder %s329, %s330
      %p342 = scmp.eq.s32.totalorder %s44, 1
      %p343 = por %p341, %p342
      %p345 = scmp.ne.s32.totalorder %s330, %s344
      %p346 = scmp.eq.s32.totalorder %s44, 0
      %p347 = por %p345, %p346
      %s348 = ssub.s32 %s45, %s57
      %s349 = ssub.s32 %s46, %s53
      %s350 = sor.u32 %s348, %s349
      %p351 = scmp.eq.s32.totalorder %s350, 0
      %s353 = sadd.s32 %s352, 1
      %s354 = scalar_select %p351, %s352, %s353
      %p357 = pneg %p351
      %p358 = scmp.eq.s32.totalorder %s38, 1
      %p359 = por %p357, %p358
      %p360 = scmp.ne.s32.totalorder %s352, %s355
      %p361 = scmp.eq.s32.totalorder %s38, 0
      %p362 = por %p360, %p361
      %p363 = scmp.ne.s32.totalorder %s352, %s355
      %p364 = scmp.eq.s32.totalorder %s43, 1
      %p365 = por %p363, %p364
      %p366 = scmp.ne.s32.totalorder %s355, %s356
      %p367 = scmp.eq.s32.totalorder %s43, 0
      %p368 = por %p366, %p367
      %p369 = scmp.ne.s32.totalorder %s355, %s356
      %p370 = scmp.eq.s32.totalorder %s44, 1
      %p371 = por %p369, %p370
      %p373 = scmp.ne.s32.totalorder %s356, %s372
      %p374 = scmp.eq.s32.totalorder %s44, 0
      %p375 = por %p373, %p374
      %s376 = ssub.s32 %s45, %s57
      %s377 = ssub.s32 %s46, %s53
      %s378 = sor.u32 %s376, %s377
      %p379 = scmp.eq.s32.totalorder %s378, 0
      %s381 = sadd.s32 %s380, 1
      %s382 = scalar_select %p379, %s380, %s381
      %p385 = pneg %p379
      %p386 = scmp.eq.s32.totalorder %s38, 1
      %p387 = por %p385, %p386
      %p388 = scmp.ne.s32.totalorder %s380, %s383
      %p389 = scmp.eq.s32.totalorder %s38, 0
      %p390 = por %p388, %p389
      %p391 = scmp.ne.s32.totalorder %s380, %s383
      %p392 = scmp.eq.s32.totalorder %s43, 1
      %p393 = por %p391, %p392
      %p394 = scmp.ne.s32.totalorder %s383, %s384
      %p395 = scmp.eq.s32.totalorder %s43, 0
      %p396 = por %p394, %p395
      %p397 = scmp.ne.s32.totalorder %s383, %s384
      %p398 = scmp.eq.s32.totalorder %s44, 1
      %p399 = por %p397, %p398
      %p401 = scmp.ne.s32.totalorder %s384, %s400
      %p402 = scmp.eq.s32.totalorder %s44, 0
      %p403 = por %p401, %p402
      %p404 = scmp.le.s32.totalorder 1, %s38
      %p405 = scmp.lt.s32.totalorder %s38, 3
      %p406 = pnand %p404, %p405
      %p407 = pneg %p406
      // Predicated region
      $region9: #{transformer_forward.15} parent=5 // pred_check
        _
      $region10: #{transformer_forward.15} parent=5 // pred_check_branch
        %409 = sbr.rel (%p406) target = $region12
      $region11: #{transformer_forward.15} parent=5 // pred_region
        %s410 = ssub.s32 %s38, 1
        // Predicated region
        $region13: #{transformer_forward.15} parent=11 // pred_check
          %p411 = pneg %p151
        $region14: #{transformer_forward.15} parent=11 // pred_check_branch
          %413 = sbr.rel (%p411) target = $region16
        $region15: #{transformer_forward.15} parent=11 // pred_region
          %s415 = ssub.s32 256, 256
          %416 = vsyncadd [#allocation9], %s415
          %s417 = sshll.u32 [#allocation8], 4
          %s418 = int_to_ptr.vmem [resolvable:$true] %s417
          %423 = dma.hbm_to_vmem [thread:$0]  %s3, 256, %s418, [#allocation9], 64, 64, 4
        $region16: #{transformer_forward.15} parent=11 // pred_fallthru
          _
        // Predicated region
        $region17: #{transformer_forward.15} parent=11 // pred_check
          %p424 = pneg %p172
        $region18: #{transformer_forward.15} parent=11 // pred_check_branch
          %426 = sbr.rel (%p424) target = $region20
        $region19: #{transformer_forward.15} parent=11 // pred_region
          %s428 = ssub.s32 256, 256
          %429 = vsyncadd [#allocation9], %s428
          %s430 = sshll.u32 [#allocation10], 4
          %s431 = int_to_ptr.vmem [resolvable:$true] %s430
          %436 = dma.hbm_to_vmem [thread:$0]  %s4, 256, %s431, [#allocation9], 64, 64, 4
        $region20: #{transformer_forward.15} parent=11 // pred_fallthru
          _
        // Predicated region
        $region21: #{transformer_forward.15} parent=11 // pred_check
          %p437 = pneg %p193
        $region22: #{transformer_forward.15} parent=11 // pred_check_branch
          %439 = sbr.rel (%p437) target = $region24
        $region23: #{transformer_forward.15} parent=11 // pred_region
          %s441 = ssub.s32 256, 256
          %442 = vsyncadd [#allocation12], %s441
          %s443 = sshll.u32 [#allocation11], 4
          %s444 = int_to_ptr.vmem [resolvable:$true] %s443
          %449 = dma.hbm_to_vmem [thread:$0]  %s5, 256, %s444, [#allocation12], 64, 64, 4
        $region24: #{transformer_forward.15} parent=11 // pred_fallthru
          _
        // Predicated region
        $region25: #{transformer_forward.15} parent=11 // pred_check
          %p450 = pneg %p214
        $region26: #{transformer_forward.15} parent=11 // pred_check_branch
          %452 = sbr.rel (%p450) target = $region28
        $region27: #{transformer_forward.15} parent=11 // pred_region
          %s454 = ssub.s32 256, 256
          %455 = vsyncadd [#allocation12], %s454
          %s456 = sshll.u32 [#allocation13], 4
          %s457 = int_to_ptr.vmem [resolvable:$true] %s456
          %462 = dma.hbm_to_vmem [thread:$0]  %s6, 256, %s457, [#allocation12], 64, 64, 4
        $region28: #{transformer_forward.15} parent=11 // pred_fallthru
          _
        // Predicated region
        $region29: #{transformer_forward.15} parent=11 // pred_check
          %p463 = pneg %p235
        $region30: #{transformer_forward.15} parent=11 // pred_check_branch
          %465 = sbr.rel (%p463) target = $region32
        $region31: #{transformer_forward.15} parent=11 // pred_region
          %s467 = ssub.s32 16, 16
          %468 = vsyncadd [#allocation15], %s467
          %s470 = sshll.u32 [#allocation14], 4
          %s471 = int_to_ptr.vmem [resolvable:$true] %s470
          %473 = dma.hbm_to_vmem [thread:$0]  %s7, 16, %s471, [#allocation15]
        $region32: #{transformer_forward.15} parent=11 // pred_fallthru
          _
        // Predicated region
        $region33: #{transformer_forward.15} parent=11 // pred_check
          %p474 = pneg %p256
        $region34: #{transformer_forward.15} parent=11 // pred_check_branch
          %476 = sbr.rel (%p474) target = $region36
        $region35: #{transformer_forward.15} parent=11 // pred_region
          %s478 = ssub.s32 16, 16
          %479 = vsyncadd [#allocation15], %s478
          %s481 = sshll.u32 [#allocation16], 4
          %s482 = int_to_ptr.vmem [resolvable:$true] %s481
          %484 = dma.hbm_to_vmem [thread:$0]  %s8, 16, %s482, [#allocation15]
        $region36: #{transformer_forward.15} parent=11 // pred_fallthru
          _
        // Predicated region
        $region37: #{transformer_forward.15} parent=11 // pred_check
          %p485 = pneg %p277
        $region38: #{transformer_forward.15} parent=11 // pred_check_branch
          %487 = sbr.rel (%p485) target = $region40
        $region39: #{transformer_forward.15} parent=11 // pred_region
          %s489 = ssub.s32 16, 16
          %490 = vsyncadd [#allocation18], %s489
          %s492 = sshll.u32 [#allocation17], 4
          %s493 = int_to_ptr.vmem [resolvable:$true] %s492
          %495 = dma.hbm_to_vmem [thread:$0]  %s9, 16, %s493, [#allocation18]
        $region40: #{transformer_forward.15} parent=11 // pred_fallthru
          _
        // Predicated region
        $region41: #{transformer_forward.15} parent=11 // pred_check
          %p496 = pneg %p298
        $region42: #{transformer_forward.15} parent=11 // pred_check_branch
          %498 = sbr.rel (%p496) target = $region44
        $region43: #{transformer_forward.15} parent=11 // pred_region
          %s500 = ssub.s32 16, 16
          %501 = vsyncadd [#allocation18], %s500
          %s503 = sshll.u32 [#allocation19], 4
          %s504 = int_to_ptr.vmem [resolvable:$true] %s503
          %506 = dma.hbm_to_vmem [thread:$0]  %s10, 16, %s504, [#allocation18]
        $region44: #{transformer_forward.15} parent=11 // pred_fallthru
          _
        // Predicated region
        $region45: #{transformer_forward.15} parent=11 // pred_check
          %p507 = pneg %p319
        $region46: #{transformer_forward.15} parent=11 // pred_check_branch
          %509 = sbr.rel (%p507) target = $region48
        $region47: #{transformer_forward.15} parent=11 // pred_region
          %s511 = ssub.s32 16, 16
          %512 = vsyncadd [#allocation21], %s511
          %s514 = sshll.u32 [#allocation20], 4
          %s515 = int_to_ptr.vmem [resolvable:$true] %s514
          %517 = dma.hbm_to_vmem [thread:$0]  %s11, 16, %s515, [#allocation21]
        $region48: #{transformer_forward.15} parent=11 // pred_fallthru
          _
        // Predicated region
        $region49: #{transformer_forward.15} parent=11 // pred_check
          %p518 = pneg %p340
        $region50: #{transformer_forward.15} parent=11 // pred_check_branch
          %520 = sbr.rel (%p518) target = $region52
        $region51: #{transformer_forward.15} parent=11 // pred_region
          %s522 = ssub.s32 16, 16
          %523 = vsyncadd [#allocation21], %s522
          %s525 = sshll.u32 [#allocation22], 4
          %s526 = int_to_ptr.vmem [resolvable:$true] %s525
          %528 = dma.hbm_to_vmem [thread:$0]  %s12, 16, %s526, [#allocation21]
        $region52: #{transformer_forward.15} parent=11 // pred_fallthru
          _
      $region12: #{transformer_forward.15} parent=5 // pred_fallthru
        _
      %p529 = scmp.lt.s32.totalorder %s38, 2
      // Predicated region
      $region53: #{transformer_forward.15} parent=5 // pred_check
        %p530 = pneg %p529
      $region54: #{transformer_forward.15} parent=5 // pred_check_branch
        %532 = sbr.rel (%p530) target = $region56
      $region55: #{transformer_forward.15} parent=5 // pred_region
        // Predicated region
        $region57: #{transformer_forward.15} parent=55 // pred_check
          %p533 = pneg %p72
        $region58: #{transformer_forward.15} parent=55 // pred_check_branch
          %535 = sbr.rel (%p533) target = $region60
        $region59: #{transformer_forward.15} parent=55 // pred_region
          %s536 = sand.u32 %s62, 1
          %s537 = scalar_lea.sflag [#allocation3], %s536
          %s538 = sand.u32 %s62, 1
          %s539 = smul.addr %s538, 4
          %s540 = scalar_lea.vmem [#allocation2], %s539
          %s542 = ssub.s32 64, 64
          %543 = vsyncadd %s537, %s542
          %s544 = sadd.s32 %s46, %s45
          %s545 = smul.addr %s544, 64
          %s546 = scalar_lea.hbm %s0, %s545
          %s548 = sshll.u32 %s540, 4
          %s549 = int_to_ptr.vmem [resolvable:$true] %s548
          %551 = dma.hbm_to_vmem [thread:$0]  %s546, 64, %s549, %s537
        $region60: #{transformer_forward.15} parent=55 // pred_fallthru
          _
        // Predicated region
        $region61: #{transformer_forward.15} parent=55 // pred_check
          %p552 = pneg %p98
        $region62: #{transformer_forward.15} parent=55 // pred_check_branch
          %554 = sbr.rel (%p552) target = $region64
        $region63: #{transformer_forward.15} parent=55 // pred_region
          %s555 = sand.u32 %s38, 1
          %s556 = scalar_lea.sflag [#allocation6], %s555
          %s557 = sand.u32 %s88, 1
          %s558 = smul.addr %s557, 4
          %s559 = scalar_lea.vmem [#allocation5], %s558
          %s561 = ssub.s32 64, 64
          %562 = vsyncadd %s556, %s561
          %s563 = smul.addr %s45, 64
          %s564 = scalar_lea.hbm %s1, %s563
          %s566 = sshll.u32 %s559, 4
          %s567 = int_to_ptr.vmem [resolvable:$true] %s566
          %569 = dma.hbm_to_vmem [thread:$0]  %s564, 64, %s567, %s556
        $region64: #{transformer_forward.15} parent=55 // pred_fallthru
          _
        // Predicated region
        $region65: #{transformer_forward.15} parent=55 // pred_check
          %p570 = pneg %p124
        $region66: #{transformer_forward.15} parent=55 // pred_check_branch
          %572 = sbr.rel (%p570) target = $region68
        $region67: #{transformer_forward.15} parent=55 // pred_region
          %s573 = sand.u32 %s38, 1
          %s574 = scalar_lea.sflag [#allocation6], %s573
          %s575 = sand.u32 %s114, 1
          %s576 = scalar_lea.vmem [#allocation7], %s575
          %s578 = ssub.s32 16, 16
          %579 = vsyncadd %s574, %s578
          %s580 = smul.addr %s45, 16
          %s581 = scalar_lea.hbm %s2, %s580
          %s583 = sshll.u32 %s576, 4
          %s584 = int_to_ptr.vmem [resolvable:$true] %s583
          %586 = dma.hbm_to_vmem [thread:$0]  %s581, 16, %s584, %s574
        $region68: #{transformer_forward.15} parent=55 // pred_fallthru
          _
      $region56: #{transformer_forward.15} parent=5 // pred_fallthru
        _
      %p587 = scmp.le.s32.totalorder 1, %s38
      %p588 = scmp.lt.s32.totalorder %s38, 3
      %p589 = pnand %p587, %p588
      %p590 = pneg %p589
      // Predicated region
      $region69: #{transformer_forward.15} parent=5 // pred_check
        _
      $region70: #{transformer_forward.15} parent=5 // pred_check_branch
        %592 = sbr.rel (%p589) target = $region72
      $region71: #{transformer_forward.15} parent=5 // pred_region
        %s593 = ssub.s32 %s38, 1
        %s594 = sand.u32 %s65, 1
        %s595 = scalar_lea.sflag [#allocation3], %s594
        %s596 = sand.u32 %s65, 1
        %s597 = smul.addr %s596, 4
        %s598 = scalar_lea.vmem [#allocation2], %s597
        // Predicated region
        $region73: #{transformer_forward.15} parent=71 // pred_check
          %p599 = pneg %p78
        $region74: #{transformer_forward.15} parent=71 // pred_check_branch
          %601 = sbr.rel (%p599) target = $region76
        $region75: #{transformer_forward.15} parent=71 // pred_region
          %602 = dma.done %s595, 64
        $region76: #{transformer_forward.15} parent=71 // pred_fallthru
          _
        %s603 = sand.u32 %s43, 1
        %s604 = scalar_lea.sflag [#allocation6], %s603
        %s605 = sand.u32 %s91, 1
        %s606 = smul.addr %s605, 4
        %s607 = scalar_lea.vmem [#allocation5], %s606
        // Predicated region
        $region77: #{transformer_forward.15} parent=71 // pred_check
          %p608 = pneg %p104
        $region78: #{transformer_forward.15} parent=71 // pred_check_branch
          %610 = sbr.rel (%p608) target = $region80
        $region79: #{transformer_forward.15} parent=71 // pred_region
          %611 = dma.done %s604, 64
        $region80: #{transformer_forward.15} parent=71 // pred_fallthru
          _
        %s612 = sand.u32 %s43, 1
        %s613 = scalar_lea.sflag [#allocation6], %s612
        %s614 = sand.u32 %s117, 1
        %s615 = scalar_lea.vmem [#allocation7], %s614
        // Predicated region
        $region81: #{transformer_forward.15} parent=71 // pred_check
          %p616 = pneg %p130
        $region82: #{transformer_forward.15} parent=71 // pred_check_branch
          %618 = sbr.rel (%p616) target = $region84
        $region83: #{transformer_forward.15} parent=71 // pred_region
          %619 = dma.done %s613, 16
        $region84: #{transformer_forward.15} parent=71 // pred_fallthru
          _
        // Predicated region
        $region85: #{transformer_forward.15} parent=71 // pred_check
          %p620 = pneg %p151
        $region86: #{transformer_forward.15} parent=71 // pred_check_branch
          %622 = sbr.rel (%p620) target = $region88
        $region87: #{transformer_forward.15} parent=71 // pred_region
          %623 = dma.done [#allocation9], 256
        $region88: #{transformer_forward.15} parent=71 // pred_fallthru
          _
        // Predicated region
        $region89: #{transformer_forward.15} parent=71 // pred_check
          %p624 = pneg %p172
        $region90: #{transformer_forward.15} parent=71 // pred_check_branch
          %626 = sbr.rel (%p624) target = $region92
        $region91: #{transformer_forward.15} parent=71 // pred_region
          %627 = dma.done [#allocation9], 256
        $region92: #{transformer_forward.15} parent=71 // pred_fallthru
          _
        // Predicated region
        $region93: #{transformer_forward.15} parent=71 // pred_check
          %p628 = pneg %p193
        $region94: #{transformer_forward.15} parent=71 // pred_check_branch
          %630 = sbr.rel (%p628) target = $region96
        $region95: #{transformer_forward.15} parent=71 // pred_region
          %631 = dma.done [#allocation12], 256
        $region96: #{transformer_forward.15} parent=71 // pred_fallthru
          _
        // Predicated region
        $region97: #{transformer_forward.15} parent=71 // pred_check
          %p632 = pneg %p214
        $region98: #{transformer_forward.15} parent=71 // pred_check_branch
          %634 = sbr.rel (%p632) target = $region100
        $region99: #{transformer_forward.15} parent=71 // pred_region
          %635 = dma.done [#allocation12], 256
        $region100: #{transformer_forward.15} parent=71 // pred_fallthru
          _
        // Predicated region
        $region101: #{transformer_forward.15} parent=71 // pred_check
          %p636 = pneg %p235
        $region102: #{transformer_forward.15} parent=71 // pred_check_branch
          %638 = sbr.rel (%p636) target = $region104
        $region103: #{transformer_forward.15} parent=71 // pred_region
          %639 = dma.done [#allocation15], 16
        $region104: #{transformer_forward.15} parent=71 // pred_fallthru
          _
        // Predicated region
        $region105: #{transformer_forward.15} parent=71 // pred_check
          %p640 = pneg %p256
        $region106: #{transformer_forward.15} parent=71 // pred_check_branch
          %642 = sbr.rel (%p640) target = $region108
        $region107: #{transformer_forward.15} parent=71 // pred_region
          %643 = dma.done [#allocation15], 16
        $region108: #{transformer_forward.15} parent=71 // pred_fallthru
          _
        // Predicated region
        $region109: #{transformer_forward.15} parent=71 // pred_check
          %p644 = pneg %p277
        $region110: #{transformer_forward.15} parent=71 // pred_check_branch
          %646 = sbr.rel (%p644) target = $region112
        $region111: #{transformer_forward.15} parent=71 // pred_region
          %647 = dma.done [#allocation18], 16
        $region112: #{transformer_forward.15} parent=71 // pred_fallthru
          _
        // Predicated region
        $region113: #{transformer_forward.15} parent=71 // pred_check
          %p648 = pneg %p298
        $region114: #{transformer_forward.15} parent=71 // pred_check_branch
          %650 = sbr.rel (%p648) target = $region116
        $region115: #{transformer_forward.15} parent=71 // pred_region
          %651 = dma.done [#allocation18], 16
        $region116: #{transformer_forward.15} parent=71 // pred_fallthru
          _
        // Predicated region
        $region117: #{transformer_forward.15} parent=71 // pred_check
          %p652 = pneg %p319
        $region118: #{transformer_forward.15} parent=71 // pred_check_branch
          %654 = sbr.rel (%p652) target = $region120
        $region119: #{transformer_forward.15} parent=71 // pred_region
          %655 = dma.done [#allocation21], 16
        $region120: #{transformer_forward.15} parent=71 // pred_fallthru
          _
        // Predicated region
        $region121: #{transformer_forward.15} parent=71 // pred_check
          %p656 = pneg %p340
        $region122: #{transformer_forward.15} parent=71 // pred_check_branch
          %658 = sbr.rel (%p656) target = $region124
        $region123: #{transformer_forward.15} parent=71 // pred_region
          %659 = dma.done [#allocation21], 16
        $region124: #{transformer_forward.15} parent=71 // pred_fallthru
          _
        %s660 = sand.u32 %s65, 1
        %s661 = scalar_lea.sflag [#allocation3], %s660
        %s662 = sand.u32 %s65, 1
        %s663 = smul.addr %s662, 4
        %s664 = scalar_lea.vmem [#allocation2], %s663
        %p665 = pneg %p78
        %p666 = pneg %p75
        %s667 = sand.u32 %s43, 1
        %s668 = scalar_lea.sflag [#allocation6], %s667
        %s669 = sand.u32 %s91, 1
        %s670 = smul.addr %s669, 4
        %s671 = scalar_lea.vmem [#allocation5], %s670
        %p672 = pneg %p104
        %p673 = pneg %p101
        %s674 = sand.u32 %s43, 1
        %s675 = scalar_lea.sflag [#allocation6], %s674
        %s676 = sand.u32 %s117, 1
        %s677 = scalar_lea.vmem [#allocation7], %s676
        %p678 = pneg %p130
        %p679 = pneg %p127
        %p680 = pneg %p151
        %p681 = pneg %p148
        %p682 = pneg %p172
        %p683 = pneg %p169
        %p684 = pneg %p193
        %p685 = pneg %p190
        %p686 = pneg %p214
        %p687 = pneg %p211
        %p688 = pneg %p235
        %p689 = pneg %p232
        %p690 = pneg %p256
        %p691 = pneg %p253
        %p692 = pneg %p277
        %p693 = pneg %p274
        %p694 = pneg %p298
        %p695 = pneg %p295
        %p696 = pneg %p319
        %p697 = pneg %p316
        %p698 = pneg %p340
        %p699 = pneg %p337
        %p700 = pneg %p368
        %p701 = pneg %p365
        %s702 = sand.u32 %s355, 1
        %s703 = scalar_lea.sflag [#allocation4], %s702
        %s704 = sand.u32 %s355, 1
        %s705 = smul.addr %s704, 4
        %s706 = scalar_lea.vmem [#allocation23], %s705
        %p707 = pneg %p396
        %p708 = pneg %p393
        %s709 = sand.u32 %s383, 1
        %s710 = scalar_lea.sflag [#allocation25], %s709
        %s711 = sand.u32 %s383, 1
        %s712 = smul.addr %s711, 32
        %s713 = scalar_lea.vmem [#allocation24], %s712
        %v715 = vld [vmem:[%s598] sm:$0xf]
        %v716 = vld [vmem:[%s607] sm:$0xf]
        %v717 = vld [vmem:[#allocation8] sm:$0xf]
        %v718 = vld [vmem:[#allocation8 + $0x4] sm:$0xf]
        %v719 = vld [vmem:[#allocation8 + $0x8] sm:$0xf]
        %v720 = vld [vmem:[#allocation8 + $0xc] sm:$0xf]
        %v721 = vld [vmem:[#allocation14] sm:$0x1]
        %v723 = vlaneseq
        %v724 = vshrl.u32 %v723, 7
        %v725 = vsub.s32 0, %v724
        %v726 = vrot.slane %v721, %v725
        %v732 = vunpack.c.l.b16 %v717
        %v733 = vunpack.c.l.b16 %v718
        %v734 = vunpack.c.l.b16 %v719
        %v735 = vunpack.c.l.b16 %v720
        %v736 = vpack.c.b16 %v733, %v732
        %v737 = vpack.c.b16 %v735, %v734
        %vm740 = vcmask 261120
        %v742 = vsel %vm740, %v715, 0
        %744 = vmatprep.subr.bf16.mxu0 0
        %745 = vmatpush1.bf16.msra.mxu0 %v736
        %746 = vmatprep.subr.bf16.mxu0 0
        %747 = vmatpush1.bf16.msra.mxu0 %v737
        %748 = vmatprep.subr.bf16.mxu0 0
        %749 = vmatpush1.bf16.msra.mxu0 0
        %750 = vmatprep.subr.bf16.mxu0 0
        %751 = vmatpush1.bf16.msra.mxu0 0
        %752 = vmatprep.subr.bf16.mxu0 0
        %753 = vmatpush1.bf16.msra.mxu0 0
        %754 = vmatprep.subr.bf16.mxu0 0
        %755 = vmatpush1.bf16.msra.mxu0 0
        %756 = vmatprep.subr.bf16.mxu0 0
        %757 = vmatpush1.bf16.msra.mxu0 0
        %758 = vmatprep.subr.bf16.mxu0 0
        %759 = vmatpush1.bf16.msra.mxu0 0
        %760 = vmatprep.subr.bf16.mxu0 0
        %761 = vmatpush1.bf16.msra.mxu0 0
        %762 = vmatprep.subr.bf16.mxu0 0
        %763 = vmatpush1.bf16.msra.mxu0 0
        %764 = vmatprep.subr.bf16.mxu0 0
        %765 = vmatpush1.bf16.msra.mxu0 0
        %766 = vmatprep.subr.bf16.mxu0 0
        %767 = vmatpush1.bf16.msra.mxu0 0
        %768 = vmatprep.subr.bf16.mxu0 0
        %769 = vmatpush1.bf16.msra.mxu0 0
        %770 = vmatprep.subr.bf16.mxu0 0
        %771 = vmatpush1.bf16.msra.mxu0 0
        %772 = vmatprep.subr.bf16.mxu0 0
        %773 = vmatpush1.bf16.msra.mxu0 0
        %774 = vmatprep.subr.bf16.mxu0 0
        %775 = vmatpush1.bf16.msra.mxu0 0
        %776 = vmatprep.mubr.bf16.mxu0 0
        %777 = vmatmul.mubr.bf16.gmra.mrb[0].mxu0 %v742
        %v778 = vpop.f32.mrb[0].mxu0
        %v779 = vadd.f32 %v726, %v778
        %v780 = vpop.f32.mrb[0].mxu0
        %v781 = vpop.f32.mrb[0].mxu0
        %v782 = vpop.f32.mrb[0].mxu0
        %783 = vdwg.mxu0
        %v784 = vld [vmem:[#allocation10] sm:$0xf]
        %v785 = vld [vmem:[#allocation10 + $0x4] sm:$0xf]
        %v786 = vld [vmem:[#allocation10 + $0x8] sm:$0xf]
        %v787 = vld [vmem:[#allocation10 + $0xc] sm:$0xf]
        %v788 = vld [vmem:[#allocation16] sm:$0x1]
        %v790 = vlaneseq
        %v791 = vshrl.u32 %v790, 7
        %v792 = vsub.s32 0, %v791
        %v793 = vrot.slane %v788, %v792
        %v799 = vunpack.c.l.b16 %v784
        %v800 = vunpack.c.l.b16 %v785
        %v801 = vunpack.c.l.b16 %v786
        %v802 = vunpack.c.l.b16 %v787
        %v803 = vpack.c.b16 %v800, %v799
        %v804 = vpack.c.b16 %v802, %v801
        %v808 = vsel %vm740, %v716, 0
        %810 = vmatprep.subr.bf16.mxu0 0
        %811 = vmatpush1.bf16.msra.mxu0 %v803
        %812 = vmatprep.subr.bf16.mxu0 0
        %813 = vmatpush1.bf16.msra.mxu0 %v804
        %814 = vmatprep.subr.bf16.mxu0 0
        %815 = vmatpush1.bf16.msra.mxu0 0
        %816 = vmatprep.subr.bf16.mxu0 0
        %817 = vmatpush1.bf16.msra.mxu0 0
        %818 = vmatprep.subr.bf16.mxu0 0
        %819 = vmatpush1.bf16.msra.mxu0 0
        %820 = vmatprep.subr.bf16.mxu0 0
        %821 = vmatpush1.bf16.msra.mxu0 0
        %822 = vmatprep.subr.bf16.mxu0 0
        %823 = vmatpush1.bf16.msra.mxu0 0
        %824 = vmatprep.subr.bf16.mxu0 0
        %825 = vmatpush1.bf16.msra.mxu0 0
        %826 = vmatprep.subr.bf16.mxu0 0
        %827 = vmatpush1.bf16.msra.mxu0 0
        %828 = vmatprep.subr.bf16.mxu0 0
        %829 = vmatpush1.bf16.msra.mxu0 0
        %830 = vmatprep.subr.bf16.mxu0 0
        %831 = vmatpush1.bf16.msra.mxu0 0
        %832 = vmatprep.subr.bf16.mxu0 0
        %833 = vmatpush1.bf16.msra.mxu0 0
        %834 = vmatprep.subr.bf16.mxu0 0
        %835 = vmatpush1.bf16.msra.mxu0 0
        %836 = vmatprep.subr.bf16.mxu0 0
        %837 = vmatpush1.bf16.msra.mxu0 0
        %838 = vmatprep.subr.bf16.mxu0 0
        %839 = vmatpush1.bf16.msra.mxu0 0
        %840 = vmatprep.subr.bf16.mxu0 0
        %841 = vmatpush1.bf16.msra.mxu0 0
        %842 = vmatprep.mubr.bf16.mxu0 0
        %843 = vmatmul.mubr.bf16.gmra.mrb[0].mxu0 %v808
        %v844 = vpop.f32.mrb[0].mxu0
        %v845 = vadd.f32 %v793, %v844
        %v846 = vpop.f32.mrb[0].mxu0
        %v847 = vpop.f32.mrb[0].mxu0
        %v848 = vpop.f32.mrb[0].mxu0
        %849 = vdwg.mxu0
        %v850 = vld [vmem:[#allocation11] sm:$0xf]
        %v851 = vld [vmem:[#allocation11 + $0x4] sm:$0xf]
        %v852 = vld [vmem:[#allocation11 + $0x8] sm:$0xf]
        %v853 = vld [vmem:[#allocation11 + $0xc] sm:$0xf]
        %v854 = vld [vmem:[#allocation17] sm:$0x1]
        %v856 = vlaneseq
        %v857 = vshrl.u32 %v856, 7
        %v858 = vsub.s32 0, %v857
        %v859 = vrot.slane %v854, %v858
        %v865 = vunpack.c.l.b16 %v850
        %v866 = vunpack.c.l.b16 %v851
        %v867 = vunpack.c.l.b16 %v852
        %v868 = vunpack.c.l.b16 %v853
        %v869 = vpack.c.b16 %v866, %v865
        %v870 = vpack.c.b16 %v868, %v867
        %873 = vmatprep.subr.bf16.mxu0 0
        %874 = vmatpush1.bf16.msra.mxu0 %v869
        %875 = vmatprep.subr.bf16.mxu0 0
        %876 = vmatpush1.bf16.msra.mxu0 %v870
        %877 = vmatprep.subr.bf16.mxu0 0
        %878 = vmatpush1.bf16.msra.mxu0 0
        %879 = vmatprep.subr.bf16.mxu0 0
        %880 = vmatpush1.bf16.msra.mxu0 0
        %881 = vmatprep.subr.bf16.mxu0 0
        %882 = vmatpush1.bf16.msra.mxu0 0
        %883 = vmatprep.subr.bf16.mxu0 0
        %884 = vmatpush1.bf16.msra.mxu0 0
        %885 = vmatprep.subr.bf16.mxu0 0
        %886 = vmatpush1.bf16.msra.mxu0 0
        %887 = vmatprep.subr.bf16.mxu0 0
        %888 = vmatpush1.bf16.msra.mxu0 0
        %889 = vmatprep.subr.bf16.mxu0 0
        %890 = vmatpush1.bf16.msra.mxu0 0
        %891 = vmatprep.subr.bf16.mxu0 0
        %892 = vmatpush1.bf16.msra.mxu0 0
        %893 = vmatprep.subr.bf16.mxu0 0
        %894 = vmatpush1.bf16.msra.mxu0 0
        %895 = vmatprep.subr.bf16.mxu0 0
        %896 = vmatpush1.bf16.msra.mxu0 0
        %897 = vmatprep.subr.bf16.mxu0 0
        %898 = vmatpush1.bf16.msra.mxu0 0
        %899 = vmatprep.subr.bf16.mxu0 0
        %900 = vmatpush1.bf16.msra.mxu0 0
        %901 = vmatprep.subr.bf16.mxu0 0
        %902 = vmatpush1.bf16.msra.mxu0 0
        %903 = vmatprep.subr.bf16.mxu0 0
        %904 = vmatpush1.bf16.msra.mxu0 0
        %905 = vmatprep.mubr.bf16.mxu0 0
        %906 = vmatmul.mubr.bf16.gmra.mrb[0].mxu0 %v808
        %v907 = vpop.f32.mrb[0].mxu0
        %v908 = vadd.f32 %v859, %v907
        %v909 = vpop.f32.mrb[0].mxu0
        %v910 = vpop.f32.mrb[0].mxu0
        %v911 = vpop.f32.mrb[0].mxu0
        %912 = vdwg.mxu0
        %v913 = vld [vmem:[%s615] sm:$0x1]
        %v914 = vpack.c.bf16 %v779, %v779
        %v915 = vpack.c.bf16 %v845, %v845
        %v916 = vpack.c.bf16 %v908, %v908
        %vm917 = vcmask 64512
        %v919 = vsel %vm917, %v914, 0
        %v922 = vsel %vm917, %v915, 0
        %924 = vmatprep.subr.bf16.mxu0 0
        %925 = vmatpush1.bf16.xpose.msra.mxu0 %v922
        %926 = vmatprep.subr.bf16.mxu0 0
        %927 = vmatpush1.bf16.xpose.msra.mxu0 0
        %928 = vmatprep.subr.bf16.mxu0 0
        %929 = vmatpush1.bf16.xpose.msra.mxu0 0
        %930 = vmatprep.subr.bf16.mxu0 0
        %931 = vmatpush1.bf16.xpose.msra.mxu0 0
        %932 = vmatprep.subr.bf16.mxu0 0
        %933 = vmatpush1.bf16.xpose.msra.mxu0 0
        %934 = vmatprep.subr.bf16.mxu0 0
        %935 = vmatpush1.bf16.xpose.msra.mxu0 0
        %936 = vmatprep.subr.bf16.mxu0 0
        %937 = vmatpush1.bf16.xpose.msra.mxu0 0
        %938 = vmatprep.subr.bf16.mxu0 0
        %939 = vmatpush1.bf16.xpose.msra.mxu0 0
        %940 = vmatprep.subr.bf16.mxu0 0
        %941 = vmatpush1.bf16.xpose.msra.mxu0 0
        %942 = vmatprep.subr.bf16.mxu0 0
        %943 = vmatpush1.bf16.xpose.msra.mxu0 0
        %944 = vmatprep.subr.bf16.mxu0 0
        %945 = vmatpush1.bf16.xpose.msra.mxu0 0
        %946 = vmatprep.subr.bf16.mxu0 0
        %947 = vmatpush1.bf16.xpose.msra.mxu0 0
        %948 = vmatprep.subr.bf16.mxu0 0
        %949 = vmatpush1.bf16.xpose.msra.mxu0 0
        %950 = vmatprep.subr.bf16.mxu0 0
        %951 = vmatpush1.bf16.xpose.msra.mxu0 0
        %952 = vmatprep.subr.bf16.mxu0 0
        %953 = vmatpush1.bf16.xpose.msra.mxu0 0
        %954 = vmatprep.subr.bf16.mxu0 0
        %955 = vmatpush1.bf16.xpose.msra.mxu0 0
        %956 = vmatprep.mubr.bf16.mxu0 0
        %957 = vmatmul.mubr.bf16.gmra.mrb[0].mxu0 %v919
        %v958 = vpop.f32.mrb[0].mxu0
        %v959 = vadd.f32 0.0, %v958
        %v960 = vpop.f32.mrb[0].mxu0
        %v961 = vpop.f32.mrb[0].mxu0
        %v962 = vpop.f32.mrb[0].mxu0
        %963 = vdwg.mxu0
        %v964 = vmul.f32 %v959, 0.35355338
        %v966 = vlaneseq
        %v967 = vshrl.u32 %v966, 7
        %v968 = vsub.s32 0, %v967
        %v969 = vrot.slane %v913, %v968
        %v971 = vadd.f32 %v964, %v969
        %v972 = vsel %vm917, %v971, -inf
        %973 = vmax.xlane.f32.xlu0 %v972
        %v974 = vpop.xlane.xlu0 %973
        %v975 = vsub.f32 %v971, %v974
        %v976 = vmul.f32 %v975, 1.442695
        %v977 = vpow.pop %v976
        %v978 = vsel %vm917, %v977, 0.0
        %979 = vadd.xlane.f32.xlu0 %v978
        %v980 = vpop.xlane.xlu0 %979
        %v981 = vrcp.pop %v980
        %v982 = vmul.f32 %v977, %v981
        %983 = vst.msk [vmem:[%s713] sm:$0xff] %vm917, %v982
        %v984 = vpack.c.bf16 %v982, %v982
        %v986 = vsel %vm917, %v984, 0
        %vm988 = vcmask 1043456
        %v990 = vsel %vm988, %v916, 0
        %992 = vmatprep.subr.bf16.mxu0 0
        %993 = vmatpush1.bf16.msra.mxu0 %v990
        %994 = vmatprep.subr.bf16.mxu0 0
        %995 = vmatpush1.bf16.msra.mxu0 0
        %996 = vmatprep.subr.bf16.mxu0 0
        %997 = vmatpush1.bf16.msra.mxu0 0
        %998 = vmatprep.subr.bf16.mxu0 0
        %999 = vmatpush1.bf16.msra.mxu0 0
        %1000 = vmatprep.subr.bf16.mxu0 0
        %1001 = vmatpush1.bf16.msra.mxu0 0
        %1002 = vmatprep.subr.bf16.mxu0 0
        %1003 = vmatpush1.bf16.msra.mxu0 0
        %1004 = vmatprep.subr.bf16.mxu0 0
        %1005 = vmatpush1.bf16.msra.mxu0 0
        %1006 = vmatprep.subr.bf16.mxu0 0
        %1007 = vmatpush1.bf16.msra.mxu0 0
        %1008 = vmatprep.subr.bf16.mxu0 0
        %1009 = vmatpush1.bf16.msra.mxu0 0
        %1010 = vmatprep.subr.bf16.mxu0 0
        %1011 = vmatpush1.bf16.msra.mxu0 0
        %1012 = vmatprep.subr.bf16.mxu0 0
        %1013 = vmatpush1.bf16.msra.mxu0 0
        %1014 = vmatprep.subr.bf16.mxu0 0
        %1015 = vmatpush1.bf16.msra.mxu0 0
        %1016 = vmatprep.subr.bf16.mxu0 0
        %1017 = vmatpush1.bf16.msra.mxu0 0
        %1018 = vmatprep.subr.bf16.mxu0 0
        %1019 = vmatpush1.bf16.msra.mxu0 0
        %1020 = vmatprep.subr.bf16.mxu0 0
        %1021 = vmatpush1.bf16.msra.mxu0 0
        %1022 = vmatprep.subr.bf16.mxu0 0
        %1023 = vmatpush1.bf16.msra.mxu0 0
        %1024 = vmatprep.mubr.bf16.mxu0 0
        %1025 = vmatmul.mubr.bf16.gmra.mrb[0].mxu0 %v986
        %v1026 = vpop.f32.mrb[0].mxu0
        %v1027 = vadd.f32 0.0, %v1026
        %v1028 = vpop.f32.mrb[0].mxu0
        %v1029 = vpop.f32.mrb[0].mxu0
        %v1030 = vpop.f32.mrb[0].mxu0
        %1031 = vdwg.mxu0
        %1033 = vrot.lane.b32.xlu0 %v914, 120
        %v1034 = vpop.permute.xlu0 %1033
        %1036 = vrot.lane.b32.xlu0 %v915, 120
        %v1037 = vpop.permute.xlu0 %1036
        %v1039 = vsel %vm917, %v1034, 0
        %v1042 = vsel %vm917, %v1037, 0
        %1044 = vmatprep.subr.bf16.mxu0 0
        %1045 = vmatpush1.bf16.xpose.msra.mxu0 %v1042
        %1046 = vmatprep.subr.bf16.mxu0 0
        %1047 = vmatpush1.bf16.xpose.msra.mxu0 0
        %1048 = vmatprep.subr.bf16.mxu0 0
        %1049 = vmatpush1.bf16.xpose.msra.mxu0 0
        %1050 = vmatprep.subr.bf16.mxu0 0
        %1051 = vmatpush1.bf16.xpose.msra.mxu0 0
        %1052 = vmatprep.subr.bf16.mxu0 0
        %1053 = vmatpush1.bf16.xpose.msra.mxu0 0
        %1054 = vmatprep.subr.bf16.mxu0 0
        %1055 = vmatpush1.bf16.xpose.msra.mxu0 0
        %1056 = vmatprep.subr.bf16.mxu0 0
        %1057 = vmatpush1.bf16.xpose.msra.mxu0 0
        %1058 = vmatprep.subr.bf16.mxu0 0
        %1059 = vmatpush1.bf16.xpose.msra.mxu0 0
        %1060 = vmatprep.subr.bf16.mxu0 0
        %1061 = vmatpush1.bf16.xpose.msra.mxu0 0
        %1062 = vmatprep.subr.bf16.mxu0 0
        %1063 = vmatpush1.bf16.xpose.msra.mxu0 0
        %1064 = vmatprep.subr.bf16.mxu0 0
        %1065 = vmatpush1.bf16.xpose.msra.mxu0 0
        %1066 = vmatprep.subr.bf16.mxu0 0
        %1067 = vmatpush1.bf16.xpose.msra.mxu0 0
        %1068 = vmatprep.subr.bf16.mxu0 0
        %1069 = vmatpush1.bf16.xpose.msra.mxu0 0
        %1070 = vmatprep.subr.bf16.mxu0 0
        %1071 = vmatpush1.bf16.xpose.msra.mxu0 0
        %1072 = vmatprep.subr.bf16.mxu0 0
        %1073 = vmatpush1.bf16.xpose.msra.mxu0 0
        %1074 = vmatprep.subr.bf16.mxu0 0
        %1075 = vmatpush1.bf16.xpose.msra.mxu0 0
        %1076 = vmatprep.mubr.bf16.mxu0 0
        %1077 = vmatmul.mubr.bf16.gmra.mrb[0].mxu0 %v1039
        %v1078 = vpop.f32.mrb[0].mxu0
        %v1079 = vadd.f32 0.0, %v1078
        %v1080 = vpop.f32.mrb[0].mxu0
        %v1081 = vpop.f32.mrb[0].mxu0
        %v1082 = vpop.f32.mrb[0].mxu0
        %1083 = vdwg.mxu0
        %v1084 = vmul.f32 %v1079, 0.35355338
        %v1085 = vadd.f32 %v1084, %v969
        %v1086 = vsel %vm917, %v1085, -inf
        %1087 = vmax.xlane.f32.xlu0 %v1086
        %v1088 = vpop.xlane.xlu0 %1087
        %v1089 = vsub.f32 %v1085, %v1088
        %v1090 = vmul.f32 %v1089, 1.442695
        %v1091 = vpow.pop %v1090
        %v1092 = vsel %vm917, %v1091, 0.0
        %1093 = vadd.xlane.f32.xlu0 %v1092
        %v1094 = vpop.xlane.xlu0 %1093
        %v1095 = vrcp.pop %v1094
        %v1096 = vmul.f32 %v1091, %v1095
        %s1097 = scalar_lea.vmem %s713, 8 [#allocation24]
        %1098 = vst.msk [vmem:[%s1097] sm:$0xff] %vm917, %v1096
        %v1099 = vpack.c.bf16 %v1096, %v1096
        %1101 = vrot.lane.b32.xlu0 %v916, 120
        %v1102 = vpop.permute.xlu0 %1101
        %v1104 = vsel %vm917, %v1099, 0
        %v1107 = vsel %vm988, %v1102, 0
        %1109 = vmatprep.subr.bf16.mxu0 0
        %1110 = vmatpush1.bf16.msra.mxu0 %v1107
        %1111 = vmatprep.subr.bf16.mxu0 0
        %1112 = vmatpush1.bf16.msra.mxu0 0
        %1113 = vmatprep.subr.bf16.mxu0 0
        %1114 = vmatpush1.bf16.msra.mxu0 0
        %1115 = vmatprep.subr.bf16.mxu0 0
        %1116 = vmatpush1.bf16.msra.mxu0 0
        %1117 = vmatprep.subr.bf16.mxu0 0
        %1118 = vmatpush1.bf16.msra.mxu0 0
        %1119 = vmatprep.subr.bf16.mxu0 0
        %1120 = vmatpush1.bf16.msra.mxu0 0
        %1121 = vmatprep.subr.bf16.mxu0 0
        %1122 = vmatpush1.bf16.msra.mxu0 0
        %1123 = vmatprep.subr.bf16.mxu0 0
        %1124 = vmatpush1.bf16.msra.mxu0 0
        %1125 = vmatprep.subr.bf16.mxu0 0
        %1126 = vmatpush1.bf16.msra.mxu0 0
        %1127 = vmatprep.subr.bf16.mxu0 0
        %1128 = vmatpush1.bf16.msra.mxu0 0
        %1129 = vmatprep.subr.bf16.mxu0 0
        %1130 = vmatpush1.bf16.msra.mxu0 0
        %1131 = vmatprep.subr.bf16.mxu0 0
        %1132 = vmatpush1.bf16.msra.mxu0 0
        %1133 = vmatprep.subr.bf16.mxu0 0
        %1134 = vmatpush1.bf16.msra.mxu0 0
        %1135 = vmatprep.subr.bf16.mxu0 0
        %1136 = vmatpush1.bf16.msra.mxu0 0
        %1137 = vmatprep.subr.bf16.mxu0 0
        %1138 = vmatpush1.bf16.msra.mxu0 0
        %1139 = vmatprep.subr.bf16.mxu0 0
        %1140 = vmatpush1.bf16.msra.mxu0 0
        %1141 = vmatprep.mubr.bf16.mxu0 0
        %1142 = vmatmul.mubr.bf16.gmra.mrb[0].mxu0 %v1104
        %v1143 = vpop.f32.mrb[0].mxu0
        %v1144 = vadd.f32 0.0, %v1143
        %v1145 = vpop.f32.mrb[0].mxu0
        %v1146 = vpop.f32.mrb[0].mxu0
        %v1147 = vpop.f32.mrb[0].mxu0
        %1148 = vdwg.mxu0
        %1149 = vrot.lane.b32.xlu0 %v914, 112
        %v1150 = vpop.permute.xlu0 %1149
        %1151 = vrot.lane.b32.xlu0 %v915, 112
        %v1152 = vpop.permute.xlu0 %1151
        %v1154 = vsel %vm917, %v1150, 0
        %v1157 = vsel %vm917, %v1152, 0
        %1159 = vmatprep.subr.bf16.mxu0 0
        %1160 = vmatpush1.bf16.xpose.msra.mxu0 %v1157
        %1161 = vmatprep.subr.bf16.mxu0 0
        %1162 = vmatpush1.bf16.xpose.msra.mxu0 0
        %1163 = vmatprep.subr.bf16.mxu0 0
        %1164 = vmatpush1.bf16.xpose.msra.mxu0 0
        %1165 = vmatprep.subr.bf16.mxu0 0
        %1166 = vmatpush1.bf16.xpose.msra.mxu0 0
        %1167 = vmatprep.subr.bf16.mxu0 0
        %1168 = vmatpush1.bf16.xpose.msra.mxu0 0
        %1169 = vmatprep.subr.bf16.mxu0 0
        %1170 = vmatpush1.bf16.xpose.msra.mxu0 0
        %1171 = vmatprep.subr.bf16.mxu0 0
        %1172 = vmatpush1.bf16.xpose.msra.mxu0 0
        %1173 = vmatprep.subr.bf16.mxu0 0
        %1174 = vmatpush1.bf16.xpose.msra.mxu0 0
        %1175 = vmatprep.subr.bf16.mxu0 0
        %1176 = vmatpush1.bf16.xpose.msra.mxu0 0
        %1177 = vmatprep.subr.bf16.mxu0 0
        %1178 = vmatpush1.bf16.xpose.msra.mxu0 0
        %1179 = vmatprep.subr.bf16.mxu0 0
        %1180 = vmatpush1.bf16.xpose.msra.mxu0 0
        %1181 = vmatprep.subr.bf16.mxu0 0
        %1182 = vmatpush1.bf16.xpose.msra.mxu0 0
        %1183 = vmatprep.subr.bf16.mxu0 0
        %1184 = vmatpush1.bf16.xpose.msra.mxu0 0
        %1185 = vmatprep.subr.bf16.mxu0 0
        %1186 = vmatpush1.bf16.xpose.msra.mxu0 0
        %1187 = vmatprep.subr.bf16.mxu0 0
        %1188 = vmatpush1.bf16.xpose.msra.mxu0 0
        %1189 = vmatprep.subr.bf16.mxu0 0
        %1190 = vmatpush1.bf16.xpose.msra.mxu0 0
        %1191 = vmatprep.mubr.bf16.mxu0 0
        %1192 = vmatmul.mubr.bf16.gmra.mrb[0].mxu0 %v1154
        %v1193 = vpop.f32.mrb[0].mxu0
        %v1194 = vadd.f32 0.0, %v1193
        %v1195 = vpop.f32.mrb[0].mxu0
        %v1196 = vpop.f32.mrb[0].mxu0
        %v1197 = vpop.f32.mrb[0].mxu0
        %1198 = vdwg.mxu0
        %v1199 = vmul.f32 %v1194, 0.35355338
        %v1200 = vadd.f32 %v1199, %v969
        %v1201 = vsel %vm917, %v1200, -inf
        %1202 = vmax.xlane.f32.xlu0 %v1201
        %v1203 = vpop.xlane.xlu0 %1202
        %v1204 = vsub.f32 %v1200, %v1203
        %v1205 = vmul.f32 %v1204, 1.442695
        %v1206 = vpow.pop %v1205
        %v1207 = vsel %vm917, %v1206, 0.0
        %1208 = vadd.xlane.f32.xlu0 %v1207
        %v1209 = vpop.xlane.xlu0 %1208
        %v1210 = vrcp.pop %v1209
        %v1211 = vmul.f32 %v1206, %v1210
        %s1212 = scalar_lea.vmem %s713, 16 [#allocation24]
        %1213 = vst.msk [vmem:[%s1212] sm:$0xff] %vm917, %v1211
        %v1214 = vpack.c.bf16 %v1211, %v1211
        %1215 = vrot.lane.b32.xlu0 %v916, 112
        %v1216 = vpop.permute.xlu0 %1215
        %v1218 = vsel %vm917, %v1214, 0
        %v1221 = vsel %vm988, %v1216, 0
        %1223 = vmatprep.subr.bf16.mxu0 0
        %1224 = vmatpush1.bf16.msra.mxu0 %v1221
        %1225 = vmatprep.subr.bf16.mxu0 0
        %1226 = vmatpush1.bf16.msra.mxu0 0
        %1227 = vmatprep.subr.bf16.mxu0 0
        %1228 = vmatpush1.bf16.msra.mxu0 0
        %1229 = vmatprep.subr.bf16.mxu0 0
        %1230 = vmatpush1.bf16.msra.mxu0 0
        %1231 = vmatprep.subr.bf16.mxu0 0
        %1232 = vmatpush1.bf16.msra.mxu0 0
        %1233 = vmatprep.subr.bf16.mxu0 0
        %1234 = vmatpush1.bf16.msra.mxu0 0
        %1235 = vmatprep.subr.bf16.mxu0 0
        %1236 = vmatpush1.bf16.msra.mxu0 0
        %1237 = vmatprep.subr.bf16.mxu0 0
        %1238 = vmatpush1.bf16.msra.mxu0 0
        %1239 = vmatprep.subr.bf16.mxu0 0
        %1240 = vmatpush1.bf16.msra.mxu0 0
        %1241 = vmatprep.subr.bf16.mxu0 0
        %1242 = vmatpush1.bf16.msra.mxu0 0
        %1243 = vmatprep.subr.bf16.mxu0 0
        %1244 = vmatpush1.bf16.msra.mxu0 0
        %1245 = vmatprep.subr.bf16.mxu0 0
        %1246 = vmatpush1.bf16.msra.mxu0 0
        %1247 = vmatprep.subr.bf16.mxu0 0
        %1248 = vmatpush1.bf16.msra.mxu0 0
        %1249 = vmatprep.subr.bf16.mxu0 0
        %1250 = vmatpush1.bf16.msra.mxu0 0
        %1251 = vmatprep.subr.bf16.mxu0 0
        %1252 = vmatpush1.bf16.msra.mxu0 0
        %1253 = vmatprep.subr.bf16.mxu0 0
        %1254 = vmatpush1.bf16.msra.mxu0 0
        %1255 = vmatprep.mubr.bf16.mxu0 0
        %1256 = vmatmul.mubr.bf16.gmra.mrb[0].mxu0 %v1218
        %v1257 = vpop.f32.mrb[0].mxu0
        %v1258 = vadd.f32 0.0, %v1257
        %v1259 = vpop.f32.mrb[0].mxu0
        %v1260 = vpop.f32.mrb[0].mxu0
        %v1261 = vpop.f32.mrb[0].mxu0
        %1262 = vdwg.mxu0
        %1263 = vrot.lane.b32.xlu0 %v914, 104
        %v1264 = vpop.permute.xlu0 %1263
        %1265 = vrot.lane.b32.xlu0 %v915, 104
        %v1266 = vpop.permute.xlu0 %1265
        %v1268 = vsel %vm917, %v1264, 0
        %v1271 = vsel %vm917, %v1266, 0
        %1273 = vmatprep.subr.bf16.mxu0 0
        %1274 = vmatpush1.bf16.xpose.msra.mxu0 %v1271
        %1275 = vmatprep.subr.bf16.mxu0 0
        %1276 = vmatpush1.bf16.xpose.msra.mxu0 0
        %1277 = vmatprep.subr.bf16.mxu0 0
        %1278 = vmatpush1.bf16.xpose.msra.mxu0 0
        %1279 = vmatprep.subr.bf16.mxu0 0
        %1280 = vmatpush1.bf16.xpose.msra.mxu0 0
        %1281 = vmatprep.subr.bf16.mxu0 0
        %1282 = vmatpush1.bf16.xpose.msra.mxu0 0
        %1283 = vmatprep.subr.bf16.mxu0 0
        %1284 = vmatpush1.bf16.xpose.msra.mxu0 0
        %1285 = vmatprep.subr.bf16.mxu0 0
        %1286 = vmatpush1.bf16.xpose.msra.mxu0 0
        %1287 = vmatprep.subr.bf16.mxu0 0
        %1288 = vmatpush1.bf16.xpose.msra.mxu0 0
        %1289 = vmatprep.subr.bf16.mxu0 0
        %1290 = vmatpush1.bf16.xpose.msra.mxu0 0
        %1291 = vmatprep.subr.bf16.mxu0 0
        %1292 = vmatpush1.bf16.xpose.msra.mxu0 0
        %1293 = vmatprep.subr.bf16.mxu0 0
        %1294 = vmatpush1.bf16.xpose.msra.mxu0 0
        %1295 = vmatprep.subr.bf16.mxu0 0
        %1296 = vmatpush1.bf16.xpose.msra.mxu0 0
        %1297 = vmatprep.subr.bf16.mxu0 0
        %1298 = vmatpush1.bf16.xpose.msra.mxu0 0
        %1299 = vmatprep.subr.bf16.mxu0 0
        %1300 = vmatpush1.bf16.xpose.msra.mxu0 0
        %1301 = vmatprep.subr.bf16.mxu0 0
        %1302 = vmatpush1.bf16.xpose.msra.mxu0 0
        %1303 = vmatprep.subr.bf16.mxu0 0
        %1304 = vmatpush1.bf16.xpose.msra.mxu0 0
        %1305 = vmatprep.mubr.bf16.mxu0 0
        %1306 = vmatmul.mubr.bf16.gmra.mrb[0].mxu0 %v1268
        %v1307 = vpop.f32.mrb[0].mxu0
        %v1308 = vadd.f32 0.0, %v1307
        %v1309 = vpop.f32.mrb[0].mxu0
        %v1310 = vpop.f32.mrb[0].mxu0
        %v1311 = vpop.f32.mrb[0].mxu0
        %1312 = vdwg.mxu0
        %v1313 = vmul.f32 %v1308, 0.35355338
        %v1314 = vadd.f32 %v1313, %v969
        %v1315 = vsel %vm917, %v1314, -inf
        %1316 = vmax.xlane.f32.xlu0 %v1315
        %v1317 = vpop.xlane.xlu0 %1316
        %v1318 = vsub.f32 %v1314, %v1317
        %v1319 = vmul.f32 %v1318, 1.442695
        %v1320 = vpow.pop %v1319
        %v1321 = vsel %vm917, %v1320, 0.0
        %1322 = vadd.xlane.f32.xlu0 %v1321
        %v1323 = vpop.xlane.xlu0 %1322
        %v1324 = vrcp.pop %v1323
        %v1325 = vmul.f32 %v1320, %v1324
        %s1326 = scalar_lea.vmem %s713, 24 [#allocation24]
        %1327 = vst.msk [vmem:[%s1326] sm:$0xff] %vm917, %v1325
        %v1328 = vpack.c.bf16 %v1325, %v1325
        %1329 = vrot.lane.b32.xlu0 %v916, 104
        %v1330 = vpop.permute.xlu0 %1329
        %v1332 = vsel %vm917, %v1328, 0
        %v1335 = vsel %vm988, %v1330, 0
        %1337 = vmatprep.subr.bf16.mxu0 0
        %1338 = vmatpush1.bf16.msra.mxu0 %v1335
        %1339 = vmatprep.subr.bf16.mxu0 0
        %1340 = vmatpush1.bf16.msra.mxu0 0
        %1341 = vmatprep.subr.bf16.mxu0 0
        %1342 = vmatpush1.bf16.msra.mxu0 0
        %1343 = vmatprep.subr.bf16.mxu0 0
        %1344 = vmatpush1.bf16.msra.mxu0 0
        %1345 = vmatprep.subr.bf16.mxu0 0
        %1346 = vmatpush1.bf16.msra.mxu0 0
        %1347 = vmatprep.subr.bf16.mxu0 0
        %1348 = vmatpush1.bf16.msra.mxu0 0
        %1349 = vmatprep.subr.bf16.mxu0 0
        %1350 = vmatpush1.bf16.msra.mxu0 0
        %1351 = vmatprep.subr.bf16.mxu0 0
        %1352 = vmatpush1.bf16.msra.mxu0 0
        %1353 = vmatprep.subr.bf16.mxu0 0
        %1354 = vmatpush1.bf16.msra.mxu0 0
        %1355 = vmatprep.subr.bf16.mxu0 0
        %1356 = vmatpush1.bf16.msra.mxu0 0
        %1357 = vmatprep.subr.bf16.mxu0 0
        %1358 = vmatpush1.bf16.msra.mxu0 0
        %1359 = vmatprep.subr.bf16.mxu0 0
        %1360 = vmatpush1.bf16.msra.mxu0 0
        %1361 = vmatprep.subr.bf16.mxu0 0
        %1362 = vmatpush1.bf16.msra.mxu0 0
        %1363 = vmatprep.subr.bf16.mxu0 0
        %1364 = vmatpush1.bf16.msra.mxu0 0
        %1365 = vmatprep.subr.bf16.mxu0 0
        %1366 = vmatpush1.bf16.msra.mxu0 0
        %1367 = vmatprep.subr.bf16.mxu0 0
        %1368 = vmatpush1.bf16.msra.mxu0 0
        %1369 = vmatprep.mubr.bf16.mxu0 0
        %1370 = vmatmul.mubr.bf16.gmra.mrb[0].mxu0 %v1332
        %v1371 = vpop.f32.mrb[0].mxu0
        %v1372 = vadd.f32 0.0, %v1371
        %v1373 = vpop.f32.mrb[0].mxu0
        %v1374 = vpop.f32.mrb[0].mxu0
        %v1375 = vpop.f32.mrb[0].mxu0
        %1376 = vdwg.mxu0
        %1378 = vrot.lane.b32.xlu0 %v1144, 8
        %v1379 = vpop.permute.xlu0 %1378
        %1382 = vrot.lane.b32.xlu0 %v1258, 16
        %v1383 = vpop.permute.xlu0 %1382
        %1386 = vrot.lane.b32.xlu0 %v1372, 24
        %v1387 = vpop.permute.xlu0 %1386
        %v1389 = vsel %vm917, %v1027, %v1379
        %vm1390 = vcmask 130048
        %v1391 = vsel %vm1390, %v1389, %v1383
        %vm1392 = vcmask 195584
        %v1393 = vsel %vm1392, %v1391, %v1387
        %v1394 = vpack.c.bf16 %v1393, %v1393
        %v1395 = vld [vmem:[#allocation13] sm:$0xf]
        %v1396 = vld [vmem:[#allocation13 + $0x4] sm:$0xf]
        %v1397 = vld [vmem:[#allocation13 + $0x8] sm:$0xf]
        %v1398 = vld [vmem:[#allocation13 + $0xc] sm:$0xf]
        %v1399 = vld [vmem:[#allocation19] sm:$0x1]
        %v1401 = vlaneseq
        %v1402 = vshrl.u32 %v1401, 7
        %v1403 = vsub.s32 0, %v1402
        %v1404 = vrot.slane %v1399, %v1403
        %v1410 = vunpack.c.l.b16 %v1395
        %v1411 = vunpack.c.l.b16 %v1396
        %v1412 = vunpack.c.l.b16 %v1397
        %v1413 = vunpack.c.l.b16 %v1398
        %v1414 = vpack.c.b16 %v1411, %v1410
        %v1415 = vpack.c.b16 %v1413, %v1412
        %v1419 = vsel %vm740, %v1394, 0
        %1421 = vmatprep.subr.bf16.mxu0 0
        %1422 = vmatpush1.bf16.msra.mxu0 %v1414
        %1423 = vmatprep.subr.bf16.mxu0 0
        %1424 = vmatpush1.bf16.msra.mxu0 %v1415
        %1425 = vmatprep.subr.bf16.mxu0 0
        %1426 = vmatpush1.bf16.msra.mxu0 0
        %1427 = vmatprep.subr.bf16.mxu0 0
        %1428 = vmatpush1.bf16.msra.mxu0 0
        %1429 = vmatprep.subr.bf16.mxu0 0
        %1430 = vmatpush1.bf16.msra.mxu0 0
        %1431 = vmatprep.subr.bf16.mxu0 0
        %1432 = vmatpush1.bf16.msra.mxu0 0
        %1433 = vmatprep.subr.bf16.mxu0 0
        %1434 = vmatpush1.bf16.msra.mxu0 0
        %1435 = vmatprep.subr.bf16.mxu0 0
        %1436 = vmatpush1.bf16.msra.mxu0 0
        %1437 = vmatprep.subr.bf16.mxu0 0
        %1438 = vmatpush1.bf16.msra.mxu0 0
        %1439 = vmatprep.subr.bf16.mxu0 0
        %1440 = vmatpush1.bf16.msra.mxu0 0
        %1441 = vmatprep.subr.bf16.mxu0 0
        %1442 = vmatpush1.bf16.msra.mxu0 0
        %1443 = vmatprep.subr.bf16.mxu0 0
        %1444 = vmatpush1.bf16.msra.mxu0 0
        %1445 = vmatprep.subr.bf16.mxu0 0
        %1446 = vmatpush1.bf16.msra.mxu0 0
        %1447 = vmatprep.subr.bf16.mxu0 0
        %1448 = vmatpush1.bf16.msra.mxu0 0
        %1449 = vmatprep.subr.bf16.mxu0 0
        %1450 = vmatpush1.bf16.msra.mxu0 0
        %1451 = vmatprep.subr.bf16.mxu0 0
        %1452 = vmatpush1.bf16.msra.mxu0 0
        %1453 = vmatprep.mubr.bf16.mxu0 0
        %1454 = vmatmul.mubr.bf16.gmra.mrb[0].mxu0 %v1419
        %v1455 = vpop.f32.mrb[0].mxu0
        %v1456 = vadd.f32 %v1404, %v1455
        %v1457 = vpop.f32.mrb[0].mxu0
        %v1458 = vpop.f32.mrb[0].mxu0
        %v1459 = vpop.f32.mrb[0].mxu0
        %1460 = vdwg.mxu0
        %v1461 = vunpack.c.l.bf16 %v715
        %v1462 = vadd.f32 %v1456, %v1461
        %v1463 = vsel %vm740, %v1462, 0.0
        %1464 = vadd.xlane.f32.xlu0 %v1463
        %v1465 = vpop.xlane.xlu0 %1464
        %v1466 = vrcp.pop 32.0
        %v1467 = vmul.f32 %v1465, %v1466
        %v1468 = vsub.f32 %v1462, %v1467
        %v1469 = vmul.f32 %v1468, %v1468
        %v1470 = vsel %vm740, %v1469, 0.0
        %1471 = vadd.xlane.f32.xlu0 %v1470
        %v1472 = vpop.xlane.xlu0 %1471
        %v1473 = vmul.f32 %v1472, %v1466
        %v1474 = vadd.f32 %v1473, 1e-12
        %v1475 = vrsqrt.pop %v1474
        %v1476 = vmul.f32 %v1468, %v1475
        %v1477 = vld [vmem:[#allocation20] sm:$0x1]
        %v1479 = vlaneseq
        %v1480 = vshrl.u32 %v1479, 7
        %v1481 = vsub.s32 0, %v1480
        %v1482 = vrot.slane %v1477, %v1481
        %v1484 = vmul.f32 %v1476, %v1482
        %v1485 = vld [vmem:[#allocation22] sm:$0x1]
        %v1487 = vlaneseq
        %v1488 = vshrl.u32 %v1487, 7
        %v1489 = vsub.s32 0, %v1488
        %v1490 = vrot.slane %v1485, %v1489
        %v1492 = vadd.f32 %v1484, %v1490
        %v1493 = vpack.c.bf16 %v1492, %v1492
        %vm1494 = vcmask 257024
        %1495 = vst.msk [vmem:[%s706] sm:$0xf] %vm1494, %v1493
        %s1496 = sand.u32 %s355, 1
        %s1497 = scalar_lea.sflag [#allocation4], %s1496
        %s1498 = sand.u32 %s355, 1
        %s1499 = smul.addr %s1498, 4
        %s1500 = scalar_lea.vmem [#allocation23], %s1499
        %s1501 = sand.u32 %s383, 1
        %s1502 = scalar_lea.sflag [#allocation25], %s1501
        %s1503 = sand.u32 %s383, 1
        %s1504 = smul.addr %s1503, 32
        %s1505 = scalar_lea.vmem [#allocation24], %s1504
        // Predicated region
        $region125: #{transformer_forward.15} parent=71 // pred_check
          %p1506 = pneg %p365
        $region126: #{transformer_forward.15} parent=71 // pred_check_branch
          %1508 = sbr.rel (%p1506) target = $region128
        $region127: #{transformer_forward.15} parent=71 // pred_region
          %s1510 = ssub.s32 64, 64
          %1511 = vsyncadd %s1497, %s1510
          %s1512 = sadd.s32 %s48, %s47
          %s1513 = smul.addr %s1512, 64
          %s1514 = scalar_lea.hbm %s13, %s1513
          %s1516 = sshll.u32 %s1500, 4
          %s1517 = int_to_ptr.vmem [resolvable:$true] %s1516
          %1519 = dma.vmem_to_hbm [thread:$0]  %s1517, 64, %s1514, %s1497
        $region128: #{transformer_forward.15} parent=71 // pred_fallthru
          _
        // Predicated region
        $region129: #{transformer_forward.15} parent=71 // pred_check
          %p1520 = pneg %p393
        $region130: #{transformer_forward.15} parent=71 // pred_check_branch
          %1522 = sbr.rel (%p1520) target = $region132
        $region131: #{transformer_forward.15} parent=71 // pred_region
          %s1524 = ssub.s32 512, 512
          %1525 = vsyncadd %s1502, %s1524
          %s1526 = smul.addr %s47, 4
          %s1527 = sadd.s32 %s48, %s1526
          %s1528 = smul.addr %s1527, 128
          %s1529 = scalar_lea.hbm %s14, %s1528
          %s1530 = sshll.u32 %s1505, 4
          %s1531 = int_to_ptr.vmem [resolvable:$true] %s1530
          %1536 = dma.vmem_to_hbm [thread:$0]  %s1531, 512, %s1529, %s1502, 128, 128, 8
        $region132: #{transformer_forward.15} parent=71 // pred_fallthru
          _
      $region72: #{transformer_forward.15} parent=5 // pred_fallthru
        _
      %p1537 = scmp.le.s32.totalorder 2, %s38
      // Predicated region
      $region133: #{transformer_forward.15} parent=5 // pred_check
        %p1538 = pneg %p1537
      $region134: #{transformer_forward.15} parent=5 // pred_check_branch
        %1540 = sbr.rel (%p1538) target = $region136
      $region135: #{transformer_forward.15} parent=5 // pred_region
        %s1541 = ssub.s32 %s38, 2
        // Predicated region
        $region137: #{transformer_forward.15} parent=135 // pred_check
          %p1542 = pneg %p371
        $region138: #{transformer_forward.15} parent=135 // pred_check_branch
          %1544 = sbr.rel (%p1542) target = $region140
        $region139: #{transformer_forward.15} parent=135 // pred_region
          %s1545 = sand.u32 %s356, 1
          %s1546 = scalar_lea.sflag [#allocation4], %s1545
          %s1547 = sand.u32 %s356, 1
          %s1548 = smul.addr %s1547, 4
          %s1549 = scalar_lea.vmem [#allocation23], %s1548
          %1550 = dma.done %s1546, 64
        $region140: #{transformer_forward.15} parent=135 // pred_fallthru
          _
        // Predicated region
        $region141: #{transformer_forward.15} parent=135 // pred_check
          %p1551 = pneg %p399
        $region142: #{transformer_forward.15} parent=135 // pred_check_branch
          %1553 = sbr.rel (%p1551) target = $region144
        $region143: #{transformer_forward.15} parent=135 // pred_region
          %s1554 = sand.u32 %s384, 1
          %s1555 = scalar_lea.sflag [#allocation25], %s1554
          %s1556 = sand.u32 %s384, 1
          %s1557 = smul.addr %s1556, 32
          %s1558 = scalar_lea.vmem [#allocation24], %s1557
          %1559 = dma.done %s1555, 512
        $region144: #{transformer_forward.15} parent=135 // pred_fallthru
          _
      $region136: #{transformer_forward.15} parent=5 // pred_fallthru
        _
    $region6: #{transformer_forward.15} parent=1 // loop_footer
      %s42 = sadd.s32 1, %s38
    $region7: #{transformer_forward.15} parent=1 // loop_footer_branch
      %37 = sbr.rel target = $region3
    $region8: #{transformer_forward.15} parent=1 // loop_exit
      _
    %1560 = vsyncpa [#allocation3], 1
    %s1561 = scalar_lea.sflag [#allocation3], 1
    %1562 = vsyncpa %s1561, 1
    %1563 = vsyncpa [#allocation6], 1
    %s1564 = scalar_lea.sflag [#allocation6], 1
    %1565 = vsyncpa %s1564, 1
    %1566 = vsyncpa [#allocation9], 1
    %1567 = vsyncpa [#allocation12], 1
    %1568 = vsyncpa [#allocation15], 1
    %1569 = vsyncpa [#allocation18], 1
    %1570 = vsyncpa [#allocation21], 1
    %1571 = vsyncpa [#allocation4], 1
    %s1572 = scalar_lea.sflag [#allocation4], 1
    %1573 = vsyncpa %s1572, 1
    %1574 = vsyncpa [#allocation25], 1
    %s1575 = scalar_lea.sflag [#allocation25], 1
    %1576 = vsyncpa %s1575, 1

// kernel: transformer_forward.14
$region0: #{transformer_forward.14}
  #allocation0 [shape = 'u32[]', space=smem, size = 0x4, offset = 0x4, fixed_abs, tag = 'smem constant byte address 0x4 - core index']
  #allocation1 [shape = 'u32[144,128]{1,0:T(1,128)}', space=vmem, size = 0x12000, scoped, tag = 'internal scratch']
  %s0 = inlined_call_operand.hbm [shape: bf16[2,8,32], index: 0, kind: input, shape index: {}]
  %s1 = inlined_call_operand.hbm [shape: f32[2,1,8], index: 1, kind: input, shape index: {}]
  %s2 = inlined_call_operand.hbm [shape: bf16[32,32], index: 2, kind: input, shape index: {}]
  %s3 = inlined_call_operand.hbm [shape: bf16[32,32], index: 3, kind: input, shape index: {}]
  %s4 = inlined_call_operand.hbm [shape: bf16[32,32], index: 4, kind: input, shape index: {}]
  %s5 = inlined_call_operand.hbm [shape: bf16[32,32], index: 5, kind: input, shape index: {}]
  %s6 = inlined_call_operand.hbm [shape: f32[1,32], index: 6, kind: input, shape index: {}]
  %s7 = inlined_call_operand.hbm [shape: f32[1,32], index: 7, kind: input, shape index: {}]
  %s8 = inlined_call_operand.hbm [shape: f32[1,32], index: 8, kind: input, shape index: {}]
  %s9 = inlined_call_operand.hbm [shape: f32[1,32], index: 9, kind: input, shape index: {}]
  %s10 = inlined_call_operand.hbm [shape: f32[1,32], index: 10, kind: input, shape index: {}]
  %s11 = inlined_call_operand.hbm [shape: f32[1,32], index: 11, kind: input, shape index: {}]
  %s12 = inlined_call_operand.hbm [shape: bf16[2,8,32], index: 12, kind: output, shape index: {0}]
  %s13 = inlined_call_operand.hbm [shape: f32[2,4,8,8], index: 13, kind: output, shape index: {1}]
  %14 = xla_tuple %s12, %s13
  %s15 = sld [smem:[#allocation0]]
  $region137: #{transformer_forward.14} parent=0
    _
  %s17 = ssub.s32 1, %s15
  %s18 = scalar_select 0, %s17, %s15
  $region1: #{transformer_forward.14} parent=0
    #allocation2 [shape = 'u8[4096]{0}', space=vmem, size = 0x1000, scoped, tag = 'input window, operand 0']
    #allocation3 [shape = 's32[2]{0}', space=sflag, size = 0x8, scoped, tag = 'scoped memory for transformer_forward.14']
    #allocation4 [shape = 's32[2]{0}', space=sflag, size = 0x8, scoped, tag = 'scoped memory for transformer_forward.14']
    #allocation5 [shape = 'u8[1024]{0}', space=vmem, size = 0x400, scoped, tag = 'input window, operand 1']
    #allocation6 [shape = 's32[2]{0}', space=sflag, size = 0x8, scoped, tag = 'scoped memory for transformer_forward.14']
    #allocation7 [shape = 'u8[8192]{0}', space=vmem, size = 0x2000, scoped, tag = 'input window, operand 2, single buffered']
    #allocation8 [shape = 'u8[8192]{0}', space=vmem, size = 0x2000, scoped, tag = 'input window, operand 3, single buffered']
    #allocation9 [shape = 's32[1]{0}', space=sflag, size = 0x4, scoped, tag = 'scoped memory for transformer_forward.14']
    #allocation10 [shape = 'u8[8192]{0}', space=vmem, size = 0x2000, scoped, tag = 'input window, operand 4, single buffered']
    #allocation11 [shape = 'u8[8192]{0}', space=vmem, size = 0x2000, scoped, tag = 'input window, operand 5, single buffered']
    #allocation12 [shape = 's32[1]{0}', space=sflag, size = 0x4, scoped, tag = 'scoped memory for transformer_forward.14']
    #allocation13 [shape = 'u8[512]{0}', space=vmem, size = 0x400, scoped, tag = 'input window, operand 6, single buffered']
    #allocation14 [shape = 'u8[512]{0}', space=vmem, size = 0x400, scoped, tag = 'input window, operand 7, single buffered']
    #allocation15 [shape = 's32[1]{0}', space=sflag, size = 0x4, scoped, tag = 'scoped memory for transformer_forward.14']
    #allocation16 [shape = 'u8[512]{0}', space=vmem, size = 0x400, scoped, tag = 'input window, operand 8, single buffered']
    #allocation17 [shape = 'u8[512]{0}', space=vmem, size = 0x400, scoped, tag = 'input window, operand 9, single buffered']
    #allocation18 [shape = 's32[1]{0}', space=sflag, size = 0x4, scoped, tag = 'scoped memory for transformer_forward.14']
    #allocation19 [shape = 'u8[512]{0}', space=vmem, size = 0x400, scoped, tag = 'input window, operand 10, single buffered']
    #allocation20 [shape = 'u8[512]{0}', space=vmem, size = 0x400, scoped, tag = 'input window, operand 11, single buffered']
    #allocation21 [shape = 's32[1]{0}', space=sflag, size = 0x4, scoped, tag = 'scoped memory for transformer_forward.14']
    #allocation22 [shape = 'u8[4096]{0}', space=vmem, size = 0x1000, scoped, tag = 'output window, operand 0']
    #allocation23 [shape = 'u8[32768]{0}', space=vmem, size = 0x8000, scoped, tag = 'output window, operand 1']
    #allocation24 [shape = 's32[2]{0}', space=sflag, size = 0x8, scoped, tag = 'scoped memory for transformer_forward.14']
    %19 = vsyncpa [#allocation3], 0
    %s20 = scalar_lea.sflag [#allocation3], 1
    %21 = vsyncpa %s20, 0
    %22 = vsyncpa [#allocation6], 0
    %s23 = scalar_lea.sflag [#allocation6], 1
    %24 = vsyncpa %s23, 0
    %25 = vsyncpa [#allocation9], 0
    %26 = vsyncpa [#allocation12], 0
    %27 = vsyncpa [#allocation15], 0
    %28 = vsyncpa [#allocation18], 0
    %29 = vsyncpa [#allocation21], 0
    %30 = vsyncpa [#allocation4], 0
    %s31 = scalar_lea.sflag [#allocation4], 1
    %32 = vsyncpa %s31, 0
    %33 = vsyncpa [#allocation24], 0
    %s34 = scalar_lea.sflag [#allocation24], 1
    %35 = vsyncpa %s34, 0
    loop: start=0, step=1, limit=4
    $region2: #{transformer_forward.14} parent=1 // loop_pre_header
      _
    $region3: #{transformer_forward.14} parent=1 // loop_header
      %s37 = sphi 0, %s41
      %p38 = scmp.ge.s32.totalorder %s37, 4
      %s44 = sphi 0, %s56
      %s45 = sphi 0, %s52
      %s46 = sphi 0, %s44
      %s47 = sphi 0, %s45
      %s48 = sphi 0, %s46
      %s49 = sphi 0, %s47
      %s59 = sphi 0, %s61
      %s62 = sphi 0, %s59
      %s63 = sphi 0, %s62
      %s79 = sphi 0, %s63
      %s85 = sphi 0, %s87
      %s88 = sphi 0, %s85
      %s89 = sphi 0, %s88
      %s105 = sphi 0, %s89
      %s109 = sphi 0, %s109
      %s111 = sphi 0, %s109
      %s112 = sphi 0, %s111
      %s126 = sphi 0, %s112
      %s130 = sphi 0, %s130
      %s132 = sphi 0, %s130
      %s133 = sphi 0, %s132
      %s147 = sphi 0, %s133
      %s151 = sphi 0, %s151
      %s153 = sphi 0, %s151
      %s154 = sphi 0, %s153
      %s168 = sphi 0, %s154
      %s172 = sphi 0, %s172
      %s174 = sphi 0, %s172
      %s175 = sphi 0, %s174
      %s189 = sphi 0, %s175
      %s193 = sphi 0, %s193
      %s195 = sphi 0, %s193
      %s196 = sphi 0, %s195
      %s210 = sphi 0, %s196
      %s214 = sphi 0, %s214
      %s216 = sphi 0, %s214
      %s217 = sphi 0, %s216
      %s231 = sphi 0, %s217
      %s235 = sphi 0, %s235
      %s237 = sphi 0, %s235
      %s238 = sphi 0, %s237
      %s252 = sphi 0, %s238
      %s256 = sphi 0, %s256
      %s258 = sphi 0, %s256
      %s259 = sphi 0, %s258
      %s273 = sphi 0, %s259
      %s277 = sphi 0, %s277
      %s279 = sphi 0, %s277
      %s280 = sphi 0, %s279
      %s294 = sphi 0, %s280
      %s298 = sphi 0, %s298
      %s300 = sphi 0, %s298
      %s301 = sphi 0, %s300
      %s315 = sphi 0, %s301
      %s323 = sphi 0, %s325
      %s326 = sphi 0, %s323
      %s327 = sphi 0, %s326
      %s343 = sphi 0, %s327
      %s351 = sphi 0, %s353
      %s354 = sphi 0, %s351
      %s355 = sphi 0, %s354
      %s371 = sphi 0, %s355
    $region4: #{transformer_forward.14} parent=1 // loop_header_branch
      %40 = sbr.rel (%p38) target = $region8
    $region5: #{transformer_forward.14} parent=1 // loop_body
      %s42 = ssub.s32 %s37, 1
      %s43 = ssub.s32 %s37, 2
      %s50 = sadd.s32 1, %s45
      %p51 = scmp.ge.s32.totalorder %s50, 1
      %s52 = scalar_select %p51, 0, %s50
      %s53 = sadd.s32 1, %s44
      %s54 = scalar_select %p51, %s53, %s44
      %p55 = scmp.ge.s32.totalorder %s54, 2
      %s56 = scalar_select %p55, 0, %s54
      %s57 = ssub.s32 %s44, %s56
      %p58 = scmp.eq.s32.totalorder %s57, 0
      %s60 = sadd.s32 %s59, 1
      %s61 = scalar_select %p58, %s59, %s60
      %p64 = pneg %p58
      %p65 = scmp.eq.s32.totalorder %s37, 1
      %p66 = por %p64, %p65
      %p67 = scmp.ne.s32.totalorder %s59, %s62
      %p68 = scmp.eq.s32.totalorder %s37, 0
      %p69 = por %p67, %p68
      %p70 = scmp.ne.s32.totalorder %s59, %s62
      %p71 = scmp.eq.s32.totalorder %s42, 1
      %p72 = por %p70, %p71
      %p73 = scmp.ne.s32.totalorder %s62, %s63
      %p74 = scmp.eq.s32.totalorder %s42, 0
      %p75 = por %p73, %p74
      %p76 = scmp.ne.s32.totalorder %s62, %s63
      %p77 = scmp.eq.s32.totalorder %s43, 1
      %p78 = por %p76, %p77
      %p80 = scmp.ne.s32.totalorder %s63, %s79
      %p81 = scmp.eq.s32.totalorder %s43, 0
      %p82 = por %p80, %p81
      %s83 = ssub.s32 %s44, %s56
      %p84 = scmp.eq.s32.totalorder %s83, 0
      %s86 = sadd.s32 %s85, 1
      %s87 = scalar_select %p84, %s85, %s86
      %p90 = pneg %p84
      %p91 = scmp.eq.s32.totalorder %s37, 1
      %p92 = por %p90, %p91
      %p93 = scmp.ne.s32.totalorder %s85, %s88
      %p94 = scmp.eq.s32.totalorder %s37, 0
      %p95 = por %p93, %p94
      %p96 = scmp.ne.s32.totalorder %s85, %s88
      %p97 = scmp.eq.s32.totalorder %s42, 1
      %p98 = por %p96, %p97
      %p99 = scmp.ne.s32.totalorder %s88, %s89
      %p100 = scmp.eq.s32.totalorder %s42, 0
      %p101 = por %p99, %p100
      %p102 = scmp.ne.s32.totalorder %s88, %s89
      %p103 = scmp.eq.s32.totalorder %s43, 1
      %p104 = por %p102, %p103
      %p106 = scmp.ne.s32.totalorder %s89, %s105
      %p107 = scmp.eq.s32.totalorder %s43, 0
      %p108 = por %p106, %p107
      %s110 = sadd.s32 %s109, 1
      %p113 = scmp.eq.s32.totalorder %s37, 1
      %p114 = scmp.ne.s32.totalorder %s109, %s111
      %p115 = scmp.eq.s32.totalorder %s37, 0
      %p116 = por %p114, %p115
      %p117 = scmp.ne.s32.totalorder %s109, %s111
      %p118 = scmp.eq.s32.totalorder %s42, 1
      %p119 = por %p117, %p118
      %p120 = scmp.ne.s32.totalorder %s111, %s112
      %p121 = scmp.eq.s32.totalorder %s42, 0
      %p122 = por %p120, %p121
      %p123 = scmp.ne.s32.totalorder %s111, %s112
      %p124 = scmp.eq.s32.totalorder %s43, 1
      %p125 = por %p123, %p124
      %p127 = scmp.ne.s32.totalorder %s112, %s126
      %p128 = scmp.eq.s32.totalorder %s43, 0
      %p129 = por %p127, %p128
      %s131 = sadd.s32 %s130, 1
      %p134 = scmp.eq.s32.totalorder %s37, 1
      %p135 = scmp.ne.s32.totalorder %s130, %s132
      %p136 = scmp.eq.s32.totalorder %s37, 0
      %p137 = por %p135, %p136
      %p138 = scmp.ne.s32.totalorder %s130, %s132
      %p139 = scmp.eq.s32.totalorder %s42, 1
      %p140 = por %p138, %p139
      %p141 = scmp.ne.s32.totalorder %s132, %s133
      %p142 = scmp.eq.s32.totalorder %s42, 0
      %p143 = por %p141, %p142
      %p144 = scmp.ne.s32.totalorder %s132, %s133
      %p145 = scmp.eq.s32.totalorder %s43, 1
      %p146 = por %p144, %p145
      %p148 = scmp.ne.s32.totalorder %s133, %s147
      %p149 = scmp.eq.s32.totalorder %s43, 0
      %p150 = por %p148, %p149
      %s152 = sadd.s32 %s151, 1
      %p155 = scmp.eq.s32.totalorder %s37, 1
      %p156 = scmp.ne.s32.totalorder %s151, %s153
      %p157 = scmp.eq.s32.totalorder %s37, 0
      %p158 = por %p156, %p157
      %p159 = scmp.ne.s32.totalorder %s151, %s153
      %p160 = scmp.eq.s32.totalorder %s42, 1
      %p161 = por %p159, %p160
      %p162 = scmp.ne.s32.totalorder %s153, %s154
      %p163 = scmp.eq.s32.totalorder %s42, 0
      %p164 = por %p162, %p163
      %p165 = scmp.ne.s32.totalorder %s153, %s154
      %p166 = scmp.eq.s32.totalorder %s43, 1
      %p167 = por %p165, %p166
      %p169 = scmp.ne.s32.totalorder %s154, %s168
      %p170 = scmp.eq.s32.totalorder %s43, 0
      %p171 = por %p169, %p170
      %s173 = sadd.s32 %s172, 1
      %p176 = scmp.eq.s32.totalorder %s37, 1
      %p177 = scmp.ne.s32.totalorder %s172, %s174
      %p178 = scmp.eq.s32.totalorder %s37, 0
      %p179 = por %p177, %p178
      %p180 = scmp.ne.s32.totalorder %s172, %s174
      %p181 = scmp.eq.s32.totalorder %s42, 1
      %p182 = por %p180, %p181
      %p183 = scmp.ne.s32.totalorder %s174, %s175
      %p184 = scmp.eq.s32.totalorder %s42, 0
      %p185 = por %p183, %p184
      %p186 = scmp.ne.s32.totalorder %s174, %s175
      %p187 = scmp.eq.s32.totalorder %s43, 1
      %p188 = por %p186, %p187
      %p190 = scmp.ne.s32.totalorder %s175, %s189
      %p191 = scmp.eq.s32.totalorder %s43, 0
      %p192 = por %p190, %p191
      %s194 = sadd.s32 %s193, 1
      %p197 = scmp.eq.s32.totalorder %s37, 1
      %p198 = scmp.ne.s32.totalorder %s193, %s195
      %p199 = scmp.eq.s32.totalorder %s37, 0
      %p200 = por %p198, %p199
      %p201 = scmp.ne.s32.totalorder %s193, %s195
      %p202 = scmp.eq.s32.totalorder %s42, 1
      %p203 = por %p201, %p202
      %p204 = scmp.ne.s32.totalorder %s195, %s196
      %p205 = scmp.eq.s32.totalorder %s42, 0
      %p206 = por %p204, %p205
      %p207 = scmp.ne.s32.totalorder %s195, %s196
      %p208 = scmp.eq.s32.totalorder %s43, 1
      %p209 = por %p207, %p208
      %p211 = scmp.ne.s32.totalorder %s196, %s210
      %p212 = scmp.eq.s32.totalorder %s43, 0
      %p213 = por %p211, %p212
      %s215 = sadd.s32 %s214, 1
      %p218 = scmp.eq.s32.totalorder %s37, 1
      %p219 = scmp.ne.s32.totalorder %s214, %s216
      %p220 = scmp.eq.s32.totalorder %s37, 0
      %p221 = por %p219, %p220
      %p222 = scmp.ne.s32.totalorder %s214, %s216
      %p223 = scmp.eq.s32.totalorder %s42, 1
      %p224 = por %p222, %p223
      %p225 = scmp.ne.s32.totalorder %s216, %s217
      %p226 = scmp.eq.s32.totalorder %s42, 0
      %p227 = por %p225, %p226
      %p228 = scmp.ne.s32.totalorder %s216, %s217
      %p229 = scmp.eq.s32.totalorder %s43, 1
      %p230 = por %p228, %p229
      %p232 = scmp.ne.s32.totalorder %s217, %s231
      %p233 = scmp.eq.s32.totalorder %s43, 0
      %p234 = por %p232, %p233
      %s236 = sadd.s32 %s235, 1
      %p239 = scmp.eq.s32.totalorder %s37, 1
      %p240 = scmp.ne.s32.totalorder %s235, %s237
      %p241 = scmp.eq.s32.totalorder %s37, 0
      %p242 = por %p240, %p241
      %p243 = scmp.ne.s32.totalorder %s235, %s237
      %p244 = scmp.eq.s32.totalorder %s42, 1
      %p245 = por %p243, %p244
      %p246 = scmp.ne.s32.totalorder %s237, %s238
      %p247 = scmp.eq.s32.totalorder %s42, 0
      %p248 = por %p246, %p247
      %p249 = scmp.ne.s32.totalorder %s237, %s238
      %p250 = scmp.eq.s32.totalorder %s43, 1
      %p251 = por %p249, %p250
      %p253 = scmp.ne.s32.totalorder %s238, %s252
      %p254 = scmp.eq.s32.totalorder %s43, 0
      %p255 = por %p253, %p254
      %s257 = sadd.s32 %s256, 1
      %p260 = scmp.eq.s32.totalorder %s37, 1
      %p261 = scmp.ne.s32.totalorder %s256, %s258
      %p262 = scmp.eq.s32.totalorder %s37, 0
      %p263 = por %p261, %p262
      %p264 = scmp.ne.s32.totalorder %s256, %s258
      %p265 = scmp.eq.s32.totalorder %s42, 1
      %p266 = por %p264, %p265
      %p267 = scmp.ne.s32.totalorder %s258, %s259
      %p268 = scmp.eq.s32.totalorder %s42, 0
      %p269 = por %p267, %p268
      %p270 = scmp.ne.s32.totalorder %s258, %s259
      %p271 = scmp.eq.s32.totalorder %s43, 1
      %p272 = por %p270, %p271
      %p274 = scmp.ne.s32.totalorder %s259, %s273
      %p275 = scmp.eq.s32.totalorder %s43, 0
      %p276 = por %p274, %p275
      %s278 = sadd.s32 %s277, 1
      %p281 = scmp.eq.s32.totalorder %s37, 1
      %p282 = scmp.ne.s32.totalorder %s277, %s279
      %p283 = scmp.eq.s32.totalorder %s37, 0
      %p284 = por %p282, %p283
      %p285 = scmp.ne.s32.totalorder %s277, %s279
      %p286 = scmp.eq.s32.totalorder %s42, 1
      %p287 = por %p285, %p286
      %p288 = scmp.ne.s32.totalorder %s279, %s280
      %p289 = scmp.eq.s32.totalorder %s42, 0
      %p290 = por %p288, %p289
      %p291 = scmp.ne.s32.totalorder %s279, %s280
      %p292 = scmp.eq.s32.totalorder %s43, 1
      %p293 = por %p291, %p292
      %p295 = scmp.ne.s32.totalorder %s280, %s294
      %p296 = scmp.eq.s32.totalorder %s43, 0
      %p297 = por %p295, %p296
      %s299 = sadd.s32 %s298, 1
      %p302 = scmp.eq.s32.totalorder %s37, 1
      %p303 = scmp.ne.s32.totalorder %s298, %s300
      %p304 = scmp.eq.s32.totalorder %s37, 0
      %p305 = por %p303, %p304
      %p306 = scmp.ne.s32.totalorder %s298, %s300
      %p307 = scmp.eq.s32.totalorder %s42, 1
      %p308 = por %p306, %p307
      %p309 = scmp.ne.s32.totalorder %s300, %s301
      %p310 = scmp.eq.s32.totalorder %s42, 0
      %p311 = por %p309, %p310
      %p312 = scmp.ne.s32.totalorder %s300, %s301
      %p313 = scmp.eq.s32.totalorder %s43, 1
      %p314 = por %p312, %p313
      %p316 = scmp.ne.s32.totalorder %s301, %s315
      %p317 = scmp.eq.s32.totalorder %s43, 0
      %p318 = por %p316, %p317
      %s319 = ssub.s32 %s44, %s56
      %s320 = ssub.s32 %s45, %s52
      %s321 = sor.u32 %s319, %s320
      %p322 = scmp.eq.s32.totalorder %s321, 0
      %s324 = sadd.s32 %s323, 1
      %s325 = scalar_select %p322, %s323, %s324
      %p328 = pneg %p322
      %p329 = scmp.eq.s32.totalorder %s37, 1
      %p330 = por %p328, %p329
      %p331 = scmp.ne.s32.totalorder %s323, %s326
      %p332 = scmp.eq.s32.totalorder %s37, 0
      %p333 = por %p331, %p332
      %p334 = scmp.ne.s32.totalorder %s323, %s326
      %p335 = scmp.eq.s32.totalorder %s42, 1
      %p336 = por %p334, %p335
      %p337 = scmp.ne.s32.totalorder %s326, %s327
      %p338 = scmp.eq.s32.totalorder %s42, 0
      %p339 = por %p337, %p338
      %p340 = scmp.ne.s32.totalorder %s326, %s327
      %p341 = scmp.eq.s32.totalorder %s43, 1
      %p342 = por %p340, %p341
      %p344 = scmp.ne.s32.totalorder %s327, %s343
      %p345 = scmp.eq.s32.totalorder %s43, 0
      %p346 = por %p344, %p345
      %s347 = ssub.s32 %s44, %s56
      %s348 = ssub.s32 %s45, %s52
      %s349 = sor.u32 %s347, %s348
      %p350 = scmp.eq.s32.totalorder %s349, 0
      %s352 = sadd.s32 %s351, 1
      %s353 = scalar_select %p350, %s351, %s352
      %p356 = pneg %p350
      %p357 = scmp.eq.s32.totalorder %s37, 1
      %p358 = por %p356, %p357
      %p359 = scmp.ne.s32.totalorder %s351, %s354
      %p360 = scmp.eq.s32.totalorder %s37, 0
      %p361 = por %p359, %p360
      %p362 = scmp.ne.s32.totalorder %s351, %s354
      %p363 = scmp.eq.s32.totalorder %s42, 1
      %p364 = por %p362, %p363
      %p365 = scmp.ne.s32.totalorder %s354, %s355
      %p366 = scmp.eq.s32.totalorder %s42, 0
      %p367 = por %p365, %p366
      %p368 = scmp.ne.s32.totalorder %s354, %s355
      %p369 = scmp.eq.s32.totalorder %s43, 1
      %p370 = por %p368, %p369
      %p372 = scmp.ne.s32.totalorder %s355, %s371
      %p373 = scmp.eq.s32.totalorder %s43, 0
      %p374 = por %p372, %p373
      %p375 = scmp.le.s32.totalorder 1, %s37
      %p376 = scmp.lt.s32.totalorder %s37, 3
      %p377 = pnand %p375, %p376
      %p378 = pneg %p377
      // Predicated region
      $region9: #{transformer_forward.14} parent=5 // pred_check
        _
      $region10: #{transformer_forward.14} parent=5 // pred_check_branch
        %380 = sbr.rel (%p377) target = $region12
      $region11: #{transformer_forward.14} parent=5 // pred_region
        %s381 = ssub.s32 %s37, 1
        // Predicated region
        $region13: #{transformer_forward.14} parent=11 // pred_check
          %p382 = pneg %p122
        $region14: #{transformer_forward.14} parent=11 // pred_check_branch
          %384 = sbr.rel (%p382) target = $region16
        $region15: #{transformer_forward.14} parent=11 // pred_region
          %s386 = ssub.s32 256, 256
          %387 = vsyncadd [#allocation6], %s386
          %s388 = sshll.u32 [#allocation7], 4
          %s389 = int_to_ptr.vmem [resolvable:$true] %s388
          %394 = dma.hbm_to_vmem [thread:$0]  %s2, 256, %s389, [#allocation6], 64, 64, 4
        $region16: #{transformer_forward.14} parent=11 // pred_fallthru
          _
        // Predicated region
        $region17: #{transformer_forward.14} parent=11 // pred_check
          %p395 = pneg %p143
        $region18: #{transformer_forward.14} parent=11 // pred_check_branch
          %397 = sbr.rel (%p395) target = $region20
        $region19: #{transformer_forward.14} parent=11 // pred_region
          %s399 = ssub.s32 256, 256
          %400 = vsyncadd [#allocation9], %s399
          %s401 = sshll.u32 [#allocation8], 4
          %s402 = int_to_ptr.vmem [resolvable:$true] %s401
          %407 = dma.hbm_to_vmem [thread:$0]  %s3, 256, %s402, [#allocation9], 64, 64, 4
        $region20: #{transformer_forward.14} parent=11 // pred_fallthru
          _
        // Predicated region
        $region21: #{transformer_forward.14} parent=11 // pred_check
          %p408 = pneg %p164
        $region22: #{transformer_forward.14} parent=11 // pred_check_branch
          %410 = sbr.rel (%p408) target = $region24
        $region23: #{transformer_forward.14} parent=11 // pred_region
          %s412 = ssub.s32 256, 256
          %413 = vsyncadd [#allocation9], %s412
          %s414 = sshll.u32 [#allocation10], 4
          %s415 = int_to_ptr.vmem [resolvable:$true] %s414
          %420 = dma.hbm_to_vmem [thread:$0]  %s4, 256, %s415, [#allocation9], 64, 64, 4
        $region24: #{transformer_forward.14} parent=11 // pred_fallthru
          _
        // Predicated region
        $region25: #{transformer_forward.14} parent=11 // pred_check
          %p421 = pneg %p185
        $region26: #{transformer_forward.14} parent=11 // pred_check_branch
          %423 = sbr.rel (%p421) target = $region28
        $region27: #{transformer_forward.14} parent=11 // pred_region
          %s425 = ssub.s32 256, 256
          %426 = vsyncadd [#allocation12], %s425
          %s427 = sshll.u32 [#allocation11], 4
          %s428 = int_to_ptr.vmem [resolvable:$true] %s427
          %433 = dma.hbm_to_vmem [thread:$0]  %s5, 256, %s428, [#allocation12], 64, 64, 4
        $region28: #{transformer_forward.14} parent=11 // pred_fallthru
          _
        // Predicated region
        $region29: #{transformer_forward.14} parent=11 // pred_check
          %p434 = pneg %p206
        $region30: #{transformer_forward.14} parent=11 // pred_check_branch
          %436 = sbr.rel (%p434) target = $region32
        $region31: #{transformer_forward.14} parent=11 // pred_region
          %s438 = ssub.s32 16, 16
          %439 = vsyncadd [#allocation12], %s438
          %s441 = sshll.u32 [#allocation13], 4
          %s442 = int_to_ptr.vmem [resolvable:$true] %s441
          %444 = dma.hbm_to_vmem [thread:$0]  %s6, 16, %s442, [#allocation12]
        $region32: #{transformer_forward.14} parent=11 // pred_fallthru
          _
        // Predicated region
        $region33: #{transformer_forward.14} parent=11 // pred_check
          %p445 = pneg %p227
        $region34: #{transformer_forward.14} parent=11 // pred_check_branch
          %447 = sbr.rel (%p445) target = $region36
        $region35: #{transformer_forward.14} parent=11 // pred_region
          %s449 = ssub.s32 16, 16
          %450 = vsyncadd [#allocation15], %s449
          %s452 = sshll.u32 [#allocation14], 4
          %s453 = int_to_ptr.vmem [resolvable:$true] %s452
          %455 = dma.hbm_to_vmem [thread:$0]  %s7, 16, %s453, [#allocation15]
        $region36: #{transformer_forward.14} parent=11 // pred_fallthru
          _
        // Predicated region
        $region37: #{transformer_forward.14} parent=11 // pred_check
          %p456 = pneg %p248
        $region38: #{transformer_forward.14} parent=11 // pred_check_branch
          %458 = sbr.rel (%p456) target = $region40
        $region39: #{transformer_forward.14} parent=11 // pred_region
          %s460 = ssub.s32 16, 16
          %461 = vsyncadd [#allocation15], %s460
          %s463 = sshll.u32 [#allocation16], 4
          %s464 = int_to_ptr.vmem [resolvable:$true] %s463
          %466 = dma.hbm_to_vmem [thread:$0]  %s8, 16, %s464, [#allocation15]
        $region40: #{transformer_forward.14} parent=11 // pred_fallthru
          _
        // Predicated region
        $region41: #{transformer_forward.14} parent=11 // pred_check
          %p467 = pneg %p269
        $region42: #{transformer_forward.14} parent=11 // pred_check_branch
          %469 = sbr.rel (%p467) target = $region44
        $region43: #{transformer_forward.14} parent=11 // pred_region
          %s471 = ssub.s32 16, 16
          %472 = vsyncadd [#allocation18], %s471
          %s474 = sshll.u32 [#allocation17], 4
          %s475 = int_to_ptr.vmem [resolvable:$true] %s474
          %477 = dma.hbm_to_vmem [thread:$0]  %s9, 16, %s475, [#allocation18]
        $region44: #{transformer_forward.14} parent=11 // pred_fallthru
          _
        // Predicated region
        $region45: #{transformer_forward.14} parent=11 // pred_check
          %p478 = pneg %p290
        $region46: #{transformer_forward.14} parent=11 // pred_check_branch
          %480 = sbr.rel (%p478) target = $region48
        $region47: #{transformer_forward.14} parent=11 // pred_region
          %s482 = ssub.s32 16, 16
          %483 = vsyncadd [#allocation18], %s482
          %s485 = sshll.u32 [#allocation19], 4
          %s486 = int_to_ptr.vmem [resolvable:$true] %s485
          %488 = dma.hbm_to_vmem [thread:$0]  %s10, 16, %s486, [#allocation18]
        $region48: #{transformer_forward.14} parent=11 // pred_fallthru
          _
        // Predicated region
        $region49: #{transformer_forward.14} parent=11 // pred_check
          %p489 = pneg %p311
        $region50: #{transformer_forward.14} parent=11 // pred_check_branch
          %491 = sbr.rel (%p489) target = $region52
        $region51: #{transformer_forward.14} parent=11 // pred_region
          %s493 = ssub.s32 16, 16
          %494 = vsyncadd [#allocation21], %s493
          %s496 = sshll.u32 [#allocation20], 4
          %s497 = int_to_ptr.vmem [resolvable:$true] %s496
          %499 = dma.hbm_to_vmem [thread:$0]  %s11, 16, %s497, [#allocation21]
        $region52: #{transformer_forward.14} parent=11 // pred_fallthru
          _
      $region12: #{transformer_forward.14} parent=5 // pred_fallthru
        _
      %p500 = scmp.lt.s32.totalorder %s37, 2
      // Predicated region
      $region53: #{transformer_forward.14} parent=5 // pred_check
        %p501 = pneg %p500
      $region54: #{transformer_forward.14} parent=5 // pred_check_branch
        %503 = sbr.rel (%p501) target = $region56
      $region55: #{transformer_forward.14} parent=5 // pred_region
        // Predicated region
        $region57: #{transformer_forward.14} parent=55 // pred_check
          %p504 = pneg %p69
        $region58: #{transformer_forward.14} parent=55 // pred_check_branch
          %506 = sbr.rel (%p504) target = $region60
        $region59: #{transformer_forward.14} parent=55 // pred_region
          %s507 = sand.u32 %s59, 1
          %s508 = scalar_lea.sflag [#allocation3], %s507
          %s509 = sand.u32 %s59, 1
          %s510 = smul.addr %s509, 4
          %s511 = scalar_lea.vmem [#allocation2], %s510
          %s513 = ssub.s32 64, 64
          %514 = vsyncadd %s508, %s513
          %s515 = smul.addr %s44, 64
          %s516 = scalar_lea.hbm %s0, %s515
          %s518 = sshll.u32 %s511, 4
          %s519 = int_to_ptr.vmem [resolvable:$true] %s518
          %521 = dma.hbm_to_vmem [thread:$0]  %s516, 64, %s519, %s508
        $region60: #{transformer_forward.14} parent=55 // pred_fallthru
          _
        // Predicated region
        $region61: #{transformer_forward.14} parent=55 // pred_check
          %p522 = pneg %p95
        $region62: #{transformer_forward.14} parent=55 // pred_check_branch
          %524 = sbr.rel (%p522) target = $region64
        $region63: #{transformer_forward.14} parent=55 // pred_region
          %s525 = sand.u32 %s37, 1
          %s526 = scalar_lea.sflag [#allocation6], %s525
          %s527 = sand.u32 %s85, 1
          %s528 = scalar_lea.vmem [#allocation5], %s527
          %s530 = ssub.s32 16, 16
          %531 = vsyncadd %s526, %s530
          %s532 = smul.addr %s44, 16
          %s533 = scalar_lea.hbm %s1, %s532
          %s535 = sshll.u32 %s528, 4
          %s536 = int_to_ptr.vmem [resolvable:$true] %s535
          %538 = dma.hbm_to_vmem [thread:$0]  %s533, 16, %s536, %s526
        $region64: #{transformer_forward.14} parent=55 // pred_fallthru
          _
      $region56: #{transformer_forward.14} parent=5 // pred_fallthru
        _
      %p539 = scmp.le.s32.totalorder 1, %s37
      %p540 = scmp.lt.s32.totalorder %s37, 3
      %p541 = pnand %p539, %p540
      %p542 = pneg %p541
      // Predicated region
      $region65: #{transformer_forward.14} parent=5 // pred_check
        _
      $region66: #{transformer_forward.14} parent=5 // pred_check_branch
        %544 = sbr.rel (%p541) target = $region68
      $region67: #{transformer_forward.14} parent=5 // pred_region
        %s545 = ssub.s32 %s37, 1
        %s546 = sand.u32 %s62, 1
        %s547 = scalar_lea.sflag [#allocation3], %s546
        %s548 = sand.u32 %s62, 1
        %s549 = smul.addr %s548, 4
        %s550 = scalar_lea.vmem [#allocation2], %s549
        // Predicated region
        $region69: #{transformer_forward.14} parent=67 // pred_check
          %p551 = pneg %p75
        $region70: #{transformer_forward.14} parent=67 // pred_check_branch
          %553 = sbr.rel (%p551) target = $region72
        $region71: #{transformer_forward.14} parent=67 // pred_region
          %554 = dma.done %s547, 64
        $region72: #{transformer_forward.14} parent=67 // pred_fallthru
          _
        %s555 = sand.u32 %s42, 1
        %s556 = scalar_lea.sflag [#allocation6], %s555
        %s557 = sand.u32 %s88, 1
        %s558 = scalar_lea.vmem [#allocation5], %s557
        // Predicated region
        $region73: #{transformer_forward.14} parent=67 // pred_check
          %p559 = pneg %p101
        $region74: #{transformer_forward.14} parent=67 // pred_check_branch
          %561 = sbr.rel (%p559) target = $region76
        $region75: #{transformer_forward.14} parent=67 // pred_region
          %562 = dma.done %s556, 16
        $region76: #{transformer_forward.14} parent=67 // pred_fallthru
          _
        // Predicated region
        $region77: #{transformer_forward.14} parent=67 // pred_check
          %p563 = pneg %p122
        $region78: #{transformer_forward.14} parent=67 // pred_check_branch
          %565 = sbr.rel (%p563) target = $region80
        $region79: #{transformer_forward.14} parent=67 // pred_region
          %566 = dma.done [#allocation6], 256
        $region80: #{transformer_forward.14} parent=67 // pred_fallthru
          _
        // Predicated region
        $region81: #{transformer_forward.14} parent=67 // pred_check
          %p567 = pneg %p143
        $region82: #{transformer_forward.14} parent=67 // pred_check_branch
          %569 = sbr.rel (%p567) target = $region84
        $region83: #{transformer_forward.14} parent=67 // pred_region
          %570 = dma.done [#allocation9], 256
        $region84: #{transformer_forward.14} parent=67 // pred_fallthru
          _
        // Predicated region
        $region85: #{transformer_forward.14} parent=67 // pred_check
          %p571 = pneg %p164
        $region86: #{transformer_forward.14} parent=67 // pred_check_branch
          %573 = sbr.rel (%p571) target = $region88
        $region87: #{transformer_forward.14} parent=67 // pred_region
          %574 = dma.done [#allocation9], 256
        $region88: #{transformer_forward.14} parent=67 // pred_fallthru
          _
        // Predicated region
        $region89: #{transformer_forward.14} parent=67 // pred_check
          %p575 = pneg %p185
        $region90: #{transformer_forward.14} parent=67 // pred_check_branch
          %577 = sbr.rel (%p575) target = $region92
        $region91: #{transformer_forward.14} parent=67 // pred_region
          %578 = dma.done [#allocation12], 256
        $region92: #{transformer_forward.14} parent=67 // pred_fallthru
          _
        // Predicated region
        $region93: #{transformer_forward.14} parent=67 // pred_check
          %p579 = pneg %p206
        $region94: #{transformer_forward.14} parent=67 // pred_check_branch
          %581 = sbr.rel (%p579) target = $region96
        $region95: #{transformer_forward.14} parent=67 // pred_region
          %582 = dma.done [#allocation12], 16
        $region96: #{transformer_forward.14} parent=67 // pred_fallthru
          _
        // Predicated region
        $region97: #{transformer_forward.14} parent=67 // pred_check
          %p583 = pneg %p227
        $region98: #{transformer_forward.14} parent=67 // pred_check_branch
          %585 = sbr.rel (%p583) target = $region100
        $region99: #{transformer_forward.14} parent=67 // pred_region
          %586 = dma.done [#allocation15], 16
        $region100: #{transformer_forward.14} parent=67 // pred_fallthru
          _
        // Predicated region
        $region101: #{transformer_forward.14} parent=67 // pred_check
          %p587 = pneg %p248
        $region102: #{transformer_forward.14} parent=67 // pred_check_branch
          %589 = sbr.rel (%p587) target = $region104
        $region103: #{transformer_forward.14} parent=67 // pred_region
          %590 = dma.done [#allocation15], 16
        $region104: #{transformer_forward.14} parent=67 // pred_fallthru
          _
        // Predicated region
        $region105: #{transformer_forward.14} parent=67 // pred_check
          %p591 = pneg %p269
        $region106: #{transformer_forward.14} parent=67 // pred_check_branch
          %593 = sbr.rel (%p591) target = $region108
        $region107: #{transformer_forward.14} parent=67 // pred_region
          %594 = dma.done [#allocation18], 16
        $region108: #{transformer_forward.14} parent=67 // pred_fallthru
          _
        // Predicated region
        $region109: #{transformer_forward.14} parent=67 // pred_check
          %p595 = pneg %p290
        $region110: #{transformer_forward.14} parent=67 // pred_check_branch
          %597 = sbr.rel (%p595) target = $region112
        $region111: #{transformer_forward.14} parent=67 // pred_region
          %598 = dma.done [#allocation18], 16
        $region112: #{transformer_forward.14} parent=67 // pred_fallthru
          _
        // Predicated region
        $region113: #{transformer_forward.14} parent=67 // pred_check
          %p599 = pneg %p311
        $region114: #{transformer_forward.14} parent=67 // pred_check_branch
          %601 = sbr.rel (%p599) target = $region116
        $region115: #{transformer_forward.14} parent=67 // pred_region
          %602 = dma.done [#allocation21], 16
        $region116: #{transformer_forward.14} parent=67 // pred_fallthru
          _
        %s603 = sand.u32 %s62, 1
        %s604 = scalar_lea.sflag [#allocation3], %s603
        %s605 = sand.u32 %s62, 1
        %s606 = smul.addr %s605, 4
        %s607 = scalar_lea.vmem [#allocation2], %s606
        %p608 = pneg %p75
        %p609 = pneg %p72
        %s610 = sand.u32 %s42, 1
        %s611 = scalar_lea.sflag [#allocation6], %s610
        %s612 = sand.u32 %s88, 1
        %s613 = scalar_lea.vmem [#allocation5], %s612
        %p614 = pneg %p101
        %p615 = pneg %p98
        %p616 = pneg %p122
        %p617 = pneg %p119
        %p618 = pneg %p143
        %p619 = pneg %p140
        %p620 = pneg %p164
        %p621 = pneg %p161
        %p622 = pneg %p185
        %p623 = pneg %p182
        %p624 = pneg %p206
        %p625 = pneg %p203
        %p626 = pneg %p227
        %p627 = pneg %p224
        %p628 = pneg %p248
        %p629 = pneg %p245
        %p630 = pneg %p269
        %p631 = pneg %p266
        %p632 = pneg %p290
        %p633 = pneg %p287
        %p634 = pneg %p311
        %p635 = pneg %p308
        %p636 = pneg %p339
        %p637 = pneg %p336
        %s638 = sand.u32 %s326, 1
        %s639 = scalar_lea.sflag [#allocation4], %s638
        %s640 = sand.u32 %s326, 1
        %s641 = smul.addr %s640, 4
        %s642 = scalar_lea.vmem [#allocation22], %s641
        %p643 = pneg %p367
        %p644 = pneg %p364
        %s645 = sand.u32 %s354, 1
        %s646 = scalar_lea.sflag [#allocation24], %s645
        %s647 = sand.u32 %s354, 1
        %s648 = smul.addr %s647, 32
        %s649 = scalar_lea.vmem [#allocation23], %s648
        %v651 = vld [vmem:[%s550] sm:$0xf]
        %v652 = vld [vmem:[#allocation7] sm:$0xf]
        %v653 = vld [vmem:[#allocation7 + $0x4] sm:$0xf]
        %v654 = vld [vmem:[#allocation7 + $0x8] sm:$0xf]
        %v655 = vld [vmem:[#allocation7 + $0xc] sm:$0xf]
        %v656 = vld [vmem:[#allocation13] sm:$0x1]
        %v658 = vlaneseq
        %v659 = vshrl.u32 %v658, 7
        %v660 = vsub.s32 0, %v659
        %v661 = vrot.slane %v656, %v660
        %v667 = vunpack.c.l.b16 %v652
        %v668 = vunpack.c.l.b16 %v653
        %v669 = vunpack.c.l.b16 %v654
        %v670 = vunpack.c.l.b16 %v655
        %v671 = vpack.c.b16 %v668, %v667
        %v672 = vpack.c.b16 %v670, %v669
        %vm675 = vcmask 261120
        %v677 = vsel %vm675, %v651, 0
        %679 = vmatprep.subr.bf16.mxu0 0
        %680 = vmatpush1.bf16.msra.mxu0 %v671
        %681 = vmatprep.subr.bf16.mxu0 0
        %682 = vmatpush1.bf16.msra.mxu0 %v672
        %683 = vmatprep.subr.bf16.mxu0 0
        %684 = vmatpush1.bf16.msra.mxu0 0
        %685 = vmatprep.subr.bf16.mxu0 0
        %686 = vmatpush1.bf16.msra.mxu0 0
        %687 = vmatprep.subr.bf16.mxu0 0
        %688 = vmatpush1.bf16.msra.mxu0 0
        %689 = vmatprep.subr.bf16.mxu0 0
        %690 = vmatpush1.bf16.msra.mxu0 0
        %691 = vmatprep.subr.bf16.mxu0 0
        %692 = vmatpush1.bf16.msra.mxu0 0
        %693 = vmatprep.subr.bf16.mxu0 0
        %694 = vmatpush1.bf16.msra.mxu0 0
        %695 = vmatprep.subr.bf16.mxu0 0
        %696 = vmatpush1.bf16.msra.mxu0 0
        %697 = vmatprep.subr.bf16.mxu0 0
        %698 = vmatpush1.bf16.msra.mxu0 0
        %699 = vmatprep.subr.bf16.mxu0 0
        %700 = vmatpush1.bf16.msra.mxu0 0
        %701 = vmatprep.subr.bf16.mxu0 0
        %702 = vmatpush1.bf16.msra.mxu0 0
        %703 = vmatprep.subr.bf16.mxu0 0
        %704 = vmatpush1.bf16.msra.mxu0 0
        %705 = vmatprep.subr.bf16.mxu0 0
        %706 = vmatpush1.bf16.msra.mxu0 0
        %707 = vmatprep.subr.bf16.mxu0 0
        %708 = vmatpush1.bf16.msra.mxu0 0
        %709 = vmatprep.subr.bf16.mxu0 0
        %710 = vmatpush1.bf16.msra.mxu0 0
        %711 = vmatprep.mubr.bf16.mxu0 0
        %712 = vmatmul.mubr.bf16.gmra.mrb[0].mxu0 %v677
        %v713 = vpop.f32.mrb[0].mxu0
        %v714 = vadd.f32 %v661, %v713
        %v715 = vpop.f32.mrb[0].mxu0
        %v716 = vpop.f32.mrb[0].mxu0
        %v717 = vpop.f32.mrb[0].mxu0
        %718 = vdwg.mxu0
        %v719 = vld [vmem:[#allocation8] sm:$0xf]
        %v720 = vld [vmem:[#allocation8 + $0x4] sm:$0xf]
        %v721 = vld [vmem:[#allocation8 + $0x8] sm:$0xf]
        %v722 = vld [vmem:[#allocation8 + $0xc] sm:$0xf]
        %v723 = vld [vmem:[#allocation14] sm:$0x1]
        %v725 = vlaneseq
        %v726 = vshrl.u32 %v725, 7
        %v727 = vsub.s32 0, %v726
        %v728 = vrot.slane %v723, %v727
        %v734 = vunpack.c.l.b16 %v719
        %v735 = vunpack.c.l.b16 %v720
        %v736 = vunpack.c.l.b16 %v721
        %v737 = vunpack.c.l.b16 %v722
        %v738 = vpack.c.b16 %v735, %v734
        %v739 = vpack.c.b16 %v737, %v736
        %742 = vmatprep.subr.bf16.mxu0 0
        %743 = vmatpush1.bf16.msra.mxu0 %v738
        %744 = vmatprep.subr.bf16.mxu0 0
        %745 = vmatpush1.bf16.msra.mxu0 %v739
        %746 = vmatprep.subr.bf16.mxu0 0
        %747 = vmatpush1.bf16.msra.mxu0 0
        %748 = vmatprep.subr.bf16.mxu0 0
        %749 = vmatpush1.bf16.msra.mxu0 0
        %750 = vmatprep.subr.bf16.mxu0 0
        %751 = vmatpush1.bf16.msra.mxu0 0
        %752 = vmatprep.subr.bf16.mxu0 0
        %753 = vmatpush1.bf16.msra.mxu0 0
        %754 = vmatprep.subr.bf16.mxu0 0
        %755 = vmatpush1.bf16.msra.mxu0 0
        %756 = vmatprep.subr.bf16.mxu0 0
        %757 = vmatpush1.bf16.msra.mxu0 0
        %758 = vmatprep.subr.bf16.mxu0 0
        %759 = vmatpush1.bf16.msra.mxu0 0
        %760 = vmatprep.subr.bf16.mxu0 0
        %761 = vmatpush1.bf16.msra.mxu0 0
        %762 = vmatprep.subr.bf16.mxu0 0
        %763 = vmatpush1.bf16.msra.mxu0 0
        %764 = vmatprep.subr.bf16.mxu0 0
        %765 = vmatpush1.bf16.msra.mxu0 0
        %766 = vmatprep.subr.bf16.mxu0 0
        %767 = vmatpush1.bf16.msra.mxu0 0
        %768 = vmatprep.subr.bf16.mxu0 0
        %769 = vmatpush1.bf16.msra.mxu0 0
        %770 = vmatprep.subr.bf16.mxu0 0
        %771 = vmatpush1.bf16.msra.mxu0 0
        %772 = vmatprep.subr.bf16.mxu0 0
        %773 = vmatpush1.bf16.msra.mxu0 0
        %774 = vmatprep.mubr.bf16.mxu0 0
        %775 = vmatmul.mubr.bf16.gmra.mrb[0].mxu0 %v677
        %v776 = vpop.f32.mrb[0].mxu0
        %v777 = vadd.f32 %v728, %v776
        %v778 = vpop.f32.mrb[0].mxu0
        %v779 = vpop.f32.mrb[0].mxu0
        %v780 = vpop.f32.mrb[0].mxu0
        %781 = vdwg.mxu0
        %v782 = vld [vmem:[#allocation10] sm:$0xf]
        %v783 = vld [vmem:[#allocation10 + $0x4] sm:$0xf]
        %v784 = vld [vmem:[#allocation10 + $0x8] sm:$0xf]
        %v785 = vld [vmem:[#allocation10 + $0xc] sm:$0xf]
        %v786 = vld [vmem:[#allocation16] sm:$0x1]
        %v788 = vlaneseq
        %v789 = vshrl.u32 %v788, 7
        %v790 = vsub.s32 0, %v789
        %v791 = vrot.slane %v786, %v790
        %v797 = vunpack.c.l.b16 %v782
        %v798 = vunpack.c.l.b16 %v783
        %v799 = vunpack.c.l.b16 %v784
        %v800 = vunpack.c.l.b16 %v785
        %v801 = vpack.c.b16 %v798, %v797
        %v802 = vpack.c.b16 %v800, %v799
        %805 = vmatprep.subr.bf16.mxu0 0
        %806 = vmatpush1.bf16.msra.mxu0 %v801
        %807 = vmatprep.subr.bf16.mxu0 0
        %808 = vmatpush1.bf16.msra.mxu0 %v802
        %809 = vmatprep.subr.bf16.mxu0 0
        %810 = vmatpush1.bf16.msra.mxu0 0
        %811 = vmatprep.subr.bf16.mxu0 0
        %812 = vmatpush1.bf16.msra.mxu0 0
        %813 = vmatprep.subr.bf16.mxu0 0
        %814 = vmatpush1.bf16.msra.mxu0 0
        %815 = vmatprep.subr.bf16.mxu0 0
        %816 = vmatpush1.bf16.msra.mxu0 0
        %817 = vmatprep.subr.bf16.mxu0 0
        %818 = vmatpush1.bf16.msra.mxu0 0
        %819 = vmatprep.subr.bf16.mxu0 0
        %820 = vmatpush1.bf16.msra.mxu0 0
        %821 = vmatprep.subr.bf16.mxu0 0
        %822 = vmatpush1.bf16.msra.mxu0 0
        %823 = vmatprep.subr.bf16.mxu0 0
        %824 = vmatpush1.bf16.msra.mxu0 0
        %825 = vmatprep.subr.bf16.mxu0 0
        %826 = vmatpush1.bf16.msra.mxu0 0
        %827 = vmatprep.subr.bf16.mxu0 0
        %828 = vmatpush1.bf16.msra.mxu0 0
        %829 = vmatprep.subr.bf16.mxu0 0
        %830 = vmatpush1.bf16.msra.mxu0 0
        %831 = vmatprep.subr.bf16.mxu0 0
        %832 = vmatpush1.bf16.msra.mxu0 0
        %833 = vmatprep.subr.bf16.mxu0 0
        %834 = vmatpush1.bf16.msra.mxu0 0
        %835 = vmatprep.subr.bf16.mxu0 0
        %836 = vmatpush1.bf16.msra.mxu0 0
        %837 = vmatprep.mubr.bf16.mxu0 0
        %838 = vmatmul.mubr.bf16.gmra.mrb[0].mxu0 %v677
        %v839 = vpop.f32.mrb[0].mxu0
        %v840 = vadd.f32 %v791, %v839
        %v841 = vpop.f32.mrb[0].mxu0
        %v842 = vpop.f32.mrb[0].mxu0
        %v843 = vpop.f32.mrb[0].mxu0
        %844 = vdwg.mxu0
        %v845 = vld [vmem:[%s558] sm:$0x1]
        %s846 = smul.u32 %s47, 8
        %v847 = vlaneseq
        %v848 = vshrl.u32 %v847, 7
        %v849 = vstv %s846
        %v850 = vadd.s32 %v849, %v848
        %v851 = vlaneseq
        %v852 = vand.u32 %v851, 127
        %vm853 = vcmp.le.s32.totalorder %v852, %v850
        %v854 = vsel %vm853, 0.0, -3.4028235e+38
        %v856 = vlaneseq
        %v857 = vshrl.u32 %v856, 7
        %v858 = vsub.s32 0, %v857
        %v859 = vrot.slane %v845, %v858
        %v861 = vadd.f32 %v859, %v854
        %v862 = vpack.c.bf16 %v714, %v714
        %v863 = vpack.c.bf16 %v777, %v777
        %v864 = vpack.c.bf16 %v840, %v840
        %vm865 = vcmask 64512
        %v867 = vsel %vm865, %v862, 0
        %v870 = vsel %vm865, %v863, 0
        %872 = vmatprep.subr.bf16.mxu0 0
        %873 = vmatpush1.bf16.xpose.msra.mxu0 %v870
        %874 = vmatprep.subr.bf16.mxu0 0
        %875 = vmatpush1.bf16.xpose.msra.mxu0 0
        %876 = vmatprep.subr.bf16.mxu0 0
        %877 = vmatpush1.bf16.xpose.msra.mxu0 0
        %878 = vmatprep.subr.bf16.mxu0 0
        %879 = vmatpush1.bf16.xpose.msra.mxu0 0
        %880 = vmatprep.subr.bf16.mxu0 0
        %881 = vmatpush1.bf16.xpose.msra.mxu0 0
        %882 = vmatprep.subr.bf16.mxu0 0
        %883 = vmatpush1.bf16.xpose.msra.mxu0 0
        %884 = vmatprep.subr.bf16.mxu0 0
        %885 = vmatpush1.bf16.xpose.msra.mxu0 0
        %886 = vmatprep.subr.bf16.mxu0 0
        %887 = vmatpush1.bf16.xpose.msra.mxu0 0
        %888 = vmatprep.subr.bf16.mxu0 0
        %889 = vmatpush1.bf16.xpose.msra.mxu0 0
        %890 = vmatprep.subr.bf16.mxu0 0
        %891 = vmatpush1.bf16.xpose.msra.mxu0 0
        %892 = vmatprep.subr.bf16.mxu0 0
        %893 = vmatpush1.bf16.xpose.msra.mxu0 0
        %894 = vmatprep.subr.bf16.mxu0 0
        %895 = vmatpush1.bf16.xpose.msra.mxu0 0
        %896 = vmatprep.subr.bf16.mxu0 0
        %897 = vmatpush1.bf16.xpose.msra.mxu0 0
        %898 = vmatprep.subr.bf16.mxu0 0
        %899 = vmatpush1.bf16.xpose.msra.mxu0 0
        %900 = vmatprep.subr.bf16.mxu0 0
        %901 = vmatpush1.bf16.xpose.msra.mxu0 0
        %902 = vmatprep.subr.bf16.mxu0 0
        %903 = vmatpush1.bf16.xpose.msra.mxu0 0
        %904 = vmatprep.mubr.bf16.mxu0 0
        %905 = vmatmul.mubr.bf16.gmra.mrb[0].mxu0 %v867
        %v906 = vpop.f32.mrb[0].mxu0
        %v907 = vadd.f32 0.0, %v906
        %v908 = vpop.f32.mrb[0].mxu0
        %v909 = vpop.f32.mrb[0].mxu0
        %v910 = vpop.f32.mrb[0].mxu0
        %911 = vdwg.mxu0
        %v912 = vmul.f32 %v907, 0.35355338
        %v913 = vadd.f32 %v912, %v861
        %v914 = vsel %vm865, %v913, -inf
        %915 = vmax.xlane.f32.xlu0 %v914
        %v916 = vpop.xlane.xlu0 %915
        %v917 = vsub.f32 %v913, %v916
        %v918 = vmul.f32 %v917, 1.442695
        %v919 = vpow.pop %v918
        %v920 = vsel %vm865, %v919, 0.0
        %921 = vadd.xlane.f32.xlu0 %v920
        %v922 = vpop.xlane.xlu0 %921
        %v923 = vrcp.pop %v922
        %v924 = vmul.f32 %v919, %v923
        %925 = vst.msk [vmem:[%s649] sm:$0xff] %vm865, %v924
        %v926 = vpack.c.bf16 %v924, %v924
        %v928 = vsel %vm865, %v926, 0
        %vm930 = vcmask 1043456
        %v932 = vsel %vm930, %v864, 0
        %934 = vmatprep.subr.bf16.mxu0 0
        %935 = vmatpush1.bf16.msra.mxu0 %v932
        %936 = vmatprep.subr.bf16.mxu0 0
        %937 = vmatpush1.bf16.msra.mxu0 0
        %938 = vmatprep.subr.bf16.mxu0 0
        %939 = vmatpush1.bf16.msra.mxu0 0
        %940 = vmatprep.subr.bf16.mxu0 0
        %941 = vmatpush1.bf16.msra.mxu0 0
        %942 = vmatprep.subr.bf16.mxu0 0
        %943 = vmatpush1.bf16.msra.mxu0 0
        %944 = vmatprep.subr.bf16.mxu0 0
        %945 = vmatpush1.bf16.msra.mxu0 0
        %946 = vmatprep.subr.bf16.mxu0 0
        %947 = vmatpush1.bf16.msra.mxu0 0
        %948 = vmatprep.subr.bf16.mxu0 0
        %949 = vmatpush1.bf16.msra.mxu0 0
        %950 = vmatprep.subr.bf16.mxu0 0
        %951 = vmatpush1.bf16.msra.mxu0 0
        %952 = vmatprep.subr.bf16.mxu0 0
        %953 = vmatpush1.bf16.msra.mxu0 0
        %954 = vmatprep.subr.bf16.mxu0 0
        %955 = vmatpush1.bf16.msra.mxu0 0
        %956 = vmatprep.subr.bf16.mxu0 0
        %957 = vmatpush1.bf16.msra.mxu0 0
        %958 = vmatprep.subr.bf16.mxu0 0
        %959 = vmatpush1.bf16.msra.mxu0 0
        %960 = vmatprep.subr.bf16.mxu0 0
        %961 = vmatpush1.bf16.msra.mxu0 0
        %962 = vmatprep.subr.bf16.mxu0 0
        %963 = vmatpush1.bf16.msra.mxu0 0
        %964 = vmatprep.subr.bf16.mxu0 0
        %965 = vmatpush1.bf16.msra.mxu0 0
        %966 = vmatprep.mubr.bf16.mxu0 0
        %967 = vmatmul.mubr.bf16.gmra.mrb[0].mxu0 %v928
        %v968 = vpop.f32.mrb[0].mxu0
        %v969 = vadd.f32 0.0, %v968
        %v970 = vpop.f32.mrb[0].mxu0
        %v971 = vpop.f32.mrb[0].mxu0
        %v972 = vpop.f32.mrb[0].mxu0
        %973 = vdwg.mxu0
        %975 = vrot.lane.b32.xlu0 %v862, 120
        %v976 = vpop.permute.xlu0 %975
        %978 = vrot.lane.b32.xlu0 %v863, 120
        %v979 = vpop.permute.xlu0 %978
        %v981 = vsel %vm865, %v976, 0
        %v984 = vsel %vm865, %v979, 0
        %986 = vmatprep.subr.bf16.mxu0 0
        %987 = vmatpush1.bf16.xpose.msra.mxu0 %v984
        %988 = vmatprep.subr.bf16.mxu0 0
        %989 = vmatpush1.bf16.xpose.msra.mxu0 0
        %990 = vmatprep.subr.bf16.mxu0 0
        %991 = vmatpush1.bf16.xpose.msra.mxu0 0
        %992 = vmatprep.subr.bf16.mxu0 0
        %993 = vmatpush1.bf16.xpose.msra.mxu0 0
        %994 = vmatprep.subr.bf16.mxu0 0
        %995 = vmatpush1.bf16.xpose.msra.mxu0 0
        %996 = vmatprep.subr.bf16.mxu0 0
        %997 = vmatpush1.bf16.xpose.msra.mxu0 0
        %998 = vmatprep.subr.bf16.mxu0 0
        %999 = vmatpush1.bf16.xpose.msra.mxu0 0
        %1000 = vmatprep.subr.bf16.mxu0 0
        %1001 = vmatpush1.bf16.xpose.msra.mxu0 0
        %1002 = vmatprep.subr.bf16.mxu0 0
        %1003 = vmatpush1.bf16.xpose.msra.mxu0 0
        %1004 = vmatprep.subr.bf16.mxu0 0
        %1005 = vmatpush1.bf16.xpose.msra.mxu0 0
        %1006 = vmatprep.subr.bf16.mxu0 0
        %1007 = vmatpush1.bf16.xpose.msra.mxu0 0
        %1008 = vmatprep.subr.bf16.mxu0 0
        %1009 = vmatpush1.bf16.xpose.msra.mxu0 0
        %1010 = vmatprep.subr.bf16.mxu0 0
        %1011 = vmatpush1.bf16.xpose.msra.mxu0 0
        %1012 = vmatprep.subr.bf16.mxu0 0
        %1013 = vmatpush1.bf16.xpose.msra.mxu0 0
        %1014 = vmatprep.subr.bf16.mxu0 0
        %1015 = vmatpush1.bf16.xpose.msra.mxu0 0
        %1016 = vmatprep.subr.bf16.mxu0 0
        %1017 = vmatpush1.bf16.xpose.msra.mxu0 0
        %1018 = vmatprep.mubr.bf16.mxu0 0
        %1019 = vmatmul.mubr.bf16.gmra.mrb[0].mxu0 %v981
        %v1020 = vpop.f32.mrb[0].mxu0
        %v1021 = vadd.f32 0.0, %v1020
        %v1022 = vpop.f32.mrb[0].mxu0
        %v1023 = vpop.f32.mrb[0].mxu0
        %v1024 = vpop.f32.mrb[0].mxu0
        %1025 = vdwg.mxu0
        %v1026 = vmul.f32 %v1021, 0.35355338
        %v1027 = vadd.f32 %v1026, %v861
        %v1028 = vsel %vm865, %v1027, -inf
        %1029 = vmax.xlane.f32.xlu0 %v1028
        %v1030 = vpop.xlane.xlu0 %1029
        %v1031 = vsub.f32 %v1027, %v1030
        %v1032 = vmul.f32 %v1031, 1.442695
        %v1033 = vpow.pop %v1032
        %v1034 = vsel %vm865, %v1033, 0.0
        %1035 = vadd.xlane.f32.xlu0 %v1034
        %v1036 = vpop.xlane.xlu0 %1035
        %v1037 = vrcp.pop %v1036
        %v1038 = vmul.f32 %v1033, %v1037
        %s1039 = scalar_lea.vmem %s649, 8 [#allocation23]
        %1040 = vst.msk [vmem:[%s1039] sm:$0xff] %vm865, %v1038
        %v1041 = vpack.c.bf16 %v1038, %v1038
        %1043 = vrot.lane.b32.xlu0 %v864, 120
        %v1044 = vpop.permute.xlu0 %1043
        %v1046 = vsel %vm865, %v1041, 0
        %v1049 = vsel %vm930, %v1044, 0
        %1051 = vmatprep.subr.bf16.mxu0 0
        %1052 = vmatpush1.bf16.msra.mxu0 %v1049
        %1053 = vmatprep.subr.bf16.mxu0 0
        %1054 = vmatpush1.bf16.msra.mxu0 0
        %1055 = vmatprep.subr.bf16.mxu0 0
        %1056 = vmatpush1.bf16.msra.mxu0 0
        %1057 = vmatprep.subr.bf16.mxu0 0
        %1058 = vmatpush1.bf16.msra.mxu0 0
        %1059 = vmatprep.subr.bf16.mxu0 0
        %1060 = vmatpush1.bf16.msra.mxu0 0
        %1061 = vmatprep.subr.bf16.mxu0 0
        %1062 = vmatpush1.bf16.msra.mxu0 0
        %1063 = vmatprep.subr.bf16.mxu0 0
        %1064 = vmatpush1.bf16.msra.mxu0 0
        %1065 = vmatprep.subr.bf16.mxu0 0
        %1066 = vmatpush1.bf16.msra.mxu0 0
        %1067 = vmatprep.subr.bf16.mxu0 0
        %1068 = vmatpush1.bf16.msra.mxu0 0
        %1069 = vmatprep.subr.bf16.mxu0 0
        %1070 = vmatpush1.bf16.msra.mxu0 0
        %1071 = vmatprep.subr.bf16.mxu0 0
        %1072 = vmatpush1.bf16.msra.mxu0 0
        %1073 = vmatprep.subr.bf16.mxu0 0
        %1074 = vmatpush1.bf16.msra.mxu0 0
        %1075 = vmatprep.subr.bf16.mxu0 0
        %1076 = vmatpush1.bf16.msra.mxu0 0
        %1077 = vmatprep.subr.bf16.mxu0 0
        %1078 = vmatpush1.bf16.msra.mxu0 0
        %1079 = vmatprep.subr.bf16.mxu0 0
        %1080 = vmatpush1.bf16.msra.mxu0 0
        %1081 = vmatprep.subr.bf16.mxu0 0
        %1082 = vmatpush1.bf16.msra.mxu0 0
        %1083 = vmatprep.mubr.bf16.mxu0 0
        %1084 = vmatmul.mubr.bf16.gmra.mrb[0].mxu0 %v1046
        %v1085 = vpop.f32.mrb[0].mxu0
        %v1086 = vadd.f32 0.0, %v1085
        %v1087 = vpop.f32.mrb[0].mxu0
        %v1088 = vpop.f32.mrb[0].mxu0
        %v1089 = vpop.f32.mrb[0].mxu0
        %1090 = vdwg.mxu0
        %1091 = vrot.lane.b32.xlu0 %v862, 112
        %v1092 = vpop.permute.xlu0 %1091
        %1093 = vrot.lane.b32.xlu0 %v863, 112
        %v1094 = vpop.permute.xlu0 %1093
        %v1096 = vsel %vm865, %v1092, 0
        %v1099 = vsel %vm865, %v1094, 0
        %1101 = vmatprep.subr.bf16.mxu0 0
        %1102 = vmatpush1.bf16.xpose.msra.mxu0 %v1099
        %1103 = vmatprep.subr.bf16.mxu0 0
        %1104 = vmatpush1.bf16.xpose.msra.mxu0 0
        %1105 = vmatprep.subr.bf16.mxu0 0
        %1106 = vmatpush1.bf16.xpose.msra.mxu0 0
        %1107 = vmatprep.subr.bf16.mxu0 0
        %1108 = vmatpush1.bf16.xpose.msra.mxu0 0
        %1109 = vmatprep.subr.bf16.mxu0 0
        %1110 = vmatpush1.bf16.xpose.msra.mxu0 0
        %1111 = vmatprep.subr.bf16.mxu0 0
        %1112 = vmatpush1.bf16.xpose.msra.mxu0 0
        %1113 = vmatprep.subr.bf16.mxu0 0
        %1114 = vmatpush1.bf16.xpose.msra.mxu0 0
        %1115 = vmatprep.subr.bf16.mxu0 0
        %1116 = vmatpush1.bf16.xpose.msra.mxu0 0
        %1117 = vmatprep.subr.bf16.mxu0 0
        %1118 = vmatpush1.bf16.xpose.msra.mxu0 0
        %1119 = vmatprep.subr.bf16.mxu0 0
        %1120 = vmatpush1.bf16.xpose.msra.mxu0 0
        %1121 = vmatprep.subr.bf16.mxu0 0
        %1122 = vmatpush1.bf16.xpose.msra.mxu0 0
        %1123 = vmatprep.subr.bf16.mxu0 0
        %1124 = vmatpush1.bf16.xpose.msra.mxu0 0
        %1125 = vmatprep.subr.bf16.mxu0 0
        %1126 = vmatpush1.bf16.xpose.msra.mxu0 0
        %1127 = vmatprep.subr.bf16.mxu0 0
        %1128 = vmatpush1.bf16.xpose.msra.mxu0 0
        %1129 = vmatprep.subr.bf16.mxu0 0
        %1130 = vmatpush1.bf16.xpose.msra.mxu0 0
        %1131 = vmatprep.subr.bf16.mxu0 0
        %1132 = vmatpush1.bf16.xpose.msra.mxu0 0
        %1133 = vmatprep.mubr.bf16.mxu0 0
        %1134 = vmatmul.mubr.bf16.gmra.mrb[0].mxu0 %v1096
        %v1135 = vpop.f32.mrb[0].mxu0
        %v1136 = vadd.f32 0.0, %v1135
        %v1137 = vpop.f32.mrb[0].mxu0
        %v1138 = vpop.f32.mrb[0].mxu0
        %v1139 = vpop.f32.mrb[0].mxu0
        %1140 = vdwg.mxu0
        %v1141 = vmul.f32 %v1136, 0.35355338
        %v1142 = vadd.f32 %v1141, %v861
        %v1143 = vsel %vm865, %v1142, -inf
        %1144 = vmax.xlane.f32.xlu0 %v1143
        %v1145 = vpop.xlane.xlu0 %1144
        %v1146 = vsub.f32 %v1142, %v1145
        %v1147 = vmul.f32 %v1146, 1.442695
        %v1148 = vpow.pop %v1147
        %v1149 = vsel %vm865, %v1148, 0.0
        %1150 = vadd.xlane.f32.xlu0 %v1149
        %v1151 = vpop.xlane.xlu0 %1150
        %v1152 = vrcp.pop %v1151
        %v1153 = vmul.f32 %v1148, %v1152
        %s1154 = scalar_lea.vmem %s649, 16 [#allocation23]
        %1155 = vst.msk [vmem:[%s1154] sm:$0xff] %vm865, %v1153
        %v1156 = vpack.c.bf16 %v1153, %v1153
        %1157 = vrot.lane.b32.xlu0 %v864, 112
        %v1158 = vpop.permute.xlu0 %1157
        %v1160 = vsel %vm865, %v1156, 0
        %v1163 = vsel %vm930, %v1158, 0
        %1165 = vmatprep.subr.bf16.mxu0 0
        %1166 = vmatpush1.bf16.msra.mxu0 %v1163
        %1167 = vmatprep.subr.bf16.mxu0 0
        %1168 = vmatpush1.bf16.msra.mxu0 0
        %1169 = vmatprep.subr.bf16.mxu0 0
        %1170 = vmatpush1.bf16.msra.mxu0 0
        %1171 = vmatprep.subr.bf16.mxu0 0
        %1172 = vmatpush1.bf16.msra.mxu0 0
        %1173 = vmatprep.subr.bf16.mxu0 0
        %1174 = vmatpush1.bf16.msra.mxu0 0
        %1175 = vmatprep.subr.bf16.mxu0 0
        %1176 = vmatpush1.bf16.msra.mxu0 0
        %1177 = vmatprep.subr.bf16.mxu0 0
        %1178 = vmatpush1.bf16.msra.mxu0 0
        %1179 = vmatprep.subr.bf16.mxu0 0
        %1180 = vmatpush1.bf16.msra.mxu0 0
        %1181 = vmatprep.subr.bf16.mxu0 0
        %1182 = vmatpush1.bf16.msra.mxu0 0
        %1183 = vmatprep.subr.bf16.mxu0 0
        %1184 = vmatpush1.bf16.msra.mxu0 0
        %1185 = vmatprep.subr.bf16.mxu0 0
        %1186 = vmatpush1.bf16.msra.mxu0 0
        %1187 = vmatprep.subr.bf16.mxu0 0
        %1188 = vmatpush1.bf16.msra.mxu0 0
        %1189 = vmatprep.subr.bf16.mxu0 0
        %1190 = vmatpush1.bf16.msra.mxu0 0
        %1191 = vmatprep.subr.bf16.mxu0 0
        %1192 = vmatpush1.bf16.msra.mxu0 0
        %1193 = vmatprep.subr.bf16.mxu0 0
        %1194 = vmatpush1.bf16.msra.mxu0 0
        %1195 = vmatprep.subr.bf16.mxu0 0
        %1196 = vmatpush1.bf16.msra.mxu0 0
        %1197 = vmatprep.mubr.bf16.mxu0 0
        %1198 = vmatmul.mubr.bf16.gmra.mrb[0].mxu0 %v1160
        %v1199 = vpop.f32.mrb[0].mxu0
        %v1200 = vadd.f32 0.0, %v1199
        %v1201 = vpop.f32.mrb[0].mxu0
        %v1202 = vpop.f32.mrb[0].mxu0
        %v1203 = vpop.f32.mrb[0].mxu0
        %1204 = vdwg.mxu0
        %1205 = vrot.lane.b32.xlu0 %v862, 104
        %v1206 = vpop.permute.xlu0 %1205
        %1207 = vrot.lane.b32.xlu0 %v863, 104
        %v1208 = vpop.permute.xlu0 %1207
        %v1210 = vsel %vm865, %v1206, 0
        %v1213 = vsel %vm865, %v1208, 0
        %1215 = vmatprep.subr.bf16.mxu0 0
        %1216 = vmatpush1.bf16.xpose.msra.mxu0 %v1213
        %1217 = vmatprep.subr.bf16.mxu0 0
        %1218 = vmatpush1.bf16.xpose.msra.mxu0 0
        %1219 = vmatprep.subr.bf16.mxu0 0
        %1220 = vmatpush1.bf16.xpose.msra.mxu0 0
        %1221 = vmatprep.subr.bf16.mxu0 0
        %1222 = vmatpush1.bf16.xpose.msra.mxu0 0
        %1223 = vmatprep.subr.bf16.mxu0 0
        %1224 = vmatpush1.bf16.xpose.msra.mxu0 0
        %1225 = vmatprep.subr.bf16.mxu0 0
        %1226 = vmatpush1.bf16.xpose.msra.mxu0 0
        %1227 = vmatprep.subr.bf16.mxu0 0
        %1228 = vmatpush1.bf16.xpose.msra.mxu0 0
        %1229 = vmatprep.subr.bf16.mxu0 0
        %1230 = vmatpush1.bf16.xpose.msra.mxu0 0
        %1231 = vmatprep.subr.bf16.mxu0 0
        %1232 = vmatpush1.bf16.xpose.msra.mxu0 0
        %1233 = vmatprep.subr.bf16.mxu0 0
        %1234 = vmatpush1.bf16.xpose.msra.mxu0 0
        %1235 = vmatprep.subr.bf16.mxu0 0
        %1236 = vmatpush1.bf16.xpose.msra.mxu0 0
        %1237 = vmatprep.subr.bf16.mxu0 0
        %1238 = vmatpush1.bf16.xpose.msra.mxu0 0
        %1239 = vmatprep.subr.bf16.mxu0 0
        %1240 = vmatpush1.bf16.xpose.msra.mxu0 0
        %1241 = vmatprep.subr.bf16.mxu0 0
        %1242 = vmatpush1.bf16.xpose.msra.mxu0 0
        %1243 = vmatprep.subr.bf16.mxu0 0
        %1244 = vmatpush1.bf16.xpose.msra.mxu0 0
        %1245 = vmatprep.subr.bf16.mxu0 0
        %1246 = vmatpush1.bf16.xpose.msra.mxu0 0
        %1247 = vmatprep.mubr.bf16.mxu0 0
        %1248 = vmatmul.mubr.bf16.gmra.mrb[0].mxu0 %v1210
        %v1249 = vpop.f32.mrb[0].mxu0
        %v1250 = vadd.f32 0.0, %v1249
        %v1251 = vpop.f32.mrb[0].mxu0
        %v1252 = vpop.f32.mrb[0].mxu0
        %v1253 = vpop.f32.mrb[0].mxu0
        %1254 = vdwg.mxu0
        %v1255 = vmul.f32 %v1250, 0.35355338
        %v1256 = vadd.f32 %v1255, %v861
        %v1257 = vsel %vm865, %v1256, -inf
        %1258 = vmax.xlane.f32.xlu0 %v1257
        %v1259 = vpop.xlane.xlu0 %1258
        %v1260 = vsub.f32 %v1256, %v1259
        %v1261 = vmul.f32 %v1260, 1.442695
        %v1262 = vpow.pop %v1261
        %v1263 = vsel %vm865, %v1262, 0.0
        %1264 = vadd.xlane.f32.xlu0 %v1263
        %v1265 = vpop.xlane.xlu0 %1264
        %v1266 = vrcp.pop %v1265
        %v1267 = vmul.f32 %v1262, %v1266
        %s1268 = scalar_lea.vmem %s649, 24 [#allocation23]
        %1269 = vst.msk [vmem:[%s1268] sm:$0xff] %vm865, %v1267
        %v1270 = vpack.c.bf16 %v1267, %v1267
        %1271 = vrot.lane.b32.xlu0 %v864, 104
        %v1272 = vpop.permute.xlu0 %1271
        %v1274 = vsel %vm865, %v1270, 0
        %v1277 = vsel %vm930, %v1272, 0
        %1279 = vmatprep.subr.bf16.mxu0 0
        %1280 = vmatpush1.bf16.msra.mxu0 %v1277
        %1281 = vmatprep.subr.bf16.mxu0 0
        %1282 = vmatpush1.bf16.msra.mxu0 0
        %1283 = vmatprep.subr.bf16.mxu0 0
        %1284 = vmatpush1.bf16.msra.mxu0 0
        %1285 = vmatprep.subr.bf16.mxu0 0
        %1286 = vmatpush1.bf16.msra.mxu0 0
        %1287 = vmatprep.subr.bf16.mxu0 0
        %1288 = vmatpush1.bf16.msra.mxu0 0
        %1289 = vmatprep.subr.bf16.mxu0 0
        %1290 = vmatpush1.bf16.msra.mxu0 0
        %1291 = vmatprep.subr.bf16.mxu0 0
        %1292 = vmatpush1.bf16.msra.mxu0 0
        %1293 = vmatprep.subr.bf16.mxu0 0
        %1294 = vmatpush1.bf16.msra.mxu0 0
        %1295 = vmatprep.subr.bf16.mxu0 0
        %1296 = vmatpush1.bf16.msra.mxu0 0
        %1297 = vmatprep.subr.bf16.mxu0 0
        %1298 = vmatpush1.bf16.msra.mxu0 0
        %1299 = vmatprep.subr.bf16.mxu0 0
        %1300 = vmatpush1.bf16.msra.mxu0 0
        %1301 = vmatprep.subr.bf16.mxu0 0
        %1302 = vmatpush1.bf16.msra.mxu0 0
        %1303 = vmatprep.subr.bf16.mxu0 0
        %1304 = vmatpush1.bf16.msra.mxu0 0
        %1305 = vmatprep.subr.bf16.mxu0 0
        %1306 = vmatpush1.bf16.msra.mxu0 0
        %1307 = vmatprep.subr.bf16.mxu0 0
        %1308 = vmatpush1.bf16.msra.mxu0 0
        %1309 = vmatprep.subr.bf16.mxu0 0
        %1310 = vmatpush1.bf16.msra.mxu0 0
        %1311 = vmatprep.mubr.bf16.mxu0 0
        %1312 = vmatmul.mubr.bf16.gmra.mrb[0].mxu0 %v1274
        %v1313 = vpop.f32.mrb[0].mxu0
        %v1314 = vadd.f32 0.0, %v1313
        %v1315 = vpop.f32.mrb[0].mxu0
        %v1316 = vpop.f32.mrb[0].mxu0
        %v1317 = vpop.f32.mrb[0].mxu0
        %1318 = vdwg.mxu0
        %1320 = vrot.lane.b32.xlu0 %v1086, 8
        %v1321 = vpop.permute.xlu0 %1320
        %1324 = vrot.lane.b32.xlu0 %v1200, 16
        %v1325 = vpop.permute.xlu0 %1324
        %1328 = vrot.lane.b32.xlu0 %v1314, 24
        %v1329 = vpop.permute.xlu0 %1328
        %v1331 = vsel %vm865, %v969, %v1321
        %vm1332 = vcmask 130048
        %v1333 = vsel %vm1332, %v1331, %v1325
        %vm1334 = vcmask 195584
        %v1335 = vsel %vm1334, %v1333, %v1329
        %v1336 = vpack.c.bf16 %v1335, %v1335
        %v1337 = vld [vmem:[#allocation11] sm:$0xf]
        %v1338 = vld [vmem:[#allocation11 + $0x4] sm:$0xf]
        %v1339 = vld [vmem:[#allocation11 + $0x8] sm:$0xf]
        %v1340 = vld [vmem:[#allocation11 + $0xc] sm:$0xf]
        %v1341 = vld [vmem:[#allocation17] sm:$0x1]
        %v1343 = vlaneseq
        %v1344 = vshrl.u32 %v1343, 7
        %v1345 = vsub.s32 0, %v1344
        %v1346 = vrot.slane %v1341, %v1345
        %v1352 = vunpack.c.l.b16 %v1337
        %v1353 = vunpack.c.l.b16 %v1338
        %v1354 = vunpack.c.l.b16 %v1339
        %v1355 = vunpack.c.l.b16 %v1340
        %v1356 = vpack.c.b16 %v1353, %v1352
        %v1357 = vpack.c.b16 %v1355, %v1354
        %v1361 = vsel %vm675, %v1336, 0
        %1363 = vmatprep.subr.bf16.mxu0 0
        %1364 = vmatpush1.bf16.msra.mxu0 %v1356
        %1365 = vmatprep.subr.bf16.mxu0 0
        %1366 = vmatpush1.bf16.msra.mxu0 %v1357
        %1367 = vmatprep.subr.bf16.mxu0 0
        %1368 = vmatpush1.bf16.msra.mxu0 0
        %1369 = vmatprep.subr.bf16.mxu0 0
        %1370 = vmatpush1.bf16.msra.mxu0 0
        %1371 = vmatprep.subr.bf16.mxu0 0
        %1372 = vmatpush1.bf16.msra.mxu0 0
        %1373 = vmatprep.subr.bf16.mxu0 0
        %1374 = vmatpush1.bf16.msra.mxu0 0
        %1375 = vmatprep.subr.bf16.mxu0 0
        %1376 = vmatpush1.bf16.msra.mxu0 0
        %1377 = vmatprep.subr.bf16.mxu0 0
        %1378 = vmatpush1.bf16.msra.mxu0 0
        %1379 = vmatprep.subr.bf16.mxu0 0
        %1380 = vmatpush1.bf16.msra.mxu0 0
        %1381 = vmatprep.subr.bf16.mxu0 0
        %1382 = vmatpush1.bf16.msra.mxu0 0
        %1383 = vmatprep.subr.bf16.mxu0 0
        %1384 = vmatpush1.bf16.msra.mxu0 0
        %1385 = vmatprep.subr.bf16.mxu0 0
        %1386 = vmatpush1.bf16.msra.mxu0 0
        %1387 = vmatprep.subr.bf16.mxu0 0
        %1388 = vmatpush1.bf16.msra.mxu0 0
        %1389 = vmatprep.subr.bf16.mxu0 0
        %1390 = vmatpush1.bf16.msra.mxu0 0
        %1391 = vmatprep.subr.bf16.mxu0 0
        %1392 = vmatpush1.bf16.msra.mxu0 0
        %1393 = vmatprep.subr.bf16.mxu0 0
        %1394 = vmatpush1.bf16.msra.mxu0 0
        %1395 = vmatprep.mubr.bf16.mxu0 0
        %1396 = vmatmul.mubr.bf16.gmra.mrb[0].mxu0 %v1361
        %v1397 = vpop.f32.mrb[0].mxu0
        %v1398 = vadd.f32 %v1346, %v1397
        %v1399 = vpop.f32.mrb[0].mxu0
        %v1400 = vpop.f32.mrb[0].mxu0
        %v1401 = vpop.f32.mrb[0].mxu0
        %1402 = vdwg.mxu0
        %v1403 = vunpack.c.l.bf16 %v651
        %v1404 = vadd.f32 %v1398, %v1403
        %v1405 = vsel %vm675, %v1404, 0.0
        %1406 = vadd.xlane.f32.xlu0 %v1405
        %v1407 = vpop.xlane.xlu0 %1406
        %v1408 = vrcp.pop 32.0
        %v1409 = vmul.f32 %v1407, %v1408
        %v1410 = vsub.f32 %v1404, %v1409
        %v1411 = vmul.f32 %v1410, %v1410
        %v1412 = vsel %vm675, %v1411, 0.0
        %1413 = vadd.xlane.f32.xlu0 %v1412
        %v1414 = vpop.xlane.xlu0 %1413
        %v1415 = vmul.f32 %v1414, %v1408
        %v1416 = vadd.f32 %v1415, 1e-05
        %v1417 = vrsqrt.pop %v1416
        %v1418 = vmul.f32 %v1410, %v1417
        %v1419 = vld [vmem:[#allocation19] sm:$0x1]
        %v1421 = vlaneseq
        %v1422 = vshrl.u32 %v1421, 7
        %v1423 = vsub.s32 0, %v1422
        %v1424 = vrot.slane %v1419, %v1423
        %v1426 = vmul.f32 %v1418, %v1424
        %v1427 = vld [vmem:[#allocation20] sm:$0x1]
        %v1429 = vlaneseq
        %v1430 = vshrl.u32 %v1429, 7
        %v1431 = vsub.s32 0, %v1430
        %v1432 = vrot.slane %v1427, %v1431
        %v1434 = vadd.f32 %v1426, %v1432
        %v1435 = vpack.c.bf16 %v1434, %v1434
        %vm1436 = vcmask 257024
        %1437 = vst.msk [vmem:[%s642] sm:$0xf] %vm1436, %v1435
        %s1438 = sand.u32 %s326, 1
        %s1439 = scalar_lea.sflag [#allocation4], %s1438
        %s1440 = sand.u32 %s326, 1
        %s1441 = smul.addr %s1440, 4
        %s1442 = scalar_lea.vmem [#allocation22], %s1441
        %s1443 = sand.u32 %s354, 1
        %s1444 = scalar_lea.sflag [#allocation24], %s1443
        %s1445 = sand.u32 %s354, 1
        %s1446 = smul.addr %s1445, 32
        %s1447 = scalar_lea.vmem [#allocation23], %s1446
        // Predicated region
        $region117: #{transformer_forward.14} parent=67 // pred_check
          %p1448 = pneg %p336
        $region118: #{transformer_forward.14} parent=67 // pred_check_branch
          %1450 = sbr.rel (%p1448) target = $region120
        $region119: #{transformer_forward.14} parent=67 // pred_region
          %s1452 = ssub.s32 64, 64
          %1453 = vsyncadd %s1439, %s1452
          %s1454 = sadd.s32 %s47, %s46
          %s1455 = smul.addr %s1454, 64
          %s1456 = scalar_lea.hbm %s12, %s1455
          %s1458 = sshll.u32 %s1442, 4
          %s1459 = int_to_ptr.vmem [resolvable:$true] %s1458
          %1461 = dma.vmem_to_hbm [thread:$0]  %s1459, 64, %s1456, %s1439
        $region120: #{transformer_forward.14} parent=67 // pred_fallthru
          _
        // Predicated region
        $region121: #{transformer_forward.14} parent=67 // pred_check
          %p1462 = pneg %p364
        $region122: #{transformer_forward.14} parent=67 // pred_check_branch
          %1464 = sbr.rel (%p1462) target = $region124
        $region123: #{transformer_forward.14} parent=67 // pred_region
          %s1466 = ssub.s32 512, 512
          %1467 = vsyncadd %s1444, %s1466
          %s1468 = smul.addr %s46, 4
          %s1469 = sadd.s32 %s47, %s1468
          %s1470 = smul.addr %s1469, 128
          %s1471 = scalar_lea.hbm %s13, %s1470
          %s1472 = sshll.u32 %s1447, 4
          %s1473 = int_to_ptr.vmem [resolvable:$true] %s1472
          %1478 = dma.vmem_to_hbm [thread:$0]  %s1473, 512, %s1471, %s1444, 128, 128, 8
        $region124: #{transformer_forward.14} parent=67 // pred_fallthru
          _
      $region68: #{transformer_forward.14} parent=5 // pred_fallthru
        _
      %p1479 = scmp.le.s32.totalorder 2, %s37
      // Predicated region
      $region125: #{transformer_forward.14} parent=5 // pred_check
        %p1480 = pneg %p1479
      $region126: #{transformer_forward.14} parent=5 // pred_check_branch
        %1482 = sbr.rel (%p1480) target = $region128
      $region127: #{transformer_forward.14} parent=5 // pred_region
        %s1483 = ssub.s32 %s37, 2
        // Predicated region
        $region129: #{transformer_forward.14} parent=127 // pred_check
          %p1484 = pneg %p342
        $region130: #{transformer_forward.14} parent=127 // pred_check_branch
          %1486 = sbr.rel (%p1484) target = $region132
        $region131: #{transformer_forward.14} parent=127 // pred_region
          %s1487 = sand.u32 %s327, 1
          %s1488 = scalar_lea.sflag [#allocation4], %s1487
          %s1489 = sand.u32 %s327, 1
          %s1490 = smul.addr %s1489, 4
          %s1491 = scalar_lea.vmem [#allocation22], %s1490
          %1492 = dma.done %s1488, 64
        $region132: #{transformer_forward.14} parent=127 // pred_fallthru
          _
        // Predicated region
        $region133: #{transformer_forward.14} parent=127 // pred_check
          %p1493 = pneg %p370
        $region134: #{transformer_forward.14} parent=127 // pred_check_branch
          %1495 = sbr.rel (%p1493) target = $region136
        $region135: #{transformer_forward.14} parent=127 // pred_region
          %s1496 = sand.u32 %s355, 1
          %s1497 = scalar_lea.sflag [#allocation24], %s1496
          %s1498 = sand.u32 %s355, 1
          %s1499 = smul.addr %s1498, 32
          %s1500 = scalar_lea.vmem [#allocation23], %s1499
          %1501 = dma.done %s1497, 512
        $region136: #{transformer_forward.14} parent=127 // pred_fallthru
          _
      $region128: #{transformer_forward.14} parent=5 // pred_fallthru
        _
    $region6: #{transformer_forward.14} parent=1 // loop_footer
      %s41 = sadd.s32 1, %s37
    $region7: #{transformer_forward.14} parent=1 // loop_footer_branch
      %36 = sbr.rel target = $region3
    $region8: #{transformer_forward.14} parent=1 // loop_exit
      _
    %1502 = vsyncpa [#allocation3], 1
    %s1503 = scalar_lea.sflag [#allocation3], 1
    %1504 = vsyncpa %s1503, 1
    %1505 = vsyncpa [#allocation6], 1
    %s1506 = scalar_lea.sflag [#allocation6], 1
    %1507 = vsyncpa %s1506, 1
    %1508 = vsyncpa [#allocation9], 1
    %1509 = vsyncpa [#allocation12], 1
    %1510 = vsyncpa [#allocation15], 1
    %1511 = vsyncpa [#allocation18], 1
    %1512 = vsyncpa [#allocation21], 1
    %1513 = vsyncpa [#allocation4], 1
    %s1514 = scalar_lea.sflag [#allocation4], 1
    %1515 = vsyncpa %s1514, 1
    %1516 = vsyncpa [#allocation24], 1
    %s1517 = scalar_lea.sflag [#allocation24], 1
    %1518 = vsyncpa %s1517, 1

// kernel: transformer_forward.16
$region0: #{transformer_forward.16}
  #allocation0 [shape = 'u32[]', space=smem, size = 0x4, offset = 0x4, fixed_abs, tag = 'smem constant byte address 0x4 - core index']
  #allocation1 [shape = 'u32[144,128]{1,0:T(1,128)}', space=vmem, size = 0x12000, scoped, tag = 'internal scratch']
  %s0 = inlined_call_operand.hbm [shape: bf16[2,8,32], index: 0, kind: input, shape index: {}]
  %s1 = inlined_call_operand.hbm [shape: bf16[32,128], index: 1, kind: input, shape index: {}]
  %s2 = inlined_call_operand.hbm [shape: f32[1,128], index: 2, kind: input, shape index: {}]
  %s3 = inlined_call_operand.hbm [shape: bf16[128,32], index: 3, kind: input, shape index: {}]
  %s4 = inlined_call_operand.hbm [shape: f32[1,32], index: 4, kind: input, shape index: {}]
  %s5 = inlined_call_operand.hbm [shape: f32[1,32], index: 5, kind: input, shape index: {}]
  %s6 = inlined_call_operand.hbm [shape: f32[1,32], index: 6, kind: input, shape index: {}]
  %s7 = inlined_call_operand.hbm [shape: bf16[2,8,32], index: 7, kind: output, shape index: {}]
  %s8 = sld [smem:[#allocation0]]
  $region89: #{transformer_forward.16} parent=0
    _
  %s10 = ssub.s32 1, %s8
  %s11 = scalar_select 0, %s10, %s8
  $region1: #{transformer_forward.16} parent=0
    #allocation2 [shape = 'u8[4096]{0}', space=vmem, size = 0x1000, scoped, tag = 'input window, operand 0']
    #allocation3 [shape = 's32[2]{0}', space=sflag, size = 0x8, scoped, tag = 'scoped memory for transformer_forward.16']
    #allocation4 [shape = 's32[2]{0}', space=sflag, size = 0x8, scoped, tag = 'scoped memory for transformer_forward.16']
    #allocation5 [shape = 'u8[8192]{0}', space=vmem, size = 0x2000, scoped, tag = 'input window, operand 1, single buffered']
    #allocation6 [shape = 's32[1]{0}', space=sflag, size = 0x4, scoped, tag = 'scoped memory for transformer_forward.16']
    #allocation7 [shape = 'u8[512]{0}', space=vmem, size = 0x400, scoped, tag = 'input window, operand 2, single buffered']
    #allocation8 [shape = 'u8[32768]{0}', space=vmem, size = 0x8000, scoped, tag = 'input window, operand 3, single buffered']
    #allocation9 [shape = 's32[1]{0}', space=sflag, size = 0x4, scoped, tag = 'scoped memory for transformer_forward.16']
    #allocation10 [shape = 'u8[512]{0}', space=vmem, size = 0x400, scoped, tag = 'input window, operand 4, single buffered']
    #allocation11 [shape = 'u8[512]{0}', space=vmem, size = 0x400, scoped, tag = 'input window, operand 5, single buffered']
    #allocation12 [shape = 's32[1]{0}', space=sflag, size = 0x4, scoped, tag = 'scoped memory for transformer_forward.16']
    #allocation13 [shape = 'u8[512]{0}', space=vmem, size = 0x400, scoped, tag = 'input window, operand 6, single buffered']
    #allocation14 [shape = 'u8[4096]{0}', space=vmem, size = 0x1000, scoped, tag = 'output window, operand 0']
    %12 = vsyncpa [#allocation3], 0
    %s13 = scalar_lea.sflag [#allocation3], 1
    %14 = vsyncpa %s13, 0
    %15 = vsyncpa [#allocation6], 0
    %16 = vsyncpa [#allocation9], 0
    %17 = vsyncpa [#allocation12], 0
    %18 = vsyncpa [#allocation4], 0
    %s19 = scalar_lea.sflag [#allocation4], 1
    %20 = vsyncpa %s19, 0
    loop: start=0, step=1, limit=4
    $region2: #{transformer_forward.16} parent=1 // loop_pre_header
      _
    $region3: #{transformer_forward.16} parent=1 // loop_header
      %s22 = sphi 0, %s26
      %p23 = scmp.ge.s32.totalorder %s22, 4
      %s29 = sphi 0, %s41
      %s30 = sphi 0, %s37
      %s31 = sphi 0, %s29
      %s32 = sphi 0, %s30
      %s33 = sphi 0, %s31
      %s34 = sphi 0, %s32
      %s46 = sphi 0, %s48
      %s49 = sphi 0, %s46
      %s50 = sphi 0, %s49
      %s66 = sphi 0, %s50
      %s70 = sphi 0, %s70
      %s72 = sphi 0, %s70
      %s73 = sphi 0, %s72
      %s87 = sphi 0, %s73
      %s91 = sphi 0, %s91
      %s93 = sphi 0, %s91
      %s94 = sphi 0, %s93
      %s108 = sphi 0, %s94
      %s112 = sphi 0, %s112
      %s114 = sphi 0, %s112
      %s115 = sphi 0, %s114
      %s129 = sphi 0, %s115
      %s133 = sphi 0, %s133
      %s135 = sphi 0, %s133
      %s136 = sphi 0, %s135
      %s150 = sphi 0, %s136
      %s154 = sphi 0, %s154
      %s156 = sphi 0, %s154
      %s157 = sphi 0, %s156
      %s171 = sphi 0, %s157
      %s175 = sphi 0, %s175
      %s177 = sphi 0, %s175
      %s178 = sphi 0, %s177
      %s192 = sphi 0, %s178
      %s200 = sphi 0, %s202
      %s203 = sphi 0, %s200
      %s204 = sphi 0, %s203
      %s220 = sphi 0, %s204
    $region4: #{transformer_forward.16} parent=1 // loop_header_branch
      %25 = sbr.rel (%p23) target = $region8
    $region5: #{transformer_forward.16} parent=1 // loop_body
      %s27 = ssub.s32 %s22, 1
      %s28 = ssub.s32 %s22, 2
      %s35 = sadd.s32 1, %s30
      %p36 = scmp.ge.s32.totalorder %s35, 1
      %s37 = scalar_select %p36, 0, %s35
      %s38 = sadd.s32 1, %s29
      %s39 = scalar_select %p36, %s38, %s29
      %p40 = scmp.ge.s32.totalorder %s39, 2
      %s41 = scalar_select %p40, 0, %s39
      %s42 = ssub.s32 %s29, %s41
      %s43 = ssub.s32 %s30, %s37
      %s44 = sor.u32 %s42, %s43
      %p45 = scmp.eq.s32.totalorder %s44, 0
      %s47 = sadd.s32 %s46, 1
      %s48 = scalar_select %p45, %s46, %s47
      %p51 = pneg %p45
      %p52 = scmp.eq.s32.totalorder %s22, 1
      %p53 = por %p51, %p52
      %p54 = scmp.ne.s32.totalorder %s46, %s49
      %p55 = scmp.eq.s32.totalorder %s22, 0
      %p56 = por %p54, %p55
      %p57 = scmp.ne.s32.totalorder %s46, %s49
      %p58 = scmp.eq.s32.totalorder %s27, 1
      %p59 = por %p57, %p58
      %p60 = scmp.ne.s32.totalorder %s49, %s50
      %p61 = scmp.eq.s32.totalorder %s27, 0
      %p62 = por %p60, %p61
      %p63 = scmp.ne.s32.totalorder %s49, %s50
      %p64 = scmp.eq.s32.totalorder %s28, 1
      %p65 = por %p63, %p64
      %p67 = scmp.ne.s32.totalorder %s50, %s66
      %p68 = scmp.eq.s32.totalorder %s28, 0
      %p69 = por %p67, %p68
      %s71 = sadd.s32 %s70, 1
      %p74 = scmp.eq.s32.totalorder %s22, 1
      %p75 = scmp.ne.s32.totalorder %s70, %s72
      %p76 = scmp.eq.s32.totalorder %s22, 0
      %p77 = por %p75, %p76
      %p78 = scmp.ne.s32.totalorder %s70, %s72
      %p79 = scmp.eq.s32.totalorder %s27, 1
      %p80 = por %p78, %p79
      %p81 = scmp.ne.s32.totalorder %s72, %s73
      %p82 = scmp.eq.s32.totalorder %s27, 0
      %p83 = por %p81, %p82
      %p84 = scmp.ne.s32.totalorder %s72, %s73
      %p85 = scmp.eq.s32.totalorder %s28, 1
      %p86 = por %p84, %p85
      %p88 = scmp.ne.s32.totalorder %s73, %s87
      %p89 = scmp.eq.s32.totalorder %s28, 0
      %p90 = por %p88, %p89
      %s92 = sadd.s32 %s91, 1
      %p95 = scmp.eq.s32.totalorder %s22, 1
      %p96 = scmp.ne.s32.totalorder %s91, %s93
      %p97 = scmp.eq.s32.totalorder %s22, 0
      %p98 = por %p96, %p97
      %p99 = scmp.ne.s32.totalorder %s91, %s93
      %p100 = scmp.eq.s32.totalorder %s27, 1
      %p101 = por %p99, %p100
      %p102 = scmp.ne.s32.totalorder %s93, %s94
      %p103 = scmp.eq.s32.totalorder %s27, 0
      %p104 = por %p102, %p103
      %p105 = scmp.ne.s32.totalorder %s93, %s94
      %p106 = scmp.eq.s32.totalorder %s28, 1
      %p107 = por %p105, %p106
      %p109 = scmp.ne.s32.totalorder %s94, %s108
      %p110 = scmp.eq.s32.totalorder %s28, 0
      %p111 = por %p109, %p110
      %s113 = sadd.s32 %s112, 1
      %p116 = scmp.eq.s32.totalorder %s22, 1
      %p117 = scmp.ne.s32.totalorder %s112, %s114
      %p118 = scmp.eq.s32.totalorder %s22, 0
      %p119 = por %p117, %p118
      %p120 = scmp.ne.s32.totalorder %s112, %s114
      %p121 = scmp.eq.s32.totalorder %s27, 1
      %p122 = por %p120, %p121
      %p123 = scmp.ne.s32.totalorder %s114, %s115
      %p124 = scmp.eq.s32.totalorder %s27, 0
      %p125 = por %p123, %p124
      %p126 = scmp.ne.s32.totalorder %s114, %s115
      %p127 = scmp.eq.s32.totalorder %s28, 1
      %p128 = por %p126, %p127
      %p130 = scmp.ne.s32.totalorder %s115, %s129
      %p131 = scmp.eq.s32.totalorder %s28, 0
      %p132 = por %p130, %p131
      %s134 = sadd.s32 %s133, 1
      %p137 = scmp.eq.s32.totalorder %s22, 1
      %p138 = scmp.ne.s32.totalorder %s133, %s135
      %p139 = scmp.eq.s32.totalorder %s22, 0
      %p140 = por %p138, %p139
      %p141 = scmp.ne.s32.totalorder %s133, %s135
      %p142 = scmp.eq.s32.totalorder %s27, 1
      %p143 = por %p141, %p142
      %p144 = scmp.ne.s32.totalorder %s135, %s136
      %p145 = scmp.eq.s32.totalorder %s27, 0
      %p146 = por %p144, %p145
      %p147 = scmp.ne.s32.totalorder %s135, %s136
      %p148 = scmp.eq.s32.totalorder %s28, 1
      %p149 = por %p147, %p148
      %p151 = scmp.ne.s32.totalorder %s136, %s150
      %p152 = scmp.eq.s32.totalorder %s28, 0
      %p153 = por %p151, %p152
      %s155 = sadd.s32 %s154, 1
      %p158 = scmp.eq.s32.totalorder %s22, 1
      %p159 = scmp.ne.s32.totalorder %s154, %s156
      %p160 = scmp.eq.s32.totalorder %s22, 0
      %p161 = por %p159, %p160
      %p162 = scmp.ne.s32.totalorder %s154, %s156
      %p163 = scmp.eq.s32.totalorder %s27, 1
      %p164 = por %p162, %p163
      %p165 = scmp.ne.s32.totalorder %s156, %s157
      %p166 = scmp.eq.s32.totalorder %s27, 0
      %p167 = por %p165, %p166
      %p168 = scmp.ne.s32.totalorder %s156, %s157
      %p169 = scmp.eq.s32.totalorder %s28, 1
      %p170 = por %p168, %p169
      %p172 = scmp.ne.s32.totalorder %s157, %s171
      %p173 = scmp.eq.s32.totalorder %s28, 0
      %p174 = por %p172, %p173
      %s176 = sadd.s32 %s175, 1
      %p179 = scmp.eq.s32.totalorder %s22, 1
      %p180 = scmp.ne.s32.totalorder %s175, %s177
      %p181 = scmp.eq.s32.totalorder %s22, 0
      %p182 = por %p180, %p181
      %p183 = scmp.ne.s32.totalorder %s175, %s177
      %p184 = scmp.eq.s32.totalorder %s27, 1
      %p185 = por %p183, %p184
      %p186 = scmp.ne.s32.totalorder %s177, %s178
      %p187 = scmp.eq.s32.totalorder %s27, 0
      %p188 = por %p186, %p187
      %p189 = scmp.ne.s32.totalorder %s177, %s178
      %p190 = scmp.eq.s32.totalorder %s28, 1
      %p191 = por %p189, %p190
      %p193 = scmp.ne.s32.totalorder %s178, %s192
      %p194 = scmp.eq.s32.totalorder %s28, 0
      %p195 = por %p193, %p194
      %s196 = ssub.s32 %s29, %s41
      %s197 = ssub.s32 %s30, %s37
      %s198 = sor.u32 %s196, %s197
      %p199 = scmp.eq.s32.totalorder %s198, 0
      %s201 = sadd.s32 %s200, 1
      %s202 = scalar_select %p199, %s200, %s201
      %p205 = pneg %p199
      %p206 = scmp.eq.s32.totalorder %s22, 1
      %p207 = por %p205, %p206
      %p208 = scmp.ne.s32.totalorder %s200, %s203
      %p209 = scmp.eq.s32.totalorder %s22, 0
      %p210 = por %p208, %p209
      %p211 = scmp.ne.s32.totalorder %s200, %s203
      %p212 = scmp.eq.s32.totalorder %s27, 1
      %p213 = por %p211, %p212
      %p214 = scmp.ne.s32.totalorder %s203, %s204
      %p215 = scmp.eq.s32.totalorder %s27, 0
      %p216 = por %p214, %p215
      %p217 = scmp.ne.s32.totalorder %s203, %s204
      %p218 = scmp.eq.s32.totalorder %s28, 1
      %p219 = por %p217, %p218
      %p221 = scmp.ne.s32.totalorder %s204, %s220
      %p222 = scmp.eq.s32.totalorder %s28, 0
      %p223 = por %p221, %p222
      %p224 = scmp.le.s32.totalorder 1, %s22
      %p225 = scmp.lt.s32.totalorder %s22, 3
      %p226 = pnand %p224, %p225
      %p227 = pneg %p226
      // Predicated region
      $region9: #{transformer_forward.16} parent=5 // pred_check
        _
      $region10: #{transformer_forward.16} parent=5 // pred_check_branch
        %229 = sbr.rel (%p226) target = $region12
      $region11: #{transformer_forward.16} parent=5 // pred_region
        %s230 = ssub.s32 %s22, 1
        // Predicated region
        $region13: #{transformer_forward.16} parent=11 // pred_check
          %p231 = pneg %p83
        $region14: #{transformer_forward.16} parent=11 // pred_check_branch
          %233 = sbr.rel (%p231) target = $region16
        $region15: #{transformer_forward.16} parent=11 // pred_region
          %s235 = ssub.s32 256, 256
          %236 = vsyncadd [#allocation6], %s235
          %s237 = sshll.u32 [#allocation5], 4
          %s238 = int_to_ptr.vmem [resolvable:$true] %s237
          %243 = dma.hbm_to_vmem [thread:$0]  %s1, 256, %s238, [#allocation6], 64, 64, 4
        $region16: #{transformer_forward.16} parent=11 // pred_fallthru
          _
        // Predicated region
        $region17: #{transformer_forward.16} parent=11 // pred_check
          %p244 = pneg %p104
        $region18: #{transformer_forward.16} parent=11 // pred_check_branch
          %246 = sbr.rel (%p244) target = $region20
        $region19: #{transformer_forward.16} parent=11 // pred_region
          %s248 = ssub.s32 16, 16
          %249 = vsyncadd [#allocation6], %s248
          %s251 = sshll.u32 [#allocation7], 4
          %s252 = int_to_ptr.vmem [resolvable:$true] %s251
          %254 = dma.hbm_to_vmem [thread:$0]  %s2, 16, %s252, [#allocation6]
        $region20: #{transformer_forward.16} parent=11 // pred_fallthru
          _
        // Predicated region
        $region21: #{transformer_forward.16} parent=11 // pred_check
          %p255 = pneg %p125
        $region22: #{transformer_forward.16} parent=11 // pred_check_branch
          %257 = sbr.rel (%p255) target = $region24
        $region23: #{transformer_forward.16} parent=11 // pred_region
          %s259 = ssub.s32 1024, 1024
          %260 = vsyncadd [#allocation9], %s259
          %s261 = sshll.u32 [#allocation8], 4
          %s262 = int_to_ptr.vmem [resolvable:$true] %s261
          %267 = dma.hbm_to_vmem [thread:$0]  %s3, 1024, %s262, [#allocation9], 64, 64, 4
        $region24: #{transformer_forward.16} parent=11 // pred_fallthru
          _
        // Predicated region
        $region25: #{transformer_forward.16} parent=11 // pred_check
          %p268 = pneg %p146
        $region26: #{transformer_forward.16} parent=11 // pred_check_branch
          %270 = sbr.rel (%p268) target = $region28
        $region27: #{transformer_forward.16} parent=11 // pred_region
          %s272 = ssub.s32 16, 16
          %273 = vsyncadd [#allocation9], %s272
          %s275 = sshll.u32 [#allocation10], 4
          %s276 = int_to_ptr.vmem [resolvable:$true] %s275
          %278 = dma.hbm_to_vmem [thread:$0]  %s4, 16, %s276, [#allocation9]
        $region28: #{transformer_forward.16} parent=11 // pred_fallthru
          _
        // Predicated region
        $region29: #{transformer_forward.16} parent=11 // pred_check
          %p279 = pneg %p167
        $region30: #{transformer_forward.16} parent=11 // pred_check_branch
          %281 = sbr.rel (%p279) target = $region32
        $region31: #{transformer_forward.16} parent=11 // pred_region
          %s283 = ssub.s32 16, 16
          %284 = vsyncadd [#allocation12], %s283
          %s286 = sshll.u32 [#allocation11], 4
          %s287 = int_to_ptr.vmem [resolvable:$true] %s286
          %289 = dma.hbm_to_vmem [thread:$0]  %s5, 16, %s287, [#allocation12]
        $region32: #{transformer_forward.16} parent=11 // pred_fallthru
          _
        // Predicated region
        $region33: #{transformer_forward.16} parent=11 // pred_check
          %p290 = pneg %p188
        $region34: #{transformer_forward.16} parent=11 // pred_check_branch
          %292 = sbr.rel (%p290) target = $region36
        $region35: #{transformer_forward.16} parent=11 // pred_region
          %s294 = ssub.s32 16, 16
          %295 = vsyncadd [#allocation12], %s294
          %s297 = sshll.u32 [#allocation13], 4
          %s298 = int_to_ptr.vmem [resolvable:$true] %s297
          %300 = dma.hbm_to_vmem [thread:$0]  %s6, 16, %s298, [#allocation12]
        $region36: #{transformer_forward.16} parent=11 // pred_fallthru
          _
      $region12: #{transformer_forward.16} parent=5 // pred_fallthru
        _
      %p301 = scmp.lt.s32.totalorder %s22, 2
      // Predicated region
      $region37: #{transformer_forward.16} parent=5 // pred_check
        %p302 = pneg %p301
      $region38: #{transformer_forward.16} parent=5 // pred_check_branch
        %304 = sbr.rel (%p302) target = $region40
      $region39: #{transformer_forward.16} parent=5 // pred_region
        // Predicated region
        $region41: #{transformer_forward.16} parent=39 // pred_check
          %p305 = pneg %p56
        $region42: #{transformer_forward.16} parent=39 // pred_check_branch
          %307 = sbr.rel (%p305) target = $region44
        $region43: #{transformer_forward.16} parent=39 // pred_region
          %s308 = sand.u32 %s46, 1
          %s309 = scalar_lea.sflag [#allocation3], %s308
          %s310 = sand.u32 %s46, 1
          %s311 = smul.addr %s310, 4
          %s312 = scalar_lea.vmem [#allocation2], %s311
          %s314 = ssub.s32 64, 64
          %315 = vsyncadd %s309, %s314
          %s316 = sadd.s32 %s30, %s29
          %s317 = smul.addr %s316, 64
          %s318 = scalar_lea.hbm %s0, %s317
          %s320 = sshll.u32 %s312, 4
          %s321 = int_to_ptr.vmem [resolvable:$true] %s320
          %323 = dma.hbm_to_vmem [thread:$0]  %s318, 64, %s321, %s309
        $region44: #{transformer_forward.16} parent=39 // pred_fallthru
          _
      $region40: #{transformer_forward.16} parent=5 // pred_fallthru
        _
      %p324 = scmp.le.s32.totalorder 1, %s22
      %p325 = scmp.lt.s32.totalorder %s22, 3
      %p326 = pnand %p324, %p325
      %p327 = pneg %p326
      // Predicated region
      $region45: #{transformer_forward.16} parent=5 // pred_check
        _
      $region46: #{transformer_forward.16} parent=5 // pred_check_branch
        %329 = sbr.rel (%p326) target = $region48
      $region47: #{transformer_forward.16} parent=5 // pred_region
        %s330 = ssub.s32 %s22, 1
        %s331 = sand.u32 %s49, 1
        %s332 = scalar_lea.sflag [#allocation3], %s331
        %s333 = sand.u32 %s49, 1
        %s334 = smul.addr %s333, 4
        %s335 = scalar_lea.vmem [#allocation2], %s334
        // Predicated region
        $region49: #{transformer_forward.16} parent=47 // pred_check
          %p336 = pneg %p62
        $region50: #{transformer_forward.16} parent=47 // pred_check_branch
          %338 = sbr.rel (%p336) target = $region52
        $region51: #{transformer_forward.16} parent=47 // pred_region
          %339 = dma.done %s332, 64
        $region52: #{transformer_forward.16} parent=47 // pred_fallthru
          _
        // Predicated region
        $region53: #{transformer_forward.16} parent=47 // pred_check
          %p340 = pneg %p83
        $region54: #{transformer_forward.16} parent=47 // pred_check_branch
          %342 = sbr.rel (%p340) target = $region56
        $region55: #{transformer_forward.16} parent=47 // pred_region
          %343 = dma.done [#allocation6], 256
        $region56: #{transformer_forward.16} parent=47 // pred_fallthru
          _
        // Predicated region
        $region57: #{transformer_forward.16} parent=47 // pred_check
          %p344 = pneg %p104
        $region58: #{transformer_forward.16} parent=47 // pred_check_branch
          %346 = sbr.rel (%p344) target = $region60
        $region59: #{transformer_forward.16} parent=47 // pred_region
          %347 = dma.done [#allocation6], 16
        $region60: #{transformer_forward.16} parent=47 // pred_fallthru
          _
        // Predicated region
        $region61: #{transformer_forward.16} parent=47 // pred_check
          %p348 = pneg %p125
        $region62: #{transformer_forward.16} parent=47 // pred_check_branch
          %350 = sbr.rel (%p348) target = $region64
        $region63: #{transformer_forward.16} parent=47 // pred_region
          %351 = dma.done [#allocation9], 1024
        $region64: #{transformer_forward.16} parent=47 // pred_fallthru
          _
        // Predicated region
        $region65: #{transformer_forward.16} parent=47 // pred_check
          %p352 = pneg %p146
        $region66: #{transformer_forward.16} parent=47 // pred_check_branch
          %354 = sbr.rel (%p352) target = $region68
        $region67: #{transformer_forward.16} parent=47 // pred_region
          %355 = dma.done [#allocation9], 16
        $region68: #{transformer_forward.16} parent=47 // pred_fallthru
          _
        // Predicated region
        $region69: #{transformer_forward.16} parent=47 // pred_check
          %p356 = pneg %p167
        $region70: #{transformer_forward.16} parent=47 // pred_check_branch
          %358 = sbr.rel (%p356) target = $region72
        $region71: #{transformer_forward.16} parent=47 // pred_region
          %359 = dma.done [#allocation12], 16
        $region72: #{transformer_forward.16} parent=47 // pred_fallthru
          _
        // Predicated region
        $region73: #{transformer_forward.16} parent=47 // pred_check
          %p360 = pneg %p188
        $region74: #{transformer_forward.16} parent=47 // pred_check_branch
          %362 = sbr.rel (%p360) target = $region76
        $region75: #{transformer_forward.16} parent=47 // pred_region
          %363 = dma.done [#allocation12], 16
        $region76: #{transformer_forward.16} parent=47 // pred_fallthru
          _
        %s364 = sand.u32 %s49, 1
        %s365 = scalar_lea.sflag [#allocation3], %s364
        %s366 = sand.u32 %s49, 1
        %s367 = smul.addr %s366, 4
        %s368 = scalar_lea.vmem [#allocation2], %s367
        %p369 = pneg %p62
        %p370 = pneg %p59
        %p371 = pneg %p83
        %p372 = pneg %p80
        %p373 = pneg %p104
        %p374 = pneg %p101
        %p375 = pneg %p125
        %p376 = pneg %p122
        %p377 = pneg %p146
        %p378 = pneg %p143
        %p379 = pneg %p167
        %p380 = pneg %p164
        %p381 = pneg %p188
        %p382 = pneg %p185
        %p383 = pneg %p216
        %p384 = pneg %p213
        %s385 = sand.u32 %s203, 1
        %s386 = scalar_lea.sflag [#allocation4], %s385
        %s387 = sand.u32 %s203, 1
        %s388 = smul.addr %s387, 4
        %s389 = scalar_lea.vmem [#allocation14], %s388
        %v391 = vld [vmem:[%s335] sm:$0xf]
        %v392 = vld [vmem:[#allocation5] sm:$0xf]
        %v393 = vld [vmem:[#allocation5 + $0x4] sm:$0xf]
        %v394 = vld [vmem:[#allocation5 + $0x8] sm:$0xf]
        %v395 = vld [vmem:[#allocation5 + $0xc] sm:$0xf]
        %v396 = vld [vmem:[#allocation7] sm:$0x1]
        %v398 = vlaneseq
        %v399 = vshrl.u32 %v398, 7
        %v400 = vsub.s32 0, %v399
        %v401 = vrot.slane %v396, %v400
        %v407 = vunpack.c.l.b16 %v392
        %v408 = vunpack.c.l.b16 %v393
        %v409 = vunpack.c.l.b16 %v394
        %v410 = vunpack.c.l.b16 %v395
        %v411 = vpack.c.b16 %v408, %v407
        %v412 = vpack.c.b16 %v410, %v409
        %vm415 = vcmask 261120
        %v417 = vsel %vm415, %v391, 0
        %419 = vmatprep.subr.bf16.mxu0 0
        %420 = vmatpush1.bf16.msra.mxu0 %v411
        %421 = vmatprep.subr.bf16.mxu0 0
        %422 = vmatpush1.bf16.msra.mxu0 %v412
        %423 = vmatprep.subr.bf16.mxu0 0
        %424 = vmatpush1.bf16.msra.mxu0 0
        %425 = vmatprep.subr.bf16.mxu0 0
        %426 = vmatpush1.bf16.msra.mxu0 0
        %427 = vmatprep.subr.bf16.mxu0 0
        %428 = vmatpush1.bf16.msra.mxu0 0
        %429 = vmatprep.subr.bf16.mxu0 0
        %430 = vmatpush1.bf16.msra.mxu0 0
        %431 = vmatprep.subr.bf16.mxu0 0
        %432 = vmatpush1.bf16.msra.mxu0 0
        %433 = vmatprep.subr.bf16.mxu0 0
        %434 = vmatpush1.bf16.msra.mxu0 0
        %435 = vmatprep.subr.bf16.mxu0 0
        %436 = vmatpush1.bf16.msra.mxu0 0
        %437 = vmatprep.subr.bf16.mxu0 0
        %438 = vmatpush1.bf16.msra.mxu0 0
        %439 = vmatprep.subr.bf16.mxu0 0
        %440 = vmatpush1.bf16.msra.mxu0 0
        %441 = vmatprep.subr.bf16.mxu0 0
        %442 = vmatpush1.bf16.msra.mxu0 0
        %443 = vmatprep.subr.bf16.mxu0 0
        %444 = vmatpush1.bf16.msra.mxu0 0
        %445 = vmatprep.subr.bf16.mxu0 0
        %446 = vmatpush1.bf16.msra.mxu0 0
        %447 = vmatprep.subr.bf16.mxu0 0
        %448 = vmatpush1.bf16.msra.mxu0 0
        %449 = vmatprep.subr.bf16.mxu0 0
        %450 = vmatpush1.bf16.msra.mxu0 0
        %451 = vmatprep.mubr.bf16.mxu0 0
        %452 = vmatmul.mubr.bf16.gmra.mrb[0].mxu0 %v417
        %v453 = vpop.f32.mrb[0].mxu0
        %v454 = vadd.f32 %v401, %v453
        %v455 = vpop.f32.mrb[0].mxu0
        %v456 = vpop.f32.mrb[0].mxu0
        %v457 = vpop.f32.mrb[0].mxu0
        %458 = vdwg.mxu0
        %v459 = vmul.f32 %v454, 0.5
        %v460 = vmul.f32 %v454, 0.044715
        %v461 = vmul.f32 %v460, %v454
        %v462 = vmul.f32 %v461, %v454
        %v463 = vadd.f32 %v454, %v462
        %v464 = vmul.f32 %v463, 0.7978846
        %v465 = vtanh.pop %v464
        %v466 = vadd.f32 %v465, 1.0
        %v467 = vmul.f32 %v459, %v466
        %v468 = vpack.c.bf16 %v467, %v467
        %v469 = vld [vmem:[#allocation8] sm:$0xf]
        %v470 = vld [vmem:[#allocation8 + $0x4] sm:$0xf]
        %v471 = vld [vmem:[#allocation8 + $0x8] sm:$0xf]
        %v472 = vld [vmem:[#allocation8 + $0xc] sm:$0xf]
        %v473 = vld [vmem:[#allocation8 + $0x10] sm:$0xf]
        %v474 = vld [vmem:[#allocation8 + $0x14] sm:$0xf]
        %v475 = vld [vmem:[#allocation8 + $0x18] sm:$0xf]
        %v476 = vld [vmem:[#allocation8 + $0x1c] sm:$0xf]
        %v477 = vld [vmem:[#allocation8 + $0x20] sm:$0xf]
        %v478 = vld [vmem:[#allocation8 + $0x24] sm:$0xf]
        %v479 = vld [vmem:[#allocation8 + $0x28] sm:$0xf]
        %v480 = vld [vmem:[#allocation8 + $0x2c] sm:$0xf]
        %v481 = vld [vmem:[#allocation8 + $0x30] sm:$0xf]
        %v482 = vld [vmem:[#allocation8 + $0x34] sm:$0xf]
        %v483 = vld [vmem:[#allocation8 + $0x38] sm:$0xf]
        %v484 = vld [vmem:[#allocation8 + $0x3c] sm:$0xf]
        %v485 = vld [vmem:[#allocation10] sm:$0x1]
        %v487 = vlaneseq
        %v488 = vshrl.u32 %v487, 7
        %v489 = vsub.s32 0, %v488
        %v490 = vrot.slane %v485, %v489
        %v508 = vunpack.c.l.b16 %v469
        %v509 = vunpack.c.l.b16 %v470
        %v510 = vunpack.c.l.b16 %v471
        %v511 = vunpack.c.l.b16 %v472
        %v512 = vunpack.c.l.b16 %v473
        %v513 = vunpack.c.l.b16 %v474
        %v514 = vunpack.c.l.b16 %v475
        %v515 = vunpack.c.l.b16 %v476
        %v516 = vunpack.c.l.b16 %v477
        %v517 = vunpack.c.l.b16 %v478
        %v518 = vunpack.c.l.b16 %v479
        %v519 = vunpack.c.l.b16 %v480
        %v520 = vunpack.c.l.b16 %v481
        %v521 = vunpack.c.l.b16 %v482
        %v522 = vunpack.c.l.b16 %v483
        %v523 = vunpack.c.l.b16 %v484
        %v524 = vpack.c.b16 %v509, %v508
        %v525 = vpack.c.b16 %v511, %v510
        %v526 = vpack.c.b16 %v513, %v512
        %v527 = vpack.c.b16 %v515, %v514
        %v528 = vpack.c.b16 %v517, %v516
        %v529 = vpack.c.b16 %v519, %v518
        %v530 = vpack.c.b16 %v521, %v520
        %v531 = vpack.c.b16 %v523, %v522
        %540 = vmatprep.subr.bf16.mxu0 0
        %541 = vmatpush1.bf16.msra.mxu0 %v524
        %542 = vmatprep.subr.bf16.mxu0 0
        %543 = vmatpush1.bf16.msra.mxu0 %v525
        %544 = vmatprep.subr.bf16.mxu0 0
        %545 = vmatpush1.bf16.msra.mxu0 %v526
        %546 = vmatprep.subr.bf16.mxu0 0
        %547 = vmatpush1.bf16.msra.mxu0 %v527
        %548 = vmatprep.subr.bf16.mxu0 0
        %549 = vmatpush1.bf16.msra.mxu0 %v528
        %550 = vmatprep.subr.bf16.mxu0 0
        %551 = vmatpush1.bf16.msra.mxu0 %v529
        %552 = vmatprep.subr.bf16.mxu0 0
        %553 = vmatpush1.bf16.msra.mxu0 %v530
        %554 = vmatprep.subr.bf16.mxu0 0
        %555 = vmatpush1.bf16.msra.mxu0 %v531
        %556 = vmatprep.subr.bf16.mxu0 0
        %557 = vmatpush1.bf16.msra.mxu0 0
        %558 = vmatprep.subr.bf16.mxu0 0
        %559 = vmatpush1.bf16.msra.mxu0 0
        %560 = vmatprep.subr.bf16.mxu0 0
        %561 = vmatpush1.bf16.msra.mxu0 0
        %562 = vmatprep.subr.bf16.mxu0 0
        %563 = vmatpush1.bf16.msra.mxu0 0
        %564 = vmatprep.subr.bf16.mxu0 0
        %565 = vmatpush1.bf16.msra.mxu0 0
        %566 = vmatprep.subr.bf16.mxu0 0
        %567 = vmatpush1.bf16.msra.mxu0 0
        %568 = vmatprep.subr.bf16.mxu0 0
        %569 = vmatpush1.bf16.msra.mxu0 0
        %570 = vmatprep.subr.bf16.mxu0 0
        %571 = vmatpush1.bf16.msra.mxu0 0
        %572 = vmatprep.mubr.bf16.mxu0 0
        %573 = vmatmul.mubr.bf16.gmra.mrb[0].mxu0 %v468
        %v574 = vpop.f32.mrb[0].mxu0
        %v575 = vadd.f32 %v490, %v574
        %v576 = vpop.f32.mrb[0].mxu0
        %v577 = vpop.f32.mrb[0].mxu0
        %v578 = vpop.f32.mrb[0].mxu0
        %579 = vdwg.mxu0
        %v580 = vunpack.c.l.bf16 %v391
        %v581 = vadd.f32 %v575, %v580
        %v582 = vsel %vm415, %v581, 0.0
        %583 = vadd.xlane.f32.xlu0 %v582
        %v584 = vpop.xlane.xlu0 %583
        %v585 = vrcp.pop 32.0
        %v586 = vmul.f32 %v584, %v585
        %v587 = vsub.f32 %v581, %v586
        %v588 = vmul.f32 %v587, %v587
        %v589 = vsel %vm415, %v588, 0.0
        %590 = vadd.xlane.f32.xlu0 %v589
        %v591 = vpop.xlane.xlu0 %590
        %v592 = vmul.f32 %v591, %v585
        %v593 = vadd.f32 %v592, 1e-12
        %v594 = vrsqrt.pop %v593
        %v595 = vmul.f32 %v587, %v594
        %v596 = vld [vmem:[#allocation11] sm:$0x1]
        %v598 = vlaneseq
        %v599 = vshrl.u32 %v598, 7
        %v600 = vsub.s32 0, %v599
        %v601 = vrot.slane %v596, %v600
        %v603 = vmul.f32 %v595, %v601
        %v604 = vld [vmem:[#allocation13] sm:$0x1]
        %v606 = vlaneseq
        %v607 = vshrl.u32 %v606, 7
        %v608 = vsub.s32 0, %v607
        %v609 = vrot.slane %v604, %v608
        %v611 = vadd.f32 %v603, %v609
        %v612 = vpack.c.bf16 %v611, %v611
        %vm613 = vcmask 257024
        %614 = vst.msk [vmem:[%s389] sm:$0xf] %vm613, %v612
        %s615 = sand.u32 %s203, 1
        %s616 = scalar_lea.sflag [#allocation4], %s615
        %s617 = sand.u32 %s203, 1
        %s618 = smul.addr %s617, 4
        %s619 = scalar_lea.vmem [#allocation14], %s618
        // Predicated region
        $region77: #{transformer_forward.16} parent=47 // pred_check
          %p620 = pneg %p213
        $region78: #{transformer_forward.16} parent=47 // pred_check_branch
          %622 = sbr.rel (%p620) target = $region80
        $region79: #{transformer_forward.16} parent=47 // pred_region
          %s624 = ssub.s32 64, 64
          %625 = vsyncadd %s616, %s624
          %s626 = sadd.s32 %s32, %s31
          %s627 = smul.addr %s626, 64
          %s628 = scalar_lea.hbm %s7, %s627
          %s630 = sshll.u32 %s619, 4
          %s631 = int_to_ptr.vmem [resolvable:$true] %s630
          %633 = dma.vmem_to_hbm [thread:$0]  %s631, 64, %s628, %s616
        $region80: #{transformer_forward.16} parent=47 // pred_fallthru
          _
      $region48: #{transformer_forward.16} parent=5 // pred_fallthru
        _
      %p634 = scmp.le.s32.totalorder 2, %s22
      // Predicated region
      $region81: #{transformer_forward.16} parent=5 // pred_check
        %p635 = pneg %p634
      $region82: #{transformer_forward.16} parent=5 // pred_check_branch
        %637 = sbr.rel (%p635) target = $region84
      $region83: #{transformer_forward.16} parent=5 // pred_region
        %s638 = ssub.s32 %s22, 2
        // Predicated region
        $region85: #{transformer_forward.16} parent=83 // pred_check
          %p639 = pneg %p219
        $region86: #{transformer_forward.16} parent=83 // pred_check_branch
          %641 = sbr.rel (%p639) target = $region88
        $region87: #{transformer_forward.16} parent=83 // pred_region
          %s642 = sand.u32 %s204, 1
          %s643 = scalar_lea.sflag [#allocation4], %s642
          %s644 = sand.u32 %s204, 1
          %s645 = smul.addr %s644, 4
          %s646 = scalar_lea.vmem [#allocation14], %s645
          %647 = dma.done %s643, 64
        $region88: #{transformer_forward.16} parent=83 // pred_fallthru
          _
      $region84: #{transformer_forward.16} parent=5 // pred_fallthru
        _
    $region6: #{transformer_forward.16} parent=1 // loop_footer
      %s26 = sadd.s32 1, %s22
    $region7: #{transformer_forward.16} parent=1 // loop_footer_branch
      %21 = sbr.rel target = $region3
    $region8: #{transformer_forward.16} parent=1 // loop_exit
      _
    %648 = vsyncpa [#allocation3], 1
    %s649 = scalar_lea.sflag [#allocation3], 1
    %650 = vsyncpa %s649, 1
    %651 = vsyncpa [#allocation6], 1
    %652 = vsyncpa [#allocation9], 1
    %653 = vsyncpa [#allocation12], 1
    %654 = vsyncpa [#allocation4], 1
    %s655 = scalar_lea.sflag [#allocation4], 1
    %656 = vsyncpa %s655, 1

</llo_original>
